<compile_context>
chip_gen: v6e
topology: v6e:2x2x1
jax: 0.10.0
libtpu: 0.0.40
codegen_flags: <defaults>
</compile_context>

<pallas_src>
import functools

import jax
import jax.numpy as jnp
import numpy as np
from jax.experimental import pallas as pl
from jax.experimental.pallas import tpu as pltpu


# ------------------------------ fused layer kernel ------------------------------


def _encoder_layer_kernel(
    x_ref, amask_ref, alibi_ref, valid_ref,
    g1_ref, bt1_ref,
    wq_ref, wk_ref, wv_ref, wo_ref, bo_ref,
    wpre_ref, wpost_ref,
    g2_ref, bt2_ref,
    w1_ref, cb1_ref, w2_ref, cb2_ref,
    o_ref,
    *, H, D, S, E, hid, K,
):
    f32 = jnp.float32

    def layer_norm(v, g, b):
        mu = jnp.mean(v, axis=-1, keepdims=True)
        var = jnp.mean(jnp.square(v - mu), axis=-1, keepdims=True)
        return (v - mu) * jax.lax.rsqrt(var + 1e-5) * g + b

    xb = x_ref[0]                                    # (S, E)

    # ---------------- attention branch ----------------
    nx = layer_norm(xb, g1_ref[...], bt1_ref[...])

    wpre = wpre_ref[...]                             # (H, H) pre-softmax talking heads
    wpost = wpost_ref[...]                           # (H, H) post-softmax talking heads
    amask = amask_ref[0]                             # (S, S), nonzero == attend
    scale = 1.0 / float(np.sqrt(E))                  # torch divides by sqrt(embed_size)

    energies = []
    vals = []
    for h in range(H):
        qh = jnp.dot(nx, wq_ref[h], preferred_element_type=f32)   # (S, D)
        kh = jnp.dot(nx, wk_ref[h], preferred_element_type=f32)   # (S, D)
        vals.append(jnp.dot(nx, wv_ref[h], preferred_element_type=f32))
        eh = jax.lax.dot_general(qh, kh, (((1,), (1,)), ((), ())),
                                 preferred_element_type=f32)      # (S, S) = q k^T
        energies.append(eh + alibi_ref[h])                        # ALiBi bias

    # pre-softmax talking heads -> mask -> scaled softmax
    att = []
    for g in range(H):
        eg = jnp.zeros((S, S), f32)
        for h in range(H):
            eg = eg + wpre[g:g + 1, h:h + 1] * energies[h]
        eg = jnp.where(amask == 0.0, f32(-1e4), eg) * scale
        eg = eg - jnp.max(eg, axis=-1, keepdims=True)
        pg = jnp.exp(eg)
        att.append(pg / jnp.sum(pg, axis=-1, keepdims=True))

    # post-softmax talking heads, value aggregation, output projection (folded per head)
    attn_out = jnp.zeros((S, E), f32)
    for g in range(H):
        ag = jnp.zeros((S, S), f32)
        for h in range(H):
            ag = ag + wpost[g:g + 1, h:h + 1] * att[h]
        og = jnp.dot(ag, vals[g], preferred_element_type=f32)       # (S, D)
        attn_out = attn_out + jnp.dot(og, wo_ref[g],
                                      preferred_element_type=f32)   # (S, E)
    attn_out = attn_out + bo_ref[...]
    x1 = xb + attn_out                               # residual (Dropout == identity)

    # ---------------- SwiGLU conv FFN branch ----------------
    nx2 = layer_norm(x1, g2_ref[...], bt2_ref[...])
    vcol = valid_ref[0]                              # (S, 1), 1.0 == valid timestep
    pad_left = (K - 1) // 2

    # shift matrices: (shift_mats[off] @ a)[t] == a[t + off], zero outside [0, S)
    rows = jax.lax.broadcasted_iota(jnp.int32, (S, S), 0)
    cols = jax.lax.broadcasted_iota(jnp.int32, (S, S), 1)
    shift_mats = {
        off: jnp.where(cols == rows + off, f32(1.0), f32(0.0))
        for off in range(-pad_left, K - pad_left) if off != 0
    }

    def conv1d_same(a, w_taps_ref, b_row, cout):
        acc = jnp.zeros((S, cout), f32)
        for kk in range(K):
            off = kk - pad_left
            shifted = a if off == 0 else jnp.dot(
                shift_mats[off], a, preferred_element_type=f32)
            acc = acc + jnp.dot(shifted, w_taps_ref[kk],
                                preferred_element_type=f32)
        return acc + b_row

    xm = nx2 * vcol                                  # masked_fill(pad, 0) before conv1
    h12 = conv1d_same(xm, w1_ref, cb1_ref[...], 2 * hid)   # (S, 2*hid)
    x1g = h12[:, :hid]
    x2g = h12[:, hid:]
    hidden = (x1g * (1.0 / (1.0 + jnp.exp(-x1g)))) * x2g   # SwiGLU: silu(x1) * x2
    hidden = hidden * vcol                                 # masked_fill(pad, 0) again
    ff = conv1d_same(hidden, w2_ref, cb2_ref[...], E)      # (S, E)

    o_ref[0] = x1 + ff                               # residual


def _encoder_layer_call(x, amask_f, valid_col, kp, *, H, hid, K):
    B, S, E = x.shape
    D = E // H
    kernel = functools.partial(_encoder_layer_kernel,
                               H=H, D=D, S=S, E=E, hid=hid, K=K)
    per_b3 = lambda i: (i, 0, 0)
    bcast3 = lambda i: (0, 0, 0)
    bcast2 = lambda i: (0, 0)
    return pl.pallas_call(
        kernel,
        out_shape=jax.ShapeDtypeStruct((B, S, E), jnp.float32),
        grid=(B,),
        in_specs=[
            pl.BlockSpec((1, S, E), per_b3),            # x
            pl.BlockSpec((1, S, S), per_b3),            # attention mask (per batch)
            pl.BlockSpec((H, S, S), bcast3),            # ALiBi bias (per layer)
            pl.BlockSpec((1, S, 1), per_b3),            # conv valid mask
            pl.BlockSpec((1, E), bcast2),               # LN1 gamma
            pl.BlockSpec((1, E), bcast2),               # LN1 beta
            pl.BlockSpec((H, E, D), bcast3),            # per-head Q weight
            pl.BlockSpec((H, E, D), bcast3),            # per-head K weight
            pl.BlockSpec((H, E, D), bcast3),            # per-head V weight
            pl.BlockSpec((H, D, E), bcast3),            # fc_out weight (per-head rows)
            pl.BlockSpec((1, E), bcast2),               # fc_out bias
            pl.BlockSpec((H, H), bcast2),               # pre-softmax talking heads
            pl.BlockSpec((H, H), bcast2),               # post-softmax talking heads
            pl.BlockSpec((1, E), bcast2),               # LN2 gamma
            pl.BlockSpec((1, E), bcast2),               # LN2 beta
            pl.BlockSpec((K, E, 2 * hid), bcast3),      # conv1 weight (tap, in, out)
            pl.BlockSpec((1, 2 * hid), bcast2),         # conv1 bias
            pl.BlockSpec((K, hid, E), bcast3),          # conv2 weight (tap, in, out)
            pl.BlockSpec((1, E), bcast2),               # conv2 bias
        ],
        out_specs=pl.BlockSpec((1, S, E), per_b3),
        compiler_params=pltpu.CompilerParams(
            dimension_semantics=("parallel",)),
    )(x, amask_f, kp["alibi"], valid_col,
      kp["g1"], kp["bt1"],
      kp["wq_hd"], kp["wk_hd"], kp["wv_hd"], kp["wo_hd"], kp["bo_row"],
      kp["wpre"], kp["wpost"],
      kp["g2"], kp["bt2"],
      kp["w1t"], kp["cb1_row"], kp["w2t"], kp["cb2_row"])


def transformer_encoder_forward(x, pad_mask, kernel_layers, *, H, hid, K):
    """x: (B, S, E) f32; pad_mask: (B, S) bool, True == padded."""
    B, S, _ = x.shape
    valid = (~pad_mask).astype(jnp.float32)                        # (B, S)
    amask_f = jnp.broadcast_to(valid[:, None, :], (B, S, S))       # key-padding mask
    valid_col = valid[:, :, None]                                  # (B, S, 1)
    for kp in kernel_layers:
        x = _encoder_layer_call(x, amask_f, valid_col, kp, H=H, hid=hid, K=K)
    return x


# ------------------------------ parameters ------------------------------


def init_encoder_params(key, *, E, H, num_layers, forward_expansion, S,
                        alibi_alpha=1.0, start_i=0, K=3):
    """Deterministic parameters in PyTorch layouts (Linear: (out,in); Conv1d: (out,in,K))."""
    D = E // H
    hid = forward_expansion * E
    t = np.arange(S)
    dist = np.abs(t[:, None] - t[None, :]).astype(np.float32)      # |q - k|
    layers = []
    for li in range(num_layers):
        key, *ks = jax.random.split(key, 16)

        def uni(kk, shape, fan_in):
            b = 1.0 / np.sqrt(fan_in)
            return jax.random.uniform(kk, shape, jnp.float32, -b, b)

        p = {
            "g1": 1.0 + 0.1 * jax.random.normal(ks[0], (E,), jnp.float32),
            "bt1": 0.1 * jax.random.normal(ks[1], (E,), jnp.float32),
            "g2": 1.0 + 0.1 * jax.random.normal(ks[2], (E,), jnp.float32),
            "bt2": 0.1 * jax.random.normal(ks[3], (E,), jnp.float32),
            "wq": uni(ks[4], (D, D), D),
            "wk": uni(ks[5], (D, D), D),
            "wv": uni(ks[6], (D, D), D),
            "wo": uni(ks[7], (E, E), E),
            "bo": uni(ks[8], (E,), E),
            "wpre": uni(ks[9], (H, H), H),
            "wpost": uni(ks[10], (H, H), H),
            "cw1": uni(ks[11], (2 * hid, E, K), E * K),
            "cb1": uni(ks[12], (2 * hid,), E * K),
            "cw2": uni(ks[13], (E, hid, K), hid * K),
            "cb2": uni(ks[14], (E,), hid * K),
        }
        # per-layer ALiBi slopes: start_i_increment = start_i + layer_idx * heads
        start_inc = start_i + li * H
        slopes = np.array([2.0 ** (-alibi_alpha * (i + start_inc))
                           for i in range(1, H + 1)], np.float32)
        p["alibi"] = jnp.asarray(-dist[None, :, :] * slopes[:, None, None])  # (H,S,S)
        layers.append(p)
    return layers


def pack_kernel_params(p, *, H):
    """Repack torch-layout parameters into kernel-friendly layouts."""
    D = p["wq"].shape[0]
    E = p["wo"].shape[0]

    def per_head_in(w):  # (D,D) shared-head Linear weight -> (H, E, D) column blocks
        stack = jnp.zeros((H, E, D), jnp.float32)
        for h in range(H):
            stack = stack.at[h, h * D:(h + 1) * D, :].set(w.T)
        return stack

    return {
        "g1": p["g1"][None, :], "bt1": p["bt1"][None, :],
        "g2": p["g2"][None, :], "bt2": p["bt2"][None, :],
        "wq_hd": per_head_in(p["wq"]),
        "wk_hd": per_head_in(p["wk"]),
        "wv_hd": per_head_in(p["wv"]),
        "wo_hd": p["wo"].T.reshape(H, D, E),
        "bo_row": p["bo"][None, :],
        "wpre": p["wpre"], "wpost": p["wpost"],
        "w1t": jnp.transpose(p["cw1"], (2, 1, 0)),     # (K, in, out)
        "cb1_row": p["cb1"][None, :],
        "w2t": jnp.transpose(p["cw2"], (2, 1, 0)),     # (K, in, out)
        "cb2_row": p["cb2"][None, :],
        "alibi": p["alibi"],
    }


# ------------------------- plain-JAX reference (torch transcription) -------------------------


def transformer_encoder_ref(x, pad_mask, layers, *, H, hid, K):
    B, S, E = x.shape
    D = E // H
    valid = (~pad_mask).astype(jnp.float32)
    mask4 = valid[:, None, None, :]                  # (B,1,1,S), nonzero == attend
    vcol = valid[:, :, None]                         # (B,S,1)

    def ln(v, g, b):
        mu = jnp.mean(v, -1, keepdims=True)
        var = jnp.mean((v - mu) ** 2, -1, keepdims=True)
        return (v - mu) / jnp.sqrt(var + 1e-5) * g + b

    pad_left = (K - 1) // 2
    pad_right = K - 1 - pad_left
    for p in layers:
        nx = ln(x, p["g1"], p["bt1"])
        nxh = nx.reshape(B, S, H, D)
        q = jnp.einsum("bshd,od->bsho", nxh, p["wq"])
        k = jnp.einsum("bshd,od->bsho", nxh, p["wk"])
        v = jnp.einsum("bshd,od->bsho", nxh, p["wv"])
        energy = jnp.einsum("bqhd,bkhd->bhqk", q, k) + p["alibi"][None]
        energy = jnp.einsum("gh,bhqk->bgqk", p["wpre"], energy)
        energy = jnp.where(mask4 == 0.0, -1e4, energy)
        att = jax.nn.softmax(energy / np.sqrt(E), axis=-1)
        att = jnp.einsum("gh,bhqk->bgqk", p["wpost"], att)
        out = jnp.einsum("bhqk,bkhd->bqhd", att, v).reshape(B, S, E)
        x = x + out @ p["wo"].T + p["bo"]

        nx2 = ln(x, p["g2"], p["bt2"])
        xm = nx2 * vcol
        xp = jnp.pad(xm, ((0, 0), (pad_left, pad_right), (0, 0)))
        w1t = jnp.transpose(p["cw1"], (2, 1, 0))
        h12 = sum(jnp.einsum("bsc,cd->bsd", xp[:, kk:kk + S, :], w1t[kk])
                  for kk in range(K)) + p["cb1"]
        x1g, x2g = h12[..., :hid], h12[..., hid:]
        hidden = jax.nn.silu(x1g) * x2g
        hidden = hidden * vcol
        hp = jnp.pad(hidden, ((0, 0), (pad_left, pad_right), (0, 0)))
        w2t = jnp.transpose(p["cw2"], (2, 1, 0))
        ff = sum(jnp.einsum("bsc,cd->bsd", hp[:, kk:kk + S, :], w2t[kk])
                 for kk in range(K)) + p["cb2"]
        x = x + ff
    return x


# ------------------------------------ main ------------------------------------


if __name__ == "__main__":
    key = jax.random.PRNGKey(0)
    kx, kparam = jax.random.split(key)

    B, S, E, H = 2, 16, 32, 4
    num_layers, forward_expansion, K = 2, 4, 3
    hid = forward_expansion * E          # 128 -> lane-dense SwiGLU hidden

    x = jax.random.normal(kx, (B, S, E), jnp.float32)
    pad_mask = jnp.zeros((B, S), dtype=bool).at[1, S - 3:].set(True)   # last 3 steps of batch 1 padded

    layers = init_encoder_params(kparam, E=E, H=H, num_layers=num_layers,
                                 forward_expansion=forward_expansion, S=S, K=K)
    kernel_layers = [pack_kernel_params(p, H=H) for p in layers]

    fwd = jax.jit(functools.partial(transformer_encoder_forward, H=H, hid=hid, K=K))
    out = jax.block_until_ready(fwd(x, pad_mask, kernel_layers))
    assert out.shape == (B, S, E)

    ref = transformer_encoder_ref(x, pad_mask, layers, H=H, hid=hid, K=K)
    np.testing.assert_allclose(np.asarray(out), np.asarray(ref), rtol=2e-3, atol=2e-3)

    print("KERNEL_OK")
</pallas_src>

<mosaic_0001>
module attributes {stable_mosaic.version = 11 : i64} {
  func.func @_encoder_layer_kernel(%arg0: i32, %arg1: memref<1x16x32xf32, #tpu.memory_space<vmem>>, %arg2: memref<1x16x16xf32, #tpu.memory_space<vmem>>, %arg3: memref<4x16x16xf32, #tpu.memory_space<vmem>>, %arg4: memref<1x16x1xf32, #tpu.memory_space<vmem>>, %arg5: memref<1x32xf32, #tpu.memory_space<vmem>>, %arg6: memref<1x32xf32, #tpu.memory_space<vmem>>, %arg7: memref<4x32x8xf32, #tpu.memory_space<vmem>>, %arg8: memref<4x32x8xf32, #tpu.memory_space<vmem>>, %arg9: memref<4x32x8xf32, #tpu.memory_space<vmem>>, %arg10: memref<4x8x32xf32, #tpu.memory_space<vmem>>, %arg11: memref<1x32xf32, #tpu.memory_space<vmem>>, %arg12: memref<4x4xf32, #tpu.memory_space<vmem>>, %arg13: memref<4x4xf32, #tpu.memory_space<vmem>>, %arg14: memref<1x32xf32, #tpu.memory_space<vmem>>, %arg15: memref<1x32xf32, #tpu.memory_space<vmem>>, %arg16: memref<3x32x256xf32, #tpu.memory_space<vmem>>, %arg17: memref<1x256xf32, #tpu.memory_space<vmem>>, %arg18: memref<3x128x32xf32, #tpu.memory_space<vmem>>, %arg19: memref<1x32xf32, #tpu.memory_space<vmem>>, %arg20: memref<1x16x32xf32, #tpu.memory_space<vmem>>) attributes {dimension_semantics = [#tpu.dimension_semantics<parallel>], iteration_bounds = array<i64: 2>, scalar_prefetch = 0 : i64, scratch_operands = 0 : i64, tpu.core_type = #tpu.core_type<tc>, window_params = [{transform_indices = @transform_0, window_bounds = array<i64: 1, 16, 32>}, {transform_indices = @transform_1, window_bounds = array<i64: 1, 16, 16>}, {pipeline_mode = #tpu.pipeline_mode<synchronous>, transform_indices = @transform_2, window_bounds = array<i64: 4, 16, 16>}, {transform_indices = @transform_3, window_bounds = array<i64: 1, 16, 1>}, {pipeline_mode = #tpu.pipeline_mode<synchronous>, transform_indices = @transform_4, window_bounds = array<i64: 1, 32>}, {pipeline_mode = #tpu.pipeline_mode<synchronous>, transform_indices = @transform_5, window_bounds = array<i64: 1, 32>}, {pipeline_mode = #tpu.pipeline_mode<synchronous>, transform_indices = @transform_6, window_bounds = array<i64: 4, 32, 8>}, {pipeline_mode = #tpu.pipeline_mode<synchronous>, transform_indices = @transform_7, window_bounds = array<i64: 4, 32, 8>}, {pipeline_mode = #tpu.pipeline_mode<synchronous>, transform_indices = @transform_8, window_bounds = array<i64: 4, 32, 8>}, {pipeline_mode = #tpu.pipeline_mode<synchronous>, transform_indices = @transform_9, window_bounds = array<i64: 4, 8, 32>}, {pipeline_mode = #tpu.pipeline_mode<synchronous>, transform_indices = @transform_10, window_bounds = array<i64: 1, 32>}, {pipeline_mode = #tpu.pipeline_mode<synchronous>, transform_indices = @transform_11, window_bounds = array<i64: 4, 4>}, {pipeline_mode = #tpu.pipeline_mode<synchronous>, transform_indices = @transform_12, window_bounds = array<i64: 4, 4>}, {pipeline_mode = #tpu.pipeline_mode<synchronous>, transform_indices = @transform_13, window_bounds = array<i64: 1, 32>}, {pipeline_mode = #tpu.pipeline_mode<synchronous>, transform_indices = @transform_14, window_bounds = array<i64: 1, 32>}, {pipeline_mode = #tpu.pipeline_mode<synchronous>, transform_indices = @transform_15, window_bounds = array<i64: 3, 32, 256>}, {pipeline_mode = #tpu.pipeline_mode<synchronous>, transform_indices = @transform_16, window_bounds = array<i64: 1, 256>}, {pipeline_mode = #tpu.pipeline_mode<synchronous>, transform_indices = @transform_17, window_bounds = array<i64: 3, 128, 32>}, {pipeline_mode = #tpu.pipeline_mode<synchronous>, transform_indices = @transform_18, window_bounds = array<i64: 1, 32>}, {transform_indices = @transform_19, window_bounds = array<i64: 1, 16, 32>}]} {
    %c0 = arith.constant 0 : index
    %c0_0 = arith.constant 0 : index
    %c0_1 = arith.constant 0 : index
    %0 = vector.load %arg1[%c0, %c0_0, %c0_1] : memref<1x16x32xf32, #tpu.memory_space<vmem>>, vector<1x16x32xf32>
    %1 = vector.shape_cast %0 : vector<1x16x32xf32> to vector<16x32xf32>
    %c0_2 = arith.constant 0 : index
    %c0_3 = arith.constant 0 : index
    %2 = vector.load %arg5[%c0_2, %c0_3] : memref<1x32xf32, #tpu.memory_space<vmem>>, vector<1x32xf32>
    %c0_4 = arith.constant 0 : index
    %c0_5 = arith.constant 0 : index
    %3 = vector.load %arg6[%c0_4, %c0_5] : memref<1x32xf32, #tpu.memory_space<vmem>>, vector<1x32xf32>
    %cst = arith.constant dense<0.000000e+00> : vector<16xf32>
    %4 = vector.multi_reduction <add>, %1, %cst [1] : vector<16x32xf32> to vector<16xf32>
    %5 = vector.shape_cast %4 : vector<16xf32> to vector<16x1xf32>
    %cst_6 = arith.constant 3.200000e+01 : f32
    %6 = vector.broadcast %cst_6 : f32 to vector<16x1xf32>
    %7 = arith.divf %5, %6 : vector<16x1xf32>
    %8 = vector.broadcast %7 : vector<16x1xf32> to vector<16x32xf32>
    %9 = arith.subf %1, %8 : vector<16x32xf32>
    %10 = arith.mulf %9, %9 : vector<16x32xf32>
    %cst_7 = arith.constant dense<0.000000e+00> : vector<16xf32>
    %11 = vector.multi_reduction <add>, %10, %cst_7 [1] : vector<16x32xf32> to vector<16xf32>
    %12 = vector.shape_cast %11 : vector<16xf32> to vector<16x1xf32>
    %cst_8 = arith.constant 3.200000e+01 : f32
    %13 = vector.broadcast %cst_8 : f32 to vector<16x1xf32>
    %14 = arith.divf %12, %13 : vector<16x1xf32>
    %15 = vector.broadcast %7 : vector<16x1xf32> to vector<16x32xf32>
    %16 = arith.subf %1, %15 : vector<16x32xf32>
    %cst_9 = arith.constant 9.99999974E-6 : f32
    %17 = vector.broadcast %cst_9 : f32 to vector<16x1xf32>
    %18 = arith.addf %14, %17 : vector<16x1xf32>
    %19 = math.rsqrt %18 : vector<16x1xf32>
    %20 = vector.broadcast %19 : vector<16x1xf32> to vector<16x32xf32>
    %21 = arith.mulf %16, %20 : vector<16x32xf32>
    %22 = vector.broadcast %2 : vector<1x32xf32> to vector<16x32xf32>
    %23 = arith.mulf %21, %22 : vector<16x32xf32>
    %24 = vector.broadcast %3 : vector<1x32xf32> to vector<16x32xf32>
    %25 = arith.addf %23, %24 : vector<16x32xf32>
    %c0_10 = arith.constant 0 : index
    %c0_11 = arith.constant 0 : index
    %26 = vector.load %arg12[%c0_10, %c0_11] : memref<4x4xf32, #tpu.memory_space<vmem>>, vector<4x4xf32>
    %c0_12 = arith.constant 0 : index
    %c0_13 = arith.constant 0 : index
    %27 = vector.load %arg13[%c0_12, %c0_13] : memref<4x4xf32, #tpu.memory_space<vmem>>, vector<4x4xf32>
    %c0_14 = arith.constant 0 : index
    %c0_15 = arith.constant 0 : index
    %c0_16 = arith.constant 0 : index
    %28 = vector.load %arg2[%c0_14, %c0_15, %c0_16] : memref<1x16x16xf32, #tpu.memory_space<vmem>>, vector<1x16x16xf32>
    %29 = vector.shape_cast %28 : vector<1x16x16xf32> to vector<16x16xf32>
    %c0_17 = arith.constant 0 : index
    %c0_18 = arith.constant 0 : index
    %c0_19 = arith.constant 0 : index
    %30 = vector.load %arg7[%c0_17, %c0_18, %c0_19] : memref<4x32x8xf32, #tpu.memory_space<vmem>>, vector<1x32x8xf32>
    %31 = vector.shape_cast %30 : vector<1x32x8xf32> to vector<32x8xf32>
    %cst_20 = arith.constant dense<0.000000e+00> : vector<16x8xf32>
    %32 = tpu.matmul %25, %31, %cst_20 {dimension_numbers = #tpu.dot_dimension_numbers<[1], [0], [0], [1], [0, 0, 1, 1], [], []>} : vector<16x32xf32>, vector<32x8xf32>, vector<16x8xf32> -> vector<16x8xf32>
    %c0_21 = arith.constant 0 : index
    %c0_22 = arith.constant 0 : index
    %c0_23 = arith.constant 0 : index
    %33 = vector.load %arg8[%c0_21, %c0_22, %c0_23] : memref<4x32x8xf32, #tpu.memory_space<vmem>>, vector<1x32x8xf32>
    %34 = vector.shape_cast %33 : vector<1x32x8xf32> to vector<32x8xf32>
    %cst_24 = arith.constant dense<0.000000e+00> : vector<16x8xf32>
    %35 = tpu.matmul %25, %34, %cst_24 {dimension_numbers = #tpu.dot_dimension_numbers<[1], [0], [0], [1], [0, 0, 1, 1], [], []>} : vector<16x32xf32>, vector<32x8xf32>, vector<16x8xf32> -> vector<16x8xf32>
    %c0_25 = arith.constant 0 : index
    %c0_26 = arith.constant 0 : index
    %c0_27 = arith.constant 0 : index
    %36 = vector.load %arg9[%c0_25, %c0_26, %c0_27] : memref<4x32x8xf32, #tpu.memory_space<vmem>>, vector<1x32x8xf32>
    %37 = vector.shape_cast %36 : vector<1x32x8xf32> to vector<32x8xf32>
    %cst_28 = arith.constant dense<0.000000e+00> : vector<16x8xf32>
    %38 = tpu.matmul %25, %37, %cst_28 {dimension_numbers = #tpu.dot_dimension_numbers<[1], [0], [0], [1], [0, 0, 1, 1], [], []>} : vector<16x32xf32>, vector<32x8xf32>, vector<16x8xf32> -> vector<16x8xf32>
    %cst_29 = arith.constant dense<0.000000e+00> : vector<16x16xf32>
    %39 = tpu.matmul %32, %35, %cst_29 {dimension_numbers = #tpu.dot_dimension_numbers<[1], [1], [0], [0], [0, 0, 1, 0], [], []>} : vector<16x8xf32>, vector<16x8xf32>, vector<16x16xf32> -> vector<16x16xf32>
    %c0_30 = arith.constant 0 : index
    %c0_31 = arith.constant 0 : index
    %c0_32 = arith.constant 0 : index
    %40 = vector.load %arg3[%c0_30, %c0_31, %c0_32] : memref<4x16x16xf32, #tpu.memory_space<vmem>>, vector<1x16x16xf32>
    %41 = vector.shape_cast %40 : vector<1x16x16xf32> to vector<16x16xf32>
    %42 = arith.addf %39, %41 : vector<16x16xf32>
    %c1 = arith.constant 1 : index
    %c0_33 = arith.constant 0 : index
    %c0_34 = arith.constant 0 : index
    %43 = vector.load %arg7[%c1, %c0_33, %c0_34] : memref<4x32x8xf32, #tpu.memory_space<vmem>>, vector<1x32x8xf32>
    %44 = vector.shape_cast %43 : vector<1x32x8xf32> to vector<32x8xf32>
    %cst_35 = arith.constant dense<0.000000e+00> : vector<16x8xf32>
    %45 = tpu.matmul %25, %44, %cst_35 {dimension_numbers = #tpu.dot_dimension_numbers<[1], [0], [0], [1], [0, 0, 1, 1], [], []>} : vector<16x32xf32>, vector<32x8xf32>, vector<16x8xf32> -> vector<16x8xf32>
    %c1_36 = arith.constant 1 : index
    %c0_37 = arith.constant 0 : index
    %c0_38 = arith.constant 0 : index
    %46 = vector.load %arg8[%c1_36, %c0_37, %c0_38] : memref<4x32x8xf32, #tpu.memory_space<vmem>>, vector<1x32x8xf32>
    %47 = vector.shape_cast %46 : vector<1x32x8xf32> to vector<32x8xf32>
    %cst_39 = arith.constant dense<0.000000e+00> : vector<16x8xf32>
    %48 = tpu.matmul %25, %47, %cst_39 {dimension_numbers = #tpu.dot_dimension_numbers<[1], [0], [0], [1], [0, 0, 1, 1], [], []>} : vector<16x32xf32>, vector<32x8xf32>, vector<16x8xf32> -> vector<16x8xf32>
    %c1_40 = arith.constant 1 : index
    %c0_41 = arith.constant 0 : index
    %c0_42 = arith.constant 0 : index
    %49 = vector.load %arg9[%c1_40, %c0_41, %c0_42] : memref<4x32x8xf32, #tpu.memory_space<vmem>>, vector<1x32x8xf32>
    %50 = vector.shape_cast %49 : vector<1x32x8xf32> to vector<32x8xf32>
    %cst_43 = arith.constant dense<0.000000e+00> : vector<16x8xf32>
    %51 = tpu.matmul %25, %50, %cst_43 {dimension_numbers = #tpu.dot_dimension_numbers<[1], [0], [0], [1], [0, 0, 1, 1], [], []>} : vector<16x32xf32>, vector<32x8xf32>, vector<16x8xf32> -> vector<16x8xf32>
    %cst_44 = arith.constant dense<0.000000e+00> : vector<16x16xf32>
    %52 = tpu.matmul %45, %48, %cst_44 {dimension_numbers = #tpu.dot_dimension_numbers<[1], [1], [0], [0], [0, 0, 1, 0], [], []>} : vector<16x8xf32>, vector<16x8xf32>, vector<16x16xf32> -> vector<16x16xf32>
    %c1_45 = arith.constant 1 : index
    %c0_46 = arith.constant 0 : index
    %c0_47 = arith.constant 0 : index
    %53 = vector.load %arg3[%c1_45, %c0_46, %c0_47] : memref<4x16x16xf32, #tpu.memory_space<vmem>>, vector<1x16x16xf32>
    %54 = vector.shape_cast %53 : vector<1x16x16xf32> to vector<16x16xf32>
    %55 = arith.addf %52, %54 : vector<16x16xf32>
    %c2 = arith.constant 2 : index
    %c0_48 = arith.constant 0 : index
    %c0_49 = arith.constant 0 : index
    %56 = vector.load %arg7[%c2, %c0_48, %c0_49] : memref<4x32x8xf32, #tpu.memory_space<vmem>>, vector<1x32x8xf32>
    %57 = vector.shape_cast %56 : vector<1x32x8xf32> to vector<32x8xf32>
    %cst_50 = arith.constant dense<0.000000e+00> : vector<16x8xf32>
    %58 = tpu.matmul %25, %57, %cst_50 {dimension_numbers = #tpu.dot_dimension_numbers<[1], [0], [0], [1], [0, 0, 1, 1], [], []>} : vector<16x32xf32>, vector<32x8xf32>, vector<16x8xf32> -> vector<16x8xf32>
    %c2_51 = arith.constant 2 : index
    %c0_52 = arith.constant 0 : index
    %c0_53 = arith.constant 0 : index
    %59 = vector.load %arg8[%c2_51, %c0_52, %c0_53] : memref<4x32x8xf32, #tpu.memory_space<vmem>>, vector<1x32x8xf32>
    %60 = vector.shape_cast %59 : vector<1x32x8xf32> to vector<32x8xf32>
    %cst_54 = arith.constant dense<0.000000e+00> : vector<16x8xf32>
    %61 = tpu.matmul %25, %60, %cst_54 {dimension_numbers = #tpu.dot_dimension_numbers<[1], [0], [0], [1], [0, 0, 1, 1], [], []>} : vector<16x32xf32>, vector<32x8xf32>, vector<16x8xf32> -> vector<16x8xf32>
    %c2_55 = arith.constant 2 : index
    %c0_56 = arith.constant 0 : index
    %c0_57 = arith.constant 0 : index
    %62 = vector.load %arg9[%c2_55, %c0_56, %c0_57] : memref<4x32x8xf32, #tpu.memory_space<vmem>>, vector<1x32x8xf32>
    %63 = vector.shape_cast %62 : vector<1x32x8xf32> to vector<32x8xf32>
    %cst_58 = arith.constant dense<0.000000e+00> : vector<16x8xf32>
    %64 = tpu.matmul %25, %63, %cst_58 {dimension_numbers = #tpu.dot_dimension_numbers<[1], [0], [0], [1], [0, 0, 1, 1], [], []>} : vector<16x32xf32>, vector<32x8xf32>, vector<16x8xf32> -> vector<16x8xf32>
    %cst_59 = arith.constant dense<0.000000e+00> : vector<16x16xf32>
    %65 = tpu.matmul %58, %61, %cst_59 {dimension_numbers = #tpu.dot_dimension_numbers<[1], [1], [0], [0], [0, 0, 1, 0], [], []>} : vector<16x8xf32>, vector<16x8xf32>, vector<16x16xf32> -> vector<16x16xf32>
    %c2_60 = arith.constant 2 : index
    %c0_61 = arith.constant 0 : index
    %c0_62 = arith.constant 0 : index
    %66 = vector.load %arg3[%c2_60, %c0_61, %c0_62] : memref<4x16x16xf32, #tpu.memory_space<vmem>>, vector<1x16x16xf32>
    %67 = vector.shape_cast %66 : vector<1x16x16xf32> to vector<16x16xf32>
    %68 = arith.addf %65, %67 : vector<16x16xf32>
    %c3 = arith.constant 3 : index
    %c0_63 = arith.constant 0 : index
    %c0_64 = arith.constant 0 : index
    %69 = vector.load %arg7[%c3, %c0_63, %c0_64] : memref<4x32x8xf32, #tpu.memory_space<vmem>>, vector<1x32x8xf32>
    %70 = vector.shape_cast %69 : vector<1x32x8xf32> to vector<32x8xf32>
    %cst_65 = arith.constant dense<0.000000e+00> : vector<16x8xf32>
    %71 = tpu.matmul %25, %70, %cst_65 {dimension_numbers = #tpu.dot_dimension_numbers<[1], [0], [0], [1], [0, 0, 1, 1], [], []>} : vector<16x32xf32>, vector<32x8xf32>, vector<16x8xf32> -> vector<16x8xf32>
    %c3_66 = arith.constant 3 : index
    %c0_67 = arith.constant 0 : index
    %c0_68 = arith.constant 0 : index
    %72 = vector.load %arg8[%c3_66, %c0_67, %c0_68] : memref<4x32x8xf32, #tpu.memory_space<vmem>>, vector<1x32x8xf32>
    %73 = vector.shape_cast %72 : vector<1x32x8xf32> to vector<32x8xf32>
    %cst_69 = arith.constant dense<0.000000e+00> : vector<16x8xf32>
    %74 = tpu.matmul %25, %73, %cst_69 {dimension_numbers = #tpu.dot_dimension_numbers<[1], [0], [0], [1], [0, 0, 1, 1], [], []>} : vector<16x32xf32>, vector<32x8xf32>, vector<16x8xf32> -> vector<16x8xf32>
    %c3_70 = arith.constant 3 : index
    %c0_71 = arith.constant 0 : index
    %c0_72 = arith.constant 0 : index
    %75 = vector.load %arg9[%c3_70, %c0_71, %c0_72] : memref<4x32x8xf32, #tpu.memory_space<vmem>>, vector<1x32x8xf32>
    %76 = vector.shape_cast %75 : vector<1x32x8xf32> to vector<32x8xf32>
    %cst_73 = arith.constant dense<0.000000e+00> : vector<16x8xf32>
    %77 = tpu.matmul %25, %76, %cst_73 {dimension_numbers = #tpu.dot_dimension_numbers<[1], [0], [0], [1], [0, 0, 1, 1], [], []>} : vector<16x32xf32>, vector<32x8xf32>, vector<16x8xf32> -> vector<16x8xf32>
    %cst_74 = arith.constant dense<0.000000e+00> : vector<16x16xf32>
    %78 = tpu.matmul %71, %74, %cst_74 {dimension_numbers = #tpu.dot_dimension_numbers<[1], [1], [0], [0], [0, 0, 1, 0], [], []>} : vector<16x8xf32>, vector<16x8xf32>, vector<16x16xf32> -> vector<16x16xf32>
    %c3_75 = arith.constant 3 : index
    %c0_76 = arith.constant 0 : index
    %c0_77 = arith.constant 0 : index
    %79 = vector.load %arg3[%c3_75, %c0_76, %c0_77] : memref<4x16x16xf32, #tpu.memory_space<vmem>>, vector<1x16x16xf32>
    %80 = vector.shape_cast %79 : vector<1x16x16xf32> to vector<16x16xf32>
    %81 = arith.addf %78, %80 : vector<16x16xf32>
    %cst_78 = arith.constant 0.000000e+00 : f32
    %82 = vector.broadcast %cst_78 : f32 to vector<16x16xf32>
    %83 = vector.extract_strided_slice %26 {offsets = [0, 0], sizes = [1, 1], strides = [1, 1]} : vector<4x4xf32> to vector<1x1xf32>
    %84 = vector.broadcast %83 : vector<1x1xf32> to vector<16x16xf32>
    %85 = arith.mulf %84, %42 : vector<16x16xf32>
    %86 = arith.addf %82, %85 : vector<16x16xf32>
    %87 = vector.extract_strided_slice %26 {offsets = [0, 1], sizes = [1, 1], strides = [1, 1]} : vector<4x4xf32> to vector<1x1xf32>
    %88 = vector.broadcast %87 : vector<1x1xf32> to vector<16x16xf32>
    %89 = arith.mulf %88, %55 : vector<16x16xf32>
    %90 = arith.addf %86, %89 : vector<16x16xf32>
    %91 = vector.extract_strided_slice %26 {offsets = [0, 2], sizes = [1, 1], strides = [1, 1]} : vector<4x4xf32> to vector<1x1xf32>
    %92 = vector.broadcast %91 : vector<1x1xf32> to vector<16x16xf32>
    %93 = arith.mulf %92, %68 : vector<16x16xf32>
    %94 = arith.addf %90, %93 : vector<16x16xf32>
    %95 = vector.extract_strided_slice %26 {offsets = [0, 3], sizes = [1, 1], strides = [1, 1]} : vector<4x4xf32> to vector<1x1xf32>
    %96 = vector.broadcast %95 : vector<1x1xf32> to vector<16x16xf32>
    %97 = arith.mulf %96, %81 : vector<16x16xf32>
    %98 = arith.addf %94, %97 : vector<16x16xf32>
    %cst_79 = arith.constant 0.000000e+00 : f32
    %99 = vector.broadcast %cst_79 : f32 to vector<16x16xf32>
    %100 = arith.cmpf oeq, %29, %99 : vector<16x16xf32>
    %cst_80 = arith.constant -1.000000e+04 : f32
    %101 = vector.broadcast %cst_80 : f32 to vector<16x16xf32>
    %102 = arith.select %100, %101, %98 : vector<16x16xi1>, vector<16x16xf32>
    %cst_81 = arith.constant 0.176776692 : f32
    %103 = vector.broadcast %cst_81 : f32 to vector<16x16xf32>
    %104 = arith.mulf %102, %103 : vector<16x16xf32>
    %cst_82 = arith.constant dense<0xFF800000> : vector<16xf32>
    %105 = vector.multi_reduction <maximumf>, %104, %cst_82 [1] : vector<16x16xf32> to vector<16xf32>
    %106 = vector.shape_cast %105 : vector<16xf32> to vector<16x1xf32>
    %107 = vector.broadcast %106 : vector<16x1xf32> to vector<16x16xf32>
    %108 = arith.subf %104, %107 : vector<16x16xf32>
    %109 = math.exp %108 : vector<16x16xf32>
    %cst_83 = arith.constant dense<0.000000e+00> : vector<16xf32>
    %110 = vector.multi_reduction <add>, %109, %cst_83 [1] : vector<16x16xf32> to vector<16xf32>
    %111 = vector.shape_cast %110 : vector<16xf32> to vector<16x1xf32>
    %112 = vector.broadcast %111 : vector<16x1xf32> to vector<16x16xf32>
    %113 = arith.divf %109, %112 : vector<16x16xf32>
    %cst_84 = arith.constant 0.000000e+00 : f32
    %114 = vector.broadcast %cst_84 : f32 to vector<16x16xf32>
    %115 = vector.extract_strided_slice %26 {offsets = [1, 0], sizes = [1, 1], strides = [1, 1]} : vector<4x4xf32> to vector<1x1xf32>
    %116 = vector.broadcast %115 : vector<1x1xf32> to vector<16x16xf32>
    %117 = arith.mulf %116, %42 : vector<16x16xf32>
    %118 = arith.addf %114, %117 : vector<16x16xf32>
    %119 = vector.extract_strided_slice %26 {offsets = [1, 1], sizes = [1, 1], strides = [1, 1]} : vector<4x4xf32> to vector<1x1xf32>
    %120 = vector.broadcast %119 : vector<1x1xf32> to vector<16x16xf32>
    %121 = arith.mulf %120, %55 : vector<16x16xf32>
    %122 = arith.addf %118, %121 : vector<16x16xf32>
    %123 = vector.extract_strided_slice %26 {offsets = [1, 2], sizes = [1, 1], strides = [1, 1]} : vector<4x4xf32> to vector<1x1xf32>
    %124 = vector.broadcast %123 : vector<1x1xf32> to vector<16x16xf32>
    %125 = arith.mulf %124, %68 : vector<16x16xf32>
    %126 = arith.addf %122, %125 : vector<16x16xf32>
    %127 = vector.extract_strided_slice %26 {offsets = [1, 3], sizes = [1, 1], strides = [1, 1]} : vector<4x4xf32> to vector<1x1xf32>
    %128 = vector.broadcast %127 : vector<1x1xf32> to vector<16x16xf32>
    %129 = arith.mulf %128, %81 : vector<16x16xf32>
    %130 = arith.addf %126, %129 : vector<16x16xf32>
    %cst_85 = arith.constant 0.000000e+00 : f32
    %131 = vector.broadcast %cst_85 : f32 to vector<16x16xf32>
    %132 = arith.cmpf oeq, %29, %131 : vector<16x16xf32>
    %cst_86 = arith.constant -1.000000e+04 : f32
    %133 = vector.broadcast %cst_86 : f32 to vector<16x16xf32>
    %134 = arith.select %132, %133, %130 : vector<16x16xi1>, vector<16x16xf32>
    %cst_87 = arith.constant 0.176776692 : f32
    %135 = vector.broadcast %cst_87 : f32 to vector<16x16xf32>
    %136 = arith.mulf %134, %135 : vector<16x16xf32>
    %cst_88 = arith.constant dense<0xFF800000> : vector<16xf32>
    %137 = vector.multi_reduction <maximumf>, %136, %cst_88 [1] : vector<16x16xf32> to vector<16xf32>
    %138 = vector.shape_cast %137 : vector<16xf32> to vector<16x1xf32>
    %139 = vector.broadcast %138 : vector<16x1xf32> to vector<16x16xf32>
    %140 = arith.subf %136, %139 : vector<16x16xf32>
    %141 = math.exp %140 : vector<16x16xf32>
    %cst_89 = arith.constant dense<0.000000e+00> : vector<16xf32>
    %142 = vector.multi_reduction <add>, %141, %cst_89 [1] : vector<16x16xf32> to vector<16xf32>
    %143 = vector.shape_cast %142 : vector<16xf32> to vector<16x1xf32>
    %144 = vector.broadcast %143 : vector<16x1xf32> to vector<16x16xf32>
    %145 = arith.divf %141, %144 : vector<16x16xf32>
    %cst_90 = arith.constant 0.000000e+00 : f32
    %146 = vector.broadcast %cst_90 : f32 to vector<16x16xf32>
    %147 = vector.extract_strided_slice %26 {offsets = [2, 0], sizes = [1, 1], strides = [1, 1]} : vector<4x4xf32> to vector<1x1xf32>
    %148 = vector.broadcast %147 : vector<1x1xf32> to vector<16x16xf32>
    %149 = arith.mulf %148, %42 : vector<16x16xf32>
    %150 = arith.addf %146, %149 : vector<16x16xf32>
    %151 = vector.extract_strided_slice %26 {offsets = [2, 1], sizes = [1, 1], strides = [1, 1]} : vector<4x4xf32> to vector<1x1xf32>
    %152 = vector.broadcast %151 : vector<1x1xf32> to vector<16x16xf32>
    %153 = arith.mulf %152, %55 : vector<16x16xf32>
    %154 = arith.addf %150, %153 : vector<16x16xf32>
    %155 = vector.extract_strided_slice %26 {offsets = [2, 2], sizes = [1, 1], strides = [1, 1]} : vector<4x4xf32> to vector<1x1xf32>
    %156 = vector.broadcast %155 : vector<1x1xf32> to vector<16x16xf32>
    %157 = arith.mulf %156, %68 : vector<16x16xf32>
    %158 = arith.addf %154, %157 : vector<16x16xf32>
    %159 = vector.extract_strided_slice %26 {offsets = [2, 3], sizes = [1, 1], strides = [1, 1]} : vector<4x4xf32> to vector<1x1xf32>
    %160 = vector.broadcast %159 : vector<1x1xf32> to vector<16x16xf32>
    %161 = arith.mulf %160, %81 : vector<16x16xf32>
    %162 = arith.addf %158, %161 : vector<16x16xf32>
    %cst_91 = arith.constant 0.000000e+00 : f32
    %163 = vector.broadcast %cst_91 : f32 to vector<16x16xf32>
    %164 = arith.cmpf oeq, %29, %163 : vector<16x16xf32>
    %cst_92 = arith.constant -1.000000e+04 : f32
    %165 = vector.broadcast %cst_92 : f32 to vector<16x16xf32>
    %166 = arith.select %164, %165, %162 : vector<16x16xi1>, vector<16x16xf32>
    %cst_93 = arith.constant 0.176776692 : f32
    %167 = vector.broadcast %cst_93 : f32 to vector<16x16xf32>
    %168 = arith.mulf %166, %167 : vector<16x16xf32>
    %cst_94 = arith.constant dense<0xFF800000> : vector<16xf32>
    %169 = vector.multi_reduction <maximumf>, %168, %cst_94 [1] : vector<16x16xf32> to vector<16xf32>
    %170 = vector.shape_cast %169 : vector<16xf32> to vector<16x1xf32>
    %171 = vector.broadcast %170 : vector<16x1xf32> to vector<16x16xf32>
    %172 = arith.subf %168, %171 : vector<16x16xf32>
    %173 = math.exp %172 : vector<16x16xf32>
    %cst_95 = arith.constant dense<0.000000e+00> : vector<16xf32>
    %174 = vector.multi_reduction <add>, %173, %cst_95 [1] : vector<16x16xf32> to vector<16xf32>
    %175 = vector.shape_cast %174 : vector<16xf32> to vector<16x1xf32>
    %176 = vector.broadcast %175 : vector<16x1xf32> to vector<16x16xf32>
    %177 = arith.divf %173, %176 : vector<16x16xf32>
    %cst_96 = arith.constant 0.000000e+00 : f32
    %178 = vector.broadcast %cst_96 : f32 to vector<16x16xf32>
    %179 = vector.extract_strided_slice %26 {offsets = [3, 0], sizes = [1, 1], strides = [1, 1]} : vector<4x4xf32> to vector<1x1xf32>
    %180 = vector.broadcast %179 : vector<1x1xf32> to vector<16x16xf32>
    %181 = arith.mulf %180, %42 : vector<16x16xf32>
    %182 = arith.addf %178, %181 : vector<16x16xf32>
    %183 = vector.extract_strided_slice %26 {offsets = [3, 1], sizes = [1, 1], strides = [1, 1]} : vector<4x4xf32> to vector<1x1xf32>
    %184 = vector.broadcast %183 : vector<1x1xf32> to vector<16x16xf32>
    %185 = arith.mulf %184, %55 : vector<16x16xf32>
    %186 = arith.addf %182, %185 : vector<16x16xf32>
    %187 = vector.extract_strided_slice %26 {offsets = [3, 2], sizes = [1, 1], strides = [1, 1]} : vector<4x4xf32> to vector<1x1xf32>
    %188 = vector.broadcast %187 : vector<1x1xf32> to vector<16x16xf32>
    %189 = arith.mulf %188, %68 : vector<16x16xf32>
    %190 = arith.addf %186, %189 : vector<16x16xf32>
    %191 = vector.extract_strided_slice %26 {offsets = [3, 3], sizes = [1, 1], strides = [1, 1]} : vector<4x4xf32> to vector<1x1xf32>
    %192 = vector.broadcast %191 : vector<1x1xf32> to vector<16x16xf32>
    %193 = arith.mulf %192, %81 : vector<16x16xf32>
    %194 = arith.addf %190, %193 : vector<16x16xf32>
    %cst_97 = arith.constant 0.000000e+00 : f32
    %195 = vector.broadcast %cst_97 : f32 to vector<16x16xf32>
    %196 = arith.cmpf oeq, %29, %195 : vector<16x16xf32>
    %cst_98 = arith.constant -1.000000e+04 : f32
    %197 = vector.broadcast %cst_98 : f32 to vector<16x16xf32>
    %198 = arith.select %196, %197, %194 : vector<16x16xi1>, vector<16x16xf32>
    %cst_99 = arith.constant 0.176776692 : f32
    %199 = vector.broadcast %cst_99 : f32 to vector<16x16xf32>
    %200 = arith.mulf %198, %199 : vector<16x16xf32>
    %cst_100 = arith.constant dense<0xFF800000> : vector<16xf32>
    %201 = vector.multi_reduction <maximumf>, %200, %cst_100 [1] : vector<16x16xf32> to vector<16xf32>
    %202 = vector.shape_cast %201 : vector<16xf32> to vector<16x1xf32>
    %203 = vector.broadcast %202 : vector<16x1xf32> to vector<16x16xf32>
    %204 = arith.subf %200, %203 : vector<16x16xf32>
    %205 = math.exp %204 : vector<16x16xf32>
    %cst_101 = arith.constant dense<0.000000e+00> : vector<16xf32>
    %206 = vector.multi_reduction <add>, %205, %cst_101 [1] : vector<16x16xf32> to vector<16xf32>
    %207 = vector.shape_cast %206 : vector<16xf32> to vector<16x1xf32>
    %208 = vector.broadcast %207 : vector<16x1xf32> to vector<16x16xf32>
    %209 = arith.divf %205, %208 : vector<16x16xf32>
    %cst_102 = arith.constant 0.000000e+00 : f32
    %210 = vector.broadcast %cst_102 : f32 to vector<16x32xf32>
    %cst_103 = arith.constant 0.000000e+00 : f32
    %211 = vector.broadcast %cst_103 : f32 to vector<16x16xf32>
    %212 = vector.extract_strided_slice %27 {offsets = [0, 0], sizes = [1, 1], strides = [1, 1]} : vector<4x4xf32> to vector<1x1xf32>
    %213 = vector.broadcast %212 : vector<1x1xf32> to vector<16x16xf32>
    %214 = arith.mulf %213, %113 : vector<16x16xf32>
    %215 = arith.addf %211, %214 : vector<16x16xf32>
    %216 = vector.extract_strided_slice %27 {offsets = [0, 1], sizes = [1, 1], strides = [1, 1]} : vector<4x4xf32> to vector<1x1xf32>
    %217 = vector.broadcast %216 : vector<1x1xf32> to vector<16x16xf32>
    %218 = arith.mulf %217, %145 : vector<16x16xf32>
    %219 = arith.addf %215, %218 : vector<16x16xf32>
    %220 = vector.extract_strided_slice %27 {offsets = [0, 2], sizes = [1, 1], strides = [1, 1]} : vector<4x4xf32> to vector<1x1xf32>
    %221 = vector.broadcast %220 : vector<1x1xf32> to vector<16x16xf32>
    %222 = arith.mulf %221, %177 : vector<16x16xf32>
    %223 = arith.addf %219, %222 : vector<16x16xf32>
    %224 = vector.extract_strided_slice %27 {offsets = [0, 3], sizes = [1, 1], strides = [1, 1]} : vector<4x4xf32> to vector<1x1xf32>
    %225 = vector.broadcast %224 : vector<1x1xf32> to vector<16x16xf32>
    %226 = arith.mulf %225, %209 : vector<16x16xf32>
    %227 = arith.addf %223, %226 : vector<16x16xf32>
    %cst_104 = arith.constant dense<0.000000e+00> : vector<16x8xf32>
    %228 = tpu.matmul %227, %38, %cst_104 {dimension_numbers = #tpu.dot_dimension_numbers<[1], [0], [0], [1], [0, 0, 1, 1], [], []>} : vector<16x16xf32>, vector<16x8xf32>, vector<16x8xf32> -> vector<16x8xf32>
    %c0_105 = arith.constant 0 : index
    %c0_106 = arith.constant 0 : index
    %c0_107 = arith.constant 0 : index
    %229 = vector.load %arg10[%c0_105, %c0_106, %c0_107] : memref<4x8x32xf32, #tpu.memory_space<vmem>>, vector<1x8x32xf32>
    %230 = vector.shape_cast %229 : vector<1x8x32xf32> to vector<8x32xf32>
    %cst_108 = arith.constant dense<0.000000e+00> : vector<16x32xf32>
    %231 = tpu.matmul %228, %230, %cst_108 {dimension_numbers = #tpu.dot_dimension_numbers<[1], [0], [0], [1], [0, 0, 1, 1], [], []>} : vector<16x8xf32>, vector<8x32xf32>, vector<16x32xf32> -> vector<16x32xf32>
    %232 = arith.addf %210, %231 : vector<16x32xf32>
    %cst_109 = arith.constant 0.000000e+00 : f32
    %233 = vector.broadcast %cst_109 : f32 to vector<16x16xf32>
    %234 = vector.extract_strided_slice %27 {offsets = [1, 0], sizes = [1, 1], strides = [1, 1]} : vector<4x4xf32> to vector<1x1xf32>
    %235 = vector.broadcast %234 : vector<1x1xf32> to vector<16x16xf32>
    %236 = arith.mulf %235, %113 : vector<16x16xf32>
    %237 = arith.addf %233, %236 : vector<16x16xf32>
    %238 = vector.extract_strided_slice %27 {offsets = [1, 1], sizes = [1, 1], strides = [1, 1]} : vector<4x4xf32> to vector<1x1xf32>
    %239 = vector.broadcast %238 : vector<1x1xf32> to vector<16x16xf32>
    %240 = arith.mulf %239, %145 : vector<16x16xf32>
    %241 = arith.addf %237, %240 : vector<16x16xf32>
    %242 = vector.extract_strided_slice %27 {offsets = [1, 2], sizes = [1, 1], strides = [1, 1]} : vector<4x4xf32> to vector<1x1xf32>
    %243 = vector.broadcast %242 : vector<1x1xf32> to vector<16x16xf32>
    %244 = arith.mulf %243, %177 : vector<16x16xf32>
    %245 = arith.addf %241, %244 : vector<16x16xf32>
    %246 = vector.extract_strided_slice %27 {offsets = [1, 3], sizes = [1, 1], strides = [1, 1]} : vector<4x4xf32> to vector<1x1xf32>
    %247 = vector.broadcast %246 : vector<1x1xf32> to vector<16x16xf32>
    %248 = arith.mulf %247, %209 : vector<16x16xf32>
    %249 = arith.addf %245, %248 : vector<16x16xf32>
    %cst_110 = arith.constant dense<0.000000e+00> : vector<16x8xf32>
    %250 = tpu.matmul %249, %51, %cst_110 {dimension_numbers = #tpu.dot_dimension_numbers<[1], [0], [0], [1], [0, 0, 1, 1], [], []>} : vector<16x16xf32>, vector<16x8xf32>, vector<16x8xf32> -> vector<16x8xf32>
    %c1_111 = arith.constant 1 : index
    %c0_112 = arith.constant 0 : index
    %c0_113 = arith.constant 0 : index
    %251 = vector.load %arg10[%c1_111, %c0_112, %c0_113] : memref<4x8x32xf32, #tpu.memory_space<vmem>>, vector<1x8x32xf32>
    %252 = vector.shape_cast %251 : vector<1x8x32xf32> to vector<8x32xf32>
    %cst_114 = arith.constant dense<0.000000e+00> : vector<16x32xf32>
    %253 = tpu.matmul %250, %252, %cst_114 {dimension_numbers = #tpu.dot_dimension_numbers<[1], [0], [0], [1], [0, 0, 1, 1], [], []>} : vector<16x8xf32>, vector<8x32xf32>, vector<16x32xf32> -> vector<16x32xf32>
    %254 = arith.addf %232, %253 : vector<16x32xf32>
    %cst_115 = arith.constant 0.000000e+00 : f32
    %255 = vector.broadcast %cst_115 : f32 to vector<16x16xf32>
    %256 = vector.extract_strided_slice %27 {offsets = [2, 0], sizes = [1, 1], strides = [1, 1]} : vector<4x4xf32> to vector<1x1xf32>
    %257 = vector.broadcast %256 : vector<1x1xf32> to vector<16x16xf32>
    %258 = arith.mulf %257, %113 : vector<16x16xf32>
    %259 = arith.addf %255, %258 : vector<16x16xf32>
    %260 = vector.extract_strided_slice %27 {offsets = [2, 1], sizes = [1, 1], strides = [1, 1]} : vector<4x4xf32> to vector<1x1xf32>
    %261 = vector.broadcast %260 : vector<1x1xf32> to vector<16x16xf32>
    %262 = arith.mulf %261, %145 : vector<16x16xf32>
    %263 = arith.addf %259, %262 : vector<16x16xf32>
    %264 = vector.extract_strided_slice %27 {offsets = [2, 2], sizes = [1, 1], strides = [1, 1]} : vector<4x4xf32> to vector<1x1xf32>
    %265 = vector.broadcast %264 : vector<1x1xf32> to vector<16x16xf32>
    %266 = arith.mulf %265, %177 : vector<16x16xf32>
    %267 = arith.addf %263, %266 : vector<16x16xf32>
    %268 = vector.extract_strided_slice %27 {offsets = [2, 3], sizes = [1, 1], strides = [1, 1]} : vector<4x4xf32> to vector<1x1xf32>
    %269 = vector.broadcast %268 : vector<1x1xf32> to vector<16x16xf32>
    %270 = arith.mulf %269, %209 : vector<16x16xf32>
    %271 = arith.addf %267, %270 : vector<16x16xf32>
    %cst_116 = arith.constant dense<0.000000e+00> : vector<16x8xf32>
    %272 = tpu.matmul %271, %64, %cst_116 {dimension_numbers = #tpu.dot_dimension_numbers<[1], [0], [0], [1], [0, 0, 1, 1], [], []>} : vector<16x16xf32>, vector<16x8xf32>, vector<16x8xf32> -> vector<16x8xf32>
    %c2_117 = arith.constant 2 : index
    %c0_118 = arith.constant 0 : index
    %c0_119 = arith.constant 0 : index
    %273 = vector.load %arg10[%c2_117, %c0_118, %c0_119] : memref<4x8x32xf32, #tpu.memory_space<vmem>>, vector<1x8x32xf32>
    %274 = vector.shape_cast %273 : vector<1x8x32xf32> to vector<8x32xf32>
    %cst_120 = arith.constant dense<0.000000e+00> : vector<16x32xf32>
    %275 = tpu.matmul %272, %274, %cst_120 {dimension_numbers = #tpu.dot_dimension_numbers<[1], [0], [0], [1], [0, 0, 1, 1], [], []>} : vector<16x8xf32>, vector<8x32xf32>, vector<16x32xf32> -> vector<16x32xf32>
    %276 = arith.addf %254, %275 : vector<16x32xf32>
    %cst_121 = arith.constant 0.000000e+00 : f32
    %277 = vector.broadcast %cst_121 : f32 to vector<16x16xf32>
    %278 = vector.extract_strided_slice %27 {offsets = [3, 0], sizes = [1, 1], strides = [1, 1]} : vector<4x4xf32> to vector<1x1xf32>
    %279 = vector.broadcast %278 : vector<1x1xf32> to vector<16x16xf32>
    %280 = arith.mulf %279, %113 : vector<16x16xf32>
    %281 = arith.addf %277, %280 : vector<16x16xf32>
    %282 = vector.extract_strided_slice %27 {offsets = [3, 1], sizes = [1, 1], strides = [1, 1]} : vector<4x4xf32> to vector<1x1xf32>
    %283 = vector.broadcast %282 : vector<1x1xf32> to vector<16x16xf32>
    %284 = arith.mulf %283, %145 : vector<16x16xf32>
    %285 = arith.addf %281, %284 : vector<16x16xf32>
    %286 = vector.extract_strided_slice %27 {offsets = [3, 2], sizes = [1, 1], strides = [1, 1]} : vector<4x4xf32> to vector<1x1xf32>
    %287 = vector.broadcast %286 : vector<1x1xf32> to vector<16x16xf32>
    %288 = arith.mulf %287, %177 : vector<16x16xf32>
    %289 = arith.addf %285, %288 : vector<16x16xf32>
    %290 = vector.extract_strided_slice %27 {offsets = [3, 3], sizes = [1, 1], strides = [1, 1]} : vector<4x4xf32> to vector<1x1xf32>
    %291 = vector.broadcast %290 : vector<1x1xf32> to vector<16x16xf32>
    %292 = arith.mulf %291, %209 : vector<16x16xf32>
    %293 = arith.addf %289, %292 : vector<16x16xf32>
    %cst_122 = arith.constant dense<0.000000e+00> : vector<16x8xf32>
    %294 = tpu.matmul %293, %77, %cst_122 {dimension_numbers = #tpu.dot_dimension_numbers<[1], [0], [0], [1], [0, 0, 1, 1], [], []>} : vector<16x16xf32>, vector<16x8xf32>, vector<16x8xf32> -> vector<16x8xf32>
    %c3_123 = arith.constant 3 : index
    %c0_124 = arith.constant 0 : index
    %c0_125 = arith.constant 0 : index
    %295 = vector.load %arg10[%c3_123, %c0_124, %c0_125] : memref<4x8x32xf32, #tpu.memory_space<vmem>>, vector<1x8x32xf32>
    %296 = vector.shape_cast %295 : vector<1x8x32xf32> to vector<8x32xf32>
    %cst_126 = arith.constant dense<0.000000e+00> : vector<16x32xf32>
    %297 = tpu.matmul %294, %296, %cst_126 {dimension_numbers = #tpu.dot_dimension_numbers<[1], [0], [0], [1], [0, 0, 1, 1], [], []>} : vector<16x8xf32>, vector<8x32xf32>, vector<16x32xf32> -> vector<16x32xf32>
    %298 = arith.addf %276, %297 : vector<16x32xf32>
    %c0_127 = arith.constant 0 : index
    %c0_128 = arith.constant 0 : index
    %299 = vector.load %arg11[%c0_127, %c0_128] : memref<1x32xf32, #tpu.memory_space<vmem>>, vector<1x32xf32>
    %300 = vector.broadcast %299 : vector<1x32xf32> to vector<16x32xf32>
    %301 = arith.addf %298, %300 : vector<16x32xf32>
    %302 = arith.addf %1, %301 : vector<16x32xf32>
    %c0_129 = arith.constant 0 : index
    %c0_130 = arith.constant 0 : index
    %303 = vector.load %arg14[%c0_129, %c0_130] : memref<1x32xf32, #tpu.memory_space<vmem>>, vector<1x32xf32>
    %c0_131 = arith.constant 0 : index
    %c0_132 = arith.constant 0 : index
    %304 = vector.load %arg15[%c0_131, %c0_132] : memref<1x32xf32, #tpu.memory_space<vmem>>, vector<1x32xf32>
    %cst_133 = arith.constant dense<0.000000e+00> : vector<16xf32>
    %305 = vector.multi_reduction <add>, %302, %cst_133 [1] : vector<16x32xf32> to vector<16xf32>
    %306 = vector.shape_cast %305 : vector<16xf32> to vector<16x1xf32>
    %cst_134 = arith.constant 3.200000e+01 : f32
    %307 = vector.broadcast %cst_134 : f32 to vector<16x1xf32>
    %308 = arith.divf %306, %307 : vector<16x1xf32>
    %309 = vector.broadcast %308 : vector<16x1xf32> to vector<16x32xf32>
    %310 = arith.subf %302, %309 : vector<16x32xf32>
    %311 = arith.mulf %310, %310 : vector<16x32xf32>
    %cst_135 = arith.constant dense<0.000000e+00> : vector<16xf32>
    %312 = vector.multi_reduction <add>, %311, %cst_135 [1] : vector<16x32xf32> to vector<16xf32>
    %313 = vector.shape_cast %312 : vector<16xf32> to vector<16x1xf32>
    %cst_136 = arith.constant 3.200000e+01 : f32
    %314 = vector.broadcast %cst_136 : f32 to vector<16x1xf32>
    %315 = arith.divf %313, %314 : vector<16x1xf32>
    %316 = vector.broadcast %308 : vector<16x1xf32> to vector<16x32xf32>
    %317 = arith.subf %302, %316 : vector<16x32xf32>
    %cst_137 = arith.constant 9.99999974E-6 : f32
    %318 = vector.broadcast %cst_137 : f32 to vector<16x1xf32>
    %319 = arith.addf %315, %318 : vector<16x1xf32>
    %320 = math.rsqrt %319 : vector<16x1xf32>
    %321 = vector.broadcast %320 : vector<16x1xf32> to vector<16x32xf32>
    %322 = arith.mulf %317, %321 : vector<16x32xf32>
    %323 = vector.broadcast %303 : vector<1x32xf32> to vector<16x32xf32>
    %324 = arith.mulf %322, %323 : vector<16x32xf32>
    %325 = vector.broadcast %304 : vector<1x32xf32> to vector<16x32xf32>
    %326 = arith.addf %324, %325 : vector<16x32xf32>
    %c0_138 = arith.constant 0 : index
    %c0_139 = arith.constant 0 : index
    %c0_140 = arith.constant 0 : index
    %327 = vector.load %arg4[%c0_138, %c0_139, %c0_140] : memref<1x16x1xf32, #tpu.memory_space<vmem>>, vector<1x16x1xf32>
    %328 = vector.shape_cast %327 : vector<1x16x1xf32> to vector<16x1xf32>
    %329 = tpu.iota {dimensions = array<i32: 0>} : vector<16x16xi32>
    %330 = tpu.iota {dimensions = array<i32: 1>} : vector<16x16xi32>
    %c-1_i32 = arith.constant -1 : i32
    %331 = vector.broadcast %c-1_i32 : i32 to vector<16x16xi32>
    %332 = arith.addi %329, %331 : vector<16x16xi32>
    %333 = arith.cmpi eq, %330, %332 : vector<16x16xi32>
    %cst_141 = arith.constant 1.000000e+00 : f32
    %cst_142 = arith.constant 0.000000e+00 : f32
    %334 = vector.broadcast %cst_141 : f32 to vector<16x16xf32>
    %335 = vector.broadcast %cst_142 : f32 to vector<16x16xf32>
    %336 = arith.select %333, %334, %335 : vector<16x16xi1>, vector<16x16xf32>
    %c1_i32 = arith.constant 1 : i32
    %337 = vector.broadcast %c1_i32 : i32 to vector<16x16xi32>
    %338 = arith.addi %329, %337 : vector<16x16xi32>
    %339 = arith.cmpi eq, %330, %338 : vector<16x16xi32>
    %cst_143 = arith.constant 1.000000e+00 : f32
    %cst_144 = arith.constant 0.000000e+00 : f32
    %340 = vector.broadcast %cst_143 : f32 to vector<16x16xf32>
    %341 = vector.broadcast %cst_144 : f32 to vector<16x16xf32>
    %342 = arith.select %339, %340, %341 : vector<16x16xi1>, vector<16x16xf32>
    %343 = vector.broadcast %328 : vector<16x1xf32> to vector<16x32xf32>
    %344 = arith.mulf %326, %343 : vector<16x32xf32>
    %c0_145 = arith.constant 0 : index
    %c0_146 = arith.constant 0 : index
    %345 = vector.load %arg17[%c0_145, %c0_146] : memref<1x256xf32, #tpu.memory_space<vmem>>, vector<1x256xf32>
    %cst_147 = arith.constant 0.000000e+00 : f32
    %346 = vector.broadcast %cst_147 : f32 to vector<16x256xf32>
    %cst_148 = arith.constant dense<0.000000e+00> : vector<16x32xf32>
    %347 = tpu.matmul %336, %344, %cst_148 {dimension_numbers = #tpu.dot_dimension_numbers<[1], [0], [0], [1], [0, 0, 1, 1], [], []>} : vector<16x16xf32>, vector<16x32xf32>, vector<16x32xf32> -> vector<16x32xf32>
    %c0_149 = arith.constant 0 : index
    %c0_150 = arith.constant 0 : index
    %c0_151 = arith.constant 0 : index
    %348 = vector.load %arg16[%c0_149, %c0_150, %c0_151] : memref<3x32x256xf32, #tpu.memory_space<vmem>>, vector<1x32x256xf32>
    %349 = vector.shape_cast %348 : vector<1x32x256xf32> to vector<32x256xf32>
    %cst_152 = arith.constant dense<0.000000e+00> : vector<16x256xf32>
    %350 = tpu.matmul %347, %349, %cst_152 {dimension_numbers = #tpu.dot_dimension_numbers<[1], [0], [0], [1], [0, 0, 1, 1], [], []>} : vector<16x32xf32>, vector<32x256xf32>, vector<16x256xf32> -> vector<16x256xf32>
    %351 = arith.addf %346, %350 : vector<16x256xf32>
    %c1_153 = arith.constant 1 : index
    %c0_154 = arith.constant 0 : index
    %c0_155 = arith.constant 0 : index
    %352 = vector.load %arg16[%c1_153, %c0_154, %c0_155] : memref<3x32x256xf32, #tpu.memory_space<vmem>>, vector<1x32x256xf32>
    %353 = vector.shape_cast %352 : vector<1x32x256xf32> to vector<32x256xf32>
    %cst_156 = arith.constant dense<0.000000e+00> : vector<16x256xf32>
    %354 = tpu.matmul %344, %353, %cst_156 {dimension_numbers = #tpu.dot_dimension_numbers<[1], [0], [0], [1], [0, 0, 1, 1], [], []>} : vector<16x32xf32>, vector<32x256xf32>, vector<16x256xf32> -> vector<16x256xf32>
    %355 = arith.addf %351, %354 : vector<16x256xf32>
    %cst_157 = arith.constant dense<0.000000e+00> : vector<16x32xf32>
    %356 = tpu.matmul %342, %344, %cst_157 {dimension_numbers = #tpu.dot_dimension_numbers<[1], [0], [0], [1], [0, 0, 1, 1], [], []>} : vector<16x16xf32>, vector<16x32xf32>, vector<16x32xf32> -> vector<16x32xf32>
    %c2_158 = arith.constant 2 : index
    %c0_159 = arith.constant 0 : index
    %c0_160 = arith.constant 0 : index
    %357 = vector.load %arg16[%c2_158, %c0_159, %c0_160] : memref<3x32x256xf32, #tpu.memory_space<vmem>>, vector<1x32x256xf32>
    %358 = vector.shape_cast %357 : vector<1x32x256xf32> to vector<32x256xf32>
    %cst_161 = arith.constant dense<0.000000e+00> : vector<16x256xf32>
    %359 = tpu.matmul %356, %358, %cst_161 {dimension_numbers = #tpu.dot_dimension_numbers<[1], [0], [0], [1], [0, 0, 1, 1], [], []>} : vector<16x32xf32>, vector<32x256xf32>, vector<16x256xf32> -> vector<16x256xf32>
    %360 = arith.addf %355, %359 : vector<16x256xf32>
    %361 = vector.broadcast %345 : vector<1x256xf32> to vector<16x256xf32>
    %362 = arith.addf %360, %361 : vector<16x256xf32>
    %363 = vector.extract_strided_slice %362 {offsets = [0, 0], sizes = [16, 128], strides = [1, 1]} : vector<16x256xf32> to vector<16x128xf32>
    %364 = vector.extract_strided_slice %362 {offsets = [0, 128], sizes = [16, 128], strides = [1, 1]} : vector<16x256xf32> to vector<16x128xf32>
    %cst_162 = arith.constant 0.000000e+00 : f32
    %365 = vector.broadcast %cst_162 : f32 to vector<16x128xf32>
    %366 = arith.subf %365, %363 : vector<16x128xf32>
    %367 = math.exp %366 : vector<16x128xf32>
    %cst_163 = arith.constant 1.000000e+00 : f32
    %368 = vector.broadcast %cst_163 : f32 to vector<16x128xf32>
    %369 = arith.addf %368, %367 : vector<16x128xf32>
    %cst_164 = arith.constant 1.000000e+00 : f32
    %370 = vector.broadcast %cst_164 : f32 to vector<16x128xf32>
    %371 = arith.divf %370, %369 : vector<16x128xf32>
    %372 = arith.mulf %363, %371 : vector<16x128xf32>
    %373 = arith.mulf %372, %364 : vector<16x128xf32>
    %374 = vector.broadcast %328 : vector<16x1xf32> to vector<16x128xf32>
    %375 = arith.mulf %373, %374 : vector<16x128xf32>
    %c0_165 = arith.constant 0 : index
    %c0_166 = arith.constant 0 : index
    %376 = vector.load %arg19[%c0_165, %c0_166] : memref<1x32xf32, #tpu.memory_space<vmem>>, vector<1x32xf32>
    %cst_167 = arith.constant 0.000000e+00 : f32
    %377 = vector.broadcast %cst_167 : f32 to vector<16x32xf32>
    %cst_168 = arith.constant dense<0.000000e+00> : vector<16x128xf32>
    %378 = tpu.matmul %336, %375, %cst_168 {dimension_numbers = #tpu.dot_dimension_numbers<[1], [0], [0], [1], [0, 0, 1, 1], [], []>} : vector<16x16xf32>, vector<16x128xf32>, vector<16x128xf32> -> vector<16x128xf32>
    %c0_169 = arith.constant 0 : index
    %c0_170 = arith.constant 0 : index
    %c0_171 = arith.constant 0 : index
    %379 = vector.load %arg18[%c0_169, %c0_170, %c0_171] : memref<3x128x32xf32, #tpu.memory_space<vmem>>, vector<1x128x32xf32>
    %380 = vector.shape_cast %379 : vector<1x128x32xf32> to vector<128x32xf32>
    %cst_172 = arith.constant dense<0.000000e+00> : vector<16x32xf32>
    %381 = tpu.matmul %378, %380, %cst_172 {dimension_numbers = #tpu.dot_dimension_numbers<[1], [0], [0], [1], [0, 0, 1, 1], [], []>} : vector<16x128xf32>, vector<128x32xf32>, vector<16x32xf32> -> vector<16x32xf32>
    %382 = arith.addf %377, %381 : vector<16x32xf32>
    %c1_173 = arith.constant 1 : index
    %c0_174 = arith.constant 0 : index
    %c0_175 = arith.constant 0 : index
    %383 = vector.load %arg18[%c1_173, %c0_174, %c0_175] : memref<3x128x32xf32, #tpu.memory_space<vmem>>, vector<1x128x32xf32>
    %384 = vector.shape_cast %383 : vector<1x128x32xf32> to vector<128x32xf32>
    %cst_176 = arith.constant dense<0.000000e+00> : vector<16x32xf32>
    %385 = tpu.matmul %375, %384, %cst_176 {dimension_numbers = #tpu.dot_dimension_numbers<[1], [0], [0], [1], [0, 0, 1, 1], [], []>} : vector<16x128xf32>, vector<128x32xf32>, vector<16x32xf32> -> vector<16x32xf32>
    %386 = arith.addf %382, %385 : vector<16x32xf32>
    %cst_177 = arith.constant dense<0.000000e+00> : vector<16x128xf32>
    %387 = tpu.matmul %342, %375, %cst_177 {dimension_numbers = #tpu.dot_dimension_numbers<[1], [0], [0], [1], [0, 0, 1, 1], [], []>} : vector<16x16xf32>, vector<16x128xf32>, vector<16x128xf32> -> vector<16x128xf32>
    %c2_178 = arith.constant 2 : index
    %c0_179 = arith.constant 0 : index
    %c0_180 = arith.constant 0 : index
    %388 = vector.load %arg18[%c2_178, %c0_179, %c0_180] : memref<3x128x32xf32, #tpu.memory_space<vmem>>, vector<1x128x32xf32>
    %389 = vector.shape_cast %388 : vector<1x128x32xf32> to vector<128x32xf32>
    %cst_181 = arith.constant dense<0.000000e+00> : vector<16x32xf32>
    %390 = tpu.matmul %387, %389, %cst_181 {dimension_numbers = #tpu.dot_dimension_numbers<[1], [0], [0], [1], [0, 0, 1, 1], [], []>} : vector<16x128xf32>, vector<128x32xf32>, vector<16x32xf32> -> vector<16x32xf32>
    %391 = arith.addf %386, %390 : vector<16x32xf32>
    %392 = vector.broadcast %376 : vector<1x32xf32> to vector<16x32xf32>
    %393 = arith.addf %391, %392 : vector<16x32xf32>
    %394 = arith.addf %302, %393 : vector<16x32xf32>
    %c0_182 = arith.constant 0 : index
    %c0_183 = arith.constant 0 : index
    %c0_184 = arith.constant 0 : index
    %395 = vector.load %arg20[%c0_182, %c0_183, %c0_184] : memref<1x16x32xf32, #tpu.memory_space<vmem>>, vector<1x16x32xf32>
    %396 = vector.shape_cast %395 : vector<1x16x32xf32> to vector<16x32xf32>
    %397 = vector.shape_cast %394 : vector<16x32xf32> to vector<1x16x32xf32>
    tpu.vector_store %arg20[%c0_182, %c0_183, %c0_184], %397 {strides = array<i32>} : memref<1x16x32xf32, #tpu.memory_space<vmem>>, vector<1x16x32xf32>,
    return
  }
  func.func @transform_0(%arg0: i32) -> (i32, i32, i32) {
    %c0_i32 = arith.constant 0 : i32
    %c0_i32_0 = arith.constant 0 : i32
    %c0_i32_1 = arith.constant 0 : i32
    return %arg0, %c0_i32, %c0_i32_0 : i32, i32, i32
  }
  func.func @transform_1(%arg0: i32) -> (i32, i32, i32) {
    %c0_i32 = arith.constant 0 : i32
    %c0_i32_0 = arith.constant 0 : i32
    %c0_i32_1 = arith.constant 0 : i32
    return %arg0, %c0_i32, %c0_i32_0 : i32, i32, i32
  }
  func.func @transform_2(%arg0: i32) -> (i32, i32, i32) {
    %c0_i32 = arith.constant 0 : i32
    %c0_i32_0 = arith.constant 0 : i32
    %c0_i32_1 = arith.constant 0 : i32
    %c0_i32_2 = arith.constant 0 : i32
    return %c0_i32, %c0_i32_0, %c0_i32_1 : i32, i32, i32
  }
  func.func @transform_3(%arg0: i32) -> (i32, i32, i32) {
    %c0_i32 = arith.constant 0 : i32
    %c0_i32_0 = arith.constant 0 : i32
    %c0_i32_1 = arith.constant 0 : i32
    return %arg0, %c0_i32, %c0_i32_0 : i32, i32, i32
  }
  func.func @transform_4(%arg0: i32) -> (i32, i32) {
    %c0_i32 = arith.constant 0 : i32
    %c0_i32_0 = arith.constant 0 : i32
    %c0_i32_1 = arith.constant 0 : i32
    return %c0_i32, %c0_i32_0 : i32, i32
  }
  func.func @transform_5(%arg0: i32) -> (i32, i32) {
    %c0_i32 = arith.constant 0 : i32
    %c0_i32_0 = arith.constant 0 : i32
    %c0_i32_1 = arith.constant 0 : i32
    return %c0_i32, %c0_i32_0 : i32, i32
  }
  func.func @transform_6(%arg0: i32) -> (i32, i32, i32) {
    %c0_i32 = arith.constant 0 : i32
    %c0_i32_0 = arith.constant 0 : i32
    %c0_i32_1 = arith.constant 0 : i32
    %c0_i32_2 = arith.constant 0 : i32
    return %c0_i32, %c0_i32_0, %c0_i32_1 : i32, i32, i32
  }
  func.func @transform_7(%arg0: i32) -> (i32, i32, i32) {
    %c0_i32 = arith.constant 0 : i32
    %c0_i32_0 = arith.constant 0 : i32
    %c0_i32_1 = arith.constant 0 : i32
    %c0_i32_2 = arith.constant 0 : i32
    return %c0_i32, %c0_i32_0, %c0_i32_1 : i32, i32, i32
  }
  func.func @transform_8(%arg0: i32) -> (i32, i32, i32) {
    %c0_i32 = arith.constant 0 : i32
    %c0_i32_0 = arith.constant 0 : i32
    %c0_i32_1 = arith.constant 0 : i32
    %c0_i32_2 = arith.constant 0 : i32
    return %c0_i32, %c0_i32_0, %c0_i32_1 : i32, i32, i32
  }
  func.func @transform_9(%arg0: i32) -> (i32, i32, i32) {
    %c0_i32 = arith.constant 0 : i32
    %c0_i32_0 = arith.constant 0 : i32
    %c0_i32_1 = arith.constant 0 : i32
    %c0_i32_2 = arith.constant 0 : i32
    return %c0_i32, %c0_i32_0, %c0_i32_1 : i32, i32, i32
  }
  func.func @transform_10(%arg0: i32) -> (i32, i32) {
    %c0_i32 = arith.constant 0 : i32
    %c0_i32_0 = arith.constant 0 : i32
    %c0_i32_1 = arith.constant 0 : i32
    return %c0_i32, %c0_i32_0 : i32, i32
  }
  func.func @transform_11(%arg0: i32) -> (i32, i32) {
    %c0_i32 = arith.constant 0 : i32
    %c0_i32_0 = arith.constant 0 : i32
    %c0_i32_1 = arith.constant 0 : i32
    return %c0_i32, %c0_i32_0 : i32, i32
  }
  func.func @transform_12(%arg0: i32) -> (i32, i32) {
    %c0_i32 = arith.constant 0 : i32
    %c0_i32_0 = arith.constant 0 : i32
    %c0_i32_1 = arith.constant 0 : i32
    return %c0_i32, %c0_i32_0 : i32, i32
  }
  func.func @transform_13(%arg0: i32) -> (i32, i32) {
    %c0_i32 = arith.constant 0 : i32
    %c0_i32_0 = arith.constant 0 : i32
    %c0_i32_1 = arith.constant 0 : i32
    return %c0_i32, %c0_i32_0 : i32, i32
  }
  func.func @transform_14(%arg0: i32) -> (i32, i32) {
    %c0_i32 = arith.constant 0 : i32
    %c0_i32_0 = arith.constant 0 : i32
    %c0_i32_1 = arith.constant 0 : i32
    return %c0_i32, %c0_i32_0 : i32, i32
  }
  func.func @transform_15(%arg0: i32) -> (i32, i32, i32) {
    %c0_i32 = arith.constant 0 : i32
    %c0_i32_0 = arith.constant 0 : i32
    %c0_i32_1 = arith.constant 0 : i32
    %c0_i32_2 = arith.constant 0 : i32
    return %c0_i32, %c0_i32_0, %c0_i32_1 : i32, i32, i32
  }
  func.func @transform_16(%arg0: i32) -> (i32, i32) {
    %c0_i32 = arith.constant 0 : i32
    %c0_i32_0 = arith.constant 0 : i32
    %c0_i32_1 = arith.constant 0 : i32
    return %c0_i32, %c0_i32_0 : i32, i32
  }
  func.func @transform_17(%arg0: i32) -> (i32, i32, i32) {
    %c0_i32 = arith.constant 0 : i32
    %c0_i32_0 = arith.constant 0 : i32
    %c0_i32_1 = arith.constant 0 : i32
    %c0_i32_2 = arith.constant 0 : i32
    return %c0_i32, %c0_i32_0, %c0_i32_1 : i32, i32, i32
  }
  func.func @transform_18(%arg0: i32) -> (i32, i32) {
    %c0_i32 = arith.constant 0 : i32
    %c0_i32_0 = arith.constant 0 : i32
    %c0_i32_1 = arith.constant 0 : i32
    return %c0_i32, %c0_i32_0 : i32, i32
  }
  func.func @transform_19(%arg0: i32) -> (i32, i32, i32) {
    %c0_i32 = arith.constant 0 : i32
    %c0_i32_0 = arith.constant 0 : i32
    %c0_i32_1 = arith.constant 0 : i32
    return %arg0, %c0_i32, %c0_i32_0 : i32, i32, i32
  }
}

module attributes {stable_mosaic.version = 11 : i64} {
  func.func @_encoder_layer_kernel(%arg0: i32, %arg1: memref<1x16x32xf32, #tpu.memory_space<vmem>>, %arg2: memref<1x16x16xf32, #tpu.memory_space<vmem>>, %arg3: memref<4x16x16xf32, #tpu.memory_space<vmem>>, %arg4: memref<1x16x1xf32, #tpu.memory_space<vmem>>, %arg5: memref<1x32xf32, #tpu.memory_space<vmem>>, %arg6: memref<1x32xf32, #tpu.memory_space<vmem>>, %arg7: memref<4x32x8xf32, #tpu.memory_space<vmem>>, %arg8: memref<4x32x8xf32, #tpu.memory_space<vmem>>, %arg9: memref<4x32x8xf32, #tpu.memory_space<vmem>>, %arg10: memref<4x8x32xf32, #tpu.memory_space<vmem>>, %arg11: memref<1x32xf32, #tpu.memory_space<vmem>>, %arg12: memref<4x4xf32, #tpu.memory_space<vmem>>, %arg13: memref<4x4xf32, #tpu.memory_space<vmem>>, %arg14: memref<1x32xf32, #tpu.memory_space<vmem>>, %arg15: memref<1x32xf32, #tpu.memory_space<vmem>>, %arg16: memref<3x32x256xf32, #tpu.memory_space<vmem>>, %arg17: memref<1x256xf32, #tpu.memory_space<vmem>>, %arg18: memref<3x128x32xf32, #tpu.memory_space<vmem>>, %arg19: memref<1x32xf32, #tpu.memory_space<vmem>>, %arg20: memref<1x16x32xf32, #tpu.memory_space<vmem>>) attributes {dimension_semantics = [#tpu.dimension_semantics<parallel>], iteration_bounds = array<i64: 2>, scalar_prefetch = 0 : i64, scratch_operands = 0 : i64, tpu.core_type = #tpu.core_type<tc>, window_params = [{transform_indices = @transform_0, window_bounds = array<i64: 1, 16, 32>}, {transform_indices = @transform_1, window_bounds = array<i64: 1, 16, 16>}, {pipeline_mode = #tpu.pipeline_mode<synchronous>, transform_indices = @transform_2, window_bounds = array<i64: 4, 16, 16>}, {transform_indices = @transform_3, window_bounds = array<i64: 1, 16, 1>}, {pipeline_mode = #tpu.pipeline_mode<synchronous>, transform_indices = @transform_4, window_bounds = array<i64: 1, 32>}, {pipeline_mode = #tpu.pipeline_mode<synchronous>, transform_indices = @transform_5, window_bounds = array<i64: 1, 32>}, {pipeline_mode = #tpu.pipeline_mode<synchronous>, transform_indices = @transform_6, window_bounds = array<i64: 4, 32, 8>}, {pipeline_mode = #tpu.pipeline_mode<synchronous>, transform_indices = @transform_7, window_bounds = array<i64: 4, 32, 8>}, {pipeline_mode = #tpu.pipeline_mode<synchronous>, transform_indices = @transform_8, window_bounds = array<i64: 4, 32, 8>}, {pipeline_mode = #tpu.pipeline_mode<synchronous>, transform_indices = @transform_9, window_bounds = array<i64: 4, 8, 32>}, {pipeline_mode = #tpu.pipeline_mode<synchronous>, transform_indices = @transform_10, window_bounds = array<i64: 1, 32>}, {pipeline_mode = #tpu.pipeline_mode<synchronous>, transform_indices = @transform_11, window_bounds = array<i64: 4, 4>}, {pipeline_mode = #tpu.pipeline_mode<synchronous>, transform_indices = @transform_12, window_bounds = array<i64: 4, 4>}, {pipeline_mode = #tpu.pipeline_mode<synchronous>, transform_indices = @transform_13, window_bounds = array<i64: 1, 32>}, {pipeline_mode = #tpu.pipeline_mode<synchronous>, transform_indices = @transform_14, window_bounds = array<i64: 1, 32>}, {pipeline_mode = #tpu.pipeline_mode<synchronous>, transform_indices = @transform_15, window_bounds = array<i64: 3, 32, 256>}, {pipeline_mode = #tpu.pipeline_mode<synchronous>, transform_indices = @transform_16, window_bounds = array<i64: 1, 256>}, {pipeline_mode = #tpu.pipeline_mode<synchronous>, transform_indices = @transform_17, window_bounds = array<i64: 3, 128, 32>}, {pipeline_mode = #tpu.pipeline_mode<synchronous>, transform_indices = @transform_18, window_bounds = array<i64: 1, 32>}, {transform_indices = @transform_19, window_bounds = array<i64: 1, 16, 32>}]} {
    %c0 = arith.constant 0 : index
    %c0_0 = arith.constant 0 : index
    %c0_1 = arith.constant 0 : index
    %0 = vector.load %arg1[%c0, %c0_0, %c0_1] : memref<1x16x32xf32, #tpu.memory_space<vmem>>, vector<1x16x32xf32>
    %1 = vector.shape_cast %0 : vector<1x16x32xf32> to vector<16x32xf32>
    %c0_2 = arith.constant 0 : index
    %c0_3 = arith.constant 0 : index
    %2 = vector.load %arg5[%c0_2, %c0_3] : memref<1x32xf32, #tpu.memory_space<vmem>>, vector<1x32xf32>
    %c0_4 = arith.constant 0 : index
    %c0_5 = arith.constant 0 : index
    %3 = vector.load %arg6[%c0_4, %c0_5] : memref<1x32xf32, #tpu.memory_space<vmem>>, vector<1x32xf32>
    %cst = arith.constant dense<0.000000e+00> : vector<16xf32>
    %4 = vector.multi_reduction <add>, %1, %cst [1] : vector<16x32xf32> to vector<16xf32>
    %5 = vector.shape_cast %4 : vector<16xf32> to vector<16x1xf32>
    %cst_6 = arith.constant 3.200000e+01 : f32
    %6 = vector.broadcast %cst_6 : f32 to vector<16x1xf32>
    %7 = arith.divf %5, %6 : vector<16x1xf32>
    %8 = vector.broadcast %7 : vector<16x1xf32> to vector<16x32xf32>
    %9 = arith.subf %1, %8 : vector<16x32xf32>
    %10 = arith.mulf %9, %9 : vector<16x32xf32>
    %cst_7 = arith.constant dense<0.000000e+00> : vector<16xf32>
    %11 = vector.multi_reduction <add>, %10, %cst_7 [1] : vector<16x32xf32> to vector<16xf32>
    %12 = vector.shape_cast %11 : vector<16xf32> to vector<16x1xf32>
    %cst_8 = arith.constant 3.200000e+01 : f32
    %13 = vector.broadcast %cst_8 : f32 to vector<16x1xf32>
    %14 = arith.divf %12, %13 : vector<16x1xf32>
    %15 = vector.broadcast %7 : vector<16x1xf32> to vector<16x32xf32>
    %16 = arith.subf %1, %15 : vector<16x32xf32>
    %cst_9 = arith.constant 9.99999974E-6 : f32
    %17 = vector.broadcast %cst_9 : f32 to vector<16x1xf32>
    %18 = arith.addf %14, %17 : vector<16x1xf32>
    %19 = math.rsqrt %18 : vector<16x1xf32>
    %20 = vector.broadcast %19 : vector<16x1xf32> to vector<16x32xf32>
    %21 = arith.mulf %16, %20 : vector<16x32xf32>
    %22 = vector.broadcast %2 : vector<1x32xf32> to vector<16x32xf32>
    %23 = arith.mulf %21, %22 : vector<16x32xf32>
    %24 = vector.broadcast %3 : vector<1x32xf32> to vector<16x32xf32>
    %25 = arith.addf %23, %24 : vector<16x32xf32>
    %c0_10 = arith.constant 0 : index
    %c0_11 = arith.constant 0 : index
    %26 = vector.load %arg12[%c0_10, %c0_11] : memref<4x4xf32, #tpu.memory_space<vmem>>, vector<4x4xf32>
    %c0_12 = arith.constant 0 : index
    %c0_13 = arith.constant 0 : index
    %27 = vector.load %arg13[%c0_12, %c0_13] : memref<4x4xf32, #tpu.memory_space<vmem>>, vector<4x4xf32>
    %c0_14 = arith.constant 0 : index
    %c0_15 = arith.constant 0 : index
    %c0_16 = arith.constant 0 : index
    %28 = vector.load %arg2[%c0_14, %c0_15, %c0_16] : memref<1x16x16xf32, #tpu.memory_space<vmem>>, vector<1x16x16xf32>
    %29 = vector.shape_cast %28 : vector<1x16x16xf32> to vector<16x16xf32>
    %c0_17 = arith.constant 0 : index
    %c0_18 = arith.constant 0 : index
    %c0_19 = arith.constant 0 : index
    %30 = vector.load %arg7[%c0_17, %c0_18, %c0_19] : memref<4x32x8xf32, #tpu.memory_space<vmem>>, vector<1x32x8xf32>
    %31 = vector.shape_cast %30 : vector<1x32x8xf32> to vector<32x8xf32>
    %cst_20 = arith.constant dense<0.000000e+00> : vector<16x8xf32>
    %32 = tpu.matmul %25, %31, %cst_20 {dimension_numbers = #tpu.dot_dimension_numbers<[1], [0], [0], [1], [0, 0, 1, 1], [], []>} : vector<16x32xf32>, vector<32x8xf32>, vector<16x8xf32> -> vector<16x8xf32>
    %c0_21 = arith.constant 0 : index
    %c0_22 = arith.constant 0 : index
    %c0_23 = arith.constant 0 : index
    %33 = vector.load %arg8[%c0_21, %c0_22, %c0_23] : memref<4x32x8xf32, #tpu.memory_space<vmem>>, vector<1x32x8xf32>
    %34 = vector.shape_cast %33 : vector<1x32x8xf32> to vector<32x8xf32>
    %cst_24 = arith.constant dense<0.000000e+00> : vector<16x8xf32>
    %35 = tpu.matmul %25, %34, %cst_24 {dimension_numbers = #tpu.dot_dimension_numbers<[1], [0], [0], [1], [0, 0, 1, 1], [], []>} : vector<16x32xf32>, vector<32x8xf32>, vector<16x8xf32> -> vector<16x8xf32>
    %c0_25 = arith.constant 0 : index
    %c0_26 = arith.constant 0 : index
    %c0_27 = arith.constant 0 : index
    %36 = vector.load %arg9[%c0_25, %c0_26, %c0_27] : memref<4x32x8xf32, #tpu.memory_space<vmem>>, vector<1x32x8xf32>
    %37 = vector.shape_cast %36 : vector<1x32x8xf32> to vector<32x8xf32>
    %cst_28 = arith.constant dense<0.000000e+00> : vector<16x8xf32>
    %38 = tpu.matmul %25, %37, %cst_28 {dimension_numbers = #tpu.dot_dimension_numbers<[1], [0], [0], [1], [0, 0, 1, 1], [], []>} : vector<16x32xf32>, vector<32x8xf32>, vector<16x8xf32> -> vector<16x8xf32>
    %cst_29 = arith.constant dense<0.000000e+00> : vector<16x16xf32>
    %39 = tpu.matmul %32, %35, %cst_29 {dimension_numbers = #tpu.dot_dimension_numbers<[1], [1], [0], [0], [0, 0, 1, 0], [], []>} : vector<16x8xf32>, vector<16x8xf32>, vector<16x16xf32> -> vector<16x16xf32>
    %c0_30 = arith.constant 0 : index
    %c0_31 = arith.constant 0 : index
    %c0_32 = arith.constant 0 : index
    %40 = vector.load %arg3[%c0_30, %c0_31, %c0_32] : memref<4x16x16xf32, #tpu.memory_space<vmem>>, vector<1x16x16xf32>
    %41 = vector.shape_cast %40 : vector<1x16x16xf32> to vector<16x16xf32>
    %42 = arith.addf %39, %41 : vector<16x16xf32>
    %c1 = arith.constant 1 : index
    %c0_33 = arith.constant 0 : index
    %c0_34 = arith.constant 0 : index
    %43 = vector.load %arg7[%c1, %c0_33, %c0_34] : memref<4x32x8xf32, #tpu.memory_space<vmem>>, vector<1x32x8xf32>
    %44 = vector.shape_cast %43 : vector<1x32x8xf32> to vector<32x8xf32>
    %cst_35 = arith.constant dense<0.000000e+00> : vector<16x8xf32>
    %45 = tpu.matmul %25, %44, %cst_35 {dimension_numbers = #tpu.dot_dimension_numbers<[1], [0], [0], [1], [0, 0, 1, 1], [], []>} : vector<16x32xf32>, vector<32x8xf32>, vector<16x8xf32> -> vector<16x8xf32>
    %c1_36 = arith.constant 1 : index
    %c0_37 = arith.constant 0 : index
    %c0_38 = arith.constant 0 : index
    %46 = vector.load %arg8[%c1_36, %c0_37, %c0_38] : memref<4x32x8xf32, #tpu.memory_space<vmem>>, vector<1x32x8xf32>
    %47 = vector.shape_cast %46 : vector<1x32x8xf32> to vector<32x8xf32>
    %cst_39 = arith.constant dense<0.000000e+00> : vector<16x8xf32>
    %48 = tpu.matmul %25, %47, %cst_39 {dimension_numbers = #tpu.dot_dimension_numbers<[1], [0], [0], [1], [0, 0, 1, 1], [], []>} : vector<16x32xf32>, vector<32x8xf32>, vector<16x8xf32> -> vector<16x8xf32>
    %c1_40 = arith.constant 1 : index
    %c0_41 = arith.constant 0 : index
    %c0_42 = arith.constant 0 : index
    %49 = vector.load %arg9[%c1_40, %c0_41, %c0_42] : memref<4x32x8xf32, #tpu.memory_space<vmem>>, vector<1x32x8xf32>
    %50 = vector.shape_cast %49 : vector<1x32x8xf32> to vector<32x8xf32>
    %cst_43 = arith.constant dense<0.000000e+00> : vector<16x8xf32>
    %51 = tpu.matmul %25, %50, %cst_43 {dimension_numbers = #tpu.dot_dimension_numbers<[1], [0], [0], [1], [0, 0, 1, 1], [], []>} : vector<16x32xf32>, vector<32x8xf32>, vector<16x8xf32> -> vector<16x8xf32>
    %cst_44 = arith.constant dense<0.000000e+00> : vector<16x16xf32>
    %52 = tpu.matmul %45, %48, %cst_44 {dimension_numbers = #tpu.dot_dimension_numbers<[1], [1], [0], [0], [0, 0, 1, 0], [], []>} : vector<16x8xf32>, vector<16x8xf32>, vector<16x16xf32> -> vector<16x16xf32>
    %c1_45 = arith.constant 1 : index
    %c0_46 = arith.constant 0 : index
    %c0_47 = arith.constant 0 : index
    %53 = vector.load %arg3[%c1_45, %c0_46, %c0_47] : memref<4x16x16xf32, #tpu.memory_space<vmem>>, vector<1x16x16xf32>
    %54 = vector.shape_cast %53 : vector<1x16x16xf32> to vector<16x16xf32>
    %55 = arith.addf %52, %54 : vector<16x16xf32>
    %c2 = arith.constant 2 : index
    %c0_48 = arith.constant 0 : index
    %c0_49 = arith.constant 0 : index
    %56 = vector.load %arg7[%c2, %c0_48, %c0_49] : memref<4x32x8xf32, #tpu.memory_space<vmem>>, vector<1x32x8xf32>
    %57 = vector.shape_cast %56 : vector<1x32x8xf32> to vector<32x8xf32>
    %cst_50 = arith.constant dense<0.000000e+00> : vector<16x8xf32>
    %58 = tpu.matmul %25, %57, %cst_50 {dimension_numbers = #tpu.dot_dimension_numbers<[1], [0], [0], [1], [0, 0, 1, 1], [], []>} : vector<16x32xf32>, vector<32x8xf32>, vector<16x8xf32> -> vector<16x8xf32>
    %c2_51 = arith.constant 2 : index
    %c0_52 = arith.constant 0 : index
    %c0_53 = arith.constant 0 : index
    %59 = vector.load %arg8[%c2_51, %c0_52, %c0_53] : memref<4x32x8xf32, #tpu.memory_space<vmem>>, vector<1x32x8xf32>
    %60 = vector.shape_cast %59 : vector<1x32x8xf32> to vector<32x8xf32>
    %cst_54 = arith.constant dense<0.000000e+00> : vector<16x8xf32>
    %61 = tpu.matmul %25, %60, %cst_54 {dimension_numbers = #tpu.dot_dimension_numbers<[1], [0], [0], [1], [0, 0, 1, 1], [], []>} : vector<16x32xf32>, vector<32x8xf32>, vector<16x8xf32> -> vector<16x8xf32>
    %c2_55 = arith.constant 2 : index
    %c0_56 = arith.constant 0 : index
    %c0_57 = arith.constant 0 : index
    %62 = vector.load %arg9[%c2_55, %c0_56, %c0_57] : memref<4x32x8xf32, #tpu.memory_space<vmem>>, vector<1x32x8xf32>
    %63 = vector.shape_cast %62 : vector<1x32x8xf32> to vector<32x8xf32>
    %cst_58 = arith.constant dense<0.000000e+00> : vector<16x8xf32>
    %64 = tpu.matmul %25, %63, %cst_58 {dimension_numbers = #tpu.dot_dimension_numbers<[1], [0], [0], [1], [0, 0, 1, 1], [], []>} : vector<16x32xf32>, vector<32x8xf32>, vector<16x8xf32> -> vector<16x8xf32>
    %cst_59 = arith.constant dense<0.000000e+00> : vector<16x16xf32>
    %65 = tpu.matmul %58, %61, %cst_59 {dimension_numbers = #tpu.dot_dimension_numbers<[1], [1], [0], [0], [0, 0, 1, 0], [], []>} : vector<16x8xf32>, vector<16x8xf32>, vector<16x16xf32> -> vector<16x16xf32>
    %c2_60 = arith.constant 2 : index
    %c0_61 = arith.constant 0 : index
    %c0_62 = arith.constant 0 : index
    %66 = vector.load %arg3[%c2_60, %c0_61, %c0_62] : memref<4x16x16xf32, #tpu.memory_space<vmem>>, vector<1x16x16xf32>
    %67 = vector.shape_cast %66 : vector<1x16x16xf32> to vector<16x16xf32>
    %68 = arith.addf %65, %67 : vector<16x16xf32>
    %c3 = arith.constant 3 : index
    %c0_63 = arith.constant 0 : index
    %c0_64 = arith.constant 0 : index
    %69 = vector.load %arg7[%c3, %c0_63, %c0_64] : memref<4x32x8xf32, #tpu.memory_space<vmem>>, vector<1x32x8xf32>
    %70 = vector.shape_cast %69 : vector<1x32x8xf32> to vector<32x8xf32>
    %cst_65 = arith.constant dense<0.000000e+00> : vector<16x8xf32>
    %71 = tpu.matmul %25, %70, %cst_65 {dimension_numbers = #tpu.dot_dimension_numbers<[1], [0], [0], [1], [0, 0, 1, 1], [], []>} : vector<16x32xf32>, vector<32x8xf32>, vector<16x8xf32> -> vector<16x8xf32>
    %c3_66 = arith.constant 3 : index
    %c0_67 = arith.constant 0 : index
    %c0_68 = arith.constant 0 : index
    %72 = vector.load %arg8[%c3_66, %c0_67, %c0_68] : memref<4x32x8xf32, #tpu.memory_space<vmem>>, vector<1x32x8xf32>
    %73 = vector.shape_cast %72 : vector<1x32x8xf32> to vector<32x8xf32>
    %cst_69 = arith.constant dense<0.000000e+00> : vector<16x8xf32>
    %74 = tpu.matmul %25, %73, %cst_69 {dimension_numbers = #tpu.dot_dimension_numbers<[1], [0], [0], [1], [0, 0, 1, 1], [], []>} : vector<16x32xf32>, vector<32x8xf32>, vector<16x8xf32> -> vector<16x8xf32>
    %c3_70 = arith.constant 3 : index
    %c0_71 = arith.constant 0 : index
    %c0_72 = arith.constant 0 : index
    %75 = vector.load %arg9[%c3_70, %c0_71, %c0_72] : memref<4x32x8xf32, #tpu.memory_space<vmem>>, vector<1x32x8xf32>
    %76 = vector.shape_cast %75 : vector<1x32x8xf32> to vector<32x8xf32>
    %cst_73 = arith.constant dense<0.000000e+00> : vector<16x8xf32>
    %77 = tpu.matmul %25, %76, %cst_73 {dimension_numbers = #tpu.dot_dimension_numbers<[1], [0], [0], [1], [0, 0, 1, 1], [], []>} : vector<16x32xf32>, vector<32x8xf32>, vector<16x8xf32> -> vector<16x8xf32>
    %cst_74 = arith.constant dense<0.000000e+00> : vector<16x16xf32>
    %78 = tpu.matmul %71, %74, %cst_74 {dimension_numbers = #tpu.dot_dimension_numbers<[1], [1], [0], [0], [0, 0, 1, 0], [], []>} : vector<16x8xf32>, vector<16x8xf32>, vector<16x16xf32> -> vector<16x16xf32>
    %c3_75 = arith.constant 3 : index
    %c0_76 = arith.constant 0 : index
    %c0_77 = arith.constant 0 : index
    %79 = vector.load %arg3[%c3_75, %c0_76, %c0_77] : memref<4x16x16xf32, #tpu.memory_space<vmem>>, vector<1x16x16xf32>
    %80 = vector.shape_cast %79 : vector<1x16x16xf32> to vector<16x16xf32>
    %81 = arith.addf %78, %80 : vector<16x16xf32>
    %cst_78 = arith.constant 0.000000e+00 : f32
    %82 = vector.broadcast %cst_78 : f32 to vector<16x16xf32>
    %83 = vector.extract_strided_slice %26 {offsets = [0, 0], sizes = [1, 1], strides = [1, 1]} : vector<4x4xf32> to vector<1x1xf32>
    %84 = vector.broadcast %83 : vector<1x1xf32> to vector<16x16xf32>
    %85 = arith.mulf %84, %42 : vector<16x16xf32>
    %86 = arith.addf %82, %85 : vector<16x16xf32>
    %87 = vector.extract_strided_slice %26 {offsets = [0, 1], sizes = [1, 1], strides = [1, 1]} : vector<4x4xf32> to vector<1x1xf32>
    %88 = vector.broadcast %87 : vector<1x1xf32> to vector<16x16xf32>
    %89 = arith.mulf %88, %55 : vector<16x16xf32>
    %90 = arith.addf %86, %89 : vector<16x16xf32>
    %91 = vector.extract_strided_slice %26 {offsets = [0, 2], sizes = [1, 1], strides = [1, 1]} : vector<4x4xf32> to vector<1x1xf32>
    %92 = vector.broadcast %91 : vector<1x1xf32> to vector<16x16xf32>
    %93 = arith.mulf %92, %68 : vector<16x16xf32>
    %94 = arith.addf %90, %93 : vector<16x16xf32>
    %95 = vector.extract_strided_slice %26 {offsets = [0, 3], sizes = [1, 1], strides = [1, 1]} : vector<4x4xf32> to vector<1x1xf32>
    %96 = vector.broadcast %95 : vector<1x1xf32> to vector<16x16xf32>
    %97 = arith.mulf %96, %81 : vector<16x16xf32>
    %98 = arith.addf %94, %97 : vector<16x16xf32>
    %cst_79 = arith.constant 0.000000e+00 : f32
    %99 = vector.broadcast %cst_79 : f32 to vector<16x16xf32>
    %100 = arith.cmpf oeq, %29, %99 : vector<16x16xf32>
    %cst_80 = arith.constant -1.000000e+04 : f32
    %101 = vector.broadcast %cst_80 : f32 to vector<16x16xf32>
    %102 = arith.select %100, %101, %98 : vector<16x16xi1>, vector<16x16xf32>
    %cst_81 = arith.constant 0.176776692 : f32
    %103 = vector.broadcast %cst_81 : f32 to vector<16x16xf32>
    %104 = arith.mulf %102, %103 : vector<16x16xf32>
    %cst_82 = arith.constant dense<0xFF800000> : vector<16xf32>
    %105 = vector.multi_reduction <maximumf>, %104, %cst_82 [1] : vector<16x16xf32> to vector<16xf32>
    %106 = vector.shape_cast %105 : vector<16xf32> to vector<16x1xf32>
    %107 = vector.broadcast %106 : vector<16x1xf32> to vector<16x16xf32>
    %108 = arith.subf %104, %107 : vector<16x16xf32>
    %109 = math.exp %108 : vector<16x16xf32>
    %cst_83 = arith.constant dense<0.000000e+00> : vector<16xf32>
    %110 = vector.multi_reduction <add>, %109, %cst_83 [1] : vector<16x16xf32> to vector<16xf32>
    %111 = vector.shape_cast %110 : vector<16xf32> to vector<16x1xf32>
    %112 = vector.broadcast %111 : vector<16x1xf32> to vector<16x16xf32>
    %113 = arith.divf %109, %112 : vector<16x16xf32>
    %cst_84 = arith.constant 0.000000e+00 : f32
    %114 = vector.broadcast %cst_84 : f32 to vector<16x16xf32>
    %115 = vector.extract_strided_slice %26 {offsets = [1, 0], sizes = [1, 1], strides = [1, 1]} : vector<4x4xf32> to vector<1x1xf32>
    %116 = vector.broadcast %115 : vector<1x1xf32> to vector<16x16xf32>
    %117 = arith.mulf %116, %42 : vector<16x16xf32>
    %118 = arith.addf %114, %117 : vector<16x16xf32>
    %119 = vector.extract_strided_slice %26 {offsets = [1, 1], sizes = [1, 1], strides = [1, 1]} : vector<4x4xf32> to vector<1x1xf32>
    %120 = vector.broadcast %119 : vector<1x1xf32> to vector<16x16xf32>
    %121 = arith.mulf %120, %55 : vector<16x16xf32>
    %122 = arith.addf %118, %121 : vector<16x16xf32>
    %123 = vector.extract_strided_slice %26 {offsets = [1, 2], sizes = [1, 1], strides = [1, 1]} : vector<4x4xf32> to vector<1x1xf32>
    %124 = vector.broadcast %123 : vector<1x1xf32> to vector<16x16xf32>
    %125 = arith.mulf %124, %68 : vector<16x16xf32>
    %126 = arith.addf %122, %125 : vector<16x16xf32>
    %127 = vector.extract_strided_slice %26 {offsets = [1, 3], sizes = [1, 1], strides = [1, 1]} : vector<4x4xf32> to vector<1x1xf32>
    %128 = vector.broadcast %127 : vector<1x1xf32> to vector<16x16xf32>
    %129 = arith.mulf %128, %81 : vector<16x16xf32>
    %130 = arith.addf %126, %129 : vector<16x16xf32>
    %cst_85 = arith.constant 0.000000e+00 : f32
    %131 = vector.broadcast %cst_85 : f32 to vector<16x16xf32>
    %132 = arith.cmpf oeq, %29, %131 : vector<16x16xf32>
    %cst_86 = arith.constant -1.000000e+04 : f32
    %133 = vector.broadcast %cst_86 : f32 to vector<16x16xf32>
    %134 = arith.select %132, %133, %130 : vector<16x16xi1>, vector<16x16xf32>
    %cst_87 = arith.constant 0.176776692 : f32
    %135 = vector.broadcast %cst_87 : f32 to vector<16x16xf32>
    %136 = arith.mulf %134, %135 : vector<16x16xf32>
    %cst_88 = arith.constant dense<0xFF800000> : vector<16xf32>
    %137 = vector.multi_reduction <maximumf>, %136, %cst_88 [1] : vector<16x16xf32> to vector<16xf32>
    %138 = vector.shape_cast %137 : vector<16xf32> to vector<16x1xf32>
    %139 = vector.broadcast %138 : vector<16x1xf32> to vector<16x16xf32>
    %140 = arith.subf %136, %139 : vector<16x16xf32>
    %141 = math.exp %140 : vector<16x16xf32>
    %cst_89 = arith.constant dense<0.000000e+00> : vector<16xf32>
    %142 = vector.multi_reduction <add>, %141, %cst_89 [1] : vector<16x16xf32> to vector<16xf32>
    %143 = vector.shape_cast %142 : vector<16xf32> to vector<16x1xf32>
    %144 = vector.broadcast %143 : vector<16x1xf32> to vector<16x16xf32>
    %145 = arith.divf %141, %144 : vector<16x16xf32>
    %cst_90 = arith.constant 0.000000e+00 : f32
    %146 = vector.broadcast %cst_90 : f32 to vector<16x16xf32>
    %147 = vector.extract_strided_slice %26 {offsets = [2, 0], sizes = [1, 1], strides = [1, 1]} : vector<4x4xf32> to vector<1x1xf32>
    %148 = vector.broadcast %147 : vector<1x1xf32> to vector<16x16xf32>
    %149 = arith.mulf %148, %42 : vector<16x16xf32>
    %150 = arith.addf %146, %149 : vector<16x16xf32>
    %151 = vector.extract_strided_slice %26 {offsets = [2, 1], sizes = [1, 1], strides = [1, 1]} : vector<4x4xf32> to vector<1x1xf32>
    %152 = vector.broadcast %151 : vector<1x1xf32> to vector<16x16xf32>
    %153 = arith.mulf %152, %55 : vector<16x16xf32>
    %154 = arith.addf %150, %153 : vector<16x16xf32>
    %155 = vector.extract_strided_slice %26 {offsets = [2, 2], sizes = [1, 1], strides = [1, 1]} : vector<4x4xf32> to vector<1x1xf32>
    %156 = vector.broadcast %155 : vector<1x1xf32> to vector<16x16xf32>
    %157 = arith.mulf %156, %68 : vector<16x16xf32>
    %158 = arith.addf %154, %157 : vector<16x16xf32>
    %159 = vector.extract_strided_slice %26 {offsets = [2, 3], sizes = [1, 1], strides = [1, 1]} : vector<4x4xf32> to vector<1x1xf32>
    %160 = vector.broadcast %159 : vector<1x1xf32> to vector<16x16xf32>
    %161 = arith.mulf %160, %81 : vector<16x16xf32>
    %162 = arith.addf %158, %161 : vector<16x16xf32>
    %cst_91 = arith.constant 0.000000e+00 : f32
    %163 = vector.broadcast %cst_91 : f32 to vector<16x16xf32>
    %164 = arith.cmpf oeq, %29, %163 : vector<16x16xf32>
    %cst_92 = arith.constant -1.000000e+04 : f32
    %165 = vector.broadcast %cst_92 : f32 to vector<16x16xf32>
    %166 = arith.select %164, %165, %162 : vector<16x16xi1>, vector<16x16xf32>
    %cst_93 = arith.constant 0.176776692 : f32
    %167 = vector.broadcast %cst_93 : f32 to vector<16x16xf32>
    %168 = arith.mulf %166, %167 : vector<16x16xf32>
    %cst_94 = arith.constant dense<0xFF800000> : vector<16xf32>
    %169 = vector.multi_reduction <maximumf>, %168, %cst_94 [1] : vector<16x16xf32> to vector<16xf32>
    %170 = vector.shape_cast %169 : vector<16xf32> to vector<16x1xf32>
    %171 = vector.broadcast %170 : vector<16x1xf32> to vector<16x16xf32>
    %172 = arith.subf %168, %171 : vector<16x16xf32>
    %173 = math.exp %172 : vector<16x16xf32>
    %cst_95 = arith.constant dense<0.000000e+00> : vector<16xf32>
    %174 = vector.multi_reduction <add>, %173, %cst_95 [1] : vector<16x16xf32> to vector<16xf32>
    %175 = vector.shape_cast %174 : vector<16xf32> to vector<16x1xf32>
    %176 = vector.broadcast %175 : vector<16x1xf32> to vector<16x16xf32>
    %177 = arith.divf %173, %176 : vector<16x16xf32>
    %cst_96 = arith.constant 0.000000e+00 : f32
    %178 = vector.broadcast %cst_96 : f32 to vector<16x16xf32>
    %179 = vector.extract_strided_slice %26 {offsets = [3, 0], sizes = [1, 1], strides = [1, 1]} : vector<4x4xf32> to vector<1x1xf32>
    %180 = vector.broadcast %179 : vector<1x1xf32> to vector<16x16xf32>
    %181 = arith.mulf %180, %42 : vector<16x16xf32>
    %182 = arith.addf %178, %181 : vector<16x16xf32>
    %183 = vector.extract_strided_slice %26 {offsets = [3, 1], sizes = [1, 1], strides = [1, 1]} : vector<4x4xf32> to vector<1x1xf32>
    %184 = vector.broadcast %183 : vector<1x1xf32> to vector<16x16xf32>
    %185 = arith.mulf %184, %55 : vector<16x16xf32>
    %186 = arith.addf %182, %185 : vector<16x16xf32>
    %187 = vector.extract_strided_slice %26 {offsets = [3, 2], sizes = [1, 1], strides = [1, 1]} : vector<4x4xf32> to vector<1x1xf32>
    %188 = vector.broadcast %187 : vector<1x1xf32> to vector<16x16xf32>
    %189 = arith.mulf %188, %68 : vector<16x16xf32>
    %190 = arith.addf %186, %189 : vector<16x16xf32>
    %191 = vector.extract_strided_slice %26 {offsets = [3, 3], sizes = [1, 1], strides = [1, 1]} : vector<4x4xf32> to vector<1x1xf32>
    %192 = vector.broadcast %191 : vector<1x1xf32> to vector<16x16xf32>
    %193 = arith.mulf %192, %81 : vector<16x16xf32>
    %194 = arith.addf %190, %193 : vector<16x16xf32>
    %cst_97 = arith.constant 0.000000e+00 : f32
    %195 = vector.broadcast %cst_97 : f32 to vector<16x16xf32>
    %196 = arith.cmpf oeq, %29, %195 : vector<16x16xf32>
    %cst_98 = arith.constant -1.000000e+04 : f32
    %197 = vector.broadcast %cst_98 : f32 to vector<16x16xf32>
    %198 = arith.select %196, %197, %194 : vector<16x16xi1>, vector<16x16xf32>
    %cst_99 = arith.constant 0.176776692 : f32
    %199 = vector.broadcast %cst_99 : f32 to vector<16x16xf32>
    %200 = arith.mulf %198, %199 : vector<16x16xf32>
    %cst_100 = arith.constant dense<0xFF800000> : vector<16xf32>
    %201 = vector.multi_reduction <maximumf>, %200, %cst_100 [1] : vector<16x16xf32> to vector<16xf32>
    %202 = vector.shape_cast %201 : vector<16xf32> to vector<16x1xf32>
    %203 = vector.broadcast %202 : vector<16x1xf32> to vector<16x16xf32>
    %204 = arith.subf %200, %203 : vector<16x16xf32>
    %205 = math.exp %204 : vector<16x16xf32>
    %cst_101 = arith.constant dense<0.000000e+00> : vector<16xf32>
    %206 = vector.multi_reduction <add>, %205, %cst_101 [1] : vector<16x16xf32> to vector<16xf32>
    %207 = vector.shape_cast %206 : vector<16xf32> to vector<16x1xf32>
    %208 = vector.broadcast %207 : vector<16x1xf32> to vector<16x16xf32>
    %209 = arith.divf %205, %208 : vector<16x16xf32>
    %cst_102 = arith.constant 0.000000e+00 : f32
    %210 = vector.broadcast %cst_102 : f32 to vector<16x32xf32>
    %cst_103 = arith.constant 0.000000e+00 : f32
    %211 = vector.broadcast %cst_103 : f32 to vector<16x16xf32>
    %212 = vector.extract_strided_slice %27 {offsets = [0, 0], sizes = [1, 1], strides = [1, 1]} : vector<4x4xf32> to vector<1x1xf32>
    %213 = vector.broadcast %212 : vector<1x1xf32> to vector<16x16xf32>
    %214 = arith.mulf %213, %113 : vector<16x16xf32>
    %215 = arith.addf %211, %214 : vector<16x16xf32>
    %216 = vector.extract_strided_slice %27 {offsets = [0, 1], sizes = [1, 1], strides = [1, 1]} : vector<4x4xf32> to vector<1x1xf32>
    %217 = vector.broadcast %216 : vector<1x1xf32> to vector<16x16xf32>
    %218 = arith.mulf %217, %145 : vector<16x16xf32>
    %219 = arith.addf %215, %218 : vector<16x16xf32>
    %220 = vector.extract_strided_slice %27 {offsets = [0, 2], sizes = [1, 1], strides = [1, 1]} : vector<4x4xf32> to vector<1x1xf32>
    %221 = vector.broadcast %220 : vector<1x1xf32> to vector<16x16xf32>
    %222 = arith.mulf %221, %177 : vector<16x16xf32>
    %223 = arith.addf %219, %222 : vector<16x16xf32>
    %224 = vector.extract_strided_slice %27 {offsets = [0, 3], sizes = [1, 1], strides = [1, 1]} : vector<4x4xf32> to vector<1x1xf32>
    %225 = vector.broadcast %224 : vector<1x1xf32> to vector<16x16xf32>
    %226 = arith.mulf %225, %209 : vector<16x16xf32>
    %227 = arith.addf %223, %226 : vector<16x16xf32>
    %cst_104 = arith.constant dense<0.000000e+00> : vector<16x8xf32>
    %228 = tpu.matmul %227, %38, %cst_104 {dimension_numbers = #tpu.dot_dimension_numbers<[1], [0], [0], [1], [0, 0, 1, 1], [], []>} : vector<16x16xf32>, vector<16x8xf32>, vector<16x8xf32> -> vector<16x8xf32>
    %c0_105 = arith.constant 0 : index
    %c0_106 = arith.constant 0 : index
    %c0_107 = arith.constant 0 : index
    %229 = vector.load %arg10[%c0_105, %c0_106, %c0_107] : memref<4x8x32xf32, #tpu.memory_space<vmem>>, vector<1x8x32xf32>
    %230 = vector.shape_cast %229 : vector<1x8x32xf32> to vector<8x32xf32>
    %cst_108 = arith.constant dense<0.000000e+00> : vector<16x32xf32>
    %231 = tpu.matmul %228, %230, %cst_108 {dimension_numbers = #tpu.dot_dimension_numbers<[1], [0], [0], [1], [0, 0, 1, 1], [], []>} : vector<16x8xf32>, vector<8x32xf32>, vector<16x32xf32> -> vector<16x32xf32>
    %232 = arith.addf %210, %231 : vector<16x32xf32>
    %cst_109 = arith.constant 0.000000e+00 : f32
    %233 = vector.broadcast %cst_109 : f32 to vector<16x16xf32>
    %234 = vector.extract_strided_slice %27 {offsets = [1, 0], sizes = [1, 1], strides = [1, 1]} : vector<4x4xf32> to vector<1x1xf32>
    %235 = vector.broadcast %234 : vector<1x1xf32> to vector<16x16xf32>
    %236 = arith.mulf %235, %113 : vector<16x16xf32>
    %237 = arith.addf %233, %236 : vector<16x16xf32>
    %238 = vector.extract_strided_slice %27 {offsets = [1, 1], sizes = [1, 1], strides = [1, 1]} : vector<4x4xf32> to vector<1x1xf32>
    %239 = vector.broadcast %238 : vector<1x1xf32> to vector<16x16xf32>
    %240 = arith.mulf %239, %145 : vector<16x16xf32>
    %241 = arith.addf %237, %240 : vector<16x16xf32>
    %242 = vector.extract_strided_slice %27 {offsets = [1, 2], sizes = [1, 1], strides = [1, 1]} : vector<4x4xf32> to vector<1x1xf32>
    %243 = vector.broadcast %242 : vector<1x1xf32> to vector<16x16xf32>
    %244 = arith.mulf %243, %177 : vector<16x16xf32>
    %245 = arith.addf %241, %244 : vector<16x16xf32>
    %246 = vector.extract_strided_slice %27 {offsets = [1, 3], sizes = [1, 1], strides = [1, 1]} : vector<4x4xf32> to vector<1x1xf32>
    %247 = vector.broadcast %246 : vector<1x1xf32> to vector<16x16xf32>
    %248 = arith.mulf %247, %209 : vector<16x16xf32>
    %249 = arith.addf %245, %248 : vector<16x16xf32>
    %cst_110 = arith.constant dense<0.000000e+00> : vector<16x8xf32>
    %250 = tpu.matmul %249, %51, %cst_110 {dimension_numbers = #tpu.dot_dimension_numbers<[1], [0], [0], [1], [0, 0, 1, 1], [], []>} : vector<16x16xf32>, vector<16x8xf32>, vector<16x8xf32> -> vector<16x8xf32>
    %c1_111 = arith.constant 1 : index
    %c0_112 = arith.constant 0 : index
    %c0_113 = arith.constant 0 : index
    %251 = vector.load %arg10[%c1_111, %c0_112, %c0_113] : memref<4x8x32xf32, #tpu.memory_space<vmem>>, vector<1x8x32xf32>
    %252 = vector.shape_cast %251 : vector<1x8x32xf32> to vector<8x32xf32>
    %cst_114 = arith.constant dense<0.000000e+00> : vector<16x32xf32>
    %253 = tpu.matmul %250, %252, %cst_114 {dimension_numbers = #tpu.dot_dimension_numbers<[1], [0], [0], [1], [0, 0, 1, 1], [], []>} : vector<16x8xf32>, vector<8x32xf32>, vector<16x32xf32> -> vector<16x32xf32>
    %254 = arith.addf %232, %253 : vector<16x32xf32>
    %cst_115 = arith.constant 0.000000e+00 : f32
    %255 = vector.broadcast %cst_115 : f32 to vector<16x16xf32>
    %256 = vector.extract_strided_slice %27 {offsets = [2, 0], sizes = [1, 1], strides = [1, 1]} : vector<4x4xf32> to vector<1x1xf32>
    %257 = vector.broadcast %256 : vector<1x1xf32> to vector<16x16xf32>
    %258 = arith.mulf %257, %113 : vector<16x16xf32>
    %259 = arith.addf %255, %258 : vector<16x16xf32>
    %260 = vector.extract_strided_slice %27 {offsets = [2, 1], sizes = [1, 1], strides = [1, 1]} : vector<4x4xf32> to vector<1x1xf32>
    %261 = vector.broadcast %260 : vector<1x1xf32> to vector<16x16xf32>
    %262 = arith.mulf %261, %145 : vector<16x16xf32>
    %263 = arith.addf %259, %262 : vector<16x16xf32>
    %264 = vector.extract_strided_slice %27 {offsets = [2, 2], sizes = [1, 1], strides = [1, 1]} : vector<4x4xf32> to vector<1x1xf32>
    %265 = vector.broadcast %264 : vector<1x1xf32> to vector<16x16xf32>
    %266 = arith.mulf %265, %177 : vector<16x16xf32>
    %267 = arith.addf %263, %266 : vector<16x16xf32>
    %268 = vector.extract_strided_slice %27 {offsets = [2, 3], sizes = [1, 1], strides = [1, 1]} : vector<4x4xf32> to vector<1x1xf32>
    %269 = vector.broadcast %268 : vector<1x1xf32> to vector<16x16xf32>
    %270 = arith.mulf %269, %209 : vector<16x16xf32>
    %271 = arith.addf %267, %270 : vector<16x16xf32>
    %cst_116 = arith.constant dense<0.000000e+00> : vector<16x8xf32>
    %272 = tpu.matmul %271, %64, %cst_116 {dimension_numbers = #tpu.dot_dimension_numbers<[1], [0], [0], [1], [0, 0, 1, 1], [], []>} : vector<16x16xf32>, vector<16x8xf32>, vector<16x8xf32> -> vector<16x8xf32>
    %c2_117 = arith.constant 2 : index
    %c0_118 = arith.constant 0 : index
    %c0_119 = arith.constant 0 : index
    %273 = vector.load %arg10[%c2_117, %c0_118, %c0_119] : memref<4x8x32xf32, #tpu.memory_space<vmem>>, vector<1x8x32xf32>
    %274 = vector.shape_cast %273 : vector<1x8x32xf32> to vector<8x32xf32>
    %cst_120 = arith.constant dense<0.000000e+00> : vector<16x32xf32>
    %275 = tpu.matmul %272, %274, %cst_120 {dimension_numbers = #tpu.dot_dimension_numbers<[1], [0], [0], [1], [0, 0, 1, 1], [], []>} : vector<16x8xf32>, vector<8x32xf32>, vector<16x32xf32> -> vector<16x32xf32>
    %276 = arith.addf %254, %275 : vector<16x32xf32>
    %cst_121 = arith.constant 0.000000e+00 : f32
    %277 = vector.broadcast %cst_121 : f32 to vector<16x16xf32>
    %278 = vector.extract_strided_slice %27 {offsets = [3, 0], sizes = [1, 1], strides = [1, 1]} : vector<4x4xf32> to vector<1x1xf32>
    %279 = vector.broadcast %278 : vector<1x1xf32> to vector<16x16xf32>
    %280 = arith.mulf %279, %113 : vector<16x16xf32>
    %281 = arith.addf %277, %280 : vector<16x16xf32>
    %282 = vector.extract_strided_slice %27 {offsets = [3, 1], sizes = [1, 1], strides = [1, 1]} : vector<4x4xf32> to vector<1x1xf32>
    %283 = vector.broadcast %282 : vector<1x1xf32> to vector<16x16xf32>
    %284 = arith.mulf %283, %145 : vector<16x16xf32>
    %285 = arith.addf %281, %284 : vector<16x16xf32>
    %286 = vector.extract_strided_slice %27 {offsets = [3, 2], sizes = [1, 1], strides = [1, 1]} : vector<4x4xf32> to vector<1x1xf32>
    %287 = vector.broadcast %286 : vector<1x1xf32> to vector<16x16xf32>
    %288 = arith.mulf %287, %177 : vector<16x16xf32>
    %289 = arith.addf %285, %288 : vector<16x16xf32>
    %290 = vector.extract_strided_slice %27 {offsets = [3, 3], sizes = [1, 1], strides = [1, 1]} : vector<4x4xf32> to vector<1x1xf32>
    %291 = vector.broadcast %290 : vector<1x1xf32> to vector<16x16xf32>
    %292 = arith.mulf %291, %209 : vector<16x16xf32>
    %293 = arith.addf %289, %292 : vector<16x16xf32>
    %cst_122 = arith.constant dense<0.000000e+00> : vector<16x8xf32>
    %294 = tpu.matmul %293, %77, %cst_122 {dimension_numbers = #tpu.dot_dimension_numbers<[1], [0], [0], [1], [0, 0, 1, 1], [], []>} : vector<16x16xf32>, vector<16x8xf32>, vector<16x8xf32> -> vector<16x8xf32>
    %c3_123 = arith.constant 3 : index
    %c0_124 = arith.constant 0 : index
    %c0_125 = arith.constant 0 : index
    %295 = vector.load %arg10[%c3_123, %c0_124, %c0_125] : memref<4x8x32xf32, #tpu.memory_space<vmem>>, vector<1x8x32xf32>
    %296 = vector.shape_cast %295 : vector<1x8x32xf32> to vector<8x32xf32>
    %cst_126 = arith.constant dense<0.000000e+00> : vector<16x32xf32>
    %297 = tpu.matmul %294, %296, %cst_126 {dimension_numbers = #tpu.dot_dimension_numbers<[1], [0], [0], [1], [0, 0, 1, 1], [], []>} : vector<16x8xf32>, vector<8x32xf32>, vector<16x32xf32> -> vector<16x32xf32>
    %298 = arith.addf %276, %297 : vector<16x32xf32>
    %c0_127 = arith.constant 0 : index
    %c0_128 = arith.constant 0 : index
    %299 = vector.load %arg11[%c0_127, %c0_128] : memref<1x32xf32, #tpu.memory_space<vmem>>, vector<1x32xf32>
    %300 = vector.broadcast %299 : vector<1x32xf32> to vector<16x32xf32>
    %301 = arith.addf %298, %300 : vector<16x32xf32>
    %302 = arith.addf %1, %301 : vector<16x32xf32>
    %c0_129 = arith.constant 0 : index
    %c0_130 = arith.constant 0 : index
    %303 = vector.load %arg14[%c0_129, %c0_130] : memref<1x32xf32, #tpu.memory_space<vmem>>, vector<1x32xf32>
    %c0_131 = arith.constant 0 : index
    %c0_132 = arith.constant 0 : index
    %304 = vector.load %arg15[%c0_131, %c0_132] : memref<1x32xf32, #tpu.memory_space<vmem>>, vector<1x32xf32>
    %cst_133 = arith.constant dense<0.000000e+00> : vector<16xf32>
    %305 = vector.multi_reduction <add>, %302, %cst_133 [1] : vector<16x32xf32> to vector<16xf32>
    %306 = vector.shape_cast %305 : vector<16xf32> to vector<16x1xf32>
    %cst_134 = arith.constant 3.200000e+01 : f32
    %307 = vector.broadcast %cst_134 : f32 to vector<16x1xf32>
    %308 = arith.divf %306, %307 : vector<16x1xf32>
    %309 = vector.broadcast %308 : vector<16x1xf32> to vector<16x32xf32>
    %310 = arith.subf %302, %309 : vector<16x32xf32>
    %311 = arith.mulf %310, %310 : vector<16x32xf32>
    %cst_135 = arith.constant dense<0.000000e+00> : vector<16xf32>
    %312 = vector.multi_reduction <add>, %311, %cst_135 [1] : vector<16x32xf32> to vector<16xf32>
    %313 = vector.shape_cast %312 : vector<16xf32> to vector<16x1xf32>
    %cst_136 = arith.constant 3.200000e+01 : f32
    %314 = vector.broadcast %cst_136 : f32 to vector<16x1xf32>
    %315 = arith.divf %313, %314 : vector<16x1xf32>
    %316 = vector.broadcast %308 : vector<16x1xf32> to vector<16x32xf32>
    %317 = arith.subf %302, %316 : vector<16x32xf32>
    %cst_137 = arith.constant 9.99999974E-6 : f32
    %318 = vector.broadcast %cst_137 : f32 to vector<16x1xf32>
    %319 = arith.addf %315, %318 : vector<16x1xf32>
    %320 = math.rsqrt %319 : vector<16x1xf32>
    %321 = vector.broadcast %320 : vector<16x1xf32> to vector<16x32xf32>
    %322 = arith.mulf %317, %321 : vector<16x32xf32>
    %323 = vector.broadcast %303 : vector<1x32xf32> to vector<16x32xf32>
    %324 = arith.mulf %322, %323 : vector<16x32xf32>
    %325 = vector.broadcast %304 : vector<1x32xf32> to vector<16x32xf32>
    %326 = arith.addf %324, %325 : vector<16x32xf32>
    %c0_138 = arith.constant 0 : index
    %c0_139 = arith.constant 0 : index
    %c0_140 = arith.constant 0 : index
    %327 = vector.load %arg4[%c0_138, %c0_139, %c0_140] : memref<1x16x1xf32, #tpu.memory_space<vmem>>, vector<1x16x1xf32>
    %328 = vector.shape_cast %327 : vector<1x16x1xf32> to vector<16x1xf32>
    %329 = tpu.iota {dimensions = array<i32: 0>} : vector<16x16xi32>
    %330 = tpu.iota {dimensions = array<i32: 1>} : vector<16x16xi32>
    %c-1_i32 = arith.constant -1 : i32
    %331 = vector.broadcast %c-1_i32 : i32 to vector<16x16xi32>
    %332 = arith.addi %329, %331 : vector<16x16xi32>
    %333 = arith.cmpi eq, %330, %332 : vector<16x16xi32>
    %cst_141 = arith.constant 1.000000e+00 : f32
    %cst_142 = arith.constant 0.000000e+00 : f32
    %334 = vector.broadcast %cst_141 : f32 to vector<16x16xf32>
    %335 = vector.broadcast %cst_142 : f32 to vector<16x16xf32>
    %336 = arith.select %333, %334, %335 : vector<16x16xi1>, vector<16x16xf32>
    %c1_i32 = arith.constant 1 : i32
    %337 = vector.broadcast %c1_i32 : i32 to vector<16x16xi32>
    %338 = arith.addi %329, %337 : vector<16x16xi32>
    %339 = arith.cmpi eq, %330, %338 : vector<16x16xi32>
    %cst_143 = arith.constant 1.000000e+00 : f32
    %cst_144 = arith.constant 0.000000e+00 : f32
    %340 = vector.broadcast %cst_143 : f32 to vector<16x16xf32>
    %341 = vector.broadcast %cst_144 : f32 to vector<16x16xf32>
    %342 = arith.select %339, %340, %341 : vector<16x16xi1>, vector<16x16xf32>
    %343 = vector.broadcast %328 : vector<16x1xf32> to vector<16x32xf32>
    %344 = arith.mulf %326, %343 : vector<16x32xf32>
    %c0_145 = arith.constant 0 : index
    %c0_146 = arith.constant 0 : index
    %345 = vector.load %arg17[%c0_145, %c0_146] : memref<1x256xf32, #tpu.memory_space<vmem>>, vector<1x256xf32>
    %cst_147 = arith.constant 0.000000e+00 : f32
    %346 = vector.broadcast %cst_147 : f32 to vector<16x256xf32>
    %cst_148 = arith.constant dense<0.000000e+00> : vector<16x32xf32>
    %347 = tpu.matmul %336, %344, %cst_148 {dimension_numbers = #tpu.dot_dimension_numbers<[1], [0], [0], [1], [0, 0, 1, 1], [], []>} : vector<16x16xf32>, vector<16x32xf32>, vector<16x32xf32> -> vector<16x32xf32>
    %c0_149 = arith.constant 0 : index
    %c0_150 = arith.constant 0 : index
    %c0_151 = arith.constant 0 : index
    %348 = vector.load %arg16[%c0_149, %c0_150, %c0_151] : memref<3x32x256xf32, #tpu.memory_space<vmem>>, vector<1x32x256xf32>
    %349 = vector.shape_cast %348 : vector<1x32x256xf32> to vector<32x256xf32>
    %cst_152 = arith.constant dense<0.000000e+00> : vector<16x256xf32>
    %350 = tpu.matmul %347, %349, %cst_152 {dimension_numbers = #tpu.dot_dimension_numbers<[1], [0], [0], [1], [0, 0, 1, 1], [], []>} : vector<16x32xf32>, vector<32x256xf32>, vector<16x256xf32> -> vector<16x256xf32>
    %351 = arith.addf %346, %350 : vector<16x256xf32>
    %c1_153 = arith.constant 1 : index
    %c0_154 = arith.constant 0 : index
    %c0_155 = arith.constant 0 : index
    %352 = vector.load %arg16[%c1_153, %c0_154, %c0_155] : memref<3x32x256xf32, #tpu.memory_space<vmem>>, vector<1x32x256xf32>
    %353 = vector.shape_cast %352 : vector<1x32x256xf32> to vector<32x256xf32>
    %cst_156 = arith.constant dense<0.000000e+00> : vector<16x256xf32>
    %354 = tpu.matmul %344, %353, %cst_156 {dimension_numbers = #tpu.dot_dimension_numbers<[1], [0], [0], [1], [0, 0, 1, 1], [], []>} : vector<16x32xf32>, vector<32x256xf32>, vector<16x256xf32> -> vector<16x256xf32>
    %355 = arith.addf %351, %354 : vector<16x256xf32>
    %cst_157 = arith.constant dense<0.000000e+00> : vector<16x32xf32>
    %356 = tpu.matmul %342, %344, %cst_157 {dimension_numbers = #tpu.dot_dimension_numbers<[1], [0], [0], [1], [0, 0, 1, 1], [], []>} : vector<16x16xf32>, vector<16x32xf32>, vector<16x32xf32> -> vector<16x32xf32>
    %c2_158 = arith.constant 2 : index
    %c0_159 = arith.constant 0 : index
    %c0_160 = arith.constant 0 : index
    %357 = vector.load %arg16[%c2_158, %c0_159, %c0_160] : memref<3x32x256xf32, #tpu.memory_space<vmem>>, vector<1x32x256xf32>
    %358 = vector.shape_cast %357 : vector<1x32x256xf32> to vector<32x256xf32>
    %cst_161 = arith.constant dense<0.000000e+00> : vector<16x256xf32>
    %359 = tpu.matmul %356, %358, %cst_161 {dimension_numbers = #tpu.dot_dimension_numbers<[1], [0], [0], [1], [0, 0, 1, 1], [], []>} : vector<16x32xf32>, vector<32x256xf32>, vector<16x256xf32> -> vector<16x256xf32>
    %360 = arith.addf %355, %359 : vector<16x256xf32>
    %361 = vector.broadcast %345 : vector<1x256xf32> to vector<16x256xf32>
    %362 = arith.addf %360, %361 : vector<16x256xf32>
    %363 = vector.extract_strided_slice %362 {offsets = [0, 0], sizes = [16, 128], strides = [1, 1]} : vector<16x256xf32> to vector<16x128xf32>
    %364 = vector.extract_strided_slice %362 {offsets = [0, 128], sizes = [16, 128], strides = [1, 1]} : vector<16x256xf32> to vector<16x128xf32>
    %cst_162 = arith.constant 0.000000e+00 : f32
    %365 = vector.broadcast %cst_162 : f32 to vector<16x128xf32>
    %366 = arith.subf %365, %363 : vector<16x128xf32>
    %367 = math.exp %366 : vector<16x128xf32>
    %cst_163 = arith.constant 1.000000e+00 : f32
    %368 = vector.broadcast %cst_163 : f32 to vector<16x128xf32>
    %369 = arith.addf %368, %367 : vector<16x128xf32>
    %cst_164 = arith.constant 1.000000e+00 : f32
    %370 = vector.broadcast %cst_164 : f32 to vector<16x128xf32>
    %371 = arith.divf %370, %369 : vector<16x128xf32>
    %372 = arith.mulf %363, %371 : vector<16x128xf32>
    %373 = arith.mulf %372, %364 : vector<16x128xf32>
    %374 = vector.broadcast %328 : vector<16x1xf32> to vector<16x128xf32>
    %375 = arith.mulf %373, %374 : vector<16x128xf32>
    %c0_165 = arith.constant 0 : index
    %c0_166 = arith.constant 0 : index
    %376 = vector.load %arg19[%c0_165, %c0_166] : memref<1x32xf32, #tpu.memory_space<vmem>>, vector<1x32xf32>
    %cst_167 = arith.constant 0.000000e+00 : f32
    %377 = vector.broadcast %cst_167 : f32 to vector<16x32xf32>
    %cst_168 = arith.constant dense<0.000000e+00> : vector<16x128xf32>
    %378 = tpu.matmul %336, %375, %cst_168 {dimension_numbers = #tpu.dot_dimension_numbers<[1], [0], [0], [1], [0, 0, 1, 1], [], []>} : vector<16x16xf32>, vector<16x128xf32>, vector<16x128xf32> -> vector<16x128xf32>
    %c0_169 = arith.constant 0 : index
    %c0_170 = arith.constant 0 : index
    %c0_171 = arith.constant 0 : index
    %379 = vector.load %arg18[%c0_169, %c0_170, %c0_171] : memref<3x128x32xf32, #tpu.memory_space<vmem>>, vector<1x128x32xf32>
    %380 = vector.shape_cast %379 : vector<1x128x32xf32> to vector<128x32xf32>
    %cst_172 = arith.constant dense<0.000000e+00> : vector<16x32xf32>
    %381 = tpu.matmul %378, %380, %cst_172 {dimension_numbers = #tpu.dot_dimension_numbers<[1], [0], [0], [1], [0, 0, 1, 1], [], []>} : vector<16x128xf32>, vector<128x32xf32>, vector<16x32xf32> -> vector<16x32xf32>
    %382 = arith.addf %377, %381 : vector<16x32xf32>
    %c1_173 = arith.constant 1 : index
    %c0_174 = arith.constant 0 : index
    %c0_175 = arith.constant 0 : index
    %383 = vector.load %arg18[%c1_173, %c0_174, %c0_175] : memref<3x128x32xf32, #tpu.memory_space<vmem>>, vector<1x128x32xf32>
    %384 = vector.shape_cast %383 : vector<1x128x32xf32> to vector<128x32xf32>
    %cst_176 = arith.constant dense<0.000000e+00> : vector<16x32xf32>
    %385 = tpu.matmul %375, %384, %cst_176 {dimension_numbers = #tpu.dot_dimension_numbers<[1], [0], [0], [1], [0, 0, 1, 1], [], []>} : vector<16x128xf32>, vector<128x32xf32>, vector<16x32xf32> -> vector<16x32xf32>
    %386 = arith.addf %382, %385 : vector<16x32xf32>
    %cst_177 = arith.constant dense<0.000000e+00> : vector<16x128xf32>
    %387 = tpu.matmul %342, %375, %cst_177 {dimension_numbers = #tpu.dot_dimension_numbers<[1], [0], [0], [1], [0, 0, 1, 1], [], []>} : vector<16x16xf32>, vector<16x128xf32>, vector<16x128xf32> -> vector<16x128xf32>
    %c2_178 = arith.constant 2 : index
    %c0_179 = arith.constant 0 : index
    %c0_180 = arith.constant 0 : index
    %388 = vector.load %arg18[%c2_178, %c0_179, %c0_180] : memref<3x128x32xf32, #tpu.memory_space<vmem>>, vector<1x128x32xf32>
    %389 = vector.shape_cast %388 : vector<1x128x32xf32> to vector<128x32xf32>
    %cst_181 = arith.constant dense<0.000000e+00> : vector<16x32xf32>
    %390 = tpu.matmul %387, %389, %cst_181 {dimension_numbers = #tpu.dot_dimension_numbers<[1], [0], [0], [1], [0, 0, 1, 1], [], []>} : vector<16x128xf32>, vector<128x32xf32>, vector<16x32xf32> -> vector<16x32xf32>
    %391 = arith.addf %386, %390 : vector<16x32xf32>
    %392 = vector.broadcast %376 : vector<1x32xf32> to vector<16x32xf32>
    %393 = arith.addf %391, %392 : vector<16x32xf32>
    %394 = arith.addf %302, %393 : vector<16x32xf32>
    %c0_182 = arith.constant 0 : index
    %c0_183 = arith.constant 0 : index
    %c0_184 = arith.constant 0 : index
    %395 = vector.load %arg20[%c0_182, %c0_183, %c0_184] : memref<1x16x32xf32, #tpu.memory_space<vmem>>, vector<1x16x32xf32>
    %396 = vector.shape_cast %395 : vector<1x16x32xf32> to vector<16x32xf32>
    %397 = vector.shape_cast %394 : vector<16x32xf32> to vector<1x16x32xf32>
    tpu.vector_store %arg20[%c0_182, %c0_183, %c0_184], %397 {strides = array<i32>} : memref<1x16x32xf32, #tpu.memory_space<vmem>>, vector<1x16x32xf32>,
    return
  }
  func.func @transform_0(%arg0: i32) -> (i32, i32, i32) {
    %c0_i32 = arith.constant 0 : i32
    %c0_i32_0 = arith.constant 0 : i32
    %c0_i32_1 = arith.constant 0 : i32
    return %arg0, %c0_i32, %c0_i32_0 : i32, i32, i32
  }
  func.func @transform_1(%arg0: i32) -> (i32, i32, i32) {
    %c0_i32 = arith.constant 0 : i32
    %c0_i32_0 = arith.constant 0 : i32
    %c0_i32_1 = arith.constant 0 : i32
    return %arg0, %c0_i32, %c0_i32_0 : i32, i32, i32
  }
  func.func @transform_2(%arg0: i32) -> (i32, i32, i32) {
    %c0_i32 = arith.constant 0 : i32
    %c0_i32_0 = arith.constant 0 : i32
    %c0_i32_1 = arith.constant 0 : i32
    %c0_i32_2 = arith.constant 0 : i32
    return %c0_i32, %c0_i32_0, %c0_i32_1 : i32, i32, i32
  }
  func.func @transform_3(%arg0: i32) -> (i32, i32, i32) {
    %c0_i32 = arith.constant 0 : i32
    %c0_i32_0 = arith.constant 0 : i32
    %c0_i32_1 = arith.constant 0 : i32
    return %arg0, %c0_i32, %c0_i32_0 : i32, i32, i32
  }
  func.func @transform_4(%arg0: i32) -> (i32, i32) {
    %c0_i32 = arith.constant 0 : i32
    %c0_i32_0 = arith.constant 0 : i32
    %c0_i32_1 = arith.constant 0 : i32
    return %c0_i32, %c0_i32_0 : i32, i32
  }
  func.func @transform_5(%arg0: i32) -> (i32, i32) {
    %c0_i32 = arith.constant 0 : i32
    %c0_i32_0 = arith.constant 0 : i32
    %c0_i32_1 = arith.constant 0 : i32
    return %c0_i32, %c0_i32_0 : i32, i32
  }
  func.func @transform_6(%arg0: i32) -> (i32, i32, i32) {
    %c0_i32 = arith.constant 0 : i32
    %c0_i32_0 = arith.constant 0 : i32
    %c0_i32_1 = arith.constant 0 : i32
    %c0_i32_2 = arith.constant 0 : i32
    return %c0_i32, %c0_i32_0, %c0_i32_1 : i32, i32, i32
  }
  func.func @transform_7(%arg0: i32) -> (i32, i32, i32) {
    %c0_i32 = arith.constant 0 : i32
    %c0_i32_0 = arith.constant 0 : i32
    %c0_i32_1 = arith.constant 0 : i32
    %c0_i32_2 = arith.constant 0 : i32
    return %c0_i32, %c0_i32_0, %c0_i32_1 : i32, i32, i32
  }
  func.func @transform_8(%arg0: i32) -> (i32, i32, i32) {
    %c0_i32 = arith.constant 0 : i32
    %c0_i32_0 = arith.constant 0 : i32
    %c0_i32_1 = arith.constant 0 : i32
    %c0_i32_2 = arith.constant 0 : i32
    return %c0_i32, %c0_i32_0, %c0_i32_1 : i32, i32, i32
  }
  func.func @transform_9(%arg0: i32) -> (i32, i32, i32) {
    %c0_i32 = arith.constant 0 : i32
    %c0_i32_0 = arith.constant 0 : i32
    %c0_i32_1 = arith.constant 0 : i32
    %c0_i32_2 = arith.constant 0 : i32
    return %c0_i32, %c0_i32_0, %c0_i32_1 : i32, i32, i32
  }
  func.func @transform_10(%arg0: i32) -> (i32, i32) {
    %c0_i32 = arith.constant 0 : i32
    %c0_i32_0 = arith.constant 0 : i32
    %c0_i32_1 = arith.constant 0 : i32
    return %c0_i32, %c0_i32_0 : i32, i32
  }
  func.func @transform_11(%arg0: i32) -> (i32, i32) {
    %c0_i32 = arith.constant 0 : i32
    %c0_i32_0 = arith.constant 0 : i32
    %c0_i32_1 = arith.constant 0 : i32
    return %c0_i32, %c0_i32_0 : i32, i32
  }
  func.func @transform_12(%arg0: i32) -> (i32, i32) {
    %c0_i32 = arith.constant 0 : i32
    %c0_i32_0 = arith.constant 0 : i32
    %c0_i32_1 = arith.constant 0 : i32
    return %c0_i32, %c0_i32_0 : i32, i32
  }
  func.func @transform_13(%arg0: i32) -> (i32, i32) {
    %c0_i32 = arith.constant 0 : i32
    %c0_i32_0 = arith.constant 0 : i32
    %c0_i32_1 = arith.constant 0 : i32
    return %c0_i32, %c0_i32_0 : i32, i32
  }
  func.func @transform_14(%arg0: i32) -> (i32, i32) {
    %c0_i32 = arith.constant 0 : i32
    %c0_i32_0 = arith.constant 0 : i32
    %c0_i32_1 = arith.constant 0 : i32
    return %c0_i32, %c0_i32_0 : i32, i32
  }
  func.func @transform_15(%arg0: i32) -> (i32, i32, i32) {
    %c0_i32 = arith.constant 0 : i32
    %c0_i32_0 = arith.constant 0 : i32
    %c0_i32_1 = arith.constant 0 : i32
    %c0_i32_2 = arith.constant 0 : i32
    return %c0_i32, %c0_i32_0, %c0_i32_1 : i32, i32, i32
  }
  func.func @transform_16(%arg0: i32) -> (i32, i32) {
    %c0_i32 = arith.constant 0 : i32
    %c0_i32_0 = arith.constant 0 : i32
    %c0_i32_1 = arith.constant 0 : i32
    return %c0_i32, %c0_i32_0 : i32, i32
  }
  func.func @transform_17(%arg0: i32) -> (i32, i32, i32) {
    %c0_i32 = arith.constant 0 : i32
    %c0_i32_0 = arith.constant 0 : i32
    %c0_i32_1 = arith.constant 0 : i32
    %c0_i32_2 = arith.constant 0 : i32
    return %c0_i32, %c0_i32_0, %c0_i32_1 : i32, i32, i32
  }
  func.func @transform_18(%arg0: i32) -> (i32, i32) {
    %c0_i32 = arith.constant 0 : i32
    %c0_i32_0 = arith.constant 0 : i32
    %c0_i32_1 = arith.constant 0 : i32
    return %c0_i32, %c0_i32_0 : i32, i32
  }
  func.func @transform_19(%arg0: i32) -> (i32, i32, i32) {
    %c0_i32 = arith.constant 0 : i32
    %c0_i32_0 = arith.constant 0 : i32
    %c0_i32_1 = arith.constant 0 : i32
    return %arg0, %c0_i32, %c0_i32_0 : i32, i32, i32
  }
}

</mosaic_0001>

<llo_original>
// kernel: transformer_encoder_forward.3
$region0: #{transformer_encoder_forward.3}
  #allocation0 [shape = 'u32[]', space=smem, size = 0x4, offset = 0x4, fixed_abs, tag = 'smem constant byte address 0x4 - core index']
  #allocation1 [shape = 'u32[144,128]{1,0:T(1,128)}', space=vmem, size = 0x12000, scoped, tag = 'internal scratch']
  %s0 = inlined_call_operand.vmem [shape: f32[2,16,32], index: 0, kind: input, shape index: {}]
  %s1 = inlined_call_operand.vmem [shape: f32[2,16,16], index: 1, kind: input, shape index: {}]
  %s2 = inlined_call_operand.vmem [shape: f32[4,16,16], index: 2, kind: input, shape index: {}]
  %s3 = inlined_call_operand.vmem [shape: f32[2,16,1], index: 3, kind: input, shape index: {}]
  %s4 = inlined_call_operand.vmem [shape: f32[1,32], index: 4, kind: input, shape index: {}]
  %s5 = inlined_call_operand.vmem [shape: f32[1,32], index: 5, kind: input, shape index: {}]
  %s6 = inlined_call_operand.vmem [shape: f32[4,32,8], index: 6, kind: input, shape index: {}]
  %s7 = inlined_call_operand.vmem [shape: f32[4,32,8], index: 7, kind: input, shape index: {}]
  %s8 = inlined_call_operand.vmem [shape: f32[4,32,8], index: 8, kind: input, shape index: {}]
  %s9 = inlined_call_operand.vmem [shape: f32[4,8,32], index: 9, kind: input, shape index: {}]
  %s10 = inlined_call_operand.vmem [shape: f32[1,32], index: 10, kind: input, shape index: {}]
  %s11 = inlined_call_operand.vmem [shape: f32[4,4], index: 11, kind: input, shape index: {}]
  %s12 = inlined_call_operand.vmem [shape: f32[4,4], index: 12, kind: input, shape index: {}]
  %s13 = inlined_call_operand.vmem [shape: f32[1,32], index: 13, kind: input, shape index: {}]
  %s14 = inlined_call_operand.vmem [shape: f32[1,32], index: 14, kind: input, shape index: {}]
  %s15 = inlined_call_operand.vmem [shape: f32[3,32,256], index: 15, kind: input, shape index: {}]
  %s16 = inlined_call_operand.vmem [shape: f32[1,256], index: 16, kind: input, shape index: {}]
  %s17 = inlined_call_operand.vmem [shape: f32[3,128,32], index: 17, kind: input, shape index: {}]
  %s18 = inlined_call_operand.vmem [shape: f32[1,32], index: 18, kind: input, shape index: {}]
  %s19 = inlined_call_operand.hbm [shape: f32[2,16,32], index: 19, kind: output, shape index: {}]
  %s20 = sld [smem:[#allocation0]]
  $region109: #{transformer_encoder_forward.3} parent=0
    _
  %s22 = ssub.s32 1, %s20
  %s23 = scalar_select 0, %s22, %s20
  $region1: #{transformer_encoder_forward.3} parent=0
    #allocation2 [shape = 'u8[16384]{0}', space=vmem, size = 0x4000, scoped, tag = 'output window, operand 0']
    #allocation3 [shape = 's32[2]{0}', space=sflag, size = 0x8, scoped, tag = 'scoped memory for transformer_encoder_forward.3']
    %24 = vsyncpa [#allocation3], 0
    %s25 = scalar_lea.sflag [#allocation3], 1
    %26 = vsyncpa %s25, 0
    loop: start=0, step=1, limit=4
    $region2: #{transformer_encoder_forward.3} parent=1 // loop_pre_header
      _
    $region3: #{transformer_encoder_forward.3} parent=1 // loop_header
      %s28 = sphi 0, %s32
      %p29 = scmp.ge.s32.totalorder %s28, 4
      %s38 = sphi 0, %s40
      %s41 = sphi 0, %s38
      %s42 = sphi 0, %s41
      %s58 = sphi 0, %s42
      %s64 = sphi 0, %s66
      %s67 = sphi 0, %s64
      %s68 = sphi 0, %s67
      %s84 = sphi 0, %s68
      %s88 = sphi 0, %s88
      %s90 = sphi 0, %s88
      %s91 = sphi 0, %s90
      %s105 = sphi 0, %s91
      %s111 = sphi 0, %s113
      %s114 = sphi 0, %s111
      %s115 = sphi 0, %s114
      %s131 = sphi 0, %s115
      %s135 = sphi 0, %s135
      %s137 = sphi 0, %s135
      %s138 = sphi 0, %s137
      %s152 = sphi 0, %s138
      %s156 = sphi 0, %s156
      %s158 = sphi 0, %s156
      %s159 = sphi 0, %s158
      %s173 = sphi 0, %s159
      %s177 = sphi 0, %s177
      %s179 = sphi 0, %s177
      %s180 = sphi 0, %s179
      %s194 = sphi 0, %s180
      %s198 = sphi 0, %s198
      %s200 = sphi 0, %s198
      %s201 = sphi 0, %s200
      %s215 = sphi 0, %s201
      %s219 = sphi 0, %s219
      %s221 = sphi 0, %s219
      %s222 = sphi 0, %s221
      %s236 = sphi 0, %s222
      %s240 = sphi 0, %s240
      %s242 = sphi 0, %s240
      %s243 = sphi 0, %s242
      %s257 = sphi 0, %s243
      %s261 = sphi 0, %s261
      %s263 = sphi 0, %s261
      %s264 = sphi 0, %s263
      %s278 = sphi 0, %s264
      %s282 = sphi 0, %s282
      %s284 = sphi 0, %s282
      %s285 = sphi 0, %s284
      %s299 = sphi 0, %s285
      %s303 = sphi 0, %s303
      %s305 = sphi 0, %s303
      %s306 = sphi 0, %s305
      %s320 = sphi 0, %s306
      %s324 = sphi 0, %s324
      %s326 = sphi 0, %s324
      %s327 = sphi 0, %s326
      %s341 = sphi 0, %s327
      %s345 = sphi 0, %s345
      %s347 = sphi 0, %s345
      %s348 = sphi 0, %s347
      %s362 = sphi 0, %s348
      %s366 = sphi 0, %s366
      %s368 = sphi 0, %s366
      %s369 = sphi 0, %s368
      %s383 = sphi 0, %s369
      %s387 = sphi 0, %s387
      %s389 = sphi 0, %s387
      %s390 = sphi 0, %s389
      %s404 = sphi 0, %s390
      %s408 = sphi 0, %s408
      %s410 = sphi 0, %s408
      %s411 = sphi 0, %s410
      %s425 = sphi 0, %s411
      %s429 = sphi 0, %s429
      %s431 = sphi 0, %s429
      %s432 = sphi 0, %s431
      %s446 = sphi 0, %s432
      %s452 = sphi 0, %s454
      %s455 = sphi 0, %s452
      %s456 = sphi 0, %s455
      %s472 = sphi 0, %s456
    $region4: #{transformer_encoder_forward.3} parent=1 // loop_header_branch
      %31 = sbr.rel (%p29) target = $region8
    $region5: #{transformer_encoder_forward.3} parent=1 // loop_body
      %s33 = ssub.s32 %s28, 1
      %s34 = ssub.s32 %s28, 2
      %s35 = sadd.s32 %s28, 1
      %s36 = ssub.s32 %s28, %s35
      %p37 = scmp.eq.s32.totalorder %s36, 0
      %s39 = sadd.s32 %s38, 1
      %s40 = scalar_select %p37, %s38, %s39
      %p43 = pneg %p37
      %p44 = scmp.eq.s32.totalorder %s28, 1
      %p45 = por %p43, %p44
      %p46 = scmp.ne.s32.totalorder %s38, %s41
      %p47 = scmp.eq.s32.totalorder %s28, 0
      %p48 = por %p46, %p47
      %p49 = scmp.ne.s32.totalorder %s38, %s41
      %p50 = scmp.eq.s32.totalorder %s33, 1
      %p51 = por %p49, %p50
      %p52 = scmp.ne.s32.totalorder %s41, %s42
      %p53 = scmp.eq.s32.totalorder %s33, 0
      %p54 = por %p52, %p53
      %p55 = scmp.ne.s32.totalorder %s41, %s42
      %p56 = scmp.eq.s32.totalorder %s34, 1
      %p57 = por %p55, %p56
      %p59 = scmp.ne.s32.totalorder %s42, %s58
      %p60 = scmp.eq.s32.totalorder %s34, 0
      %p61 = por %p59, %p60
      %s62 = ssub.s32 %s28, %s35
      %p63 = scmp.eq.s32.totalorder %s62, 0
      %s65 = sadd.s32 %s64, 1
      %s66 = scalar_select %p63, %s64, %s65
      %p69 = pneg %p63
      %p70 = scmp.eq.s32.totalorder %s28, 1
      %p71 = por %p69, %p70
      %p72 = scmp.ne.s32.totalorder %s64, %s67
      %p73 = scmp.eq.s32.totalorder %s28, 0
      %p74 = por %p72, %p73
      %p75 = scmp.ne.s32.totalorder %s64, %s67
      %p76 = scmp.eq.s32.totalorder %s33, 1
      %p77 = por %p75, %p76
      %p78 = scmp.ne.s32.totalorder %s67, %s68
      %p79 = scmp.eq.s32.totalorder %s33, 0
      %p80 = por %p78, %p79
      %p81 = scmp.ne.s32.totalorder %s67, %s68
      %p82 = scmp.eq.s32.totalorder %s34, 1
      %p83 = por %p81, %p82
      %p85 = scmp.ne.s32.totalorder %s68, %s84
      %p86 = scmp.eq.s32.totalorder %s34, 0
      %p87 = por %p85, %p86
      %s89 = sadd.s32 %s88, 1
      %p92 = scmp.eq.s32.totalorder %s28, 1
      %p93 = scmp.ne.s32.totalorder %s88, %s90
      %p94 = scmp.eq.s32.totalorder %s28, 0
      %p95 = por %p93, %p94
      %p96 = scmp.ne.s32.totalorder %s88, %s90
      %p97 = scmp.eq.s32.totalorder %s33, 1
      %p98 = por %p96, %p97
      %p99 = scmp.ne.s32.totalorder %s90, %s91
      %p100 = scmp.eq.s32.totalorder %s33, 0
      %p101 = por %p99, %p100
      %p102 = scmp.ne.s32.totalorder %s90, %s91
      %p103 = scmp.eq.s32.totalorder %s34, 1
      %p104 = por %p102, %p103
      %p106 = scmp.ne.s32.totalorder %s91, %s105
      %p107 = scmp.eq.s32.totalorder %s34, 0
      %p108 = por %p106, %p107
      %s109 = ssub.s32 %s28, %s35
      %p110 = scmp.eq.s32.totalorder %s109, 0
      %s112 = sadd.s32 %s111, 1
      %s113 = scalar_select %p110, %s111, %s112
      %p116 = pneg %p110
      %p117 = scmp.eq.s32.totalorder %s28, 1
      %p118 = por %p116, %p117
      %p119 = scmp.ne.s32.totalorder %s111, %s114
      %p120 = scmp.eq.s32.totalorder %s28, 0
      %p121 = por %p119, %p120
      %p122 = scmp.ne.s32.totalorder %s111, %s114
      %p123 = scmp.eq.s32.totalorder %s33, 1
      %p124 = por %p122, %p123
      %p125 = scmp.ne.s32.totalorder %s114, %s115
      %p126 = scmp.eq.s32.totalorder %s33, 0
      %p127 = por %p125, %p126
      %p128 = scmp.ne.s32.totalorder %s114, %s115
      %p129 = scmp.eq.s32.totalorder %s34, 1
      %p130 = por %p128, %p129
      %p132 = scmp.ne.s32.totalorder %s115, %s131
      %p133 = scmp.eq.s32.totalorder %s34, 0
      %p134 = por %p132, %p133
      %s136 = sadd.s32 %s135, 1
      %p139 = scmp.eq.s32.totalorder %s28, 1
      %p140 = scmp.ne.s32.totalorder %s135, %s137
      %p141 = scmp.eq.s32.totalorder %s28, 0
      %p142 = por %p140, %p141
      %p143 = scmp.ne.s32.totalorder %s135, %s137
      %p144 = scmp.eq.s32.totalorder %s33, 1
      %p145 = por %p143, %p144
      %p146 = scmp.ne.s32.totalorder %s137, %s138
      %p147 = scmp.eq.s32.totalorder %s33, 0
      %p148 = por %p146, %p147
      %p149 = scmp.ne.s32.totalorder %s137, %s138
      %p150 = scmp.eq.s32.totalorder %s34, 1
      %p151 = por %p149, %p150
      %p153 = scmp.ne.s32.totalorder %s138, %s152
      %p154 = scmp.eq.s32.totalorder %s34, 0
      %p155 = por %p153, %p154
      %s157 = sadd.s32 %s156, 1
      %p160 = scmp.eq.s32.totalorder %s28, 1
      %p161 = scmp.ne.s32.totalorder %s156, %s158
      %p162 = scmp.eq.s32.totalorder %s28, 0
      %p163 = por %p161, %p162
      %p164 = scmp.ne.s32.totalorder %s156, %s158
      %p165 = scmp.eq.s32.totalorder %s33, 1
      %p166 = por %p164, %p165
      %p167 = scmp.ne.s32.totalorder %s158, %s159
      %p168 = scmp.eq.s32.totalorder %s33, 0
      %p169 = por %p167, %p168
      %p170 = scmp.ne.s32.totalorder %s158, %s159
      %p171 = scmp.eq.s32.totalorder %s34, 1
      %p172 = por %p170, %p171
      %p174 = scmp.ne.s32.totalorder %s159, %s173
      %p175 = scmp.eq.s32.totalorder %s34, 0
      %p176 = por %p174, %p175
      %s178 = sadd.s32 %s177, 1
      %p181 = scmp.eq.s32.totalorder %s28, 1
      %p182 = scmp.ne.s32.totalorder %s177, %s179
      %p183 = scmp.eq.s32.totalorder %s28, 0
      %p184 = por %p182, %p183
      %p185 = scmp.ne.s32.totalorder %s177, %s179
      %p186 = scmp.eq.s32.totalorder %s33, 1
      %p187 = por %p185, %p186
      %p188 = scmp.ne.s32.totalorder %s179, %s180
      %p189 = scmp.eq.s32.totalorder %s33, 0
      %p190 = por %p188, %p189
      %p191 = scmp.ne.s32.totalorder %s179, %s180
      %p192 = scmp.eq.s32.totalorder %s34, 1
      %p193 = por %p191, %p192
      %p195 = scmp.ne.s32.totalorder %s180, %s194
      %p196 = scmp.eq.s32.totalorder %s34, 0
      %p197 = por %p195, %p196
      %s199 = sadd.s32 %s198, 1
      %p202 = scmp.eq.s32.totalorder %s28, 1
      %p203 = scmp.ne.s32.totalorder %s198, %s200
      %p204 = scmp.eq.s32.totalorder %s28, 0
      %p205 = por %p203, %p204
      %p206 = scmp.ne.s32.totalorder %s198, %s200
      %p207 = scmp.eq.s32.totalorder %s33, 1
      %p208 = por %p206, %p207
      %p209 = scmp.ne.s32.totalorder %s200, %s201
      %p210 = scmp.eq.s32.totalorder %s33, 0
      %p211 = por %p209, %p210
      %p212 = scmp.ne.s32.totalorder %s200, %s201
      %p213 = scmp.eq.s32.totalorder %s34, 1
      %p214 = por %p212, %p213
      %p216 = scmp.ne.s32.totalorder %s201, %s215
      %p217 = scmp.eq.s32.totalorder %s34, 0
      %p218 = por %p216, %p217
      %s220 = sadd.s32 %s219, 1
      %p223 = scmp.eq.s32.totalorder %s28, 1
      %p224 = scmp.ne.s32.totalorder %s219, %s221
      %p225 = scmp.eq.s32.totalorder %s28, 0
      %p226 = por %p224, %p225
      %p227 = scmp.ne.s32.totalorder %s219, %s221
      %p228 = scmp.eq.s32.totalorder %s33, 1
      %p229 = por %p227, %p228
      %p230 = scmp.ne.s32.totalorder %s221, %s222
      %p231 = scmp.eq.s32.totalorder %s33, 0
      %p232 = por %p230, %p231
      %p233 = scmp.ne.s32.totalorder %s221, %s222
      %p234 = scmp.eq.s32.totalorder %s34, 1
      %p235 = por %p233, %p234
      %p237 = scmp.ne.s32.totalorder %s222, %s236
      %p238 = scmp.eq.s32.totalorder %s34, 0
      %p239 = por %p237, %p238
      %s241 = sadd.s32 %s240, 1
      %p244 = scmp.eq.s32.totalorder %s28, 1
      %p245 = scmp.ne.s32.totalorder %s240, %s242
      %p246 = scmp.eq.s32.totalorder %s28, 0
      %p247 = por %p245, %p246
      %p248 = scmp.ne.s32.totalorder %s240, %s242
      %p249 = scmp.eq.s32.totalorder %s33, 1
      %p250 = por %p248, %p249
      %p251 = scmp.ne.s32.totalorder %s242, %s243
      %p252 = scmp.eq.s32.totalorder %s33, 0
      %p253 = por %p251, %p252
      %p254 = scmp.ne.s32.totalorder %s242, %s243
      %p255 = scmp.eq.s32.totalorder %s34, 1
      %p256 = por %p254, %p255
      %p258 = scmp.ne.s32.totalorder %s243, %s257
      %p259 = scmp.eq.s32.totalorder %s34, 0
      %p260 = por %p258, %p259
      %s262 = sadd.s32 %s261, 1
      %p265 = scmp.eq.s32.totalorder %s28, 1
      %p266 = scmp.ne.s32.totalorder %s261, %s263
      %p267 = scmp.eq.s32.totalorder %s28, 0
      %p268 = por %p266, %p267
      %p269 = scmp.ne.s32.totalorder %s261, %s263
      %p270 = scmp.eq.s32.totalorder %s33, 1
      %p271 = por %p269, %p270
      %p272 = scmp.ne.s32.totalorder %s263, %s264
      %p273 = scmp.eq.s32.totalorder %s33, 0
      %p274 = por %p272, %p273
      %p275 = scmp.ne.s32.totalorder %s263, %s264
      %p276 = scmp.eq.s32.totalorder %s34, 1
      %p277 = por %p275, %p276
      %p279 = scmp.ne.s32.totalorder %s264, %s278
      %p280 = scmp.eq.s32.totalorder %s34, 0
      %p281 = por %p279, %p280
      %s283 = sadd.s32 %s282, 1
      %p286 = scmp.eq.s32.totalorder %s28, 1
      %p287 = scmp.ne.s32.totalorder %s282, %s284
      %p288 = scmp.eq.s32.totalorder %s28, 0
      %p289 = por %p287, %p288
      %p290 = scmp.ne.s32.totalorder %s282, %s284
      %p291 = scmp.eq.s32.totalorder %s33, 1
      %p292 = por %p290, %p291
      %p293 = scmp.ne.s32.totalorder %s284, %s285
      %p294 = scmp.eq.s32.totalorder %s33, 0
      %p295 = por %p293, %p294
      %p296 = scmp.ne.s32.totalorder %s284, %s285
      %p297 = scmp.eq.s32.totalorder %s34, 1
      %p298 = por %p296, %p297
      %p300 = scmp.ne.s32.totalorder %s285, %s299
      %p301 = scmp.eq.s32.totalorder %s34, 0
      %p302 = por %p300, %p301
      %s304 = sadd.s32 %s303, 1
      %p307 = scmp.eq.s32.totalorder %s28, 1
      %p308 = scmp.ne.s32.totalorder %s303, %s305
      %p309 = scmp.eq.s32.totalorder %s28, 0
      %p310 = por %p308, %p309
      %p311 = scmp.ne.s32.totalorder %s303, %s305
      %p312 = scmp.eq.s32.totalorder %s33, 1
      %p313 = por %p311, %p312
      %p314 = scmp.ne.s32.totalorder %s305, %s306
      %p315 = scmp.eq.s32.totalorder %s33, 0
      %p316 = por %p314, %p315
      %p317 = scmp.ne.s32.totalorder %s305, %s306
      %p318 = scmp.eq.s32.totalorder %s34, 1
      %p319 = por %p317, %p318
      %p321 = scmp.ne.s32.totalorder %s306, %s320
      %p322 = scmp.eq.s32.totalorder %s34, 0
      %p323 = por %p321, %p322
      %s325 = sadd.s32 %s324, 1
      %p328 = scmp.eq.s32.totalorder %s28, 1
      %p329 = scmp.ne.s32.totalorder %s324, %s326
      %p330 = scmp.eq.s32.totalorder %s28, 0
      %p331 = por %p329, %p330
      %p332 = scmp.ne.s32.totalorder %s324, %s326
      %p333 = scmp.eq.s32.totalorder %s33, 1
      %p334 = por %p332, %p333
      %p335 = scmp.ne.s32.totalorder %s326, %s327
      %p336 = scmp.eq.s32.totalorder %s33, 0
      %p337 = por %p335, %p336
      %p338 = scmp.ne.s32.totalorder %s326, %s327
      %p339 = scmp.eq.s32.totalorder %s34, 1
      %p340 = por %p338, %p339
      %p342 = scmp.ne.s32.totalorder %s327, %s341
      %p343 = scmp.eq.s32.totalorder %s34, 0
      %p344 = por %p342, %p343
      %s346 = sadd.s32 %s345, 1
      %p349 = scmp.eq.s32.totalorder %s28, 1
      %p350 = scmp.ne.s32.totalorder %s345, %s347
      %p351 = scmp.eq.s32.totalorder %s28, 0
      %p352 = por %p350, %p351
      %p353 = scmp.ne.s32.totalorder %s345, %s347
      %p354 = scmp.eq.s32.totalorder %s33, 1
      %p355 = por %p353, %p354
      %p356 = scmp.ne.s32.totalorder %s347, %s348
      %p357 = scmp.eq.s32.totalorder %s33, 0
      %p358 = por %p356, %p357
      %p359 = scmp.ne.s32.totalorder %s347, %s348
      %p360 = scmp.eq.s32.totalorder %s34, 1
      %p361 = por %p359, %p360
      %p363 = scmp.ne.s32.totalorder %s348, %s362
      %p364 = scmp.eq.s32.totalorder %s34, 0
      %p365 = por %p363, %p364
      %s367 = sadd.s32 %s366, 1
      %p370 = scmp.eq.s32.totalorder %s28, 1
      %p371 = scmp.ne.s32.totalorder %s366, %s368
      %p372 = scmp.eq.s32.totalorder %s28, 0
      %p373 = por %p371, %p372
      %p374 = scmp.ne.s32.totalorder %s366, %s368
      %p375 = scmp.eq.s32.totalorder %s33, 1
      %p376 = por %p374, %p375
      %p377 = scmp.ne.s32.totalorder %s368, %s369
      %p378 = scmp.eq.s32.totalorder %s33, 0
      %p379 = por %p377, %p378
      %p380 = scmp.ne.s32.totalorder %s368, %s369
      %p381 = scmp.eq.s32.totalorder %s34, 1
      %p382 = por %p380, %p381
      %p384 = scmp.ne.s32.totalorder %s369, %s383
      %p385 = scmp.eq.s32.totalorder %s34, 0
      %p386 = por %p384, %p385
      %s388 = sadd.s32 %s387, 1
      %p391 = scmp.eq.s32.totalorder %s28, 1
      %p392 = scmp.ne.s32.totalorder %s387, %s389
      %p393 = scmp.eq.s32.totalorder %s28, 0
      %p394 = por %p392, %p393
      %p395 = scmp.ne.s32.totalorder %s387, %s389
      %p396 = scmp.eq.s32.totalorder %s33, 1
      %p397 = por %p395, %p396
      %p398 = scmp.ne.s32.totalorder %s389, %s390
      %p399 = scmp.eq.s32.totalorder %s33, 0
      %p400 = por %p398, %p399
      %p401 = scmp.ne.s32.totalorder %s389, %s390
      %p402 = scmp.eq.s32.totalorder %s34, 1
      %p403 = por %p401, %p402
      %p405 = scmp.ne.s32.totalorder %s390, %s404
      %p406 = scmp.eq.s32.totalorder %s34, 0
      %p407 = por %p405, %p406
      %s409 = sadd.s32 %s408, 1
      %p412 = scmp.eq.s32.totalorder %s28, 1
      %p413 = scmp.ne.s32.totalorder %s408, %s410
      %p414 = scmp.eq.s32.totalorder %s28, 0
      %p415 = por %p413, %p414
      %p416 = scmp.ne.s32.totalorder %s408, %s410
      %p417 = scmp.eq.s32.totalorder %s33, 1
      %p418 = por %p416, %p417
      %p419 = scmp.ne.s32.totalorder %s410, %s411
      %p420 = scmp.eq.s32.totalorder %s33, 0
      %p421 = por %p419, %p420
      %p422 = scmp.ne.s32.totalorder %s410, %s411
      %p423 = scmp.eq.s32.totalorder %s34, 1
      %p424 = por %p422, %p423
      %p426 = scmp.ne.s32.totalorder %s411, %s425
      %p427 = scmp.eq.s32.totalorder %s34, 0
      %p428 = por %p426, %p427
      %s430 = sadd.s32 %s429, 1
      %p433 = scmp.eq.s32.totalorder %s28, 1
      %p434 = scmp.ne.s32.totalorder %s429, %s431
      %p435 = scmp.eq.s32.totalorder %s28, 0
      %p436 = por %p434, %p435
      %p437 = scmp.ne.s32.totalorder %s429, %s431
      %p438 = scmp.eq.s32.totalorder %s33, 1
      %p439 = por %p437, %p438
      %p440 = scmp.ne.s32.totalorder %s431, %s432
      %p441 = scmp.eq.s32.totalorder %s33, 0
      %p442 = por %p440, %p441
      %p443 = scmp.ne.s32.totalorder %s431, %s432
      %p444 = scmp.eq.s32.totalorder %s34, 1
      %p445 = por %p443, %p444
      %p447 = scmp.ne.s32.totalorder %s432, %s446
      %p448 = scmp.eq.s32.totalorder %s34, 0
      %p449 = por %p447, %p448
      %s450 = ssub.s32 %s28, %s35
      %p451 = scmp.eq.s32.totalorder %s450, 0
      %s453 = sadd.s32 %s452, 1
      %s454 = scalar_select %p451, %s452, %s453
      %p457 = pneg %p451
      %p458 = scmp.eq.s32.totalorder %s28, 1
      %p459 = por %p457, %p458
      %p460 = scmp.ne.s32.totalorder %s452, %s455
      %p461 = scmp.eq.s32.totalorder %s28, 0
      %p462 = por %p460, %p461
      %p463 = scmp.ne.s32.totalorder %s452, %s455
      %p464 = scmp.eq.s32.totalorder %s33, 1
      %p465 = por %p463, %p464
      %p466 = scmp.ne.s32.totalorder %s455, %s456
      %p467 = scmp.eq.s32.totalorder %s33, 0
      %p468 = por %p466, %p467
      %p469 = scmp.ne.s32.totalorder %s455, %s456
      %p470 = scmp.eq.s32.totalorder %s34, 1
      %p471 = por %p469, %p470
      %p473 = scmp.ne.s32.totalorder %s456, %s472
      %p474 = scmp.eq.s32.totalorder %s34, 0
      %p475 = por %p473, %p474
      %p476 = scmp.le.s32.totalorder 1, %s28
      %p477 = scmp.lt.s32.totalorder %s28, 3
      %p478 = pnand %p476, %p477
      %p479 = pneg %p478
      // Predicated region
      $region9: #{transformer_encoder_forward.3} parent=5 // pred_check
        _
      $region10: #{transformer_encoder_forward.3} parent=5 // pred_check_branch
        %481 = sbr.rel (%p478) target = $region12
      $region11: #{transformer_encoder_forward.3} parent=5 // pred_region
        %s482 = ssub.s32 %s28, 1
        // Predicated region
        $region13: #{transformer_encoder_forward.3} parent=11 // pred_check
          %p483 = pneg %p101
        $region14: #{transformer_encoder_forward.3} parent=11 // pred_check_branch
          %485 = sbr.rel (%p483) target = $region16
        $region15: #{transformer_encoder_forward.3} parent=11 // pred_region
          _
        $region16: #{transformer_encoder_forward.3} parent=11 // pred_fallthru
          _
        // Predicated region
        $region17: #{transformer_encoder_forward.3} parent=11 // pred_check
          %p486 = pneg %p148
        $region18: #{transformer_encoder_forward.3} parent=11 // pred_check_branch
          %488 = sbr.rel (%p486) target = $region20
        $region19: #{transformer_encoder_forward.3} parent=11 // pred_region
          _
        $region20: #{transformer_encoder_forward.3} parent=11 // pred_fallthru
          _
        // Predicated region
        $region21: #{transformer_encoder_forward.3} parent=11 // pred_check
          %p489 = pneg %p169
        $region22: #{transformer_encoder_forward.3} parent=11 // pred_check_branch
          %491 = sbr.rel (%p489) target = $region24
        $region23: #{transformer_encoder_forward.3} parent=11 // pred_region
          _
        $region24: #{transformer_encoder_forward.3} parent=11 // pred_fallthru
          _
        // Predicated region
        $region25: #{transformer_encoder_forward.3} parent=11 // pred_check
          %p492 = pneg %p190
        $region26: #{transformer_encoder_forward.3} parent=11 // pred_check_branch
          %494 = sbr.rel (%p492) target = $region28
        $region27: #{transformer_encoder_forward.3} parent=11 // pred_region
          _
        $region28: #{transformer_encoder_forward.3} parent=11 // pred_fallthru
          _
        // Predicated region
        $region29: #{transformer_encoder_forward.3} parent=11 // pred_check
          %p495 = pneg %p211
        $region30: #{transformer_encoder_forward.3} parent=11 // pred_check_branch
          %497 = sbr.rel (%p495) target = $region32
        $region31: #{transformer_encoder_forward.3} parent=11 // pred_region
          _
        $region32: #{transformer_encoder_forward.3} parent=11 // pred_fallthru
          _
        // Predicated region
        $region33: #{transformer_encoder_forward.3} parent=11 // pred_check
          %p498 = pneg %p232
        $region34: #{transformer_encoder_forward.3} parent=11 // pred_check_branch
          %500 = sbr.rel (%p498) target = $region36
        $region35: #{transformer_encoder_forward.3} parent=11 // pred_region
          _
        $region36: #{transformer_encoder_forward.3} parent=11 // pred_fallthru
          _
        // Predicated region
        $region37: #{transformer_encoder_forward.3} parent=11 // pred_check
          %p501 = pneg %p253
        $region38: #{transformer_encoder_forward.3} parent=11 // pred_check_branch
          %503 = sbr.rel (%p501) target = $region40
        $region39: #{transformer_encoder_forward.3} parent=11 // pred_region
          _
        $region40: #{transformer_encoder_forward.3} parent=11 // pred_fallthru
          _
        // Predicated region
        $region41: #{transformer_encoder_forward.3} parent=11 // pred_check
          %p504 = pneg %p274
        $region42: #{transformer_encoder_forward.3} parent=11 // pred_check_branch
          %506 = sbr.rel (%p504) target = $region44
        $region43: #{transformer_encoder_forward.3} parent=11 // pred_region
          _
        $region44: #{transformer_encoder_forward.3} parent=11 // pred_fallthru
          _
        // Predicated region
        $region45: #{transformer_encoder_forward.3} parent=11 // pred_check
          %p507 = pneg %p295
        $region46: #{transformer_encoder_forward.3} parent=11 // pred_check_branch
          %509 = sbr.rel (%p507) target = $region48
        $region47: #{transformer_encoder_forward.3} parent=11 // pred_region
          _
        $region48: #{transformer_encoder_forward.3} parent=11 // pred_fallthru
          _
        // Predicated region
        $region49: #{transformer_encoder_forward.3} parent=11 // pred_check
          %p510 = pneg %p316
        $region50: #{transformer_encoder_forward.3} parent=11 // pred_check_branch
          %512 = sbr.rel (%p510) target = $region52
        $region51: #{transformer_encoder_forward.3} parent=11 // pred_region
          _
        $region52: #{transformer_encoder_forward.3} parent=11 // pred_fallthru
          _
        // Predicated region
        $region53: #{transformer_encoder_forward.3} parent=11 // pred_check
          %p513 = pneg %p337
        $region54: #{transformer_encoder_forward.3} parent=11 // pred_check_branch
          %515 = sbr.rel (%p513) target = $region56
        $region55: #{transformer_encoder_forward.3} parent=11 // pred_region
          _
        $region56: #{transformer_encoder_forward.3} parent=11 // pred_fallthru
          _
        // Predicated region
        $region57: #{transformer_encoder_forward.3} parent=11 // pred_check
          %p516 = pneg %p358
        $region58: #{transformer_encoder_forward.3} parent=11 // pred_check_branch
          %518 = sbr.rel (%p516) target = $region60
        $region59: #{transformer_encoder_forward.3} parent=11 // pred_region
          _
        $region60: #{transformer_encoder_forward.3} parent=11 // pred_fallthru
          _
        // Predicated region
        $region61: #{transformer_encoder_forward.3} parent=11 // pred_check
          %p519 = pneg %p379
        $region62: #{transformer_encoder_forward.3} parent=11 // pred_check_branch
          %521 = sbr.rel (%p519) target = $region64
        $region63: #{transformer_encoder_forward.3} parent=11 // pred_region
          _
        $region64: #{transformer_encoder_forward.3} parent=11 // pred_fallthru
          _
        // Predicated region
        $region65: #{transformer_encoder_forward.3} parent=11 // pred_check
          %p522 = pneg %p400
        $region66: #{transformer_encoder_forward.3} parent=11 // pred_check_branch
          %524 = sbr.rel (%p522) target = $region68
        $region67: #{transformer_encoder_forward.3} parent=11 // pred_region
          _
        $region68: #{transformer_encoder_forward.3} parent=11 // pred_fallthru
          _
        // Predicated region
        $region69: #{transformer_encoder_forward.3} parent=11 // pred_check
          %p525 = pneg %p421
        $region70: #{transformer_encoder_forward.3} parent=11 // pred_check_branch
          %527 = sbr.rel (%p525) target = $region72
        $region71: #{transformer_encoder_forward.3} parent=11 // pred_region
          _
        $region72: #{transformer_encoder_forward.3} parent=11 // pred_fallthru
          _
        // Predicated region
        $region73: #{transformer_encoder_forward.3} parent=11 // pred_check
          %p528 = pneg %p442
        $region74: #{transformer_encoder_forward.3} parent=11 // pred_check_branch
          %530 = sbr.rel (%p528) target = $region76
        $region75: #{transformer_encoder_forward.3} parent=11 // pred_region
          _
        $region76: #{transformer_encoder_forward.3} parent=11 // pred_fallthru
          _
      $region12: #{transformer_encoder_forward.3} parent=5 // pred_fallthru
        _
      %p531 = scmp.lt.s32.totalorder %s28, 2
      // Predicated region
      $region77: #{transformer_encoder_forward.3} parent=5 // pred_check
        %p532 = pneg %p531
      $region78: #{transformer_encoder_forward.3} parent=5 // pred_check_branch
        %534 = sbr.rel (%p532) target = $region80
      $region79: #{transformer_encoder_forward.3} parent=5 // pred_region
        // Predicated region
        $region81: #{transformer_encoder_forward.3} parent=79 // pred_check
          %p535 = pneg %p48
        $region82: #{transformer_encoder_forward.3} parent=79 // pred_check_branch
          %537 = sbr.rel (%p535) target = $region84
        $region83: #{transformer_encoder_forward.3} parent=79 // pred_region
          %p538 = scmp.lt.s32.totalorder %s28, 1
          %s539 = scalar_select %p538, %s28, 1
          %s540 = smul.addr %s539, 2
          %s541 = smul.addr %s540, 8
          %s542 = scalar_lea.vmem %s0, %s541
        $region84: #{transformer_encoder_forward.3} parent=79 // pred_fallthru
          _
        // Predicated region
        $region85: #{transformer_encoder_forward.3} parent=79 // pred_check
          %p543 = pneg %p74
        $region86: #{transformer_encoder_forward.3} parent=79 // pred_check_branch
          %545 = sbr.rel (%p543) target = $region88
        $region87: #{transformer_encoder_forward.3} parent=79 // pred_region
          %p546 = scmp.lt.s32.totalorder %s28, 1
          %s547 = scalar_select %p546, %s28, 1
          %s548 = smul.addr %s547, 2
          %s549 = smul.addr %s548, 8
          %s550 = scalar_lea.vmem %s1, %s549
        $region88: #{transformer_encoder_forward.3} parent=79 // pred_fallthru
          _
        // Predicated region
        $region89: #{transformer_encoder_forward.3} parent=79 // pred_check
          %p551 = pneg %p121
        $region90: #{transformer_encoder_forward.3} parent=79 // pred_check_branch
          %553 = sbr.rel (%p551) target = $region92
        $region91: #{transformer_encoder_forward.3} parent=79 // pred_region
          %p554 = scmp.lt.s32.totalorder %s28, 1
          %s555 = scalar_select %p554, %s28, 1
          %s556 = smul.addr %s555, 2
          %s557 = smul.addr %s556, 8
          %s558 = scalar_lea.vmem %s3, %s557
        $region92: #{transformer_encoder_forward.3} parent=79 // pred_fallthru
          _
      $region80: #{transformer_encoder_forward.3} parent=5 // pred_fallthru
        _
      %p559 = scmp.le.s32.totalorder 1, %s28
      %p560 = scmp.lt.s32.totalorder %s28, 3
      %p561 = pnand %p559, %p560
      %p562 = pneg %p561
      // Predicated region
      $region93: #{transformer_encoder_forward.3} parent=5 // pred_check
        _
      $region94: #{transformer_encoder_forward.3} parent=5 // pred_check_branch
        %564 = sbr.rel (%p561) target = $region96
      $region95: #{transformer_encoder_forward.3} parent=5 // pred_region
        %s565 = ssub.s32 %s28, 1
        %p566 = scmp.lt.s32.totalorder %s33, 1
        %s567 = scalar_select %p566, %s33, 1
        %s568 = smul.addr %s567, 2
        %s569 = smul.addr %s568, 8
        %s570 = scalar_lea.vmem %s0, %s569
        %p571 = pneg %p54
        %p572 = pneg %p51
        %p573 = scmp.lt.s32.totalorder %s33, 1
        %s574 = scalar_select %p573, %s33, 1
        %s575 = smul.addr %s574, 2
        %s576 = smul.addr %s575, 8
        %s577 = scalar_lea.vmem %s1, %s576
        %p578 = pneg %p80
        %p579 = pneg %p77
        %p580 = pneg %p101
        %p581 = pneg %p98
        %p582 = scmp.lt.s32.totalorder %s33, 1
        %s583 = scalar_select %p582, %s33, 1
        %s584 = smul.addr %s583, 2
        %s585 = smul.addr %s584, 8
        %s586 = scalar_lea.vmem %s3, %s585
        %p587 = pneg %p127
        %p588 = pneg %p124
        %p589 = pneg %p148
        %p590 = pneg %p145
        %p591 = pneg %p169
        %p592 = pneg %p166
        %p593 = pneg %p190
        %p594 = pneg %p187
        %p595 = pneg %p211
        %p596 = pneg %p208
        %p597 = pneg %p232
        %p598 = pneg %p229
        %p599 = pneg %p253
        %p600 = pneg %p250
        %p601 = pneg %p274
        %p602 = pneg %p271
        %p603 = pneg %p295
        %p604 = pneg %p292
        %p605 = pneg %p316
        %p606 = pneg %p313
        %p607 = pneg %p337
        %p608 = pneg %p334
        %p609 = pneg %p358
        %p610 = pneg %p355
        %p611 = pneg %p379
        %p612 = pneg %p376
        %p613 = pneg %p400
        %p614 = pneg %p397
        %p615 = pneg %p421
        %p616 = pneg %p418
        %p617 = pneg %p442
        %p618 = pneg %p439
        %p619 = pneg %p468
        %p620 = pneg %p465
        %s621 = sand.u32 %s455, 1
        %s622 = scalar_lea.sflag [#allocation3], %s621
        %s623 = sand.u32 %s455, 1
        %s624 = smul.addr %s623, 16
        %s625 = scalar_lea.vmem [#allocation2], %s624
        %p626 = scmp.lt.s32.totalorder %s33, 1
        %s627 = scalar_select %p626, %s33, 1
        %s628 = smul.addr %s627, 2
        %s629 = smul.addr %s628, 8
        %s630 = scalar_lea.vmem %s0, %s629
        %p631 = scmp.lt.s32.totalorder %s33, 1
        %s632 = scalar_select %p631, %s33, 1
        %s633 = smul.addr %s632, 2
        %s634 = smul.addr %s633, 8
        %s635 = scalar_lea.vmem %s1, %s634
        %p636 = scmp.lt.s32.totalorder %s33, 1
        %s637 = scalar_select %p636, %s33, 1
        %s638 = smul.addr %s637, 2
        %s639 = smul.addr %s638, 8
        %s640 = scalar_lea.vmem %s3, %s639
        %v641 = vld [vmem:[%s630] sm:$0xff]
        %v642 = vld [vmem:[%s630 + $0x8] sm:$0xff]
        %v643 = vld [vmem:[%s4] sm:$0x1]
        %v644 = vld [vmem:[%s5] sm:$0x1]
        %vm645 = vcmask 261120
        %v646 = vsel %vm645, %v641, 0.0
        %647 = vadd.xlane.f32.xlu0 %v646
        %v648 = vpop.xlane.xlu0 %647
        %v649 = vsel %vm645, %v642, 0.0
        %650 = vadd.xlane.f32.xlu0 %v649
        %v651 = vpop.xlane.xlu0 %650
        %v652 = vrcp.pop 32.0
        %v653 = vmul.f32 %v648, %v652
        %v654 = vmul.f32 %v651, %v652
        %v655 = vsub.f32 %v641, %v653
        %v656 = vsub.f32 %v642, %v654
        %v657 = vmul.f32 %v655, %v655
        %v658 = vmul.f32 %v656, %v656
        %v659 = vsel %vm645, %v657, 0.0
        %660 = vadd.xlane.f32.xlu0 %v659
        %v661 = vpop.xlane.xlu0 %660
        %v662 = vsel %vm645, %v658, 0.0
        %663 = vadd.xlane.f32.xlu0 %v662
        %v664 = vpop.xlane.xlu0 %663
        %v665 = vmul.f32 %v661, %v652
        %v666 = vmul.f32 %v664, %v652
        %v667 = vadd.f32 %v665, 1e-05
        %v668 = vadd.f32 %v666, 1e-05
        %v669 = vrsqrt.pop %v667
        %v670 = vrsqrt.pop %v668
        %v671 = vmul.f32 %v655, %v669
        %v672 = vmul.f32 %v656, %v670
        %v674 = vlaneseq
        %v675 = vshrl.u32 %v674, 7
        %v676 = vsub.s32 0, %v675
        %v677 = vrot.slane %v643, %v676
        %v679 = vmul.f32 %v671, %v677
        %v680 = vmul.f32 %v672, %v677
        %v682 = vlaneseq
        %v683 = vshrl.u32 %v682, 7
        %v684 = vsub.s32 0, %v683
        %v685 = vrot.slane %v644, %v684
        %v687 = vadd.f32 %v679, %v685
        %v688 = vadd.f32 %v680, %v685
        %v689 = vld [vmem:[%s11] sm:$0xf]
        %v690 = vld [vmem:[%s12] sm:$0xf]
        %v691 = vld [vmem:[%s635] sm:$0xff]
        %v692 = vld [vmem:[%s635 + $0x8] sm:$0xff]
        %v693 = vld [vmem:[%s6] sm:$0xff]
        %v694 = vld [vmem:[%s6 + $0x8] sm:$0xff]
        %v695 = vld [vmem:[%s6 + $0x10] sm:$0xff]
        %v696 = vld [vmem:[%s6 + $0x18] sm:$0xff]
        %v698 = vsel %vm645, %v687, 0
        %v701 = vsel %vm645, %v688, 0
        %703 = vmatprep.subr.mxu0 0.0
        %704 = vmatpush1.msra.mxu0 0.0
        %705 = vmatprep.subr.mxu0 0.0
        %706 = vmatpush1.msra.mxu0 0.0
        %707 = vmatprep.subr.mxu0 0.0
        %708 = vmatpush1.msra.mxu0 0.0
        %709 = vmatprep.subr.mxu0 0.0
        %710 = vmatpush1.msra.mxu0 0.0
        %711 = vmatprep.subr.mxu0 0.0
        %712 = vmatpush1.msra.mxu0 0.0
        %713 = vmatprep.subr.mxu0 0.0
        %714 = vmatpush1.msra.mxu0 0.0
        %715 = vmatprep.subr.mxu0 0.0
        %716 = vmatpush1.msra.mxu0 0.0
        %717 = vmatprep.subr.mxu0 0.0
        %718 = vmatpush1.msra.mxu0 0.0
        %719 = vmatprep.subr.mxu0 0.0
        %720 = vmatpush1.msra.mxu0 0.0
        %721 = vmatprep.subr.mxu0 0.0
        %722 = vmatpush1.msra.mxu0 0.0
        %723 = vmatprep.subr.mxu0 0.0
        %724 = vmatpush1.msra.mxu0 0.0
        %725 = vmatprep.subr.mxu0 0.0
        %726 = vmatpush1.msra.mxu0 0.0
        %727 = vmatprep.subr.mxu0 0.0
        %728 = vmatpush1.msra.mxu0 %v696
        %729 = vmatprep.subr.mxu0 0.0
        %730 = vmatpush1.msra.mxu0 %v695
        %731 = vmatprep.subr.mxu0 0.0
        %732 = vmatpush1.msra.mxu0 %v694
        %733 = vmatprep.subr.mxu0 0.0
        %734 = vmatpush1.msra.mxu0 %v693
        %735 = vmatprep.subr.mxu0 0.0
        %736 = vmatpush2.msra.mxu0 0.0
        %737 = vmatprep.subr.mxu0 0.0
        %738 = vmatpush2.msra.mxu0 0.0
        %739 = vmatprep.subr.mxu0 0.0
        %740 = vmatpush2.msra.mxu0 0.0
        %741 = vmatprep.subr.mxu0 0.0
        %742 = vmatpush2.msra.mxu0 0.0
        %743 = vmatprep.subr.mxu0 0.0
        %744 = vmatpush2.msra.mxu0 0.0
        %745 = vmatprep.subr.mxu0 0.0
        %746 = vmatpush2.msra.mxu0 0.0
        %747 = vmatprep.subr.mxu0 0.0
        %748 = vmatpush2.msra.mxu0 0.0
        %749 = vmatprep.subr.mxu0 0.0
        %750 = vmatpush2.msra.mxu0 0.0
        %751 = vmatprep.subr.mxu0 0.0
        %752 = vmatpush2.msra.mxu0 0.0
        %753 = vmatprep.subr.mxu0 0.0
        %754 = vmatpush2.msra.mxu0 0.0
        %755 = vmatprep.subr.mxu0 0.0
        %756 = vmatpush2.msra.mxu0 0.0
        %757 = vmatprep.subr.mxu0 0.0
        %758 = vmatpush2.msra.mxu0 0.0
        %759 = vmatprep.subr.mxu0 0.0
        %760 = vmatpush2.msra.mxu0 0.0
        %761 = vmatprep.subr.mxu0 0.0
        %762 = vmatpush2.msra.mxu0 0.0
        %763 = vmatprep.subr.mxu0 0.0
        %764 = vmatpush2.msra.mxu0 0.0
        %765 = vmatprep.subr.mxu0 0.0
        %766 = vmatpush2.msra.mxu0 0.0
        %767 = vmatprep.mubr.f32.mxu0 0.0
        %768 = vmatmul.mubr.f32.gmra.mxu0 %v698
        %v769 = vpop.f32.mrf.mxu0
        %v770 = vadd.f32 0.0, %v769
        %v771 = vpop.f32.mrf.mxu0
        %772 = vmatprep.mubr.f32.mxu0 0.0
        %773 = vmatmul.mubr.f32.gmra.mxu0 %v701
        %v774 = vpop.f32.mrf.mxu0
        %v775 = vadd.f32 0.0, %v774
        %v776 = vpop.f32.mrf.mxu0
        %777 = vdwg.mxu0
        %v778 = vld [vmem:[%s7] sm:$0xff]
        %v779 = vld [vmem:[%s7 + $0x8] sm:$0xff]
        %v780 = vld [vmem:[%s7 + $0x10] sm:$0xff]
        %v781 = vld [vmem:[%s7 + $0x18] sm:$0xff]
        %782 = vmatprep.subr.mxu0 0.0
        %783 = vmatpush1.msra.mxu0 0.0
        %784 = vmatprep.subr.mxu0 0.0
        %785 = vmatpush1.msra.mxu0 0.0
        %786 = vmatprep.subr.mxu0 0.0
        %787 = vmatpush1.msra.mxu0 0.0
        %788 = vmatprep.subr.mxu0 0.0
        %789 = vmatpush1.msra.mxu0 0.0
        %790 = vmatprep.subr.mxu0 0.0
        %791 = vmatpush1.msra.mxu0 0.0
        %792 = vmatprep.subr.mxu0 0.0
        %793 = vmatpush1.msra.mxu0 0.0
        %794 = vmatprep.subr.mxu0 0.0
        %795 = vmatpush1.msra.mxu0 0.0
        %796 = vmatprep.subr.mxu0 0.0
        %797 = vmatpush1.msra.mxu0 0.0
        %798 = vmatprep.subr.mxu0 0.0
        %799 = vmatpush1.msra.mxu0 0.0
        %800 = vmatprep.subr.mxu0 0.0
        %801 = vmatpush1.msra.mxu0 0.0
        %802 = vmatprep.subr.mxu0 0.0
        %803 = vmatpush1.msra.mxu0 0.0
        %804 = vmatprep.subr.mxu0 0.0
        %805 = vmatpush1.msra.mxu0 0.0
        %806 = vmatprep.subr.mxu0 0.0
        %807 = vmatpush1.msra.mxu0 %v781
        %808 = vmatprep.subr.mxu0 0.0
        %809 = vmatpush1.msra.mxu0 %v780
        %810 = vmatprep.subr.mxu0 0.0
        %811 = vmatpush1.msra.mxu0 %v779
        %812 = vmatprep.subr.mxu0 0.0
        %813 = vmatpush1.msra.mxu0 %v778
        %814 = vmatprep.subr.mxu0 0.0
        %815 = vmatpush2.msra.mxu0 0.0
        %816 = vmatprep.subr.mxu0 0.0
        %817 = vmatpush2.msra.mxu0 0.0
        %818 = vmatprep.subr.mxu0 0.0
        %819 = vmatpush2.msra.mxu0 0.0
        %820 = vmatprep.subr.mxu0 0.0
        %821 = vmatpush2.msra.mxu0 0.0
        %822 = vmatprep.subr.mxu0 0.0
        %823 = vmatpush2.msra.mxu0 0.0
        %824 = vmatprep.subr.mxu0 0.0
        %825 = vmatpush2.msra.mxu0 0.0
        %826 = vmatprep.subr.mxu0 0.0
        %827 = vmatpush2.msra.mxu0 0.0
        %828 = vmatprep.subr.mxu0 0.0
        %829 = vmatpush2.msra.mxu0 0.0
        %830 = vmatprep.subr.mxu0 0.0
        %831 = vmatpush2.msra.mxu0 0.0
        %832 = vmatprep.subr.mxu0 0.0
        %833 = vmatpush2.msra.mxu0 0.0
        %834 = vmatprep.subr.mxu0 0.0
        %835 = vmatpush2.msra.mxu0 0.0
        %836 = vmatprep.subr.mxu0 0.0
        %837 = vmatpush2.msra.mxu0 0.0
        %838 = vmatprep.subr.mxu0 0.0
        %839 = vmatpush2.msra.mxu0 0.0
        %840 = vmatprep.subr.mxu0 0.0
        %841 = vmatpush2.msra.mxu0 0.0
        %842 = vmatprep.subr.mxu0 0.0
        %843 = vmatpush2.msra.mxu0 0.0
        %844 = vmatprep.subr.mxu0 0.0
        %845 = vmatpush2.msra.mxu0 0.0
        %846 = vmatprep.mubr.f32.mxu0 0.0
        %847 = vmatmul.mubr.f32.gmra.mxu0 %v698
        %v848 = vpop.f32.mrf.mxu0
        %v849 = vadd.f32 0.0, %v848
        %v850 = vpop.f32.mrf.mxu0
        %851 = vmatprep.mubr.f32.mxu0 0.0
        %852 = vmatmul.mubr.f32.gmra.mxu0 %v701
        %v853 = vpop.f32.mrf.mxu0
        %v854 = vadd.f32 0.0, %v853
        %v855 = vpop.f32.mrf.mxu0
        %856 = vdwg.mxu0
        %v857 = vld [vmem:[%s8] sm:$0xff]
        %v858 = vld [vmem:[%s8 + $0x8] sm:$0xff]
        %v859 = vld [vmem:[%s8 + $0x10] sm:$0xff]
        %v860 = vld [vmem:[%s8 + $0x18] sm:$0xff]
        %861 = vmatprep.subr.mxu0 0.0
        %862 = vmatpush1.msra.mxu0 0.0
        %863 = vmatprep.subr.mxu0 0.0
        %864 = vmatpush1.msra.mxu0 0.0
        %865 = vmatprep.subr.mxu0 0.0
        %866 = vmatpush1.msra.mxu0 0.0
        %867 = vmatprep.subr.mxu0 0.0
        %868 = vmatpush1.msra.mxu0 0.0
        %869 = vmatprep.subr.mxu0 0.0
        %870 = vmatpush1.msra.mxu0 0.0
        %871 = vmatprep.subr.mxu0 0.0
        %872 = vmatpush1.msra.mxu0 0.0
        %873 = vmatprep.subr.mxu0 0.0
        %874 = vmatpush1.msra.mxu0 0.0
        %875 = vmatprep.subr.mxu0 0.0
        %876 = vmatpush1.msra.mxu0 0.0
        %877 = vmatprep.subr.mxu0 0.0
        %878 = vmatpush1.msra.mxu0 0.0
        %879 = vmatprep.subr.mxu0 0.0
        %880 = vmatpush1.msra.mxu0 0.0
        %881 = vmatprep.subr.mxu0 0.0
        %882 = vmatpush1.msra.mxu0 0.0
        %883 = vmatprep.subr.mxu0 0.0
        %884 = vmatpush1.msra.mxu0 0.0
        %885 = vmatprep.subr.mxu0 0.0
        %886 = vmatpush1.msra.mxu0 %v860
        %887 = vmatprep.subr.mxu0 0.0
        %888 = vmatpush1.msra.mxu0 %v859
        %889 = vmatprep.subr.mxu0 0.0
        %890 = vmatpush1.msra.mxu0 %v858
        %891 = vmatprep.subr.mxu0 0.0
        %892 = vmatpush1.msra.mxu0 %v857
        %893 = vmatprep.subr.mxu0 0.0
        %894 = vmatpush2.msra.mxu0 0.0
        %895 = vmatprep.subr.mxu0 0.0
        %896 = vmatpush2.msra.mxu0 0.0
        %897 = vmatprep.subr.mxu0 0.0
        %898 = vmatpush2.msra.mxu0 0.0
        %899 = vmatprep.subr.mxu0 0.0
        %900 = vmatpush2.msra.mxu0 0.0
        %901 = vmatprep.subr.mxu0 0.0
        %902 = vmatpush2.msra.mxu0 0.0
        %903 = vmatprep.subr.mxu0 0.0
        %904 = vmatpush2.msra.mxu0 0.0
        %905 = vmatprep.subr.mxu0 0.0
        %906 = vmatpush2.msra.mxu0 0.0
        %907 = vmatprep.subr.mxu0 0.0
        %908 = vmatpush2.msra.mxu0 0.0
        %909 = vmatprep.subr.mxu0 0.0
        %910 = vmatpush2.msra.mxu0 0.0
        %911 = vmatprep.subr.mxu0 0.0
        %912 = vmatpush2.msra.mxu0 0.0
        %913 = vmatprep.subr.mxu0 0.0
        %914 = vmatpush2.msra.mxu0 0.0
        %915 = vmatprep.subr.mxu0 0.0
        %916 = vmatpush2.msra.mxu0 0.0
        %917 = vmatprep.subr.mxu0 0.0
        %918 = vmatpush2.msra.mxu0 0.0
        %919 = vmatprep.subr.mxu0 0.0
        %920 = vmatpush2.msra.mxu0 0.0
        %921 = vmatprep.subr.mxu0 0.0
        %922 = vmatpush2.msra.mxu0 0.0
        %923 = vmatprep.subr.mxu0 0.0
        %924 = vmatpush2.msra.mxu0 0.0
        %925 = vmatprep.mubr.f32.mxu0 0.0
        %926 = vmatmul.mubr.f32.gmra.mxu0 %v698
        %v927 = vpop.f32.mrf.mxu0
        %v928 = vadd.f32 0.0, %v927
        %v929 = vpop.f32.mrf.mxu0
        %930 = vmatprep.mubr.f32.mxu0 0.0
        %931 = vmatmul.mubr.f32.gmra.mxu0 %v701
        %v932 = vpop.f32.mrf.mxu0
        %v933 = vadd.f32 0.0, %v932
        %v934 = vpop.f32.mrf.mxu0
        %935 = vdwg.mxu0
        %v936 = vld [vmem:[%s2] sm:$0xff]
        %v937 = vld [vmem:[%s2 + $0x8] sm:$0xff]
        %vm938 = vcmask 64512
        %v940 = vsel %vm938, %v770, 0
        %v943 = vsel %vm938, %v775, 0
        %v946 = vsel %vm938, %v849, 0
        %v949 = vsel %vm938, %v854, 0
        %951 = vmatprep.subr.mxu0 0.0
        %952 = vmatpush1.xpose.msra.mxu0 0.0
        %953 = vmatprep.subr.mxu0 0.0
        %954 = vmatpush1.xpose.msra.mxu0 0.0
        %955 = vmatprep.subr.mxu0 0.0
        %956 = vmatpush1.xpose.msra.mxu0 0.0
        %957 = vmatprep.subr.mxu0 0.0
        %958 = vmatpush1.xpose.msra.mxu0 0.0
        %959 = vmatprep.subr.mxu0 0.0
        %960 = vmatpush1.xpose.msra.mxu0 0.0
        %961 = vmatprep.subr.mxu0 0.0
        %962 = vmatpush1.xpose.msra.mxu0 0.0
        %963 = vmatprep.subr.mxu0 0.0
        %964 = vmatpush1.xpose.msra.mxu0 0.0
        %965 = vmatprep.subr.mxu0 0.0
        %966 = vmatpush1.xpose.msra.mxu0 0.0
        %967 = vmatprep.subr.mxu0 0.0
        %968 = vmatpush1.xpose.msra.mxu0 0.0
        %969 = vmatprep.subr.mxu0 0.0
        %970 = vmatpush1.xpose.msra.mxu0 0.0
        %971 = vmatprep.subr.mxu0 0.0
        %972 = vmatpush1.xpose.msra.mxu0 0.0
        %973 = vmatprep.subr.mxu0 0.0
        %974 = vmatpush1.xpose.msra.mxu0 0.0
        %975 = vmatprep.subr.mxu0 0.0
        %976 = vmatpush1.xpose.msra.mxu0 0.0
        %977 = vmatprep.subr.mxu0 0.0
        %978 = vmatpush1.xpose.msra.mxu0 0.0
        %979 = vmatprep.subr.mxu0 0.0
        %980 = vmatpush1.xpose.msra.mxu0 %v949
        %981 = vmatprep.subr.mxu0 0.0
        %982 = vmatpush1.xpose.msra.mxu0 %v946
        %983 = vmatprep.subr.mxu0 0.0
        %984 = vmatpush2.xpose.msra.mxu0 0.0
        %985 = vmatprep.subr.mxu0 0.0
        %986 = vmatpush2.xpose.msra.mxu0 0.0
        %987 = vmatprep.subr.mxu0 0.0
        %988 = vmatpush2.xpose.msra.mxu0 0.0
        %989 = vmatprep.subr.mxu0 0.0
        %990 = vmatpush2.xpose.msra.mxu0 0.0
        %991 = vmatprep.subr.mxu0 0.0
        %992 = vmatpush2.xpose.msra.mxu0 0.0
        %993 = vmatprep.subr.mxu0 0.0
        %994 = vmatpush2.xpose.msra.mxu0 0.0
        %995 = vmatprep.subr.mxu0 0.0
        %996 = vmatpush2.xpose.msra.mxu0 0.0
        %997 = vmatprep.subr.mxu0 0.0
        %998 = vmatpush2.xpose.msra.mxu0 0.0
        %999 = vmatprep.subr.mxu0 0.0
        %1000 = vmatpush2.xpose.msra.mxu0 0.0
        %1001 = vmatprep.subr.mxu0 0.0
        %1002 = vmatpush2.xpose.msra.mxu0 0.0
        %1003 = vmatprep.subr.mxu0 0.0
        %1004 = vmatpush2.xpose.msra.mxu0 0.0
        %1005 = vmatprep.subr.mxu0 0.0
        %1006 = vmatpush2.xpose.msra.mxu0 0.0
        %1007 = vmatprep.subr.mxu0 0.0
        %1008 = vmatpush2.xpose.msra.mxu0 0.0
        %1009 = vmatprep.subr.mxu0 0.0
        %1010 = vmatpush2.xpose.msra.mxu0 0.0
        %1011 = vmatprep.subr.mxu0 0.0
        %1012 = vmatpush2.xpose.msra.mxu0 0.0
        %1013 = vmatprep.subr.mxu0 0.0
        %1014 = vmatpush2.xpose.msra.mxu0 0.0
        %1015 = vmatprep.mubr.f32.mxu0 0.0
        %1016 = vmatmul.mubr.f32.gmra.mxu0 %v940
        %v1017 = vpop.f32.mrf.mxu0
        %v1018 = vadd.f32 %v936, %v1017
        %v1019 = vpop.f32.mrf.mxu0
        %1020 = vmatprep.mubr.f32.mxu0 0.0
        %1021 = vmatmul.mubr.f32.gmra.mxu0 %v943
        %v1022 = vpop.f32.mrf.mxu0
        %v1023 = vadd.f32 %v937, %v1022
        %v1024 = vpop.f32.mrf.mxu0
        %1025 = vdwg.mxu0
        %s1026 = scalar_lea.vmem %s6, 32
        %v1027 = vld [vmem:[%s1026] sm:$0xff]
        %v1028 = vld [vmem:[%s1026 + $0x8] sm:$0xff]
        %v1029 = vld [vmem:[%s1026 + $0x10] sm:$0xff]
        %v1030 = vld [vmem:[%s1026 + $0x18] sm:$0xff]
        %1031 = vmatprep.subr.mxu0 0.0
        %1032 = vmatpush1.msra.mxu0 0.0
        %1033 = vmatprep.subr.mxu0 0.0
        %1034 = vmatpush1.msra.mxu0 0.0
        %1035 = vmatprep.subr.mxu0 0.0
        %1036 = vmatpush1.msra.mxu0 0.0
        %1037 = vmatprep.subr.mxu0 0.0
        %1038 = vmatpush1.msra.mxu0 0.0
        %1039 = vmatprep.subr.mxu0 0.0
        %1040 = vmatpush1.msra.mxu0 0.0
        %1041 = vmatprep.subr.mxu0 0.0
        %1042 = vmatpush1.msra.mxu0 0.0
        %1043 = vmatprep.subr.mxu0 0.0
        %1044 = vmatpush1.msra.mxu0 0.0
        %1045 = vmatprep.subr.mxu0 0.0
        %1046 = vmatpush1.msra.mxu0 0.0
        %1047 = vmatprep.subr.mxu0 0.0
        %1048 = vmatpush1.msra.mxu0 0.0
        %1049 = vmatprep.subr.mxu0 0.0
        %1050 = vmatpush1.msra.mxu0 0.0
        %1051 = vmatprep.subr.mxu0 0.0
        %1052 = vmatpush1.msra.mxu0 0.0
        %1053 = vmatprep.subr.mxu0 0.0
        %1054 = vmatpush1.msra.mxu0 0.0
        %1055 = vmatprep.subr.mxu0 0.0
        %1056 = vmatpush1.msra.mxu0 %v1030
        %1057 = vmatprep.subr.mxu0 0.0
        %1058 = vmatpush1.msra.mxu0 %v1029
        %1059 = vmatprep.subr.mxu0 0.0
        %1060 = vmatpush1.msra.mxu0 %v1028
        %1061 = vmatprep.subr.mxu0 0.0
        %1062 = vmatpush1.msra.mxu0 %v1027
        %1063 = vmatprep.subr.mxu0 0.0
        %1064 = vmatpush2.msra.mxu0 0.0
        %1065 = vmatprep.subr.mxu0 0.0
        %1066 = vmatpush2.msra.mxu0 0.0
        %1067 = vmatprep.subr.mxu0 0.0
        %1068 = vmatpush2.msra.mxu0 0.0
        %1069 = vmatprep.subr.mxu0 0.0
        %1070 = vmatpush2.msra.mxu0 0.0
        %1071 = vmatprep.subr.mxu0 0.0
        %1072 = vmatpush2.msra.mxu0 0.0
        %1073 = vmatprep.subr.mxu0 0.0
        %1074 = vmatpush2.msra.mxu0 0.0
        %1075 = vmatprep.subr.mxu0 0.0
        %1076 = vmatpush2.msra.mxu0 0.0
        %1077 = vmatprep.subr.mxu0 0.0
        %1078 = vmatpush2.msra.mxu0 0.0
        %1079 = vmatprep.subr.mxu0 0.0
        %1080 = vmatpush2.msra.mxu0 0.0
        %1081 = vmatprep.subr.mxu0 0.0
        %1082 = vmatpush2.msra.mxu0 0.0
        %1083 = vmatprep.subr.mxu0 0.0
        %1084 = vmatpush2.msra.mxu0 0.0
        %1085 = vmatprep.subr.mxu0 0.0
        %1086 = vmatpush2.msra.mxu0 0.0
        %1087 = vmatprep.subr.mxu0 0.0
        %1088 = vmatpush2.msra.mxu0 0.0
        %1089 = vmatprep.subr.mxu0 0.0
        %1090 = vmatpush2.msra.mxu0 0.0
        %1091 = vmatprep.subr.mxu0 0.0
        %1092 = vmatpush2.msra.mxu0 0.0
        %1093 = vmatprep.subr.mxu0 0.0
        %1094 = vmatpush2.msra.mxu0 0.0
        %1095 = vmatprep.mubr.f32.mxu0 0.0
        %1096 = vmatmul.mubr.f32.gmra.mxu0 %v698
        %v1097 = vpop.f32.mrf.mxu0
        %v1098 = vadd.f32 0.0, %v1097
        %v1099 = vpop.f32.mrf.mxu0
        %1100 = vmatprep.mubr.f32.mxu0 0.0
        %1101 = vmatmul.mubr.f32.gmra.mxu0 %v701
        %v1102 = vpop.f32.mrf.mxu0
        %v1103 = vadd.f32 0.0, %v1102
        %v1104 = vpop.f32.mrf.mxu0
        %1105 = vdwg.mxu0
        %s1106 = scalar_lea.vmem %s7, 32
        %v1107 = vld [vmem:[%s1106] sm:$0xff]
        %v1108 = vld [vmem:[%s1106 + $0x8] sm:$0xff]
        %v1109 = vld [vmem:[%s1106 + $0x10] sm:$0xff]
        %v1110 = vld [vmem:[%s1106 + $0x18] sm:$0xff]
        %1111 = vmatprep.subr.mxu0 0.0
        %1112 = vmatpush1.msra.mxu0 0.0
        %1113 = vmatprep.subr.mxu0 0.0
        %1114 = vmatpush1.msra.mxu0 0.0
        %1115 = vmatprep.subr.mxu0 0.0
        %1116 = vmatpush1.msra.mxu0 0.0
        %1117 = vmatprep.subr.mxu0 0.0
        %1118 = vmatpush1.msra.mxu0 0.0
        %1119 = vmatprep.subr.mxu0 0.0
        %1120 = vmatpush1.msra.mxu0 0.0
        %1121 = vmatprep.subr.mxu0 0.0
        %1122 = vmatpush1.msra.mxu0 0.0
        %1123 = vmatprep.subr.mxu0 0.0
        %1124 = vmatpush1.msra.mxu0 0.0
        %1125 = vmatprep.subr.mxu0 0.0
        %1126 = vmatpush1.msra.mxu0 0.0
        %1127 = vmatprep.subr.mxu0 0.0
        %1128 = vmatpush1.msra.mxu0 0.0
        %1129 = vmatprep.subr.mxu0 0.0
        %1130 = vmatpush1.msra.mxu0 0.0
        %1131 = vmatprep.subr.mxu0 0.0
        %1132 = vmatpush1.msra.mxu0 0.0
        %1133 = vmatprep.subr.mxu0 0.0
        %1134 = vmatpush1.msra.mxu0 0.0
        %1135 = vmatprep.subr.mxu0 0.0
        %1136 = vmatpush1.msra.mxu0 %v1110
        %1137 = vmatprep.subr.mxu0 0.0
        %1138 = vmatpush1.msra.mxu0 %v1109
        %1139 = vmatprep.subr.mxu0 0.0
        %1140 = vmatpush1.msra.mxu0 %v1108
        %1141 = vmatprep.subr.mxu0 0.0
        %1142 = vmatpush1.msra.mxu0 %v1107
        %1143 = vmatprep.subr.mxu0 0.0
        %1144 = vmatpush2.msra.mxu0 0.0
        %1145 = vmatprep.subr.mxu0 0.0
        %1146 = vmatpush2.msra.mxu0 0.0
        %1147 = vmatprep.subr.mxu0 0.0
        %1148 = vmatpush2.msra.mxu0 0.0
        %1149 = vmatprep.subr.mxu0 0.0
        %1150 = vmatpush2.msra.mxu0 0.0
        %1151 = vmatprep.subr.mxu0 0.0
        %1152 = vmatpush2.msra.mxu0 0.0
        %1153 = vmatprep.subr.mxu0 0.0
        %1154 = vmatpush2.msra.mxu0 0.0
        %1155 = vmatprep.subr.mxu0 0.0
        %1156 = vmatpush2.msra.mxu0 0.0
        %1157 = vmatprep.subr.mxu0 0.0
        %1158 = vmatpush2.msra.mxu0 0.0
        %1159 = vmatprep.subr.mxu0 0.0
        %1160 = vmatpush2.msra.mxu0 0.0
        %1161 = vmatprep.subr.mxu0 0.0
        %1162 = vmatpush2.msra.mxu0 0.0
        %1163 = vmatprep.subr.mxu0 0.0
        %1164 = vmatpush2.msra.mxu0 0.0
        %1165 = vmatprep.subr.mxu0 0.0
        %1166 = vmatpush2.msra.mxu0 0.0
        %1167 = vmatprep.subr.mxu0 0.0
        %1168 = vmatpush2.msra.mxu0 0.0
        %1169 = vmatprep.subr.mxu0 0.0
        %1170 = vmatpush2.msra.mxu0 0.0
        %1171 = vmatprep.subr.mxu0 0.0
        %1172 = vmatpush2.msra.mxu0 0.0
        %1173 = vmatprep.subr.mxu0 0.0
        %1174 = vmatpush2.msra.mxu0 0.0
        %1175 = vmatprep.mubr.f32.mxu0 0.0
        %1176 = vmatmul.mubr.f32.gmra.mxu0 %v698
        %v1177 = vpop.f32.mrf.mxu0
        %v1178 = vadd.f32 0.0, %v1177
        %v1179 = vpop.f32.mrf.mxu0
        %1180 = vmatprep.mubr.f32.mxu0 0.0
        %1181 = vmatmul.mubr.f32.gmra.mxu0 %v701
        %v1182 = vpop.f32.mrf.mxu0
        %v1183 = vadd.f32 0.0, %v1182
        %v1184 = vpop.f32.mrf.mxu0
        %1185 = vdwg.mxu0
        %s1186 = scalar_lea.vmem %s8, 32
        %v1187 = vld [vmem:[%s1186] sm:$0xff]
        %v1188 = vld [vmem:[%s1186 + $0x8] sm:$0xff]
        %v1189 = vld [vmem:[%s1186 + $0x10] sm:$0xff]
        %v1190 = vld [vmem:[%s1186 + $0x18] sm:$0xff]
        %1191 = vmatprep.subr.mxu0 0.0
        %1192 = vmatpush1.msra.mxu0 0.0
        %1193 = vmatprep.subr.mxu0 0.0
        %1194 = vmatpush1.msra.mxu0 0.0
        %1195 = vmatprep.subr.mxu0 0.0
        %1196 = vmatpush1.msra.mxu0 0.0
        %1197 = vmatprep.subr.mxu0 0.0
        %1198 = vmatpush1.msra.mxu0 0.0
        %1199 = vmatprep.subr.mxu0 0.0
        %1200 = vmatpush1.msra.mxu0 0.0
        %1201 = vmatprep.subr.mxu0 0.0
        %1202 = vmatpush1.msra.mxu0 0.0
        %1203 = vmatprep.subr.mxu0 0.0
        %1204 = vmatpush1.msra.mxu0 0.0
        %1205 = vmatprep.subr.mxu0 0.0
        %1206 = vmatpush1.msra.mxu0 0.0
        %1207 = vmatprep.subr.mxu0 0.0
        %1208 = vmatpush1.msra.mxu0 0.0
        %1209 = vmatprep.subr.mxu0 0.0
        %1210 = vmatpush1.msra.mxu0 0.0
        %1211 = vmatprep.subr.mxu0 0.0
        %1212 = vmatpush1.msra.mxu0 0.0
        %1213 = vmatprep.subr.mxu0 0.0
        %1214 = vmatpush1.msra.mxu0 0.0
        %1215 = vmatprep.subr.mxu0 0.0
        %1216 = vmatpush1.msra.mxu0 %v1190
        %1217 = vmatprep.subr.mxu0 0.0
        %1218 = vmatpush1.msra.mxu0 %v1189
        %1219 = vmatprep.subr.mxu0 0.0
        %1220 = vmatpush1.msra.mxu0 %v1188
        %1221 = vmatprep.subr.mxu0 0.0
        %1222 = vmatpush1.msra.mxu0 %v1187
        %1223 = vmatprep.subr.mxu0 0.0
        %1224 = vmatpush2.msra.mxu0 0.0
        %1225 = vmatprep.subr.mxu0 0.0
        %1226 = vmatpush2.msra.mxu0 0.0
        %1227 = vmatprep.subr.mxu0 0.0
        %1228 = vmatpush2.msra.mxu0 0.0
        %1229 = vmatprep.subr.mxu0 0.0
        %1230 = vmatpush2.msra.mxu0 0.0
        %1231 = vmatprep.subr.mxu0 0.0
        %1232 = vmatpush2.msra.mxu0 0.0
        %1233 = vmatprep.subr.mxu0 0.0
        %1234 = vmatpush2.msra.mxu0 0.0
        %1235 = vmatprep.subr.mxu0 0.0
        %1236 = vmatpush2.msra.mxu0 0.0
        %1237 = vmatprep.subr.mxu0 0.0
        %1238 = vmatpush2.msra.mxu0 0.0
        %1239 = vmatprep.subr.mxu0 0.0
        %1240 = vmatpush2.msra.mxu0 0.0
        %1241 = vmatprep.subr.mxu0 0.0
        %1242 = vmatpush2.msra.mxu0 0.0
        %1243 = vmatprep.subr.mxu0 0.0
        %1244 = vmatpush2.msra.mxu0 0.0
        %1245 = vmatprep.subr.mxu0 0.0
        %1246 = vmatpush2.msra.mxu0 0.0
        %1247 = vmatprep.subr.mxu0 0.0
        %1248 = vmatpush2.msra.mxu0 0.0
        %1249 = vmatprep.subr.mxu0 0.0
        %1250 = vmatpush2.msra.mxu0 0.0
        %1251 = vmatprep.subr.mxu0 0.0
        %1252 = vmatpush2.msra.mxu0 0.0
        %1253 = vmatprep.subr.mxu0 0.0
        %1254 = vmatpush2.msra.mxu0 0.0
        %1255 = vmatprep.mubr.f32.mxu0 0.0
        %1256 = vmatmul.mubr.f32.gmra.mxu0 %v698
        %v1257 = vpop.f32.mrf.mxu0
        %v1258 = vadd.f32 0.0, %v1257
        %v1259 = vpop.f32.mrf.mxu0
        %1260 = vmatprep.mubr.f32.mxu0 0.0
        %1261 = vmatmul.mubr.f32.gmra.mxu0 %v701
        %v1262 = vpop.f32.mrf.mxu0
        %v1263 = vadd.f32 0.0, %v1262
        %v1264 = vpop.f32.mrf.mxu0
        %1265 = vdwg.mxu0
        %s1266 = scalar_lea.vmem %s2, 16
        %v1267 = vld [vmem:[%s1266] sm:$0xff]
        %v1268 = vld [vmem:[%s1266 + $0x8] sm:$0xff]
        %v1270 = vsel %vm938, %v1098, 0
        %v1273 = vsel %vm938, %v1103, 0
        %v1276 = vsel %vm938, %v1178, 0
        %v1279 = vsel %vm938, %v1183, 0
        %1281 = vmatprep.subr.mxu0 0.0
        %1282 = vmatpush1.xpose.msra.mxu0 0.0
        %1283 = vmatprep.subr.mxu0 0.0
        %1284 = vmatpush1.xpose.msra.mxu0 0.0
        %1285 = vmatprep.subr.mxu0 0.0
        %1286 = vmatpush1.xpose.msra.mxu0 0.0
        %1287 = vmatprep.subr.mxu0 0.0
        %1288 = vmatpush1.xpose.msra.mxu0 0.0
        %1289 = vmatprep.subr.mxu0 0.0
        %1290 = vmatpush1.xpose.msra.mxu0 0.0
        %1291 = vmatprep.subr.mxu0 0.0
        %1292 = vmatpush1.xpose.msra.mxu0 0.0
        %1293 = vmatprep.subr.mxu0 0.0
        %1294 = vmatpush1.xpose.msra.mxu0 0.0
        %1295 = vmatprep.subr.mxu0 0.0
        %1296 = vmatpush1.xpose.msra.mxu0 0.0
        %1297 = vmatprep.subr.mxu0 0.0
        %1298 = vmatpush1.xpose.msra.mxu0 0.0
        %1299 = vmatprep.subr.mxu0 0.0
        %1300 = vmatpush1.xpose.msra.mxu0 0.0
        %1301 = vmatprep.subr.mxu0 0.0
        %1302 = vmatpush1.xpose.msra.mxu0 0.0
        %1303 = vmatprep.subr.mxu0 0.0
        %1304 = vmatpush1.xpose.msra.mxu0 0.0
        %1305 = vmatprep.subr.mxu0 0.0
        %1306 = vmatpush1.xpose.msra.mxu0 0.0
        %1307 = vmatprep.subr.mxu0 0.0
        %1308 = vmatpush1.xpose.msra.mxu0 0.0
        %1309 = vmatprep.subr.mxu0 0.0
        %1310 = vmatpush1.xpose.msra.mxu0 %v1279
        %1311 = vmatprep.subr.mxu0 0.0
        %1312 = vmatpush1.xpose.msra.mxu0 %v1276
        %1313 = vmatprep.subr.mxu0 0.0
        %1314 = vmatpush2.xpose.msra.mxu0 0.0
        %1315 = vmatprep.subr.mxu0 0.0
        %1316 = vmatpush2.xpose.msra.mxu0 0.0
        %1317 = vmatprep.subr.mxu0 0.0
        %1318 = vmatpush2.xpose.msra.mxu0 0.0
        %1319 = vmatprep.subr.mxu0 0.0
        %1320 = vmatpush2.xpose.msra.mxu0 0.0
        %1321 = vmatprep.subr.mxu0 0.0
        %1322 = vmatpush2.xpose.msra.mxu0 0.0
        %1323 = vmatprep.subr.mxu0 0.0
        %1324 = vmatpush2.xpose.msra.mxu0 0.0
        %1325 = vmatprep.subr.mxu0 0.0
        %1326 = vmatpush2.xpose.msra.mxu0 0.0
        %1327 = vmatprep.subr.mxu0 0.0
        %1328 = vmatpush2.xpose.msra.mxu0 0.0
        %1329 = vmatprep.subr.mxu0 0.0
        %1330 = vmatpush2.xpose.msra.mxu0 0.0
        %1331 = vmatprep.subr.mxu0 0.0
        %1332 = vmatpush2.xpose.msra.mxu0 0.0
        %1333 = vmatprep.subr.mxu0 0.0
        %1334 = vmatpush2.xpose.msra.mxu0 0.0
        %1335 = vmatprep.subr.mxu0 0.0
        %1336 = vmatpush2.xpose.msra.mxu0 0.0
        %1337 = vmatprep.subr.mxu0 0.0
        %1338 = vmatpush2.xpose.msra.mxu0 0.0
        %1339 = vmatprep.subr.mxu0 0.0
        %1340 = vmatpush2.xpose.msra.mxu0 0.0
        %1341 = vmatprep.subr.mxu0 0.0
        %1342 = vmatpush2.xpose.msra.mxu0 0.0
        %1343 = vmatprep.subr.mxu0 0.0
        %1344 = vmatpush2.xpose.msra.mxu0 0.0
        %1345 = vmatprep.mubr.f32.mxu0 0.0
        %1346 = vmatmul.mubr.f32.gmra.mxu0 %v1270
        %v1347 = vpop.f32.mrf.mxu0
        %v1348 = vadd.f32 %v1267, %v1347
        %v1349 = vpop.f32.mrf.mxu0
        %1350 = vmatprep.mubr.f32.mxu0 0.0
        %1351 = vmatmul.mubr.f32.gmra.mxu0 %v1273
        %v1352 = vpop.f32.mrf.mxu0
        %v1353 = vadd.f32 %v1268, %v1352
        %v1354 = vpop.f32.mrf.mxu0
        %1355 = vdwg.mxu0
        %s1356 = scalar_lea.vmem %s6, 64
        %v1357 = vld [vmem:[%s1356] sm:$0xff]
        %v1358 = vld [vmem:[%s1356 + $0x8] sm:$0xff]
        %v1359 = vld [vmem:[%s1356 + $0x10] sm:$0xff]
        %v1360 = vld [vmem:[%s1356 + $0x18] sm:$0xff]
        %1361 = vmatprep.subr.mxu0 0.0
        %1362 = vmatpush1.msra.mxu0 0.0
        %1363 = vmatprep.subr.mxu0 0.0
        %1364 = vmatpush1.msra.mxu0 0.0
        %1365 = vmatprep.subr.mxu0 0.0
        %1366 = vmatpush1.msra.mxu0 0.0
        %1367 = vmatprep.subr.mxu0 0.0
        %1368 = vmatpush1.msra.mxu0 0.0
        %1369 = vmatprep.subr.mxu0 0.0
        %1370 = vmatpush1.msra.mxu0 0.0
        %1371 = vmatprep.subr.mxu0 0.0
        %1372 = vmatpush1.msra.mxu0 0.0
        %1373 = vmatprep.subr.mxu0 0.0
        %1374 = vmatpush1.msra.mxu0 0.0
        %1375 = vmatprep.subr.mxu0 0.0
        %1376 = vmatpush1.msra.mxu0 0.0
        %1377 = vmatprep.subr.mxu0 0.0
        %1378 = vmatpush1.msra.mxu0 0.0
        %1379 = vmatprep.subr.mxu0 0.0
        %1380 = vmatpush1.msra.mxu0 0.0
        %1381 = vmatprep.subr.mxu0 0.0
        %1382 = vmatpush1.msra.mxu0 0.0
        %1383 = vmatprep.subr.mxu0 0.0
        %1384 = vmatpush1.msra.mxu0 0.0
        %1385 = vmatprep.subr.mxu0 0.0
        %1386 = vmatpush1.msra.mxu0 %v1360
        %1387 = vmatprep.subr.mxu0 0.0
        %1388 = vmatpush1.msra.mxu0 %v1359
        %1389 = vmatprep.subr.mxu0 0.0
        %1390 = vmatpush1.msra.mxu0 %v1358
        %1391 = vmatprep.subr.mxu0 0.0
        %1392 = vmatpush1.msra.mxu0 %v1357
        %1393 = vmatprep.subr.mxu0 0.0
        %1394 = vmatpush2.msra.mxu0 0.0
        %1395 = vmatprep.subr.mxu0 0.0
        %1396 = vmatpush2.msra.mxu0 0.0
        %1397 = vmatprep.subr.mxu0 0.0
        %1398 = vmatpush2.msra.mxu0 0.0
        %1399 = vmatprep.subr.mxu0 0.0
        %1400 = vmatpush2.msra.mxu0 0.0
        %1401 = vmatprep.subr.mxu0 0.0
        %1402 = vmatpush2.msra.mxu0 0.0
        %1403 = vmatprep.subr.mxu0 0.0
        %1404 = vmatpush2.msra.mxu0 0.0
        %1405 = vmatprep.subr.mxu0 0.0
        %1406 = vmatpush2.msra.mxu0 0.0
        %1407 = vmatprep.subr.mxu0 0.0
        %1408 = vmatpush2.msra.mxu0 0.0
        %1409 = vmatprep.subr.mxu0 0.0
        %1410 = vmatpush2.msra.mxu0 0.0
        %1411 = vmatprep.subr.mxu0 0.0
        %1412 = vmatpush2.msra.mxu0 0.0
        %1413 = vmatprep.subr.mxu0 0.0
        %1414 = vmatpush2.msra.mxu0 0.0
        %1415 = vmatprep.subr.mxu0 0.0
        %1416 = vmatpush2.msra.mxu0 0.0
        %1417 = vmatprep.subr.mxu0 0.0
        %1418 = vmatpush2.msra.mxu0 0.0
        %1419 = vmatprep.subr.mxu0 0.0
        %1420 = vmatpush2.msra.mxu0 0.0
        %1421 = vmatprep.subr.mxu0 0.0
        %1422 = vmatpush2.msra.mxu0 0.0
        %1423 = vmatprep.subr.mxu0 0.0
        %1424 = vmatpush2.msra.mxu0 0.0
        %1425 = vmatprep.mubr.f32.mxu0 0.0
        %1426 = vmatmul.mubr.f32.gmra.mxu0 %v698
        %v1427 = vpop.f32.mrf.mxu0
        %v1428 = vadd.f32 0.0, %v1427
        %v1429 = vpop.f32.mrf.mxu0
        %1430 = vmatprep.mubr.f32.mxu0 0.0
        %1431 = vmatmul.mubr.f32.gmra.mxu0 %v701
        %v1432 = vpop.f32.mrf.mxu0
        %v1433 = vadd.f32 0.0, %v1432
        %v1434 = vpop.f32.mrf.mxu0
        %1435 = vdwg.mxu0
        %s1436 = scalar_lea.vmem %s7, 64
        %v1437 = vld [vmem:[%s1436] sm:$0xff]
        %v1438 = vld [vmem:[%s1436 + $0x8] sm:$0xff]
        %v1439 = vld [vmem:[%s1436 + $0x10] sm:$0xff]
        %v1440 = vld [vmem:[%s1436 + $0x18] sm:$0xff]
        %1441 = vmatprep.subr.mxu0 0.0
        %1442 = vmatpush1.msra.mxu0 0.0
        %1443 = vmatprep.subr.mxu0 0.0
        %1444 = vmatpush1.msra.mxu0 0.0
        %1445 = vmatprep.subr.mxu0 0.0
        %1446 = vmatpush1.msra.mxu0 0.0
        %1447 = vmatprep.subr.mxu0 0.0
        %1448 = vmatpush1.msra.mxu0 0.0
        %1449 = vmatprep.subr.mxu0 0.0
        %1450 = vmatpush1.msra.mxu0 0.0
        %1451 = vmatprep.subr.mxu0 0.0
        %1452 = vmatpush1.msra.mxu0 0.0
        %1453 = vmatprep.subr.mxu0 0.0
        %1454 = vmatpush1.msra.mxu0 0.0
        %1455 = vmatprep.subr.mxu0 0.0
        %1456 = vmatpush1.msra.mxu0 0.0
        %1457 = vmatprep.subr.mxu0 0.0
        %1458 = vmatpush1.msra.mxu0 0.0
        %1459 = vmatprep.subr.mxu0 0.0
        %1460 = vmatpush1.msra.mxu0 0.0
        %1461 = vmatprep.subr.mxu0 0.0
        %1462 = vmatpush1.msra.mxu0 0.0
        %1463 = vmatprep.subr.mxu0 0.0
        %1464 = vmatpush1.msra.mxu0 0.0
        %1465 = vmatprep.subr.mxu0 0.0
        %1466 = vmatpush1.msra.mxu0 %v1440
        %1467 = vmatprep.subr.mxu0 0.0
        %1468 = vmatpush1.msra.mxu0 %v1439
        %1469 = vmatprep.subr.mxu0 0.0
        %1470 = vmatpush1.msra.mxu0 %v1438
        %1471 = vmatprep.subr.mxu0 0.0
        %1472 = vmatpush1.msra.mxu0 %v1437
        %1473 = vmatprep.subr.mxu0 0.0
        %1474 = vmatpush2.msra.mxu0 0.0
        %1475 = vmatprep.subr.mxu0 0.0
        %1476 = vmatpush2.msra.mxu0 0.0
        %1477 = vmatprep.subr.mxu0 0.0
        %1478 = vmatpush2.msra.mxu0 0.0
        %1479 = vmatprep.subr.mxu0 0.0
        %1480 = vmatpush2.msra.mxu0 0.0
        %1481 = vmatprep.subr.mxu0 0.0
        %1482 = vmatpush2.msra.mxu0 0.0
        %1483 = vmatprep.subr.mxu0 0.0
        %1484 = vmatpush2.msra.mxu0 0.0
        %1485 = vmatprep.subr.mxu0 0.0
        %1486 = vmatpush2.msra.mxu0 0.0
        %1487 = vmatprep.subr.mxu0 0.0
        %1488 = vmatpush2.msra.mxu0 0.0
        %1489 = vmatprep.subr.mxu0 0.0
        %1490 = vmatpush2.msra.mxu0 0.0
        %1491 = vmatprep.subr.mxu0 0.0
        %1492 = vmatpush2.msra.mxu0 0.0
        %1493 = vmatprep.subr.mxu0 0.0
        %1494 = vmatpush2.msra.mxu0 0.0
        %1495 = vmatprep.subr.mxu0 0.0
        %1496 = vmatpush2.msra.mxu0 0.0
        %1497 = vmatprep.subr.mxu0 0.0
        %1498 = vmatpush2.msra.mxu0 0.0
        %1499 = vmatprep.subr.mxu0 0.0
        %1500 = vmatpush2.msra.mxu0 0.0
        %1501 = vmatprep.subr.mxu0 0.0
        %1502 = vmatpush2.msra.mxu0 0.0
        %1503 = vmatprep.subr.mxu0 0.0
        %1504 = vmatpush2.msra.mxu0 0.0
        %1505 = vmatprep.mubr.f32.mxu0 0.0
        %1506 = vmatmul.mubr.f32.gmra.mxu0 %v698
        %v1507 = vpop.f32.mrf.mxu0
        %v1508 = vadd.f32 0.0, %v1507
        %v1509 = vpop.f32.mrf.mxu0
        %1510 = vmatprep.mubr.f32.mxu0 0.0
        %1511 = vmatmul.mubr.f32.gmra.mxu0 %v701
        %v1512 = vpop.f32.mrf.mxu0
        %v1513 = vadd.f32 0.0, %v1512
        %v1514 = vpop.f32.mrf.mxu0
        %1515 = vdwg.mxu0
        %s1516 = scalar_lea.vmem %s8, 64
        %v1517 = vld [vmem:[%s1516] sm:$0xff]
        %v1518 = vld [vmem:[%s1516 + $0x8] sm:$0xff]
        %v1519 = vld [vmem:[%s1516 + $0x10] sm:$0xff]
        %v1520 = vld [vmem:[%s1516 + $0x18] sm:$0xff]
        %1521 = vmatprep.subr.mxu0 0.0
        %1522 = vmatpush1.msra.mxu0 0.0
        %1523 = vmatprep.subr.mxu0 0.0
        %1524 = vmatpush1.msra.mxu0 0.0
        %1525 = vmatprep.subr.mxu0 0.0
        %1526 = vmatpush1.msra.mxu0 0.0
        %1527 = vmatprep.subr.mxu0 0.0
        %1528 = vmatpush1.msra.mxu0 0.0
        %1529 = vmatprep.subr.mxu0 0.0
        %1530 = vmatpush1.msra.mxu0 0.0
        %1531 = vmatprep.subr.mxu0 0.0
        %1532 = vmatpush1.msra.mxu0 0.0
        %1533 = vmatprep.subr.mxu0 0.0
        %1534 = vmatpush1.msra.mxu0 0.0
        %1535 = vmatprep.subr.mxu0 0.0
        %1536 = vmatpush1.msra.mxu0 0.0
        %1537 = vmatprep.subr.mxu0 0.0
        %1538 = vmatpush1.msra.mxu0 0.0
        %1539 = vmatprep.subr.mxu0 0.0
        %1540 = vmatpush1.msra.mxu0 0.0
        %1541 = vmatprep.subr.mxu0 0.0
        %1542 = vmatpush1.msra.mxu0 0.0
        %1543 = vmatprep.subr.mxu0 0.0
        %1544 = vmatpush1.msra.mxu0 0.0
        %1545 = vmatprep.subr.mxu0 0.0
        %1546 = vmatpush1.msra.mxu0 %v1520
        %1547 = vmatprep.subr.mxu0 0.0
        %1548 = vmatpush1.msra.mxu0 %v1519
        %1549 = vmatprep.subr.mxu0 0.0
        %1550 = vmatpush1.msra.mxu0 %v1518
        %1551 = vmatprep.subr.mxu0 0.0
        %1552 = vmatpush1.msra.mxu0 %v1517
        %1553 = vmatprep.subr.mxu0 0.0
        %1554 = vmatpush2.msra.mxu0 0.0
        %1555 = vmatprep.subr.mxu0 0.0
        %1556 = vmatpush2.msra.mxu0 0.0
        %1557 = vmatprep.subr.mxu0 0.0
        %1558 = vmatpush2.msra.mxu0 0.0
        %1559 = vmatprep.subr.mxu0 0.0
        %1560 = vmatpush2.msra.mxu0 0.0
        %1561 = vmatprep.subr.mxu0 0.0
        %1562 = vmatpush2.msra.mxu0 0.0
        %1563 = vmatprep.subr.mxu0 0.0
        %1564 = vmatpush2.msra.mxu0 0.0
        %1565 = vmatprep.subr.mxu0 0.0
        %1566 = vmatpush2.msra.mxu0 0.0
        %1567 = vmatprep.subr.mxu0 0.0
        %1568 = vmatpush2.msra.mxu0 0.0
        %1569 = vmatprep.subr.mxu0 0.0
        %1570 = vmatpush2.msra.mxu0 0.0
        %1571 = vmatprep.subr.mxu0 0.0
        %1572 = vmatpush2.msra.mxu0 0.0
        %1573 = vmatprep.subr.mxu0 0.0
        %1574 = vmatpush2.msra.mxu0 0.0
        %1575 = vmatprep.subr.mxu0 0.0
        %1576 = vmatpush2.msra.mxu0 0.0
        %1577 = vmatprep.subr.mxu0 0.0
        %1578 = vmatpush2.msra.mxu0 0.0
        %1579 = vmatprep.subr.mxu0 0.0
        %1580 = vmatpush2.msra.mxu0 0.0
        %1581 = vmatprep.subr.mxu0 0.0
        %1582 = vmatpush2.msra.mxu0 0.0
        %1583 = vmatprep.subr.mxu0 0.0
        %1584 = vmatpush2.msra.mxu0 0.0
        %1585 = vmatprep.mubr.f32.mxu0 0.0
        %1586 = vmatmul.mubr.f32.gmra.mxu0 %v698
        %v1587 = vpop.f32.mrf.mxu0
        %v1588 = vadd.f32 0.0, %v1587
        %v1589 = vpop.f32.mrf.mxu0
        %1590 = vmatprep.mubr.f32.mxu0 0.0
        %1591 = vmatmul.mubr.f32.gmra.mxu0 %v701
        %v1592 = vpop.f32.mrf.mxu0
        %v1593 = vadd.f32 0.0, %v1592
        %v1594 = vpop.f32.mrf.mxu0
        %1595 = vdwg.mxu0
        %s1596 = scalar_lea.vmem %s2, 32
        %v1597 = vld [vmem:[%s1596] sm:$0xff]
        %v1598 = vld [vmem:[%s1596 + $0x8] sm:$0xff]
        %v1600 = vsel %vm938, %v1428, 0
        %v1603 = vsel %vm938, %v1433, 0
        %v1606 = vsel %vm938, %v1508, 0
        %v1609 = vsel %vm938, %v1513, 0
        %1611 = vmatprep.subr.mxu0 0.0
        %1612 = vmatpush1.xpose.msra.mxu0 0.0
        %1613 = vmatprep.subr.mxu0 0.0
        %1614 = vmatpush1.xpose.msra.mxu0 0.0
        %1615 = vmatprep.subr.mxu0 0.0
        %1616 = vmatpush1.xpose.msra.mxu0 0.0
        %1617 = vmatprep.subr.mxu0 0.0
        %1618 = vmatpush1.xpose.msra.mxu0 0.0
        %1619 = vmatprep.subr.mxu0 0.0
        %1620 = vmatpush1.xpose.msra.mxu0 0.0
        %1621 = vmatprep.subr.mxu0 0.0
        %1622 = vmatpush1.xpose.msra.mxu0 0.0
        %1623 = vmatprep.subr.mxu0 0.0
        %1624 = vmatpush1.xpose.msra.mxu0 0.0
        %1625 = vmatprep.subr.mxu0 0.0
        %1626 = vmatpush1.xpose.msra.mxu0 0.0
        %1627 = vmatprep.subr.mxu0 0.0
        %1628 = vmatpush1.xpose.msra.mxu0 0.0
        %1629 = vmatprep.subr.mxu0 0.0
        %1630 = vmatpush1.xpose.msra.mxu0 0.0
        %1631 = vmatprep.subr.mxu0 0.0
        %1632 = vmatpush1.xpose.msra.mxu0 0.0
        %1633 = vmatprep.subr.mxu0 0.0
        %1634 = vmatpush1.xpose.msra.mxu0 0.0
        %1635 = vmatprep.subr.mxu0 0.0
        %1636 = vmatpush1.xpose.msra.mxu0 0.0
        %1637 = vmatprep.subr.mxu0 0.0
        %1638 = vmatpush1.xpose.msra.mxu0 0.0
        %1639 = vmatprep.subr.mxu0 0.0
        %1640 = vmatpush1.xpose.msra.mxu0 %v1609
        %1641 = vmatprep.subr.mxu0 0.0
        %1642 = vmatpush1.xpose.msra.mxu0 %v1606
        %1643 = vmatprep.subr.mxu0 0.0
        %1644 = vmatpush2.xpose.msra.mxu0 0.0
        %1645 = vmatprep.subr.mxu0 0.0
        %1646 = vmatpush2.xpose.msra.mxu0 0.0
        %1647 = vmatprep.subr.mxu0 0.0
        %1648 = vmatpush2.xpose.msra.mxu0 0.0
        %1649 = vmatprep.subr.mxu0 0.0
        %1650 = vmatpush2.xpose.msra.mxu0 0.0
        %1651 = vmatprep.subr.mxu0 0.0
        %1652 = vmatpush2.xpose.msra.mxu0 0.0
        %1653 = vmatprep.subr.mxu0 0.0
        %1654 = vmatpush2.xpose.msra.mxu0 0.0
        %1655 = vmatprep.subr.mxu0 0.0
        %1656 = vmatpush2.xpose.msra.mxu0 0.0
        %1657 = vmatprep.subr.mxu0 0.0
        %1658 = vmatpush2.xpose.msra.mxu0 0.0
        %1659 = vmatprep.subr.mxu0 0.0
        %1660 = vmatpush2.xpose.msra.mxu0 0.0
        %1661 = vmatprep.subr.mxu0 0.0
        %1662 = vmatpush2.xpose.msra.mxu0 0.0
        %1663 = vmatprep.subr.mxu0 0.0
        %1664 = vmatpush2.xpose.msra.mxu0 0.0
        %1665 = vmatprep.subr.mxu0 0.0
        %1666 = vmatpush2.xpose.msra.mxu0 0.0
        %1667 = vmatprep.subr.mxu0 0.0
        %1668 = vmatpush2.xpose.msra.mxu0 0.0
        %1669 = vmatprep.subr.mxu0 0.0
        %1670 = vmatpush2.xpose.msra.mxu0 0.0
        %1671 = vmatprep.subr.mxu0 0.0
        %1672 = vmatpush2.xpose.msra.mxu0 0.0
        %1673 = vmatprep.subr.mxu0 0.0
        %1674 = vmatpush2.xpose.msra.mxu0 0.0
        %1675 = vmatprep.mubr.f32.mxu0 0.0
        %1676 = vmatmul.mubr.f32.gmra.mxu0 %v1600
        %v1677 = vpop.f32.mrf.mxu0
        %v1678 = vadd.f32 %v1597, %v1677
        %v1679 = vpop.f32.mrf.mxu0
        %1680 = vmatprep.mubr.f32.mxu0 0.0
        %1681 = vmatmul.mubr.f32.gmra.mxu0 %v1603
        %v1682 = vpop.f32.mrf.mxu0
        %v1683 = vadd.f32 %v1598, %v1682
        %v1684 = vpop.f32.mrf.mxu0
        %1685 = vdwg.mxu0
        %s1686 = scalar_lea.vmem %s6, 96
        %v1687 = vld [vmem:[%s1686] sm:$0xff]
        %v1688 = vld [vmem:[%s1686 + $0x8] sm:$0xff]
        %v1689 = vld [vmem:[%s1686 + $0x10] sm:$0xff]
        %v1690 = vld [vmem:[%s1686 + $0x18] sm:$0xff]
        %1691 = vmatprep.subr.mxu0 0.0
        %1692 = vmatpush1.msra.mxu0 0.0
        %1693 = vmatprep.subr.mxu0 0.0
        %1694 = vmatpush1.msra.mxu0 0.0
        %1695 = vmatprep.subr.mxu0 0.0
        %1696 = vmatpush1.msra.mxu0 0.0
        %1697 = vmatprep.subr.mxu0 0.0
        %1698 = vmatpush1.msra.mxu0 0.0
        %1699 = vmatprep.subr.mxu0 0.0
        %1700 = vmatpush1.msra.mxu0 0.0
        %1701 = vmatprep.subr.mxu0 0.0
        %1702 = vmatpush1.msra.mxu0 0.0
        %1703 = vmatprep.subr.mxu0 0.0
        %1704 = vmatpush1.msra.mxu0 0.0
        %1705 = vmatprep.subr.mxu0 0.0
        %1706 = vmatpush1.msra.mxu0 0.0
        %1707 = vmatprep.subr.mxu0 0.0
        %1708 = vmatpush1.msra.mxu0 0.0
        %1709 = vmatprep.subr.mxu0 0.0
        %1710 = vmatpush1.msra.mxu0 0.0
        %1711 = vmatprep.subr.mxu0 0.0
        %1712 = vmatpush1.msra.mxu0 0.0
        %1713 = vmatprep.subr.mxu0 0.0
        %1714 = vmatpush1.msra.mxu0 0.0
        %1715 = vmatprep.subr.mxu0 0.0
        %1716 = vmatpush1.msra.mxu0 %v1690
        %1717 = vmatprep.subr.mxu0 0.0
        %1718 = vmatpush1.msra.mxu0 %v1689
        %1719 = vmatprep.subr.mxu0 0.0
        %1720 = vmatpush1.msra.mxu0 %v1688
        %1721 = vmatprep.subr.mxu0 0.0
        %1722 = vmatpush1.msra.mxu0 %v1687
        %1723 = vmatprep.subr.mxu0 0.0
        %1724 = vmatpush2.msra.mxu0 0.0
        %1725 = vmatprep.subr.mxu0 0.0
        %1726 = vmatpush2.msra.mxu0 0.0
        %1727 = vmatprep.subr.mxu0 0.0
        %1728 = vmatpush2.msra.mxu0 0.0
        %1729 = vmatprep.subr.mxu0 0.0
        %1730 = vmatpush2.msra.mxu0 0.0
        %1731 = vmatprep.subr.mxu0 0.0
        %1732 = vmatpush2.msra.mxu0 0.0
        %1733 = vmatprep.subr.mxu0 0.0
        %1734 = vmatpush2.msra.mxu0 0.0
        %1735 = vmatprep.subr.mxu0 0.0
        %1736 = vmatpush2.msra.mxu0 0.0
        %1737 = vmatprep.subr.mxu0 0.0
        %1738 = vmatpush2.msra.mxu0 0.0
        %1739 = vmatprep.subr.mxu0 0.0
        %1740 = vmatpush2.msra.mxu0 0.0
        %1741 = vmatprep.subr.mxu0 0.0
        %1742 = vmatpush2.msra.mxu0 0.0
        %1743 = vmatprep.subr.mxu0 0.0
        %1744 = vmatpush2.msra.mxu0 0.0
        %1745 = vmatprep.subr.mxu0 0.0
        %1746 = vmatpush2.msra.mxu0 0.0
        %1747 = vmatprep.subr.mxu0 0.0
        %1748 = vmatpush2.msra.mxu0 0.0
        %1749 = vmatprep.subr.mxu0 0.0
        %1750 = vmatpush2.msra.mxu0 0.0
        %1751 = vmatprep.subr.mxu0 0.0
        %1752 = vmatpush2.msra.mxu0 0.0
        %1753 = vmatprep.subr.mxu0 0.0
        %1754 = vmatpush2.msra.mxu0 0.0
        %1755 = vmatprep.mubr.f32.mxu0 0.0
        %1756 = vmatmul.mubr.f32.gmra.mxu0 %v698
        %v1757 = vpop.f32.mrf.mxu0
        %v1758 = vadd.f32 0.0, %v1757
        %v1759 = vpop.f32.mrf.mxu0
        %1760 = vmatprep.mubr.f32.mxu0 0.0
        %1761 = vmatmul.mubr.f32.gmra.mxu0 %v701
        %v1762 = vpop.f32.mrf.mxu0
        %v1763 = vadd.f32 0.0, %v1762
        %v1764 = vpop.f32.mrf.mxu0
        %1765 = vdwg.mxu0
        %s1766 = scalar_lea.vmem %s7, 96
        %v1767 = vld [vmem:[%s1766] sm:$0xff]
        %v1768 = vld [vmem:[%s1766 + $0x8] sm:$0xff]
        %v1769 = vld [vmem:[%s1766 + $0x10] sm:$0xff]
        %v1770 = vld [vmem:[%s1766 + $0x18] sm:$0xff]
        %1771 = vmatprep.subr.mxu0 0.0
        %1772 = vmatpush1.msra.mxu0 0.0
        %1773 = vmatprep.subr.mxu0 0.0
        %1774 = vmatpush1.msra.mxu0 0.0
        %1775 = vmatprep.subr.mxu0 0.0
        %1776 = vmatpush1.msra.mxu0 0.0
        %1777 = vmatprep.subr.mxu0 0.0
        %1778 = vmatpush1.msra.mxu0 0.0
        %1779 = vmatprep.subr.mxu0 0.0
        %1780 = vmatpush1.msra.mxu0 0.0
        %1781 = vmatprep.subr.mxu0 0.0
        %1782 = vmatpush1.msra.mxu0 0.0
        %1783 = vmatprep.subr.mxu0 0.0
        %1784 = vmatpush1.msra.mxu0 0.0
        %1785 = vmatprep.subr.mxu0 0.0
        %1786 = vmatpush1.msra.mxu0 0.0
        %1787 = vmatprep.subr.mxu0 0.0
        %1788 = vmatpush1.msra.mxu0 0.0
        %1789 = vmatprep.subr.mxu0 0.0
        %1790 = vmatpush1.msra.mxu0 0.0
        %1791 = vmatprep.subr.mxu0 0.0
        %1792 = vmatpush1.msra.mxu0 0.0
        %1793 = vmatprep.subr.mxu0 0.0
        %1794 = vmatpush1.msra.mxu0 0.0
        %1795 = vmatprep.subr.mxu0 0.0
        %1796 = vmatpush1.msra.mxu0 %v1770
        %1797 = vmatprep.subr.mxu0 0.0
        %1798 = vmatpush1.msra.mxu0 %v1769
        %1799 = vmatprep.subr.mxu0 0.0
        %1800 = vmatpush1.msra.mxu0 %v1768
        %1801 = vmatprep.subr.mxu0 0.0
        %1802 = vmatpush1.msra.mxu0 %v1767
        %1803 = vmatprep.subr.mxu0 0.0
        %1804 = vmatpush2.msra.mxu0 0.0
        %1805 = vmatprep.subr.mxu0 0.0
        %1806 = vmatpush2.msra.mxu0 0.0
        %1807 = vmatprep.subr.mxu0 0.0
        %1808 = vmatpush2.msra.mxu0 0.0
        %1809 = vmatprep.subr.mxu0 0.0
        %1810 = vmatpush2.msra.mxu0 0.0
        %1811 = vmatprep.subr.mxu0 0.0
        %1812 = vmatpush2.msra.mxu0 0.0
        %1813 = vmatprep.subr.mxu0 0.0
        %1814 = vmatpush2.msra.mxu0 0.0
        %1815 = vmatprep.subr.mxu0 0.0
        %1816 = vmatpush2.msra.mxu0 0.0
        %1817 = vmatprep.subr.mxu0 0.0
        %1818 = vmatpush2.msra.mxu0 0.0
        %1819 = vmatprep.subr.mxu0 0.0
        %1820 = vmatpush2.msra.mxu0 0.0
        %1821 = vmatprep.subr.mxu0 0.0
        %1822 = vmatpush2.msra.mxu0 0.0
        %1823 = vmatprep.subr.mxu0 0.0
        %1824 = vmatpush2.msra.mxu0 0.0
        %1825 = vmatprep.subr.mxu0 0.0
        %1826 = vmatpush2.msra.mxu0 0.0
        %1827 = vmatprep.subr.mxu0 0.0
        %1828 = vmatpush2.msra.mxu0 0.0
        %1829 = vmatprep.subr.mxu0 0.0
        %1830 = vmatpush2.msra.mxu0 0.0
        %1831 = vmatprep.subr.mxu0 0.0
        %1832 = vmatpush2.msra.mxu0 0.0
        %1833 = vmatprep.subr.mxu0 0.0
        %1834 = vmatpush2.msra.mxu0 0.0
        %1835 = vmatprep.mubr.f32.mxu0 0.0
        %1836 = vmatmul.mubr.f32.gmra.mxu0 %v698
        %v1837 = vpop.f32.mrf.mxu0
        %v1838 = vadd.f32 0.0, %v1837
        %v1839 = vpop.f32.mrf.mxu0
        %1840 = vmatprep.mubr.f32.mxu0 0.0
        %1841 = vmatmul.mubr.f32.gmra.mxu0 %v701
        %v1842 = vpop.f32.mrf.mxu0
        %v1843 = vadd.f32 0.0, %v1842
        %v1844 = vpop.f32.mrf.mxu0
        %1845 = vdwg.mxu0
        %s1846 = scalar_lea.vmem %s8, 96
        %v1847 = vld [vmem:[%s1846] sm:$0xff]
        %v1848 = vld [vmem:[%s1846 + $0x8] sm:$0xff]
        %v1849 = vld [vmem:[%s1846 + $0x10] sm:$0xff]
        %v1850 = vld [vmem:[%s1846 + $0x18] sm:$0xff]
        %1851 = vmatprep.subr.mxu0 0.0
        %1852 = vmatpush1.msra.mxu0 0.0
        %1853 = vmatprep.subr.mxu0 0.0
        %1854 = vmatpush1.msra.mxu0 0.0
        %1855 = vmatprep.subr.mxu0 0.0
        %1856 = vmatpush1.msra.mxu0 0.0
        %1857 = vmatprep.subr.mxu0 0.0
        %1858 = vmatpush1.msra.mxu0 0.0
        %1859 = vmatprep.subr.mxu0 0.0
        %1860 = vmatpush1.msra.mxu0 0.0
        %1861 = vmatprep.subr.mxu0 0.0
        %1862 = vmatpush1.msra.mxu0 0.0
        %1863 = vmatprep.subr.mxu0 0.0
        %1864 = vmatpush1.msra.mxu0 0.0
        %1865 = vmatprep.subr.mxu0 0.0
        %1866 = vmatpush1.msra.mxu0 0.0
        %1867 = vmatprep.subr.mxu0 0.0
        %1868 = vmatpush1.msra.mxu0 0.0
        %1869 = vmatprep.subr.mxu0 0.0
        %1870 = vmatpush1.msra.mxu0 0.0
        %1871 = vmatprep.subr.mxu0 0.0
        %1872 = vmatpush1.msra.mxu0 0.0
        %1873 = vmatprep.subr.mxu0 0.0
        %1874 = vmatpush1.msra.mxu0 0.0
        %1875 = vmatprep.subr.mxu0 0.0
        %1876 = vmatpush1.msra.mxu0 %v1850
        %1877 = vmatprep.subr.mxu0 0.0
        %1878 = vmatpush1.msra.mxu0 %v1849
        %1879 = vmatprep.subr.mxu0 0.0
        %1880 = vmatpush1.msra.mxu0 %v1848
        %1881 = vmatprep.subr.mxu0 0.0
        %1882 = vmatpush1.msra.mxu0 %v1847
        %1883 = vmatprep.subr.mxu0 0.0
        %1884 = vmatpush2.msra.mxu0 0.0
        %1885 = vmatprep.subr.mxu0 0.0
        %1886 = vmatpush2.msra.mxu0 0.0
        %1887 = vmatprep.subr.mxu0 0.0
        %1888 = vmatpush2.msra.mxu0 0.0
        %1889 = vmatprep.subr.mxu0 0.0
        %1890 = vmatpush2.msra.mxu0 0.0
        %1891 = vmatprep.subr.mxu0 0.0
        %1892 = vmatpush2.msra.mxu0 0.0
        %1893 = vmatprep.subr.mxu0 0.0
        %1894 = vmatpush2.msra.mxu0 0.0
        %1895 = vmatprep.subr.mxu0 0.0
        %1896 = vmatpush2.msra.mxu0 0.0
        %1897 = vmatprep.subr.mxu0 0.0
        %1898 = vmatpush2.msra.mxu0 0.0
        %1899 = vmatprep.subr.mxu0 0.0
        %1900 = vmatpush2.msra.mxu0 0.0
        %1901 = vmatprep.subr.mxu0 0.0
        %1902 = vmatpush2.msra.mxu0 0.0
        %1903 = vmatprep.subr.mxu0 0.0
        %1904 = vmatpush2.msra.mxu0 0.0
        %1905 = vmatprep.subr.mxu0 0.0
        %1906 = vmatpush2.msra.mxu0 0.0
        %1907 = vmatprep.subr.mxu0 0.0
        %1908 = vmatpush2.msra.mxu0 0.0
        %1909 = vmatprep.subr.mxu0 0.0
        %1910 = vmatpush2.msra.mxu0 0.0
        %1911 = vmatprep.subr.mxu0 0.0
        %1912 = vmatpush2.msra.mxu0 0.0
        %1913 = vmatprep.subr.mxu0 0.0
        %1914 = vmatpush2.msra.mxu0 0.0
        %1915 = vmatprep.mubr.f32.mxu0 0.0
        %1916 = vmatmul.mubr.f32.gmra.mxu0 %v698
        %v1917 = vpop.f32.mrf.mxu0
        %v1918 = vadd.f32 0.0, %v1917
        %v1919 = vpop.f32.mrf.mxu0
        %1920 = vmatprep.mubr.f32.mxu0 0.0
        %1921 = vmatmul.mubr.f32.gmra.mxu0 %v701
        %v1922 = vpop.f32.mrf.mxu0
        %v1923 = vadd.f32 0.0, %v1922
        %v1924 = vpop.f32.mrf.mxu0
        %1925 = vdwg.mxu0
        %s1926 = scalar_lea.vmem %s2, 48
        %v1927 = vld [vmem:[%s1926] sm:$0xff]
        %v1928 = vld [vmem:[%s1926 + $0x8] sm:$0xff]
        %v1930 = vsel %vm938, %v1758, 0
        %v1933 = vsel %vm938, %v1763, 0
        %v1936 = vsel %vm938, %v1838, 0
        %v1939 = vsel %vm938, %v1843, 0
        %1941 = vmatprep.subr.mxu0 0.0
        %1942 = vmatpush1.xpose.msra.mxu0 0.0
        %1943 = vmatprep.subr.mxu0 0.0
        %1944 = vmatpush1.xpose.msra.mxu0 0.0
        %1945 = vmatprep.subr.mxu0 0.0
        %1946 = vmatpush1.xpose.msra.mxu0 0.0
        %1947 = vmatprep.subr.mxu0 0.0
        %1948 = vmatpush1.xpose.msra.mxu0 0.0
        %1949 = vmatprep.subr.mxu0 0.0
        %1950 = vmatpush1.xpose.msra.mxu0 0.0
        %1951 = vmatprep.subr.mxu0 0.0
        %1952 = vmatpush1.xpose.msra.mxu0 0.0
        %1953 = vmatprep.subr.mxu0 0.0
        %1954 = vmatpush1.xpose.msra.mxu0 0.0
        %1955 = vmatprep.subr.mxu0 0.0
        %1956 = vmatpush1.xpose.msra.mxu0 0.0
        %1957 = vmatprep.subr.mxu0 0.0
        %1958 = vmatpush1.xpose.msra.mxu0 0.0
        %1959 = vmatprep.subr.mxu0 0.0
        %1960 = vmatpush1.xpose.msra.mxu0 0.0
        %1961 = vmatprep.subr.mxu0 0.0
        %1962 = vmatpush1.xpose.msra.mxu0 0.0
        %1963 = vmatprep.subr.mxu0 0.0
        %1964 = vmatpush1.xpose.msra.mxu0 0.0
        %1965 = vmatprep.subr.mxu0 0.0
        %1966 = vmatpush1.xpose.msra.mxu0 0.0
        %1967 = vmatprep.subr.mxu0 0.0
        %1968 = vmatpush1.xpose.msra.mxu0 0.0
        %1969 = vmatprep.subr.mxu0 0.0
        %1970 = vmatpush1.xpose.msra.mxu0 %v1939
        %1971 = vmatprep.subr.mxu0 0.0
        %1972 = vmatpush1.xpose.msra.mxu0 %v1936
        %1973 = vmatprep.subr.mxu0 0.0
        %1974 = vmatpush2.xpose.msra.mxu0 0.0
        %1975 = vmatprep.subr.mxu0 0.0
        %1976 = vmatpush2.xpose.msra.mxu0 0.0
        %1977 = vmatprep.subr.mxu0 0.0
        %1978 = vmatpush2.xpose.msra.mxu0 0.0
        %1979 = vmatprep.subr.mxu0 0.0
        %1980 = vmatpush2.xpose.msra.mxu0 0.0
        %1981 = vmatprep.subr.mxu0 0.0
        %1982 = vmatpush2.xpose.msra.mxu0 0.0
        %1983 = vmatprep.subr.mxu0 0.0
        %1984 = vmatpush2.xpose.msra.mxu0 0.0
        %1985 = vmatprep.subr.mxu0 0.0
        %1986 = vmatpush2.xpose.msra.mxu0 0.0
        %1987 = vmatprep.subr.mxu0 0.0
        %1988 = vmatpush2.xpose.msra.mxu0 0.0
        %1989 = vmatprep.subr.mxu0 0.0
        %1990 = vmatpush2.xpose.msra.mxu0 0.0
        %1991 = vmatprep.subr.mxu0 0.0
        %1992 = vmatpush2.xpose.msra.mxu0 0.0
        %1993 = vmatprep.subr.mxu0 0.0
        %1994 = vmatpush2.xpose.msra.mxu0 0.0
        %1995 = vmatprep.subr.mxu0 0.0
        %1996 = vmatpush2.xpose.msra.mxu0 0.0
        %1997 = vmatprep.subr.mxu0 0.0
        %1998 = vmatpush2.xpose.msra.mxu0 0.0
        %1999 = vmatprep.subr.mxu0 0.0
        %2000 = vmatpush2.xpose.msra.mxu0 0.0
        %2001 = vmatprep.subr.mxu0 0.0
        %2002 = vmatpush2.xpose.msra.mxu0 0.0
        %2003 = vmatprep.subr.mxu0 0.0
        %2004 = vmatpush2.xpose.msra.mxu0 0.0
        %2005 = vmatprep.mubr.f32.mxu0 0.0
        %2006 = vmatmul.mubr.f32.gmra.mxu0 %v1930
        %v2007 = vpop.f32.mrf.mxu0
        %v2008 = vadd.f32 %v1927, %v2007
        %v2009 = vpop.f32.mrf.mxu0
        %2010 = vmatprep.mubr.f32.mxu0 0.0
        %2011 = vmatmul.mubr.f32.gmra.mxu0 %v1933
        %v2012 = vpop.f32.mrf.mxu0
        %v2013 = vadd.f32 %v1928, %v2012
        %v2014 = vpop.f32.mrf.mxu0
        %2015 = vdwg.mxu0
        %s2017 = vtos %v689
        %v2018 = vstv %s2017
        %v2020 = vmul.f32 %v2018, %v1018
        %v2021 = vmul.f32 %v2018, %v1023
        %v2022 = vadd.f32 %v2020, 0.0
        %v2023 = vadd.f32 %v2021, 0.0
        %2024 = vrot.lane.b32.xlu0 %v689, 127
        %v2025 = vpop.permute.xlu0 %2024
        %s2026 = vtos %v2025
        %v2027 = vstv %s2026
        %v2029 = vmul.f32 %v2027, %v1348
        %v2030 = vmul.f32 %v2027, %v1353
        %v2031 = vadd.f32 %v2022, %v2029
        %v2032 = vadd.f32 %v2023, %v2030
        %2033 = vrot.lane.b32.xlu0 %v689, 126
        %v2034 = vpop.permute.xlu0 %2033
        %s2035 = vtos %v2034
        %v2036 = vstv %s2035
        %v2038 = vmul.f32 %v2036, %v1678
        %v2039 = vmul.f32 %v2036, %v1683
        %v2040 = vadd.f32 %v2031, %v2038
        %v2041 = vadd.f32 %v2032, %v2039
        %2042 = vrot.lane.b32.xlu0 %v689, 125
        %v2043 = vpop.permute.xlu0 %2042
        %s2044 = vtos %v2043
        %v2045 = vstv %s2044
        %v2047 = vmul.f32 %v2045, %v2008
        %v2048 = vmul.f32 %v2045, %v2013
        %v2049 = vadd.f32 %v2040, %v2047
        %v2050 = vadd.f32 %v2041, %v2048
        %vm2051 = vcmp.eq.f32.partialorder %v691, 0.0
        %vm2052 = vcmp.eq.f32.partialorder %v692, 0.0
        %v2053 = vsel %vm2051, -10000.0, %v2049
        %v2054 = vsel %vm2052, -10000.0, %v2050
        %v2055 = vmul.f32 %v2053, 0.17677669
        %v2056 = vmul.f32 %v2054, 0.17677669
        %vm2057 = vcmask 130048
        %v2058 = vsel %vm2057, %v2055, -inf
        %2059 = vmax.xlane.f32.xlu0 %v2058
        %v2060 = vpop.xlane.xlu0 %2059
        %v2061 = vsel %vm2057, %v2056, -inf
        %2062 = vmax.xlane.f32.xlu0 %v2061
        %v2063 = vpop.xlane.xlu0 %2062
        %v2064 = vsub.f32 %v2055, %v2060
        %v2065 = vsub.f32 %v2056, %v2063
        %v2066 = vmul.f32 %v2064, 1.442695
        %v2067 = vpow.pop %v2066
        %v2068 = vmul.f32 %v2065, 1.442695
        %v2069 = vpow.pop %v2068
        %v2070 = vsel %vm2057, %v2067, 0.0
        %2071 = vadd.xlane.f32.xlu0 %v2070
        %v2072 = vpop.xlane.xlu0 %2071
        %v2073 = vsel %vm2057, %v2069, 0.0
        %2074 = vadd.xlane.f32.xlu0 %v2073
        %v2075 = vpop.xlane.xlu0 %2074
        %v2076 = vrcp.pop %v2072
        %v2077 = vmul.f32 %v2067, %v2076
        %v2078 = vrcp.pop %v2075
        %v2079 = vmul.f32 %v2069, %v2078
        %v2080 = vrot.slane %v689, 1
        %s2081 = vtos %v2080
        %v2082 = vstv %s2081
        %v2084 = vmul.f32 %v2082, %v1018
        %v2085 = vmul.f32 %v2082, %v1023
        %v2086 = vadd.f32 %v2084, 0.0
        %v2087 = vadd.f32 %v2085, 0.0
        %2088 = vrot.lane.b32.xlu0 %v2080, 127
        %v2089 = vpop.permute.xlu0 %2088
        %s2090 = vtos %v2089
        %v2091 = vstv %s2090
        %v2093 = vmul.f32 %v2091, %v1348
        %v2094 = vmul.f32 %v2091, %v1353
        %v2095 = vadd.f32 %v2086, %v2093
        %v2096 = vadd.f32 %v2087, %v2094
        %2097 = vrot.lane.b32.xlu0 %v2080, 126
        %v2098 = vpop.permute.xlu0 %2097
        %s2099 = vtos %v2098
        %v2100 = vstv %s2099
        %v2102 = vmul.f32 %v2100, %v1678
        %v2103 = vmul.f32 %v2100, %v1683
        %v2104 = vadd.f32 %v2095, %v2102
        %v2105 = vadd.f32 %v2096, %v2103
        %2106 = vrot.lane.b32.xlu0 %v2080, 125
        %v2107 = vpop.permute.xlu0 %2106
        %s2108 = vtos %v2107
        %v2109 = vstv %s2108
        %v2111 = vmul.f32 %v2109, %v2008
        %v2112 = vmul.f32 %v2109, %v2013
        %v2113 = vadd.f32 %v2104, %v2111
        %v2114 = vadd.f32 %v2105, %v2112
        %v2115 = vsel %vm2051, -10000.0, %v2113
        %v2116 = vsel %vm2052, -10000.0, %v2114
        %v2117 = vmul.f32 %v2115, 0.17677669
        %v2118 = vmul.f32 %v2116, 0.17677669
        %v2119 = vsel %vm2057, %v2117, -inf
        %2120 = vmax.xlane.f32.xlu0 %v2119
        %v2121 = vpop.xlane.xlu0 %2120
        %v2122 = vsel %vm2057, %v2118, -inf
        %2123 = vmax.xlane.f32.xlu0 %v2122
        %v2124 = vpop.xlane.xlu0 %2123
        %v2125 = vsub.f32 %v2117, %v2121
        %v2126 = vsub.f32 %v2118, %v2124
        %v2127 = vmul.f32 %v2125, 1.442695
        %v2128 = vpow.pop %v2127
        %v2129 = vmul.f32 %v2126, 1.442695
        %v2130 = vpow.pop %v2129
        %v2131 = vsel %vm2057, %v2128, 0.0
        %2132 = vadd.xlane.f32.xlu0 %v2131
        %v2133 = vpop.xlane.xlu0 %2132
        %v2134 = vsel %vm2057, %v2130, 0.0
        %2135 = vadd.xlane.f32.xlu0 %v2134
        %v2136 = vpop.xlane.xlu0 %2135
        %v2137 = vrcp.pop %v2133
        %v2138 = vmul.f32 %v2128, %v2137
        %v2139 = vrcp.pop %v2136
        %v2140 = vmul.f32 %v2130, %v2139
        %v2141 = vrot.slane %v689, 2
        %s2142 = vtos %v2141
        %v2143 = vstv %s2142
        %v2145 = vmul.f32 %v2143, %v1018
        %v2146 = vmul.f32 %v2143, %v1023
        %v2147 = vadd.f32 %v2145, 0.0
        %v2148 = vadd.f32 %v2146, 0.0
        %2149 = vrot.lane.b32.xlu0 %v2141, 127
        %v2150 = vpop.permute.xlu0 %2149
        %s2151 = vtos %v2150
        %v2152 = vstv %s2151
        %v2154 = vmul.f32 %v2152, %v1348
        %v2155 = vmul.f32 %v2152, %v1353
        %v2156 = vadd.f32 %v2147, %v2154
        %v2157 = vadd.f32 %v2148, %v2155
        %2158 = vrot.lane.b32.xlu0 %v2141, 126
        %v2159 = vpop.permute.xlu0 %2158
        %s2160 = vtos %v2159
        %v2161 = vstv %s2160
        %v2163 = vmul.f32 %v2161, %v1678
        %v2164 = vmul.f32 %v2161, %v1683
        %v2165 = vadd.f32 %v2156, %v2163
        %v2166 = vadd.f32 %v2157, %v2164
        %2167 = vrot.lane.b32.xlu0 %v2141, 125
        %v2168 = vpop.permute.xlu0 %2167
        %s2169 = vtos %v2168
        %v2170 = vstv %s2169
        %v2172 = vmul.f32 %v2170, %v2008
        %v2173 = vmul.f32 %v2170, %v2013
        %v2174 = vadd.f32 %v2165, %v2172
        %v2175 = vadd.f32 %v2166, %v2173
        %v2176 = vsel %vm2051, -10000.0, %v2174
        %v2177 = vsel %vm2052, -10000.0, %v2175
        %v2178 = vmul.f32 %v2176, 0.17677669
        %v2179 = vmul.f32 %v2177, 0.17677669
        %v2180 = vsel %vm2057, %v2178, -inf
        %2181 = vmax.xlane.f32.xlu0 %v2180
        %v2182 = vpop.xlane.xlu0 %2181
        %v2183 = vsel %vm2057, %v2179, -inf
        %2184 = vmax.xlane.f32.xlu0 %v2183
        %v2185 = vpop.xlane.xlu0 %2184
        %v2186 = vsub.f32 %v2178, %v2182
        %v2187 = vsub.f32 %v2179, %v2185
        %v2188 = vmul.f32 %v2186, 1.442695
        %v2189 = vpow.pop %v2188
        %v2190 = vmul.f32 %v2187, 1.442695
        %v2191 = vpow.pop %v2190
        %v2192 = vsel %vm2057, %v2189, 0.0
        %2193 = vadd.xlane.f32.xlu0 %v2192
        %v2194 = vpop.xlane.xlu0 %2193
        %v2195 = vsel %vm2057, %v2191, 0.0
        %2196 = vadd.xlane.f32.xlu0 %v2195
        %v2197 = vpop.xlane.xlu0 %2196
        %v2198 = vrcp.pop %v2194
        %v2199 = vmul.f32 %v2189, %v2198
        %v2200 = vrcp.pop %v2197
        %v2201 = vmul.f32 %v2191, %v2200
        %v2202 = vrot.slane %v689, 3
        %s2203 = vtos %v2202
        %v2204 = vstv %s2203
        %v2206 = vmul.f32 %v2204, %v1018
        %v2207 = vmul.f32 %v2204, %v1023
        %v2208 = vadd.f32 %v2206, 0.0
        %v2209 = vadd.f32 %v2207, 0.0
        %2210 = vrot.lane.b32.xlu0 %v2202, 127
        %v2211 = vpop.permute.xlu0 %2210
        %s2212 = vtos %v2211
        %v2213 = vstv %s2212
        %v2215 = vmul.f32 %v2213, %v1348
        %v2216 = vmul.f32 %v2213, %v1353
        %v2217 = vadd.f32 %v2208, %v2215
        %v2218 = vadd.f32 %v2209, %v2216
        %2219 = vrot.lane.b32.xlu0 %v2202, 126
        %v2220 = vpop.permute.xlu0 %2219
        %s2221 = vtos %v2220
        %v2222 = vstv %s2221
        %v2224 = vmul.f32 %v2222, %v1678
        %v2225 = vmul.f32 %v2222, %v1683
        %v2226 = vadd.f32 %v2217, %v2224
        %v2227 = vadd.f32 %v2218, %v2225
        %2228 = vrot.lane.b32.xlu0 %v2202, 125
        %v2229 = vpop.permute.xlu0 %2228
        %s2230 = vtos %v2229
        %v2231 = vstv %s2230
        %v2233 = vmul.f32 %v2231, %v2008
        %v2234 = vmul.f32 %v2231, %v2013
        %v2235 = vadd.f32 %v2226, %v2233
        %v2236 = vadd.f32 %v2227, %v2234
        %v2237 = vsel %vm2051, -10000.0, %v2235
        %v2238 = vsel %vm2052, -10000.0, %v2236
        %v2239 = vmul.f32 %v2237, 0.17677669
        %v2240 = vmul.f32 %v2238, 0.17677669
        %v2241 = vsel %vm2057, %v2239, -inf
        %2242 = vmax.xlane.f32.xlu0 %v2241
        %v2243 = vpop.xlane.xlu0 %2242
        %v2244 = vsel %vm2057, %v2240, -inf
        %2245 = vmax.xlane.f32.xlu0 %v2244
        %v2246 = vpop.xlane.xlu0 %2245
        %v2247 = vsub.f32 %v2239, %v2243
        %v2248 = vsub.f32 %v2240, %v2246
        %v2249 = vmul.f32 %v2247, 1.442695
        %v2250 = vpow.pop %v2249
        %v2251 = vmul.f32 %v2248, 1.442695
        %v2252 = vpow.pop %v2251
        %v2253 = vsel %vm2057, %v2250, 0.0
        %2254 = vadd.xlane.f32.xlu0 %v2253
        %v2255 = vpop.xlane.xlu0 %2254
        %v2256 = vsel %vm2057, %v2252, 0.0
        %2257 = vadd.xlane.f32.xlu0 %v2256
        %v2258 = vpop.xlane.xlu0 %2257
        %v2259 = vrcp.pop %v2255
        %v2260 = vmul.f32 %v2250, %v2259
        %v2261 = vrcp.pop %v2258
        %v2262 = vmul.f32 %v2252, %v2261
        %s2264 = vtos %v690
        %v2265 = vstv %s2264
        %v2267 = vmul.f32 %v2265, %v2077
        %v2268 = vmul.f32 %v2265, %v2079
        %v2269 = vadd.f32 %v2267, 0.0
        %v2270 = vadd.f32 %v2268, 0.0
        %2271 = vrot.lane.b32.xlu0 %v690, 127
        %v2272 = vpop.permute.xlu0 %2271
        %s2273 = vtos %v2272
        %v2274 = vstv %s2273
        %v2276 = vmul.f32 %v2274, %v2138
        %v2277 = vmul.f32 %v2274, %v2140
        %v2278 = vadd.f32 %v2269, %v2276
        %v2279 = vadd.f32 %v2270, %v2277
        %2280 = vrot.lane.b32.xlu0 %v690, 126
        %v2281 = vpop.permute.xlu0 %2280
        %s2282 = vtos %v2281
        %v2283 = vstv %s2282
        %v2285 = vmul.f32 %v2283, %v2199
        %v2286 = vmul.f32 %v2283, %v2201
        %v2287 = vadd.f32 %v2278, %v2285
        %v2288 = vadd.f32 %v2279, %v2286
        %2289 = vrot.lane.b32.xlu0 %v690, 125
        %v2290 = vpop.permute.xlu0 %2289
        %s2291 = vtos %v2290
        %v2292 = vstv %s2291
        %v2294 = vmul.f32 %v2292, %v2260
        %v2295 = vmul.f32 %v2292, %v2262
        %v2296 = vadd.f32 %v2287, %v2294
        %v2297 = vadd.f32 %v2288, %v2295
        %v2299 = vsel %vm2057, %v2296, 0
        %v2302 = vsel %vm2057, %v2297, 0
        %2304 = vmatprep.subr.mxu0 0.0
        %2305 = vmatpush1.msra.mxu0 0.0
        %2306 = vmatprep.subr.mxu0 0.0
        %2307 = vmatpush1.msra.mxu0 0.0
        %2308 = vmatprep.subr.mxu0 0.0
        %2309 = vmatpush1.msra.mxu0 0.0
        %2310 = vmatprep.subr.mxu0 0.0
        %2311 = vmatpush1.msra.mxu0 0.0
        %2312 = vmatprep.subr.mxu0 0.0
        %2313 = vmatpush1.msra.mxu0 0.0
        %2314 = vmatprep.subr.mxu0 0.0
        %2315 = vmatpush1.msra.mxu0 0.0
        %2316 = vmatprep.subr.mxu0 0.0
        %2317 = vmatpush1.msra.mxu0 0.0
        %2318 = vmatprep.subr.mxu0 0.0
        %2319 = vmatpush1.msra.mxu0 0.0
        %2320 = vmatprep.subr.mxu0 0.0
        %2321 = vmatpush1.msra.mxu0 0.0
        %2322 = vmatprep.subr.mxu0 0.0
        %2323 = vmatpush1.msra.mxu0 0.0
        %2324 = vmatprep.subr.mxu0 0.0
        %2325 = vmatpush1.msra.mxu0 0.0
        %2326 = vmatprep.subr.mxu0 0.0
        %2327 = vmatpush1.msra.mxu0 0.0
        %2328 = vmatprep.subr.mxu0 0.0
        %2329 = vmatpush1.msra.mxu0 0.0
        %2330 = vmatprep.subr.mxu0 0.0
        %2331 = vmatpush1.msra.mxu0 0.0
        %2332 = vmatprep.subr.mxu0 0.0
        %2333 = vmatpush1.msra.mxu0 %v933
        %2334 = vmatprep.subr.mxu0 0.0
        %2335 = vmatpush1.msra.mxu0 %v928
        %2336 = vmatprep.subr.mxu0 0.0
        %2337 = vmatpush2.msra.mxu0 0.0
        %2338 = vmatprep.subr.mxu0 0.0
        %2339 = vmatpush2.msra.mxu0 0.0
        %2340 = vmatprep.subr.mxu0 0.0
        %2341 = vmatpush2.msra.mxu0 0.0
        %2342 = vmatprep.subr.mxu0 0.0
        %2343 = vmatpush2.msra.mxu0 0.0
        %2344 = vmatprep.subr.mxu0 0.0
        %2345 = vmatpush2.msra.mxu0 0.0
        %2346 = vmatprep.subr.mxu0 0.0
        %2347 = vmatpush2.msra.mxu0 0.0
        %2348 = vmatprep.subr.mxu0 0.0
        %2349 = vmatpush2.msra.mxu0 0.0
        %2350 = vmatprep.subr.mxu0 0.0
        %2351 = vmatpush2.msra.mxu0 0.0
        %2352 = vmatprep.subr.mxu0 0.0
        %2353 = vmatpush2.msra.mxu0 0.0
        %2354 = vmatprep.subr.mxu0 0.0
        %2355 = vmatpush2.msra.mxu0 0.0
        %2356 = vmatprep.subr.mxu0 0.0
        %2357 = vmatpush2.msra.mxu0 0.0
        %2358 = vmatprep.subr.mxu0 0.0
        %2359 = vmatpush2.msra.mxu0 0.0
        %2360 = vmatprep.subr.mxu0 0.0
        %2361 = vmatpush2.msra.mxu0 0.0
        %2362 = vmatprep.subr.mxu0 0.0
        %2363 = vmatpush2.msra.mxu0 0.0
        %2364 = vmatprep.subr.mxu0 0.0
        %2365 = vmatpush2.msra.mxu0 0.0
        %2366 = vmatprep.subr.mxu0 0.0
        %2367 = vmatpush2.msra.mxu0 0.0
        %2368 = vmatprep.mubr.f32.mxu0 0.0
        %2369 = vmatmul.mubr.f32.gmra.mxu0 %v2299
        %v2370 = vpop.f32.mrf.mxu0
        %v2371 = vadd.f32 0.0, %v2370
        %v2372 = vpop.f32.mrf.mxu0
        %2373 = vmatprep.mubr.f32.mxu0 0.0
        %2374 = vmatmul.mubr.f32.gmra.mxu0 %v2302
        %v2375 = vpop.f32.mrf.mxu0
        %v2376 = vadd.f32 0.0, %v2375
        %v2377 = vpop.f32.mrf.mxu0
        %2378 = vdwg.mxu0
        %v2379 = vld [vmem:[%s9] sm:$0xff]
        %v2380 = vrot.slane %v690, 1
        %s2381 = vtos %v2380
        %v2382 = vstv %s2381
        %v2384 = vmul.f32 %v2382, %v2077
        %v2385 = vmul.f32 %v2382, %v2079
        %v2386 = vadd.f32 %v2384, 0.0
        %v2387 = vadd.f32 %v2385, 0.0
        %2388 = vrot.lane.b32.xlu0 %v2380, 127
        %v2389 = vpop.permute.xlu0 %2388
        %s2390 = vtos %v2389
        %v2391 = vstv %s2390
        %v2393 = vmul.f32 %v2391, %v2138
        %v2394 = vmul.f32 %v2391, %v2140
        %v2395 = vadd.f32 %v2386, %v2393
        %v2396 = vadd.f32 %v2387, %v2394
        %2397 = vrot.lane.b32.xlu0 %v2380, 126
        %v2398 = vpop.permute.xlu0 %2397
        %s2399 = vtos %v2398
        %v2400 = vstv %s2399
        %v2402 = vmul.f32 %v2400, %v2199
        %v2403 = vmul.f32 %v2400, %v2201
        %v2404 = vadd.f32 %v2395, %v2402
        %v2405 = vadd.f32 %v2396, %v2403
        %2406 = vrot.lane.b32.xlu0 %v2380, 125
        %v2407 = vpop.permute.xlu0 %2406
        %s2408 = vtos %v2407
        %v2409 = vstv %s2408
        %v2411 = vmul.f32 %v2409, %v2260
        %v2412 = vmul.f32 %v2409, %v2262
        %v2413 = vadd.f32 %v2404, %v2411
        %v2414 = vadd.f32 %v2405, %v2412
        %v2416 = vsel %vm2057, %v2413, 0
        %v2419 = vsel %vm2057, %v2414, 0
        %2421 = vmatprep.subr.mxu0 0.0
        %2422 = vmatpush1.msra.mxu0 0.0
        %2423 = vmatprep.subr.mxu0 0.0
        %2424 = vmatpush1.msra.mxu0 0.0
        %2425 = vmatprep.subr.mxu0 0.0
        %2426 = vmatpush1.msra.mxu0 0.0
        %2427 = vmatprep.subr.mxu0 0.0
        %2428 = vmatpush1.msra.mxu0 0.0
        %2429 = vmatprep.subr.mxu0 0.0
        %2430 = vmatpush1.msra.mxu0 0.0
        %2431 = vmatprep.subr.mxu0 0.0
        %2432 = vmatpush1.msra.mxu0 0.0
        %2433 = vmatprep.subr.mxu0 0.0
        %2434 = vmatpush1.msra.mxu0 0.0
        %2435 = vmatprep.subr.mxu0 0.0
        %2436 = vmatpush1.msra.mxu0 0.0
        %2437 = vmatprep.subr.mxu0 0.0
        %2438 = vmatpush1.msra.mxu0 0.0
        %2439 = vmatprep.subr.mxu0 0.0
        %2440 = vmatpush1.msra.mxu0 0.0
        %2441 = vmatprep.subr.mxu0 0.0
        %2442 = vmatpush1.msra.mxu0 0.0
        %2443 = vmatprep.subr.mxu0 0.0
        %2444 = vmatpush1.msra.mxu0 0.0
        %2445 = vmatprep.subr.mxu0 0.0
        %2446 = vmatpush1.msra.mxu0 0.0
        %2447 = vmatprep.subr.mxu0 0.0
        %2448 = vmatpush1.msra.mxu0 0.0
        %2449 = vmatprep.subr.mxu0 0.0
        %2450 = vmatpush1.msra.mxu0 %v1263
        %2451 = vmatprep.subr.mxu0 0.0
        %2452 = vmatpush1.msra.mxu0 %v1258
        %2453 = vmatprep.subr.mxu0 0.0
        %2454 = vmatpush2.msra.mxu0 0.0
        %2455 = vmatprep.subr.mxu0 0.0
        %2456 = vmatpush2.msra.mxu0 0.0
        %2457 = vmatprep.subr.mxu0 0.0
        %2458 = vmatpush2.msra.mxu0 0.0
        %2459 = vmatprep.subr.mxu0 0.0
        %2460 = vmatpush2.msra.mxu0 0.0
        %2461 = vmatprep.subr.mxu0 0.0
        %2462 = vmatpush2.msra.mxu0 0.0
        %2463 = vmatprep.subr.mxu0 0.0
        %2464 = vmatpush2.msra.mxu0 0.0
        %2465 = vmatprep.subr.mxu0 0.0
        %2466 = vmatpush2.msra.mxu0 0.0
        %2467 = vmatprep.subr.mxu0 0.0
        %2468 = vmatpush2.msra.mxu0 0.0
        %2469 = vmatprep.subr.mxu0 0.0
        %2470 = vmatpush2.msra.mxu0 0.0
        %2471 = vmatprep.subr.mxu0 0.0
        %2472 = vmatpush2.msra.mxu0 0.0
        %2473 = vmatprep.subr.mxu0 0.0
        %2474 = vmatpush2.msra.mxu0 0.0
        %2475 = vmatprep.subr.mxu0 0.0
        %2476 = vmatpush2.msra.mxu0 0.0
        %2477 = vmatprep.subr.mxu0 0.0
        %2478 = vmatpush2.msra.mxu0 0.0
        %2479 = vmatprep.subr.mxu0 0.0
        %2480 = vmatpush2.msra.mxu0 0.0
        %2481 = vmatprep.subr.mxu0 0.0
        %2482 = vmatpush2.msra.mxu0 0.0
        %2483 = vmatprep.subr.mxu0 0.0
        %2484 = vmatpush2.msra.mxu0 0.0
        %2485 = vmatprep.mubr.f32.mxu0 0.0
        %2486 = vmatmul.mubr.f32.gmra.mxu0 %v2416
        %v2487 = vpop.f32.mrf.mxu0
        %v2488 = vadd.f32 0.0, %v2487
        %v2489 = vpop.f32.mrf.mxu0
        %2490 = vmatprep.mubr.f32.mxu0 0.0
        %2491 = vmatmul.mubr.f32.gmra.mxu0 %v2419
        %v2492 = vpop.f32.mrf.mxu0
        %v2493 = vadd.f32 0.0, %v2492
        %v2494 = vpop.f32.mrf.mxu0
        %2495 = vdwg.mxu0
        %s2496 = scalar_lea.vmem %s9, 8
        %v2497 = vld [vmem:[%s2496] sm:$0xff]
        %v2499 = vsel %vm938, %v2488, 0
        %v2502 = vsel %vm938, %v2493, 0
        %2504 = vmatprep.subr.mxu0 0.0
        %2505 = vmatpush1.msra.mxu0 0.0
        %2506 = vmatprep.subr.mxu0 0.0
        %2507 = vmatpush1.msra.mxu0 0.0
        %2508 = vmatprep.subr.mxu0 0.0
        %2509 = vmatpush1.msra.mxu0 0.0
        %2510 = vmatprep.subr.mxu0 0.0
        %2511 = vmatpush1.msra.mxu0 0.0
        %2512 = vmatprep.subr.mxu0 0.0
        %2513 = vmatpush1.msra.mxu0 0.0
        %2514 = vmatprep.subr.mxu0 0.0
        %2515 = vmatpush1.msra.mxu0 0.0
        %2516 = vmatprep.subr.mxu0 0.0
        %2517 = vmatpush1.msra.mxu0 0.0
        %2518 = vmatprep.subr.mxu0 0.0
        %2519 = vmatpush1.msra.mxu0 0.0
        %2520 = vmatprep.subr.mxu0 0.0
        %2521 = vmatpush1.msra.mxu0 0.0
        %2522 = vmatprep.subr.mxu0 0.0
        %2523 = vmatpush1.msra.mxu0 0.0
        %2524 = vmatprep.subr.mxu0 0.0
        %2525 = vmatpush1.msra.mxu0 0.0
        %2526 = vmatprep.subr.mxu0 0.0
        %2527 = vmatpush1.msra.mxu0 0.0
        %2528 = vmatprep.subr.mxu0 0.0
        %2529 = vmatpush1.msra.mxu0 0.0
        %2530 = vmatprep.subr.mxu0 0.0
        %2531 = vmatpush1.msra.mxu0 0.0
        %2532 = vmatprep.subr.mxu0 0.0
        %2533 = vmatpush1.msra.mxu0 0.0
        %2534 = vmatprep.subr.mxu0 0.0
        %2535 = vmatpush1.msra.mxu0 %v2497
        %2536 = vmatprep.subr.mxu0 0.0
        %2537 = vmatpush2.msra.mxu0 0.0
        %2538 = vmatprep.subr.mxu0 0.0
        %2539 = vmatpush2.msra.mxu0 0.0
        %2540 = vmatprep.subr.mxu0 0.0
        %2541 = vmatpush2.msra.mxu0 0.0
        %2542 = vmatprep.subr.mxu0 0.0
        %2543 = vmatpush2.msra.mxu0 0.0
        %2544 = vmatprep.subr.mxu0 0.0
        %2545 = vmatpush2.msra.mxu0 0.0
        %2546 = vmatprep.subr.mxu0 0.0
        %2547 = vmatpush2.msra.mxu0 0.0
        %2548 = vmatprep.subr.mxu0 0.0
        %2549 = vmatpush2.msra.mxu0 0.0
        %2550 = vmatprep.subr.mxu0 0.0
        %2551 = vmatpush2.msra.mxu0 0.0
        %2552 = vmatprep.subr.mxu0 0.0
        %2553 = vmatpush2.msra.mxu0 0.0
        %2554 = vmatprep.subr.mxu0 0.0
        %2555 = vmatpush2.msra.mxu0 0.0
        %2556 = vmatprep.subr.mxu0 0.0
        %2557 = vmatpush2.msra.mxu0 0.0
        %2558 = vmatprep.subr.mxu0 0.0
        %2559 = vmatpush2.msra.mxu0 0.0
        %2560 = vmatprep.subr.mxu0 0.0
        %2561 = vmatpush2.msra.mxu0 0.0
        %2562 = vmatprep.subr.mxu0 0.0
        %2563 = vmatpush2.msra.mxu0 0.0
        %2564 = vmatprep.subr.mxu0 0.0
        %2565 = vmatpush2.msra.mxu0 0.0
        %2566 = vmatprep.subr.mxu0 0.0
        %2567 = vmatpush2.msra.mxu0 0.0
        %2568 = vmatprep.mubr.f32.mxu0 0.0
        %2569 = vmatmul.mubr.f32.gmra.mxu0 %v2499
        %v2570 = vpop.f32.mrf.mxu0
        %v2571 = vadd.f32 0.0, %v2570
        %v2572 = vpop.f32.mrf.mxu0
        %2573 = vmatprep.mubr.f32.mxu0 0.0
        %2574 = vmatmul.mubr.f32.gmra.mxu0 %v2502
        %v2575 = vpop.f32.mrf.mxu0
        %v2576 = vadd.f32 0.0, %v2575
        %v2577 = vpop.f32.mrf.mxu0
        %2578 = vdwg.mxu0
        %v2580 = vsel %vm938, %v2371, 0
        %v2583 = vsel %vm938, %v2376, 0
        %2585 = vmatprep.subr.mxu0 0.0
        %2586 = vmatpush1.msra.mxu0 0.0
        %2587 = vmatprep.subr.mxu0 0.0
        %2588 = vmatpush1.msra.mxu0 0.0
        %2589 = vmatprep.subr.mxu0 0.0
        %2590 = vmatpush1.msra.mxu0 0.0
        %2591 = vmatprep.subr.mxu0 0.0
        %2592 = vmatpush1.msra.mxu0 0.0
        %2593 = vmatprep.subr.mxu0 0.0
        %2594 = vmatpush1.msra.mxu0 0.0
        %2595 = vmatprep.subr.mxu0 0.0
        %2596 = vmatpush1.msra.mxu0 0.0
        %2597 = vmatprep.subr.mxu0 0.0
        %2598 = vmatpush1.msra.mxu0 0.0
        %2599 = vmatprep.subr.mxu0 0.0
        %2600 = vmatpush1.msra.mxu0 0.0
        %2601 = vmatprep.subr.mxu0 0.0
        %2602 = vmatpush1.msra.mxu0 0.0
        %2603 = vmatprep.subr.mxu0 0.0
        %2604 = vmatpush1.msra.mxu0 0.0
        %2605 = vmatprep.subr.mxu0 0.0
        %2606 = vmatpush1.msra.mxu0 0.0
        %2607 = vmatprep.subr.mxu0 0.0
        %2608 = vmatpush1.msra.mxu0 0.0
        %2609 = vmatprep.subr.mxu0 0.0
        %2610 = vmatpush1.msra.mxu0 0.0
        %2611 = vmatprep.subr.mxu0 0.0
        %2612 = vmatpush1.msra.mxu0 0.0
        %2613 = vmatprep.subr.mxu0 0.0
        %2614 = vmatpush1.msra.mxu0 0.0
        %2615 = vmatprep.subr.mxu0 0.0
        %2616 = vmatpush1.msra.mxu0 %v2379
        %2617 = vmatprep.subr.mxu0 0.0
        %2618 = vmatpush2.msra.mxu0 0.0
        %2619 = vmatprep.subr.mxu0 0.0
        %2620 = vmatpush2.msra.mxu0 0.0
        %2621 = vmatprep.subr.mxu0 0.0
        %2622 = vmatpush2.msra.mxu0 0.0
        %2623 = vmatprep.subr.mxu0 0.0
        %2624 = vmatpush2.msra.mxu0 0.0
        %2625 = vmatprep.subr.mxu0 0.0
        %2626 = vmatpush2.msra.mxu0 0.0
        %2627 = vmatprep.subr.mxu0 0.0
        %2628 = vmatpush2.msra.mxu0 0.0
        %2629 = vmatprep.subr.mxu0 0.0
        %2630 = vmatpush2.msra.mxu0 0.0
        %2631 = vmatprep.subr.mxu0 0.0
        %2632 = vmatpush2.msra.mxu0 0.0
        %2633 = vmatprep.subr.mxu0 0.0
        %2634 = vmatpush2.msra.mxu0 0.0
        %2635 = vmatprep.subr.mxu0 0.0
        %2636 = vmatpush2.msra.mxu0 0.0
        %2637 = vmatprep.subr.mxu0 0.0
        %2638 = vmatpush2.msra.mxu0 0.0
        %2639 = vmatprep.subr.mxu0 0.0
        %2640 = vmatpush2.msra.mxu0 0.0
        %2641 = vmatprep.subr.mxu0 0.0
        %2642 = vmatpush2.msra.mxu0 0.0
        %2643 = vmatprep.subr.mxu0 0.0
        %2644 = vmatpush2.msra.mxu0 0.0
        %2645 = vmatprep.subr.mxu0 0.0
        %2646 = vmatpush2.msra.mxu0 0.0
        %2647 = vmatprep.subr.mxu0 0.0
        %2648 = vmatpush2.msra.mxu0 0.0
        %2649 = vmatprep.mubr.f32.mxu0 0.0
        %2650 = vmatmul.mubr.f32.gmra.mxu0 %v2580
        %v2651 = vpop.f32.mrf.mxu0
        %v2652 = vadd.f32 %v2571, %v2651
        %v2653 = vpop.f32.mrf.mxu0
        %2654 = vmatprep.mubr.f32.mxu0 0.0
        %2655 = vmatmul.mubr.f32.gmra.mxu0 %v2583
        %v2656 = vpop.f32.mrf.mxu0
        %v2657 = vadd.f32 %v2576, %v2656
        %v2658 = vpop.f32.mrf.mxu0
        %2659 = vdwg.mxu0
        %v2660 = vrot.slane %v690, 2
        %s2661 = vtos %v2660
        %v2662 = vstv %s2661
        %v2664 = vmul.f32 %v2662, %v2077
        %v2665 = vmul.f32 %v2662, %v2079
        %v2666 = vadd.f32 %v2664, 0.0
        %v2667 = vadd.f32 %v2665, 0.0
        %2668 = vrot.lane.b32.xlu0 %v2660, 127
        %v2669 = vpop.permute.xlu0 %2668
        %s2670 = vtos %v2669
        %v2671 = vstv %s2670
        %v2673 = vmul.f32 %v2671, %v2138
        %v2674 = vmul.f32 %v2671, %v2140
        %v2675 = vadd.f32 %v2666, %v2673
        %v2676 = vadd.f32 %v2667, %v2674
        %2677 = vrot.lane.b32.xlu0 %v2660, 126
        %v2678 = vpop.permute.xlu0 %2677
        %s2679 = vtos %v2678
        %v2680 = vstv %s2679
        %v2682 = vmul.f32 %v2680, %v2199
        %v2683 = vmul.f32 %v2680, %v2201
        %v2684 = vadd.f32 %v2675, %v2682
        %v2685 = vadd.f32 %v2676, %v2683
        %2686 = vrot.lane.b32.xlu0 %v2660, 125
        %v2687 = vpop.permute.xlu0 %2686
        %s2688 = vtos %v2687
        %v2689 = vstv %s2688
        %v2691 = vmul.f32 %v2689, %v2260
        %v2692 = vmul.f32 %v2689, %v2262
        %v2693 = vadd.f32 %v2684, %v2691
        %v2694 = vadd.f32 %v2685, %v2692
        %v2696 = vsel %vm2057, %v2693, 0
        %v2699 = vsel %vm2057, %v2694, 0
        %2701 = vmatprep.subr.mxu0 0.0
        %2702 = vmatpush1.msra.mxu0 0.0
        %2703 = vmatprep.subr.mxu0 0.0
        %2704 = vmatpush1.msra.mxu0 0.0
        %2705 = vmatprep.subr.mxu0 0.0
        %2706 = vmatpush1.msra.mxu0 0.0
        %2707 = vmatprep.subr.mxu0 0.0
        %2708 = vmatpush1.msra.mxu0 0.0
        %2709 = vmatprep.subr.mxu0 0.0
        %2710 = vmatpush1.msra.mxu0 0.0
        %2711 = vmatprep.subr.mxu0 0.0
        %2712 = vmatpush1.msra.mxu0 0.0
        %2713 = vmatprep.subr.mxu0 0.0
        %2714 = vmatpush1.msra.mxu0 0.0
        %2715 = vmatprep.subr.mxu0 0.0
        %2716 = vmatpush1.msra.mxu0 0.0
        %2717 = vmatprep.subr.mxu0 0.0
        %2718 = vmatpush1.msra.mxu0 0.0
        %2719 = vmatprep.subr.mxu0 0.0
        %2720 = vmatpush1.msra.mxu0 0.0
        %2721 = vmatprep.subr.mxu0 0.0
        %2722 = vmatpush1.msra.mxu0 0.0
        %2723 = vmatprep.subr.mxu0 0.0
        %2724 = vmatpush1.msra.mxu0 0.0
        %2725 = vmatprep.subr.mxu0 0.0
        %2726 = vmatpush1.msra.mxu0 0.0
        %2727 = vmatprep.subr.mxu0 0.0
        %2728 = vmatpush1.msra.mxu0 0.0
        %2729 = vmatprep.subr.mxu0 0.0
        %2730 = vmatpush1.msra.mxu0 %v1593
        %2731 = vmatprep.subr.mxu0 0.0
        %2732 = vmatpush1.msra.mxu0 %v1588
        %2733 = vmatprep.subr.mxu0 0.0
        %2734 = vmatpush2.msra.mxu0 0.0
        %2735 = vmatprep.subr.mxu0 0.0
        %2736 = vmatpush2.msra.mxu0 0.0
        %2737 = vmatprep.subr.mxu0 0.0
        %2738 = vmatpush2.msra.mxu0 0.0
        %2739 = vmatprep.subr.mxu0 0.0
        %2740 = vmatpush2.msra.mxu0 0.0
        %2741 = vmatprep.subr.mxu0 0.0
        %2742 = vmatpush2.msra.mxu0 0.0
        %2743 = vmatprep.subr.mxu0 0.0
        %2744 = vmatpush2.msra.mxu0 0.0
        %2745 = vmatprep.subr.mxu0 0.0
        %2746 = vmatpush2.msra.mxu0 0.0
        %2747 = vmatprep.subr.mxu0 0.0
        %2748 = vmatpush2.msra.mxu0 0.0
        %2749 = vmatprep.subr.mxu0 0.0
        %2750 = vmatpush2.msra.mxu0 0.0
        %2751 = vmatprep.subr.mxu0 0.0
        %2752 = vmatpush2.msra.mxu0 0.0
        %2753 = vmatprep.subr.mxu0 0.0
        %2754 = vmatpush2.msra.mxu0 0.0
        %2755 = vmatprep.subr.mxu0 0.0
        %2756 = vmatpush2.msra.mxu0 0.0
        %2757 = vmatprep.subr.mxu0 0.0
        %2758 = vmatpush2.msra.mxu0 0.0
        %2759 = vmatprep.subr.mxu0 0.0
        %2760 = vmatpush2.msra.mxu0 0.0
        %2761 = vmatprep.subr.mxu0 0.0
        %2762 = vmatpush2.msra.mxu0 0.0
        %2763 = vmatprep.subr.mxu0 0.0
        %2764 = vmatpush2.msra.mxu0 0.0
        %2765 = vmatprep.mubr.f32.mxu0 0.0
        %2766 = vmatmul.mubr.f32.gmra.mxu0 %v2696
        %v2767 = vpop.f32.mrf.mxu0
        %v2768 = vadd.f32 0.0, %v2767
        %v2769 = vpop.f32.mrf.mxu0
        %2770 = vmatprep.mubr.f32.mxu0 0.0
        %2771 = vmatmul.mubr.f32.gmra.mxu0 %v2699
        %v2772 = vpop.f32.mrf.mxu0
        %v2773 = vadd.f32 0.0, %v2772
        %v2774 = vpop.f32.mrf.mxu0
        %2775 = vdwg.mxu0
        %s2776 = scalar_lea.vmem %s9, 16
        %v2777 = vld [vmem:[%s2776] sm:$0xff]
        %v2779 = vsel %vm938, %v2768, 0
        %v2782 = vsel %vm938, %v2773, 0
        %2784 = vmatprep.subr.mxu0 0.0
        %2785 = vmatpush1.msra.mxu0 0.0
        %2786 = vmatprep.subr.mxu0 0.0
        %2787 = vmatpush1.msra.mxu0 0.0
        %2788 = vmatprep.subr.mxu0 0.0
        %2789 = vmatpush1.msra.mxu0 0.0
        %2790 = vmatprep.subr.mxu0 0.0
        %2791 = vmatpush1.msra.mxu0 0.0
        %2792 = vmatprep.subr.mxu0 0.0
        %2793 = vmatpush1.msra.mxu0 0.0
        %2794 = vmatprep.subr.mxu0 0.0
        %2795 = vmatpush1.msra.mxu0 0.0
        %2796 = vmatprep.subr.mxu0 0.0
        %2797 = vmatpush1.msra.mxu0 0.0
        %2798 = vmatprep.subr.mxu0 0.0
        %2799 = vmatpush1.msra.mxu0 0.0
        %2800 = vmatprep.subr.mxu0 0.0
        %2801 = vmatpush1.msra.mxu0 0.0
        %2802 = vmatprep.subr.mxu0 0.0
        %2803 = vmatpush1.msra.mxu0 0.0
        %2804 = vmatprep.subr.mxu0 0.0
        %2805 = vmatpush1.msra.mxu0 0.0
        %2806 = vmatprep.subr.mxu0 0.0
        %2807 = vmatpush1.msra.mxu0 0.0
        %2808 = vmatprep.subr.mxu0 0.0
        %2809 = vmatpush1.msra.mxu0 0.0
        %2810 = vmatprep.subr.mxu0 0.0
        %2811 = vmatpush1.msra.mxu0 0.0
        %2812 = vmatprep.subr.mxu0 0.0
        %2813 = vmatpush1.msra.mxu0 0.0
        %2814 = vmatprep.subr.mxu0 0.0
        %2815 = vmatpush1.msra.mxu0 %v2777
        %2816 = vmatprep.subr.mxu0 0.0
        %2817 = vmatpush2.msra.mxu0 0.0
        %2818 = vmatprep.subr.mxu0 0.0
        %2819 = vmatpush2.msra.mxu0 0.0
        %2820 = vmatprep.subr.mxu0 0.0
        %2821 = vmatpush2.msra.mxu0 0.0
        %2822 = vmatprep.subr.mxu0 0.0
        %2823 = vmatpush2.msra.mxu0 0.0
        %2824 = vmatprep.subr.mxu0 0.0
        %2825 = vmatpush2.msra.mxu0 0.0
        %2826 = vmatprep.subr.mxu0 0.0
        %2827 = vmatpush2.msra.mxu0 0.0
        %2828 = vmatprep.subr.mxu0 0.0
        %2829 = vmatpush2.msra.mxu0 0.0
        %2830 = vmatprep.subr.mxu0 0.0
        %2831 = vmatpush2.msra.mxu0 0.0
        %2832 = vmatprep.subr.mxu0 0.0
        %2833 = vmatpush2.msra.mxu0 0.0
        %2834 = vmatprep.subr.mxu0 0.0
        %2835 = vmatpush2.msra.mxu0 0.0
        %2836 = vmatprep.subr.mxu0 0.0
        %2837 = vmatpush2.msra.mxu0 0.0
        %2838 = vmatprep.subr.mxu0 0.0
        %2839 = vmatpush2.msra.mxu0 0.0
        %2840 = vmatprep.subr.mxu0 0.0
        %2841 = vmatpush2.msra.mxu0 0.0
        %2842 = vmatprep.subr.mxu0 0.0
        %2843 = vmatpush2.msra.mxu0 0.0
        %2844 = vmatprep.subr.mxu0 0.0
        %2845 = vmatpush2.msra.mxu0 0.0
        %2846 = vmatprep.subr.mxu0 0.0
        %2847 = vmatpush2.msra.mxu0 0.0
        %2848 = vmatprep.mubr.f32.mxu0 0.0
        %2849 = vmatmul.mubr.f32.gmra.mxu0 %v2779
        %v2850 = vpop.f32.mrf.mxu0
        %v2851 = vadd.f32 0.0, %v2850
        %v2852 = vpop.f32.mrf.mxu0
        %2853 = vmatprep.mubr.f32.mxu0 0.0
        %2854 = vmatmul.mubr.f32.gmra.mxu0 %v2782
        %v2855 = vpop.f32.mrf.mxu0
        %v2856 = vadd.f32 0.0, %v2855
        %v2857 = vpop.f32.mrf.mxu0
        %2858 = vdwg.mxu0
        %v2859 = vadd.f32 %v2652, %v2851
        %v2860 = vadd.f32 %v2657, %v2856
        %v2861 = vrot.slane %v690, 3
        %s2862 = vtos %v2861
        %v2863 = vstv %s2862
        %v2865 = vmul.f32 %v2863, %v2077
        %v2866 = vmul.f32 %v2863, %v2079
        %v2867 = vadd.f32 %v2865, 0.0
        %v2868 = vadd.f32 %v2866, 0.0
        %2869 = vrot.lane.b32.xlu0 %v2861, 127
        %v2870 = vpop.permute.xlu0 %2869
        %s2871 = vtos %v2870
        %v2872 = vstv %s2871
        %v2874 = vmul.f32 %v2872, %v2138
        %v2875 = vmul.f32 %v2872, %v2140
        %v2876 = vadd.f32 %v2867, %v2874
        %v2877 = vadd.f32 %v2868, %v2875
        %2878 = vrot.lane.b32.xlu0 %v2861, 126
        %v2879 = vpop.permute.xlu0 %2878
        %s2880 = vtos %v2879
        %v2881 = vstv %s2880
        %v2883 = vmul.f32 %v2881, %v2199
        %v2884 = vmul.f32 %v2881, %v2201
        %v2885 = vadd.f32 %v2876, %v2883
        %v2886 = vadd.f32 %v2877, %v2884
        %2887 = vrot.lane.b32.xlu0 %v2861, 125
        %v2888 = vpop.permute.xlu0 %2887
        %s2889 = vtos %v2888
        %v2890 = vstv %s2889
        %v2892 = vmul.f32 %v2890, %v2260
        %v2893 = vmul.f32 %v2890, %v2262
        %v2894 = vadd.f32 %v2885, %v2892
        %v2895 = vadd.f32 %v2886, %v2893
        %v2897 = vsel %vm2057, %v2894, 0
        %v2900 = vsel %vm2057, %v2895, 0
        %2902 = vmatprep.subr.mxu0 0.0
        %2903 = vmatpush1.msra.mxu0 0.0
        %2904 = vmatprep.subr.mxu0 0.0
        %2905 = vmatpush1.msra.mxu0 0.0
        %2906 = vmatprep.subr.mxu0 0.0
        %2907 = vmatpush1.msra.mxu0 0.0
        %2908 = vmatprep.subr.mxu0 0.0
        %2909 = vmatpush1.msra.mxu0 0.0
        %2910 = vmatprep.subr.mxu0 0.0
        %2911 = vmatpush1.msra.mxu0 0.0
        %2912 = vmatprep.subr.mxu0 0.0
        %2913 = vmatpush1.msra.mxu0 0.0
        %2914 = vmatprep.subr.mxu0 0.0
        %2915 = vmatpush1.msra.mxu0 0.0
        %2916 = vmatprep.subr.mxu0 0.0
        %2917 = vmatpush1.msra.mxu0 0.0
        %2918 = vmatprep.subr.mxu0 0.0
        %2919 = vmatpush1.msra.mxu0 0.0
        %2920 = vmatprep.subr.mxu0 0.0
        %2921 = vmatpush1.msra.mxu0 0.0
        %2922 = vmatprep.subr.mxu0 0.0
        %2923 = vmatpush1.msra.mxu0 0.0
        %2924 = vmatprep.subr.mxu0 0.0
        %2925 = vmatpush1.msra.mxu0 0.0
        %2926 = vmatprep.subr.mxu0 0.0
        %2927 = vmatpush1.msra.mxu0 0.0
        %2928 = vmatprep.subr.mxu0 0.0
        %2929 = vmatpush1.msra.mxu0 0.0
        %2930 = vmatprep.subr.mxu0 0.0
        %2931 = vmatpush1.msra.mxu0 %v1923
        %2932 = vmatprep.subr.mxu0 0.0
        %2933 = vmatpush1.msra.mxu0 %v1918
        %2934 = vmatprep.subr.mxu0 0.0
        %2935 = vmatpush2.msra.mxu0 0.0
        %2936 = vmatprep.subr.mxu0 0.0
        %2937 = vmatpush2.msra.mxu0 0.0
        %2938 = vmatprep.subr.mxu0 0.0
        %2939 = vmatpush2.msra.mxu0 0.0
        %2940 = vmatprep.subr.mxu0 0.0
        %2941 = vmatpush2.msra.mxu0 0.0
        %2942 = vmatprep.subr.mxu0 0.0
        %2943 = vmatpush2.msra.mxu0 0.0
        %2944 = vmatprep.subr.mxu0 0.0
        %2945 = vmatpush2.msra.mxu0 0.0
        %2946 = vmatprep.subr.mxu0 0.0
        %2947 = vmatpush2.msra.mxu0 0.0
        %2948 = vmatprep.subr.mxu0 0.0
        %2949 = vmatpush2.msra.mxu0 0.0
        %2950 = vmatprep.subr.mxu0 0.0
        %2951 = vmatpush2.msra.mxu0 0.0
        %2952 = vmatprep.subr.mxu0 0.0
        %2953 = vmatpush2.msra.mxu0 0.0
        %2954 = vmatprep.subr.mxu0 0.0
        %2955 = vmatpush2.msra.mxu0 0.0
        %2956 = vmatprep.subr.mxu0 0.0
        %2957 = vmatpush2.msra.mxu0 0.0
        %2958 = vmatprep.subr.mxu0 0.0
        %2959 = vmatpush2.msra.mxu0 0.0
        %2960 = vmatprep.subr.mxu0 0.0
        %2961 = vmatpush2.msra.mxu0 0.0
        %2962 = vmatprep.subr.mxu0 0.0
        %2963 = vmatpush2.msra.mxu0 0.0
        %2964 = vmatprep.subr.mxu0 0.0
        %2965 = vmatpush2.msra.mxu0 0.0
        %2966 = vmatprep.mubr.f32.mxu0 0.0
        %2967 = vmatmul.mubr.f32.gmra.mxu0 %v2897
        %v2968 = vpop.f32.mrf.mxu0
        %v2969 = vadd.f32 0.0, %v2968
        %v2970 = vpop.f32.mrf.mxu0
        %2971 = vmatprep.mubr.f32.mxu0 0.0
        %2972 = vmatmul.mubr.f32.gmra.mxu0 %v2900
        %v2973 = vpop.f32.mrf.mxu0
        %v2974 = vadd.f32 0.0, %v2973
        %v2975 = vpop.f32.mrf.mxu0
        %2976 = vdwg.mxu0
        %s2977 = scalar_lea.vmem %s9, 24
        %v2978 = vld [vmem:[%s2977] sm:$0xff]
        %v2980 = vsel %vm938, %v2969, 0
        %v2983 = vsel %vm938, %v2974, 0
        %2985 = vmatprep.subr.mxu0 0.0
        %2986 = vmatpush1.msra.mxu0 0.0
        %2987 = vmatprep.subr.mxu0 0.0
        %2988 = vmatpush1.msra.mxu0 0.0
        %2989 = vmatprep.subr.mxu0 0.0
        %2990 = vmatpush1.msra.mxu0 0.0
        %2991 = vmatprep.subr.mxu0 0.0
        %2992 = vmatpush1.msra.mxu0 0.0
        %2993 = vmatprep.subr.mxu0 0.0
        %2994 = vmatpush1.msra.mxu0 0.0
        %2995 = vmatprep.subr.mxu0 0.0
        %2996 = vmatpush1.msra.mxu0 0.0
        %2997 = vmatprep.subr.mxu0 0.0
        %2998 = vmatpush1.msra.mxu0 0.0
        %2999 = vmatprep.subr.mxu0 0.0
        %3000 = vmatpush1.msra.mxu0 0.0
        %3001 = vmatprep.subr.mxu0 0.0
        %3002 = vmatpush1.msra.mxu0 0.0
        %3003 = vmatprep.subr.mxu0 0.0
        %3004 = vmatpush1.msra.mxu0 0.0
        %3005 = vmatprep.subr.mxu0 0.0
        %3006 = vmatpush1.msra.mxu0 0.0
        %3007 = vmatprep.subr.mxu0 0.0
        %3008 = vmatpush1.msra.mxu0 0.0
        %3009 = vmatprep.subr.mxu0 0.0
        %3010 = vmatpush1.msra.mxu0 0.0
        %3011 = vmatprep.subr.mxu0 0.0
        %3012 = vmatpush1.msra.mxu0 0.0
        %3013 = vmatprep.subr.mxu0 0.0
        %3014 = vmatpush1.msra.mxu0 0.0
        %3015 = vmatprep.subr.mxu0 0.0
        %3016 = vmatpush1.msra.mxu0 %v2978
        %3017 = vmatprep.subr.mxu0 0.0
        %3018 = vmatpush2.msra.mxu0 0.0
        %3019 = vmatprep.subr.mxu0 0.0
        %3020 = vmatpush2.msra.mxu0 0.0
        %3021 = vmatprep.subr.mxu0 0.0
        %3022 = vmatpush2.msra.mxu0 0.0
        %3023 = vmatprep.subr.mxu0 0.0
        %3024 = vmatpush2.msra.mxu0 0.0
        %3025 = vmatprep.subr.mxu0 0.0
        %3026 = vmatpush2.msra.mxu0 0.0
        %3027 = vmatprep.subr.mxu0 0.0
        %3028 = vmatpush2.msra.mxu0 0.0
        %3029 = vmatprep.subr.mxu0 0.0
        %3030 = vmatpush2.msra.mxu0 0.0
        %3031 = vmatprep.subr.mxu0 0.0
        %3032 = vmatpush2.msra.mxu0 0.0
        %3033 = vmatprep.subr.mxu0 0.0
        %3034 = vmatpush2.msra.mxu0 0.0
        %3035 = vmatprep.subr.mxu0 0.0
        %3036 = vmatpush2.msra.mxu0 0.0
        %3037 = vmatprep.subr.mxu0 0.0
        %3038 = vmatpush2.msra.mxu0 0.0
        %3039 = vmatprep.subr.mxu0 0.0
        %3040 = vmatpush2.msra.mxu0 0.0
        %3041 = vmatprep.subr.mxu0 0.0
        %3042 = vmatpush2.msra.mxu0 0.0
        %3043 = vmatprep.subr.mxu0 0.0
        %3044 = vmatpush2.msra.mxu0 0.0
        %3045 = vmatprep.subr.mxu0 0.0
        %3046 = vmatpush2.msra.mxu0 0.0
        %3047 = vmatprep.subr.mxu0 0.0
        %3048 = vmatpush2.msra.mxu0 0.0
        %3049 = vmatprep.mubr.f32.mxu0 0.0
        %3050 = vmatmul.mubr.f32.gmra.mxu0 %v2980
        %v3051 = vpop.f32.mrf.mxu0
        %v3052 = vadd.f32 0.0, %v3051
        %v3053 = vpop.f32.mrf.mxu0
        %3054 = vmatprep.mubr.f32.mxu0 0.0
        %3055 = vmatmul.mubr.f32.gmra.mxu0 %v2983
        %v3056 = vpop.f32.mrf.mxu0
        %v3057 = vadd.f32 0.0, %v3056
        %v3058 = vpop.f32.mrf.mxu0
        %3059 = vdwg.mxu0
        %v3060 = vadd.f32 %v2859, %v3052
        %v3061 = vadd.f32 %v2860, %v3057
        %v3062 = vld [vmem:[%s10] sm:$0x1]
        %v3064 = vlaneseq
        %v3065 = vshrl.u32 %v3064, 7
        %v3066 = vsub.s32 0, %v3065
        %v3067 = vrot.slane %v3062, %v3066
        %v3069 = vadd.f32 %v3060, %v3067
        %v3070 = vadd.f32 %v3061, %v3067
        %v3071 = vadd.f32 %v641, %v3069
        %v3072 = vadd.f32 %v642, %v3070
        %v3073 = vld [vmem:[%s13] sm:$0x1]
        %v3074 = vld [vmem:[%s14] sm:$0x1]
        %v3075 = vsel %vm645, %v3071, 0.0
        %3076 = vadd.xlane.f32.xlu0 %v3075
        %v3077 = vpop.xlane.xlu0 %3076
        %v3078 = vsel %vm645, %v3072, 0.0
        %3079 = vadd.xlane.f32.xlu0 %v3078
        %v3080 = vpop.xlane.xlu0 %3079
        %v3081 = vmul.f32 %v3077, %v652
        %v3082 = vmul.f32 %v3080, %v652
        %v3083 = vsub.f32 %v3071, %v3081
        %v3084 = vsub.f32 %v3072, %v3082
        %v3085 = vmul.f32 %v3083, %v3083
        %v3086 = vmul.f32 %v3084, %v3084
        %v3087 = vsel %vm645, %v3085, 0.0
        %3088 = vadd.xlane.f32.xlu0 %v3087
        %v3089 = vpop.xlane.xlu0 %3088
        %v3090 = vsel %vm645, %v3086, 0.0
        %3091 = vadd.xlane.f32.xlu0 %v3090
        %v3092 = vpop.xlane.xlu0 %3091
        %v3093 = vmul.f32 %v3089, %v652
        %v3094 = vmul.f32 %v3092, %v652
        %v3095 = vadd.f32 %v3093, 1e-05
        %v3096 = vadd.f32 %v3094, 1e-05
        %v3097 = vrsqrt.pop %v3095
        %v3098 = vrsqrt.pop %v3096
        %v3099 = vmul.f32 %v3083, %v3097
        %v3100 = vmul.f32 %v3084, %v3098
        %v3102 = vlaneseq
        %v3103 = vshrl.u32 %v3102, 7
        %v3104 = vsub.s32 0, %v3103
        %v3105 = vrot.slane %v3073, %v3104
        %v3107 = vmul.f32 %v3099, %v3105
        %v3108 = vmul.f32 %v3100, %v3105
        %v3110 = vlaneseq
        %v3111 = vshrl.u32 %v3110, 7
        %v3112 = vsub.s32 0, %v3111
        %v3113 = vrot.slane %v3074, %v3112
        %v3115 = vadd.f32 %v3107, %v3113
        %v3116 = vadd.f32 %v3108, %v3113
        %v3117 = vld [vmem:[%s640] sm:$0xff]
        %v3118 = vld [vmem:[%s640 + $0x8] sm:$0xff]
        %v3119 = vlaneseq
        %v3120 = vshrl.u32 %v3119, 7
        %v3121 = vadd.s32 %v3120, 8
        %v3122 = vlaneseq
        %v3123 = vand.u32 %v3122, 127
        %v3124 = vadd.s32 %v3120, 4294967295
        %v3125 = vadd.s32 %v3121, 4294967295
        %vm3126 = vcmp.eq.s32.totalorder %v3123, %v3124
        %vm3127 = vcmp.eq.s32.totalorder %v3123, %v3125
        %v3128 = vsel %vm3126, 1.0, 0.0
        %v3129 = vsel %vm3127, 1.0, 0.0
        %v3130 = vadd.s32 %v3120, 1
        %v3131 = vadd.s32 %v3121, 1
        %vm3132 = vcmp.eq.s32.totalorder %v3123, %v3130
        %vm3133 = vcmp.eq.s32.totalorder %v3123, %v3131
        %v3134 = vsel %vm3132, 1.0, 0.0
        %v3135 = vsel %vm3133, 1.0, 0.0
        %3137 = vset.pattern.permute.xlu0 0
        %3138 = vperm.xlu0 %3137, %v3117
        %v3139 = vpop.permute.xlu0 %3138
        %3142 = vset.pattern.permute.xlu0 0
        %3143 = vperm.xlu0 %3142, %v3118
        %v3144 = vpop.permute.xlu0 %3143
        %v3146 = vmul.f32 %v3115, %v3139
        %v3147 = vmul.f32 %v3116, %v3144
        %v3148 = vld [vmem:[%s16] sm:$0x3]
        %v3150 = vsel %vm2057, %v3128, 0
        %v3153 = vsel %vm2057, %v3129, 0
        %3155 = vmatprep.subr.mxu0 0.0
        %3156 = vmatpush1.msra.mxu0 0.0
        %3157 = vmatprep.subr.mxu0 0.0
        %3158 = vmatpush1.msra.mxu0 0.0
        %3159 = vmatprep.subr.mxu0 0.0
        %3160 = vmatpush1.msra.mxu0 0.0
        %3161 = vmatprep.subr.mxu0 0.0
        %3162 = vmatpush1.msra.mxu0 0.0
        %3163 = vmatprep.subr.mxu0 0.0
        %3164 = vmatpush1.msra.mxu0 0.0
        %3165 = vmatprep.subr.mxu0 0.0
        %3166 = vmatpush1.msra.mxu0 0.0
        %3167 = vmatprep.subr.mxu0 0.0
        %3168 = vmatpush1.msra.mxu0 0.0
        %3169 = vmatprep.subr.mxu0 0.0
        %3170 = vmatpush1.msra.mxu0 0.0
        %3171 = vmatprep.subr.mxu0 0.0
        %3172 = vmatpush1.msra.mxu0 0.0
        %3173 = vmatprep.subr.mxu0 0.0
        %3174 = vmatpush1.msra.mxu0 0.0
        %3175 = vmatprep.subr.mxu0 0.0
        %3176 = vmatpush1.msra.mxu0 0.0
        %3177 = vmatprep.subr.mxu0 0.0
        %3178 = vmatpush1.msra.mxu0 0.0
        %3179 = vmatprep.subr.mxu0 0.0
        %3180 = vmatpush1.msra.mxu0 0.0
        %3181 = vmatprep.subr.mxu0 0.0
        %3182 = vmatpush1.msra.mxu0 0.0
        %3183 = vmatprep.subr.mxu0 0.0
        %3184 = vmatpush1.msra.mxu0 %v3147
        %3185 = vmatprep.subr.mxu0 0.0
        %3186 = vmatpush1.msra.mxu0 %v3146
        %3187 = vmatprep.subr.mxu0 0.0
        %3188 = vmatpush2.msra.mxu0 0.0
        %3189 = vmatprep.subr.mxu0 0.0
        %3190 = vmatpush2.msra.mxu0 0.0
        %3191 = vmatprep.subr.mxu0 0.0
        %3192 = vmatpush2.msra.mxu0 0.0
        %3193 = vmatprep.subr.mxu0 0.0
        %3194 = vmatpush2.msra.mxu0 0.0
        %3195 = vmatprep.subr.mxu0 0.0
        %3196 = vmatpush2.msra.mxu0 0.0
        %3197 = vmatprep.subr.mxu0 0.0
        %3198 = vmatpush2.msra.mxu0 0.0
        %3199 = vmatprep.subr.mxu0 0.0
        %3200 = vmatpush2.msra.mxu0 0.0
        %3201 = vmatprep.subr.mxu0 0.0
        %3202 = vmatpush2.msra.mxu0 0.0
        %3203 = vmatprep.subr.mxu0 0.0
        %3204 = vmatpush2.msra.mxu0 0.0
        %3205 = vmatprep.subr.mxu0 0.0
        %3206 = vmatpush2.msra.mxu0 0.0
        %3207 = vmatprep.subr.mxu0 0.0
        %3208 = vmatpush2.msra.mxu0 0.0
        %3209 = vmatprep.subr.mxu0 0.0
        %3210 = vmatpush2.msra.mxu0 0.0
        %3211 = vmatprep.subr.mxu0 0.0
        %3212 = vmatpush2.msra.mxu0 0.0
        %3213 = vmatprep.subr.mxu0 0.0
        %3214 = vmatpush2.msra.mxu0 0.0
        %3215 = vmatprep.subr.mxu0 0.0
        %3216 = vmatpush2.msra.mxu0 0.0
        %3217 = vmatprep.subr.mxu0 0.0
        %3218 = vmatpush2.msra.mxu0 0.0
        %3219 = vmatprep.mubr.f32.mxu0 0.0
        %3220 = vmatmul.mubr.f32.gmra.mxu0 %v3150
        %v3221 = vpop.f32.mrf.mxu0
        %v3222 = vadd.f32 0.0, %v3221
        %v3223 = vpop.f32.mrf.mxu0
        %3224 = vmatprep.mubr.f32.mxu0 0.0
        %3225 = vmatmul.mubr.f32.gmra.mxu0 %v3153
        %v3226 = vpop.f32.mrf.mxu0
        %v3227 = vadd.f32 0.0, %v3226
        %v3228 = vpop.f32.mrf.mxu0
        %3229 = vdwg.mxu0
        %v3230 = vld [vmem:[%s15] sm:$0xff]
        %v3231 = vld [vmem:[%s15 + $0x8] sm:$0xff]
        %v3232 = vld [vmem:[%s15 + $0x10] sm:$0xff]
        %v3233 = vld [vmem:[%s15 + $0x18] sm:$0xff]
        %v3234 = vld [vmem:[%s15 + $0x20] sm:$0xff]
        %v3235 = vld [vmem:[%s15 + $0x28] sm:$0xff]
        %v3236 = vld [vmem:[%s15 + $0x30] sm:$0xff]
        %v3237 = vld [vmem:[%s15 + $0x38] sm:$0xff]
        %s3238 = scalar_lea.vmem %s15, 64
        %v3239 = vld [vmem:[%s3238] sm:$0xff]
        %v3240 = vld [vmem:[%s3238 + $0x8] sm:$0xff]
        %v3241 = vld [vmem:[%s3238 + $0x10] sm:$0xff]
        %v3242 = vld [vmem:[%s3238 + $0x18] sm:$0xff]
        %v3243 = vld [vmem:[%s3238 + $0x20] sm:$0xff]
        %v3244 = vld [vmem:[%s3238 + $0x28] sm:$0xff]
        %v3245 = vld [vmem:[%s3238 + $0x30] sm:$0xff]
        %v3246 = vld [vmem:[%s3238 + $0x38] sm:$0xff]
        %v3248 = vsel %vm645, %v3146, 0
        %v3251 = vsel %vm645, %v3147, 0
        %3253 = vmatprep.subr.mxu0 0.0
        %3254 = vmatpush1.msra.mxu0 0.0
        %3255 = vmatprep.subr.mxu0 0.0
        %3256 = vmatpush1.msra.mxu0 0.0
        %3257 = vmatprep.subr.mxu0 0.0
        %3258 = vmatpush1.msra.mxu0 0.0
        %3259 = vmatprep.subr.mxu0 0.0
        %3260 = vmatpush1.msra.mxu0 0.0
        %3261 = vmatprep.subr.mxu0 0.0
        %3262 = vmatpush1.msra.mxu0 0.0
        %3263 = vmatprep.subr.mxu0 0.0
        %3264 = vmatpush1.msra.mxu0 0.0
        %3265 = vmatprep.subr.mxu0 0.0
        %3266 = vmatpush1.msra.mxu0 0.0
        %3267 = vmatprep.subr.mxu0 0.0
        %3268 = vmatpush1.msra.mxu0 0.0
        %3269 = vmatprep.subr.mxu0 0.0
        %3270 = vmatpush1.msra.mxu0 0.0
        %3271 = vmatprep.subr.mxu0 0.0
        %3272 = vmatpush1.msra.mxu0 0.0
        %3273 = vmatprep.subr.mxu0 0.0
        %3274 = vmatpush1.msra.mxu0 0.0
        %3275 = vmatprep.subr.mxu0 0.0
        %3276 = vmatpush1.msra.mxu0 0.0
        %3277 = vmatprep.subr.mxu0 %v3246
        %3278 = vmatpush1.msra.mxu0 %v3245
        %3279 = vmatprep.subr.mxu0 %v3244
        %3280 = vmatpush1.msra.mxu0 %v3243
        %3281 = vmatprep.subr.mxu0 %v3242
        %3282 = vmatpush1.msra.mxu0 %v3241
        %3283 = vmatprep.subr.mxu0 %v3240
        %3284 = vmatpush1.msra.mxu0 %v3239
        %3285 = vmatprep.subr.mxu0 0.0
        %3286 = vmatpush2.msra.mxu0 0.0
        %3287 = vmatprep.subr.mxu0 0.0
        %3288 = vmatpush2.msra.mxu0 0.0
        %3289 = vmatprep.subr.mxu0 0.0
        %3290 = vmatpush2.msra.mxu0 0.0
        %3291 = vmatprep.subr.mxu0 0.0
        %3292 = vmatpush2.msra.mxu0 0.0
        %3293 = vmatprep.subr.mxu0 0.0
        %3294 = vmatpush2.msra.mxu0 0.0
        %3295 = vmatprep.subr.mxu0 0.0
        %3296 = vmatpush2.msra.mxu0 0.0
        %3297 = vmatprep.subr.mxu0 0.0
        %3298 = vmatpush2.msra.mxu0 0.0
        %3299 = vmatprep.subr.mxu0 0.0
        %3300 = vmatpush2.msra.mxu0 0.0
        %3301 = vmatprep.subr.mxu0 0.0
        %3302 = vmatpush2.msra.mxu0 0.0
        %3303 = vmatprep.subr.mxu0 0.0
        %3304 = vmatpush2.msra.mxu0 0.0
        %3305 = vmatprep.subr.mxu0 0.0
        %3306 = vmatpush2.msra.mxu0 0.0
        %3307 = vmatprep.subr.mxu0 0.0
        %3308 = vmatpush2.msra.mxu0 0.0
        %3309 = vmatprep.subr.mxu0 0.0
        %3310 = vmatpush2.msra.mxu0 0.0
        %3311 = vmatprep.subr.mxu0 0.0
        %3312 = vmatpush2.msra.mxu0 0.0
        %3313 = vmatprep.subr.mxu0 0.0
        %3314 = vmatpush2.msra.mxu0 0.0
        %3315 = vmatprep.subr.mxu0 0.0
        %3316 = vmatpush2.msra.mxu0 0.0
        %3317 = vmatprep.mubr.f32.mxu0 0.0
        %3318 = vmatmul.mubr.f32.gmra.mxu0 %v3248
        %v3319 = vpop.f32.mrf.mxu0
        %v3320 = vadd.f32 0.0, %v3319
        %v3321 = vpop.f32.mrf.mxu0
        %v3322 = vadd.f32 0.0, %v3321
        %3323 = vmatprep.mubr.f32.mxu0 0.0
        %3324 = vmatmul.mubr.f32.gmra.mxu0 %v3251
        %v3325 = vpop.f32.mrf.mxu0
        %v3326 = vadd.f32 0.0, %v3325
        %v3327 = vpop.f32.mrf.mxu0
        %v3328 = vadd.f32 0.0, %v3327
        %3329 = vdwg.mxu0
        %v3331 = vsel %vm645, %v3222, 0
        %v3334 = vsel %vm645, %v3227, 0
        %3336 = vmatprep.subr.mxu0 0.0
        %3337 = vmatpush1.msra.mxu0 0.0
        %3338 = vmatprep.subr.mxu0 0.0
        %3339 = vmatpush1.msra.mxu0 0.0
        %3340 = vmatprep.subr.mxu0 0.0
        %3341 = vmatpush1.msra.mxu0 0.0
        %3342 = vmatprep.subr.mxu0 0.0
        %3343 = vmatpush1.msra.mxu0 0.0
        %3344 = vmatprep.subr.mxu0 0.0
        %3345 = vmatpush1.msra.mxu0 0.0
        %3346 = vmatprep.subr.mxu0 0.0
        %3347 = vmatpush1.msra.mxu0 0.0
        %3348 = vmatprep.subr.mxu0 0.0
        %3349 = vmatpush1.msra.mxu0 0.0
        %3350 = vmatprep.subr.mxu0 0.0
        %3351 = vmatpush1.msra.mxu0 0.0
        %3352 = vmatprep.subr.mxu0 0.0
        %3353 = vmatpush1.msra.mxu0 0.0
        %3354 = vmatprep.subr.mxu0 0.0
        %3355 = vmatpush1.msra.mxu0 0.0
        %3356 = vmatprep.subr.mxu0 0.0
        %3357 = vmatpush1.msra.mxu0 0.0
        %3358 = vmatprep.subr.mxu0 0.0
        %3359 = vmatpush1.msra.mxu0 0.0
        %3360 = vmatprep.subr.mxu0 %v3237
        %3361 = vmatpush1.msra.mxu0 %v3236
        %3362 = vmatprep.subr.mxu0 %v3235
        %3363 = vmatpush1.msra.mxu0 %v3234
        %3364 = vmatprep.subr.mxu0 %v3233
        %3365 = vmatpush1.msra.mxu0 %v3232
        %3366 = vmatprep.subr.mxu0 %v3231
        %3367 = vmatpush1.msra.mxu0 %v3230
        %3368 = vmatprep.subr.mxu0 0.0
        %3369 = vmatpush2.msra.mxu0 0.0
        %3370 = vmatprep.subr.mxu0 0.0
        %3371 = vmatpush2.msra.mxu0 0.0
        %3372 = vmatprep.subr.mxu0 0.0
        %3373 = vmatpush2.msra.mxu0 0.0
        %3374 = vmatprep.subr.mxu0 0.0
        %3375 = vmatpush2.msra.mxu0 0.0
        %3376 = vmatprep.subr.mxu0 0.0
        %3377 = vmatpush2.msra.mxu0 0.0
        %3378 = vmatprep.subr.mxu0 0.0
        %3379 = vmatpush2.msra.mxu0 0.0
        %3380 = vmatprep.subr.mxu0 0.0
        %3381 = vmatpush2.msra.mxu0 0.0
        %3382 = vmatprep.subr.mxu0 0.0
        %3383 = vmatpush2.msra.mxu0 0.0
        %3384 = vmatprep.subr.mxu0 0.0
        %3385 = vmatpush2.msra.mxu0 0.0
        %3386 = vmatprep.subr.mxu0 0.0
        %3387 = vmatpush2.msra.mxu0 0.0
        %3388 = vmatprep.subr.mxu0 0.0
        %3389 = vmatpush2.msra.mxu0 0.0
        %3390 = vmatprep.subr.mxu0 0.0
        %3391 = vmatpush2.msra.mxu0 0.0
        %3392 = vmatprep.subr.mxu0 0.0
        %3393 = vmatpush2.msra.mxu0 0.0
        %3394 = vmatprep.subr.mxu0 0.0
        %3395 = vmatpush2.msra.mxu0 0.0
        %3396 = vmatprep.subr.mxu0 0.0
        %3397 = vmatpush2.msra.mxu0 0.0
        %3398 = vmatprep.subr.mxu0 0.0
        %3399 = vmatpush2.msra.mxu0 0.0
        %3400 = vmatprep.mubr.f32.mxu0 0.0
        %3401 = vmatmul.mubr.f32.gmra.mxu0 %v3331
        %v3402 = vpop.f32.mrf.mxu0
        %v3403 = vadd.f32 %v3320, %v3402
        %v3404 = vpop.f32.mrf.mxu0
        %v3405 = vadd.f32 %v3322, %v3404
        %3406 = vmatprep.mubr.f32.mxu0 0.0
        %3407 = vmatmul.mubr.f32.gmra.mxu0 %v3334
        %v3408 = vpop.f32.mrf.mxu0
        %v3409 = vadd.f32 %v3326, %v3408
        %v3410 = vpop.f32.mrf.mxu0
        %v3411 = vadd.f32 %v3328, %v3410
        %3412 = vdwg.mxu0
        %v3414 = vsel %vm2057, %v3134, 0
        %v3417 = vsel %vm2057, %v3135, 0
        %3419 = vmatprep.subr.mxu0 0.0
        %3420 = vmatpush1.msra.mxu0 0.0
        %3421 = vmatprep.subr.mxu0 0.0
        %3422 = vmatpush1.msra.mxu0 0.0
        %3423 = vmatprep.subr.mxu0 0.0
        %3424 = vmatpush1.msra.mxu0 0.0
        %3425 = vmatprep.subr.mxu0 0.0
        %3426 = vmatpush1.msra.mxu0 0.0
        %3427 = vmatprep.subr.mxu0 0.0
        %3428 = vmatpush1.msra.mxu0 0.0
        %3429 = vmatprep.subr.mxu0 0.0
        %3430 = vmatpush1.msra.mxu0 0.0
        %3431 = vmatprep.subr.mxu0 0.0
        %3432 = vmatpush1.msra.mxu0 0.0
        %3433 = vmatprep.subr.mxu0 0.0
        %3434 = vmatpush1.msra.mxu0 0.0
        %3435 = vmatprep.subr.mxu0 0.0
        %3436 = vmatpush1.msra.mxu0 0.0
        %3437 = vmatprep.subr.mxu0 0.0
        %3438 = vmatpush1.msra.mxu0 0.0
        %3439 = vmatprep.subr.mxu0 0.0
        %3440 = vmatpush1.msra.mxu0 0.0
        %3441 = vmatprep.subr.mxu0 0.0
        %3442 = vmatpush1.msra.mxu0 0.0
        %3443 = vmatprep.subr.mxu0 0.0
        %3444 = vmatpush1.msra.mxu0 0.0
        %3445 = vmatprep.subr.mxu0 0.0
        %3446 = vmatpush1.msra.mxu0 0.0
        %3447 = vmatprep.subr.mxu0 0.0
        %3448 = vmatpush1.msra.mxu0 %v3147
        %3449 = vmatprep.subr.mxu0 0.0
        %3450 = vmatpush1.msra.mxu0 %v3146
        %3451 = vmatprep.subr.mxu0 0.0
        %3452 = vmatpush2.msra.mxu0 0.0
        %3453 = vmatprep.subr.mxu0 0.0
        %3454 = vmatpush2.msra.mxu0 0.0
        %3455 = vmatprep.subr.mxu0 0.0
        %3456 = vmatpush2.msra.mxu0 0.0
        %3457 = vmatprep.subr.mxu0 0.0
        %3458 = vmatpush2.msra.mxu0 0.0
        %3459 = vmatprep.subr.mxu0 0.0
        %3460 = vmatpush2.msra.mxu0 0.0
        %3461 = vmatprep.subr.mxu0 0.0
        %3462 = vmatpush2.msra.mxu0 0.0
        %3463 = vmatprep.subr.mxu0 0.0
        %3464 = vmatpush2.msra.mxu0 0.0
        %3465 = vmatprep.subr.mxu0 0.0
        %3466 = vmatpush2.msra.mxu0 0.0
        %3467 = vmatprep.subr.mxu0 0.0
        %3468 = vmatpush2.msra.mxu0 0.0
        %3469 = vmatprep.subr.mxu0 0.0
        %3470 = vmatpush2.msra.mxu0 0.0
        %3471 = vmatprep.subr.mxu0 0.0
        %3472 = vmatpush2.msra.mxu0 0.0
        %3473 = vmatprep.subr.mxu0 0.0
        %3474 = vmatpush2.msra.mxu0 0.0
        %3475 = vmatprep.subr.mxu0 0.0
        %3476 = vmatpush2.msra.mxu0 0.0
        %3477 = vmatprep.subr.mxu0 0.0
        %3478 = vmatpush2.msra.mxu0 0.0
        %3479 = vmatprep.subr.mxu0 0.0
        %3480 = vmatpush2.msra.mxu0 0.0
        %3481 = vmatprep.subr.mxu0 0.0
        %3482 = vmatpush2.msra.mxu0 0.0
        %3483 = vmatprep.mubr.f32.mxu0 0.0
        %3484 = vmatmul.mubr.f32.gmra.mxu0 %v3414
        %v3485 = vpop.f32.mrf.mxu0
        %v3486 = vadd.f32 0.0, %v3485
        %v3487 = vpop.f32.mrf.mxu0
        %3488 = vmatprep.mubr.f32.mxu0 0.0
        %3489 = vmatmul.mubr.f32.gmra.mxu0 %v3417
        %v3490 = vpop.f32.mrf.mxu0
        %v3491 = vadd.f32 0.0, %v3490
        %v3492 = vpop.f32.mrf.mxu0
        %3493 = vdwg.mxu0
        %s3494 = scalar_lea.vmem %s15, 128
        %v3495 = vld [vmem:[%s3494] sm:$0xff]
        %v3496 = vld [vmem:[%s3494 + $0x8] sm:$0xff]
        %v3497 = vld [vmem:[%s3494 + $0x10] sm:$0xff]
        %v3498 = vld [vmem:[%s3494 + $0x18] sm:$0xff]
        %v3499 = vld [vmem:[%s3494 + $0x20] sm:$0xff]
        %v3500 = vld [vmem:[%s3494 + $0x28] sm:$0xff]
        %v3501 = vld [vmem:[%s3494 + $0x30] sm:$0xff]
        %v3502 = vld [vmem:[%s3494 + $0x38] sm:$0xff]
        %v3504 = vsel %vm645, %v3486, 0
        %v3507 = vsel %vm645, %v3491, 0
        %3509 = vmatprep.subr.mxu0 0.0
        %3510 = vmatpush1.msra.mxu0 0.0
        %3511 = vmatprep.subr.mxu0 0.0
        %3512 = vmatpush1.msra.mxu0 0.0
        %3513 = vmatprep.subr.mxu0 0.0
        %3514 = vmatpush1.msra.mxu0 0.0
        %3515 = vmatprep.subr.mxu0 0.0
        %3516 = vmatpush1.msra.mxu0 0.0
        %3517 = vmatprep.subr.mxu0 0.0
        %3518 = vmatpush1.msra.mxu0 0.0
        %3519 = vmatprep.subr.mxu0 0.0
        %3520 = vmatpush1.msra.mxu0 0.0
        %3521 = vmatprep.subr.mxu0 0.0
        %3522 = vmatpush1.msra.mxu0 0.0
        %3523 = vmatprep.subr.mxu0 0.0
        %3524 = vmatpush1.msra.mxu0 0.0
        %3525 = vmatprep.subr.mxu0 0.0
        %3526 = vmatpush1.msra.mxu0 0.0
        %3527 = vmatprep.subr.mxu0 0.0
        %3528 = vmatpush1.msra.mxu0 0.0
        %3529 = vmatprep.subr.mxu0 0.0
        %3530 = vmatpush1.msra.mxu0 0.0
        %3531 = vmatprep.subr.mxu0 0.0
        %3532 = vmatpush1.msra.mxu0 0.0
        %3533 = vmatprep.subr.mxu0 %v3502
        %3534 = vmatpush1.msra.mxu0 %v3501
        %3535 = vmatprep.subr.mxu0 %v3500
        %3536 = vmatpush1.msra.mxu0 %v3499
        %3537 = vmatprep.subr.mxu0 %v3498
        %3538 = vmatpush1.msra.mxu0 %v3497
        %3539 = vmatprep.subr.mxu0 %v3496
        %3540 = vmatpush1.msra.mxu0 %v3495
        %3541 = vmatprep.subr.mxu0 0.0
        %3542 = vmatpush2.msra.mxu0 0.0
        %3543 = vmatprep.subr.mxu0 0.0
        %3544 = vmatpush2.msra.mxu0 0.0
        %3545 = vmatprep.subr.mxu0 0.0
        %3546 = vmatpush2.msra.mxu0 0.0
        %3547 = vmatprep.subr.mxu0 0.0
        %3548 = vmatpush2.msra.mxu0 0.0
        %3549 = vmatprep.subr.mxu0 0.0
        %3550 = vmatpush2.msra.mxu0 0.0
        %3551 = vmatprep.subr.mxu0 0.0
        %3552 = vmatpush2.msra.mxu0 0.0
        %3553 = vmatprep.subr.mxu0 0.0
        %3554 = vmatpush2.msra.mxu0 0.0
        %3555 = vmatprep.subr.mxu0 0.0
        %3556 = vmatpush2.msra.mxu0 0.0
        %3557 = vmatprep.subr.mxu0 0.0
        %3558 = vmatpush2.msra.mxu0 0.0
        %3559 = vmatprep.subr.mxu0 0.0
        %3560 = vmatpush2.msra.mxu0 0.0
        %3561 = vmatprep.subr.mxu0 0.0
        %3562 = vmatpush2.msra.mxu0 0.0
        %3563 = vmatprep.subr.mxu0 0.0
        %3564 = vmatpush2.msra.mxu0 0.0
        %3565 = vmatprep.subr.mxu0 0.0
        %3566 = vmatpush2.msra.mxu0 0.0
        %3567 = vmatprep.subr.mxu0 0.0
        %3568 = vmatpush2.msra.mxu0 0.0
        %3569 = vmatprep.subr.mxu0 0.0
        %3570 = vmatpush2.msra.mxu0 0.0
        %3571 = vmatprep.subr.mxu0 0.0
        %3572 = vmatpush2.msra.mxu0 0.0
        %3573 = vmatprep.mubr.f32.mxu0 0.0
        %3574 = vmatmul.mubr.f32.gmra.mxu0 %v3504
        %v3575 = vpop.f32.mrf.mxu0
        %v3576 = vadd.f32 0.0, %v3575
        %v3577 = vpop.f32.mrf.mxu0
        %v3578 = vadd.f32 0.0, %v3577
        %3579 = vmatprep.mubr.f32.mxu0 0.0
        %3580 = vmatmul.mubr.f32.gmra.mxu0 %v3507
        %v3581 = vpop.f32.mrf.mxu0
        %v3582 = vadd.f32 0.0, %v3581
        %v3583 = vpop.f32.mrf.mxu0
        %v3584 = vadd.f32 0.0, %v3583
        %3585 = vdwg.mxu0
        %v3586 = vadd.f32 %v3403, %v3576
        %v3587 = vadd.f32 %v3405, %v3578
        %v3588 = vadd.f32 %v3409, %v3582
        %v3589 = vadd.f32 %v3411, %v3584
        %v3591 = vlaneseq
        %v3592 = vshrl.u32 %v3591, 7
        %v3593 = vsub.s32 0, %v3592
        %v3594 = vrot.slane %v3148, %v3593
        %v3595 = vlaneseq
        %v3596 = vshrl.u32 %v3595, 7
        %v3597 = vsub.s32 1, %v3596
        %v3598 = vrot.slane %v3148, %v3597
        %v3601 = vadd.f32 %v3586, %v3594
        %v3602 = vadd.f32 %v3587, %v3598
        %v3603 = vadd.f32 %v3588, %v3594
        %v3604 = vadd.f32 %v3589, %v3598
        %v3605 = vsub.f32 0.0, %v3601
        %v3606 = vsub.f32 0.0, %v3603
        %v3607 = vmul.f32 %v3605, 1.442695
        %v3608 = vpow.pop %v3607
        %v3609 = vmul.f32 %v3606, 1.442695
        %v3610 = vpow.pop %v3609
        %v3611 = vadd.f32 %v3608, 1.0
        %v3612 = vadd.f32 %v3610, 1.0
        %v3613 = vrcp.pop %v3611
        %v3614 = vmul.f32 1.0, %v3613
        %v3615 = vrcp.pop %v3612
        %v3616 = vmul.f32 1.0, %v3615
        %v3617 = vmul.f32 %v3601, %v3614
        %v3618 = vmul.f32 %v3603, %v3616
        %v3619 = vmul.f32 %v3617, %v3602
        %v3620 = vmul.f32 %v3618, %v3604
        %v3621 = vmul.f32 %v3619, %v3139
        %v3622 = vmul.f32 %v3620, %v3144
        %v3623 = vld [vmem:[%s18] sm:$0x1]
        %3624 = vmatprep.subr.mxu0 0.0
        %3625 = vmatpush1.msra.mxu0 0.0
        %3626 = vmatprep.subr.mxu0 0.0
        %3627 = vmatpush1.msra.mxu0 0.0
        %3628 = vmatprep.subr.mxu0 0.0
        %3629 = vmatpush1.msra.mxu0 0.0
        %3630 = vmatprep.subr.mxu0 0.0
        %3631 = vmatpush1.msra.mxu0 0.0
        %3632 = vmatprep.subr.mxu0 0.0
        %3633 = vmatpush1.msra.mxu0 0.0
        %3634 = vmatprep.subr.mxu0 0.0
        %3635 = vmatpush1.msra.mxu0 0.0
        %3636 = vmatprep.subr.mxu0 0.0
        %3637 = vmatpush1.msra.mxu0 0.0
        %3638 = vmatprep.subr.mxu0 0.0
        %3639 = vmatpush1.msra.mxu0 0.0
        %3640 = vmatprep.subr.mxu0 0.0
        %3641 = vmatpush1.msra.mxu0 0.0
        %3642 = vmatprep.subr.mxu0 0.0
        %3643 = vmatpush1.msra.mxu0 0.0
        %3644 = vmatprep.subr.mxu0 0.0
        %3645 = vmatpush1.msra.mxu0 0.0
        %3646 = vmatprep.subr.mxu0 0.0
        %3647 = vmatpush1.msra.mxu0 0.0
        %3648 = vmatprep.subr.mxu0 0.0
        %3649 = vmatpush1.msra.mxu0 0.0
        %3650 = vmatprep.subr.mxu0 0.0
        %3651 = vmatpush1.msra.mxu0 0.0
        %3652 = vmatprep.subr.mxu0 0.0
        %3653 = vmatpush1.msra.mxu0 %v3622
        %3654 = vmatprep.subr.mxu0 0.0
        %3655 = vmatpush1.msra.mxu0 %v3621
        %3656 = vmatprep.subr.mxu0 0.0
        %3657 = vmatpush2.msra.mxu0 0.0
        %3658 = vmatprep.subr.mxu0 0.0
        %3659 = vmatpush2.msra.mxu0 0.0
        %3660 = vmatprep.subr.mxu0 0.0
        %3661 = vmatpush2.msra.mxu0 0.0
        %3662 = vmatprep.subr.mxu0 0.0
        %3663 = vmatpush2.msra.mxu0 0.0
        %3664 = vmatprep.subr.mxu0 0.0
        %3665 = vmatpush2.msra.mxu0 0.0
        %3666 = vmatprep.subr.mxu0 0.0
        %3667 = vmatpush2.msra.mxu0 0.0
        %3668 = vmatprep.subr.mxu0 0.0
        %3669 = vmatpush2.msra.mxu0 0.0
        %3670 = vmatprep.subr.mxu0 0.0
        %3671 = vmatpush2.msra.mxu0 0.0
        %3672 = vmatprep.subr.mxu0 0.0
        %3673 = vmatpush2.msra.mxu0 0.0
        %3674 = vmatprep.subr.mxu0 0.0
        %3675 = vmatpush2.msra.mxu0 0.0
        %3676 = vmatprep.subr.mxu0 0.0
        %3677 = vmatpush2.msra.mxu0 0.0
        %3678 = vmatprep.subr.mxu0 0.0
        %3679 = vmatpush2.msra.mxu0 0.0
        %3680 = vmatprep.subr.mxu0 0.0
        %3681 = vmatpush2.msra.mxu0 0.0
        %3682 = vmatprep.subr.mxu0 0.0
        %3683 = vmatpush2.msra.mxu0 0.0
        %3684 = vmatprep.subr.mxu0 0.0
        %3685 = vmatpush2.msra.mxu0 0.0
        %3686 = vmatprep.subr.mxu0 0.0
        %3687 = vmatpush2.msra.mxu0 0.0
        %3688 = vmatprep.mubr.f32.mxu0 0.0
        %3689 = vmatmul.mubr.f32.gmra.mxu0 %v3150
        %v3690 = vpop.f32.mrf.mxu0
        %v3691 = vadd.f32 0.0, %v3690
        %v3692 = vpop.f32.mrf.mxu0
        %3693 = vmatprep.mubr.f32.mxu0 0.0
        %3694 = vmatmul.mubr.f32.gmra.mxu0 %v3153
        %v3695 = vpop.f32.mrf.mxu0
        %v3696 = vadd.f32 0.0, %v3695
        %v3697 = vpop.f32.mrf.mxu0
        %3698 = vdwg.mxu0
        %v3699 = vld [vmem:[%s17] sm:$0xff]
        %v3700 = vld [vmem:[%s17 + $0x8] sm:$0xff]
        %v3701 = vld [vmem:[%s17 + $0x10] sm:$0xff]
        %v3702 = vld [vmem:[%s17 + $0x18] sm:$0xff]
        %v3703 = vld [vmem:[%s17 + $0x20] sm:$0xff]
        %v3704 = vld [vmem:[%s17 + $0x28] sm:$0xff]
        %v3705 = vld [vmem:[%s17 + $0x30] sm:$0xff]
        %v3706 = vld [vmem:[%s17 + $0x38] sm:$0xff]
        %v3707 = vld [vmem:[%s17 + $0x40] sm:$0xff]
        %v3708 = vld [vmem:[%s17 + $0x48] sm:$0xff]
        %v3709 = vld [vmem:[%s17 + $0x50] sm:$0xff]
        %v3710 = vld [vmem:[%s17 + $0x58] sm:$0xff]
        %v3711 = vld [vmem:[%s17 + $0x60] sm:$0xff]
        %v3712 = vld [vmem:[%s17 + $0x68] sm:$0xff]
        %v3713 = vld [vmem:[%s17 + $0x70] sm:$0xff]
        %v3714 = vld [vmem:[%s17 + $0x78] sm:$0xff]
        %s3715 = scalar_lea.vmem %s17, 128
        %v3716 = vld [vmem:[%s3715] sm:$0xff]
        %v3717 = vld [vmem:[%s3715 + $0x8] sm:$0xff]
        %v3718 = vld [vmem:[%s3715 + $0x10] sm:$0xff]
        %v3719 = vld [vmem:[%s3715 + $0x18] sm:$0xff]
        %v3720 = vld [vmem:[%s3715 + $0x20] sm:$0xff]
        %v3721 = vld [vmem:[%s3715 + $0x28] sm:$0xff]
        %v3722 = vld [vmem:[%s3715 + $0x30] sm:$0xff]
        %v3723 = vld [vmem:[%s3715 + $0x38] sm:$0xff]
        %v3724 = vld [vmem:[%s3715 + $0x40] sm:$0xff]
        %v3725 = vld [vmem:[%s3715 + $0x48] sm:$0xff]
        %v3726 = vld [vmem:[%s3715 + $0x50] sm:$0xff]
        %v3727 = vld [vmem:[%s3715 + $0x58] sm:$0xff]
        %v3728 = vld [vmem:[%s3715 + $0x60] sm:$0xff]
        %v3729 = vld [vmem:[%s3715 + $0x68] sm:$0xff]
        %v3730 = vld [vmem:[%s3715 + $0x70] sm:$0xff]
        %v3731 = vld [vmem:[%s3715 + $0x78] sm:$0xff]
        %3732 = vmatprep.subr.mxu0 0.0
        %3733 = vmatpush1.msra.mxu0 %v3731
        %3734 = vmatprep.subr.mxu0 0.0
        %3735 = vmatpush1.msra.mxu0 %v3730
        %3736 = vmatprep.subr.mxu0 0.0
        %3737 = vmatpush1.msra.mxu0 %v3729
        %3738 = vmatprep.subr.mxu0 0.0
        %3739 = vmatpush1.msra.mxu0 %v3728
        %3740 = vmatprep.subr.mxu0 0.0
        %3741 = vmatpush1.msra.mxu0 %v3727
        %3742 = vmatprep.subr.mxu0 0.0
        %3743 = vmatpush1.msra.mxu0 %v3726
        %3744 = vmatprep.subr.mxu0 0.0
        %3745 = vmatpush1.msra.mxu0 %v3725
        %3746 = vmatprep.subr.mxu0 0.0
        %3747 = vmatpush1.msra.mxu0 %v3724
        %3748 = vmatprep.subr.mxu0 0.0
        %3749 = vmatpush1.msra.mxu0 %v3723
        %3750 = vmatprep.subr.mxu0 0.0
        %3751 = vmatpush1.msra.mxu0 %v3722
        %3752 = vmatprep.subr.mxu0 0.0
        %3753 = vmatpush1.msra.mxu0 %v3721
        %3754 = vmatprep.subr.mxu0 0.0
        %3755 = vmatpush1.msra.mxu0 %v3720
        %3756 = vmatprep.subr.mxu0 0.0
        %3757 = vmatpush1.msra.mxu0 %v3719
        %3758 = vmatprep.subr.mxu0 0.0
        %3759 = vmatpush1.msra.mxu0 %v3718
        %3760 = vmatprep.subr.mxu0 0.0
        %3761 = vmatpush1.msra.mxu0 %v3717
        %3762 = vmatprep.subr.mxu0 0.0
        %3763 = vmatpush1.msra.mxu0 %v3716
        %3764 = vmatprep.subr.mxu0 0.0
        %3765 = vmatpush2.msra.mxu0 0.0
        %3766 = vmatprep.subr.mxu0 0.0
        %3767 = vmatpush2.msra.mxu0 0.0
        %3768 = vmatprep.subr.mxu0 0.0
        %3769 = vmatpush2.msra.mxu0 0.0
        %3770 = vmatprep.subr.mxu0 0.0
        %3771 = vmatpush2.msra.mxu0 0.0
        %3772 = vmatprep.subr.mxu0 0.0
        %3773 = vmatpush2.msra.mxu0 0.0
        %3774 = vmatprep.subr.mxu0 0.0
        %3775 = vmatpush2.msra.mxu0 0.0
        %3776 = vmatprep.subr.mxu0 0.0
        %3777 = vmatpush2.msra.mxu0 0.0
        %3778 = vmatprep.subr.mxu0 0.0
        %3779 = vmatpush2.msra.mxu0 0.0
        %3780 = vmatprep.subr.mxu0 0.0
        %3781 = vmatpush2.msra.mxu0 0.0
        %3782 = vmatprep.subr.mxu0 0.0
        %3783 = vmatpush2.msra.mxu0 0.0
        %3784 = vmatprep.subr.mxu0 0.0
        %3785 = vmatpush2.msra.mxu0 0.0
        %3786 = vmatprep.subr.mxu0 0.0
        %3787 = vmatpush2.msra.mxu0 0.0
        %3788 = vmatprep.subr.mxu0 0.0
        %3789 = vmatpush2.msra.mxu0 0.0
        %3790 = vmatprep.subr.mxu0 0.0
        %3791 = vmatpush2.msra.mxu0 0.0
        %3792 = vmatprep.subr.mxu0 0.0
        %3793 = vmatpush2.msra.mxu0 0.0
        %3794 = vmatprep.subr.mxu0 0.0
        %3795 = vmatpush2.msra.mxu0 0.0
        %3796 = vmatprep.mubr.f32.mxu0 0.0
        %3797 = vmatmul.mubr.f32.gmra.mxu0 %v3621
        %v3798 = vpop.f32.mrf.mxu0
        %v3799 = vadd.f32 0.0, %v3798
        %v3800 = vpop.f32.mrf.mxu0
        %3801 = vmatprep.mubr.f32.mxu0 0.0
        %3802 = vmatmul.mubr.f32.gmra.mxu0 %v3622
        %v3803 = vpop.f32.mrf.mxu0
        %v3804 = vadd.f32 0.0, %v3803
        %v3805 = vpop.f32.mrf.mxu0
        %3806 = vdwg.mxu0
        %3807 = vmatprep.subr.mxu0 0.0
        %3808 = vmatpush1.msra.mxu0 %v3714
        %3809 = vmatprep.subr.mxu0 0.0
        %3810 = vmatpush1.msra.mxu0 %v3713
        %3811 = vmatprep.subr.mxu0 0.0
        %3812 = vmatpush1.msra.mxu0 %v3712
        %3813 = vmatprep.subr.mxu0 0.0
        %3814 = vmatpush1.msra.mxu0 %v3711
        %3815 = vmatprep.subr.mxu0 0.0
        %3816 = vmatpush1.msra.mxu0 %v3710
        %3817 = vmatprep.subr.mxu0 0.0
        %3818 = vmatpush1.msra.mxu0 %v3709
        %3819 = vmatprep.subr.mxu0 0.0
        %3820 = vmatpush1.msra.mxu0 %v3708
        %3821 = vmatprep.subr.mxu0 0.0
        %3822 = vmatpush1.msra.mxu0 %v3707
        %3823 = vmatprep.subr.mxu0 0.0
        %3824 = vmatpush1.msra.mxu0 %v3706
        %3825 = vmatprep.subr.mxu0 0.0
        %3826 = vmatpush1.msra.mxu0 %v3705
        %3827 = vmatprep.subr.mxu0 0.0
        %3828 = vmatpush1.msra.mxu0 %v3704
        %3829 = vmatprep.subr.mxu0 0.0
        %3830 = vmatpush1.msra.mxu0 %v3703
        %3831 = vmatprep.subr.mxu0 0.0
        %3832 = vmatpush1.msra.mxu0 %v3702
        %3833 = vmatprep.subr.mxu0 0.0
        %3834 = vmatpush1.msra.mxu0 %v3701
        %3835 = vmatprep.subr.mxu0 0.0
        %3836 = vmatpush1.msra.mxu0 %v3700
        %3837 = vmatprep.subr.mxu0 0.0
        %3838 = vmatpush1.msra.mxu0 %v3699
        %3839 = vmatprep.subr.mxu0 0.0
        %3840 = vmatpush2.msra.mxu0 0.0
        %3841 = vmatprep.subr.mxu0 0.0
        %3842 = vmatpush2.msra.mxu0 0.0
        %3843 = vmatprep.subr.mxu0 0.0
        %3844 = vmatpush2.msra.mxu0 0.0
        %3845 = vmatprep.subr.mxu0 0.0
        %3846 = vmatpush2.msra.mxu0 0.0
        %3847 = vmatprep.subr.mxu0 0.0
        %3848 = vmatpush2.msra.mxu0 0.0
        %3849 = vmatprep.subr.mxu0 0.0
        %3850 = vmatpush2.msra.mxu0 0.0
        %3851 = vmatprep.subr.mxu0 0.0
        %3852 = vmatpush2.msra.mxu0 0.0
        %3853 = vmatprep.subr.mxu0 0.0
        %3854 = vmatpush2.msra.mxu0 0.0
        %3855 = vmatprep.subr.mxu0 0.0
        %3856 = vmatpush2.msra.mxu0 0.0
        %3857 = vmatprep.subr.mxu0 0.0
        %3858 = vmatpush2.msra.mxu0 0.0
        %3859 = vmatprep.subr.mxu0 0.0
        %3860 = vmatpush2.msra.mxu0 0.0
        %3861 = vmatprep.subr.mxu0 0.0
        %3862 = vmatpush2.msra.mxu0 0.0
        %3863 = vmatprep.subr.mxu0 0.0
        %3864 = vmatpush2.msra.mxu0 0.0
        %3865 = vmatprep.subr.mxu0 0.0
        %3866 = vmatpush2.msra.mxu0 0.0
        %3867 = vmatprep.subr.mxu0 0.0
        %3868 = vmatpush2.msra.mxu0 0.0
        %3869 = vmatprep.subr.mxu0 0.0
        %3870 = vmatpush2.msra.mxu0 0.0
        %3871 = vmatprep.mubr.f32.mxu0 0.0
        %3872 = vmatmul.mubr.f32.gmra.mxu0 %v3691
        %v3873 = vpop.f32.mrf.mxu0
        %v3874 = vadd.f32 %v3799, %v3873
        %v3875 = vpop.f32.mrf.mxu0
        %3876 = vmatprep.mubr.f32.mxu0 0.0
        %3877 = vmatmul.mubr.f32.gmra.mxu0 %v3696
        %v3878 = vpop.f32.mrf.mxu0
        %v3879 = vadd.f32 %v3804, %v3878
        %v3880 = vpop.f32.mrf.mxu0
        %3881 = vdwg.mxu0
        %3882 = vmatprep.subr.mxu0 0.0
        %3883 = vmatpush1.msra.mxu0 0.0
        %3884 = vmatprep.subr.mxu0 0.0
        %3885 = vmatpush1.msra.mxu0 0.0
        %3886 = vmatprep.subr.mxu0 0.0
        %3887 = vmatpush1.msra.mxu0 0.0
        %3888 = vmatprep.subr.mxu0 0.0
        %3889 = vmatpush1.msra.mxu0 0.0
        %3890 = vmatprep.subr.mxu0 0.0
        %3891 = vmatpush1.msra.mxu0 0.0
        %3892 = vmatprep.subr.mxu0 0.0
        %3893 = vmatpush1.msra.mxu0 0.0
        %3894 = vmatprep.subr.mxu0 0.0
        %3895 = vmatpush1.msra.mxu0 0.0
        %3896 = vmatprep.subr.mxu0 0.0
        %3897 = vmatpush1.msra.mxu0 0.0
        %3898 = vmatprep.subr.mxu0 0.0
        %3899 = vmatpush1.msra.mxu0 0.0
        %3900 = vmatprep.subr.mxu0 0.0
        %3901 = vmatpush1.msra.mxu0 0.0
        %3902 = vmatprep.subr.mxu0 0.0
        %3903 = vmatpush1.msra.mxu0 0.0
        %3904 = vmatprep.subr.mxu0 0.0
        %3905 = vmatpush1.msra.mxu0 0.0
        %3906 = vmatprep.subr.mxu0 0.0
        %3907 = vmatpush1.msra.mxu0 0.0
        %3908 = vmatprep.subr.mxu0 0.0
        %3909 = vmatpush1.msra.mxu0 0.0
        %3910 = vmatprep.subr.mxu0 0.0
        %3911 = vmatpush1.msra.mxu0 %v3622
        %3912 = vmatprep.subr.mxu0 0.0
        %3913 = vmatpush1.msra.mxu0 %v3621
        %3914 = vmatprep.subr.mxu0 0.0
        %3915 = vmatpush2.msra.mxu0 0.0
        %3916 = vmatprep.subr.mxu0 0.0
        %3917 = vmatpush2.msra.mxu0 0.0
        %3918 = vmatprep.subr.mxu0 0.0
        %3919 = vmatpush2.msra.mxu0 0.0
        %3920 = vmatprep.subr.mxu0 0.0
        %3921 = vmatpush2.msra.mxu0 0.0
        %3922 = vmatprep.subr.mxu0 0.0
        %3923 = vmatpush2.msra.mxu0 0.0
        %3924 = vmatprep.subr.mxu0 0.0
        %3925 = vmatpush2.msra.mxu0 0.0
        %3926 = vmatprep.subr.mxu0 0.0
        %3927 = vmatpush2.msra.mxu0 0.0
        %3928 = vmatprep.subr.mxu0 0.0
        %3929 = vmatpush2.msra.mxu0 0.0
        %3930 = vmatprep.subr.mxu0 0.0
        %3931 = vmatpush2.msra.mxu0 0.0
        %3932 = vmatprep.subr.mxu0 0.0
        %3933 = vmatpush2.msra.mxu0 0.0
        %3934 = vmatprep.subr.mxu0 0.0
        %3935 = vmatpush2.msra.mxu0 0.0
        %3936 = vmatprep.subr.mxu0 0.0
        %3937 = vmatpush2.msra.mxu0 0.0
        %3938 = vmatprep.subr.mxu0 0.0
        %3939 = vmatpush2.msra.mxu0 0.0
        %3940 = vmatprep.subr.mxu0 0.0
        %3941 = vmatpush2.msra.mxu0 0.0
        %3942 = vmatprep.subr.mxu0 0.0
        %3943 = vmatpush2.msra.mxu0 0.0
        %3944 = vmatprep.subr.mxu0 0.0
        %3945 = vmatpush2.msra.mxu0 0.0
        %3946 = vmatprep.mubr.f32.mxu0 0.0
        %3947 = vmatmul.mubr.f32.gmra.mxu0 %v3414
        %v3948 = vpop.f32.mrf.mxu0
        %v3949 = vadd.f32 0.0, %v3948
        %v3950 = vpop.f32.mrf.mxu0
        %3951 = vmatprep.mubr.f32.mxu0 0.0
        %3952 = vmatmul.mubr.f32.gmra.mxu0 %v3417
        %v3953 = vpop.f32.mrf.mxu0
        %v3954 = vadd.f32 0.0, %v3953
        %v3955 = vpop.f32.mrf.mxu0
        %3956 = vdwg.mxu0
        %s3957 = scalar_lea.vmem %s17, 256
        %v3958 = vld [vmem:[%s3957] sm:$0xff]
        %v3959 = vld [vmem:[%s3957 + $0x8] sm:$0xff]
        %v3960 = vld [vmem:[%s3957 + $0x10] sm:$0xff]
        %v3961 = vld [vmem:[%s3957 + $0x18] sm:$0xff]
        %v3962 = vld [vmem:[%s3957 + $0x20] sm:$0xff]
        %v3963 = vld [vmem:[%s3957 + $0x28] sm:$0xff]
        %v3964 = vld [vmem:[%s3957 + $0x30] sm:$0xff]
        %v3965 = vld [vmem:[%s3957 + $0x38] sm:$0xff]
        %v3966 = vld [vmem:[%s3957 + $0x40] sm:$0xff]
        %v3967 = vld [vmem:[%s3957 + $0x48] sm:$0xff]
        %v3968 = vld [vmem:[%s3957 + $0x50] sm:$0xff]
        %v3969 = vld [vmem:[%s3957 + $0x58] sm:$0xff]
        %v3970 = vld [vmem:[%s3957 + $0x60] sm:$0xff]
        %v3971 = vld [vmem:[%s3957 + $0x68] sm:$0xff]
        %v3972 = vld [vmem:[%s3957 + $0x70] sm:$0xff]
        %v3973 = vld [vmem:[%s3957 + $0x78] sm:$0xff]
        %3974 = vmatprep.subr.mxu0 0.0
        %3975 = vmatpush1.msra.mxu0 %v3973
        %3976 = vmatprep.subr.mxu0 0.0
        %3977 = vmatpush1.msra.mxu0 %v3972
        %3978 = vmatprep.subr.mxu0 0.0
        %3979 = vmatpush1.msra.mxu0 %v3971
        %3980 = vmatprep.subr.mxu0 0.0
        %3981 = vmatpush1.msra.mxu0 %v3970
        %3982 = vmatprep.subr.mxu0 0.0
        %3983 = vmatpush1.msra.mxu0 %v3969
        %3984 = vmatprep.subr.mxu0 0.0
        %3985 = vmatpush1.msra.mxu0 %v3968
        %3986 = vmatprep.subr.mxu0 0.0
        %3987 = vmatpush1.msra.mxu0 %v3967
        %3988 = vmatprep.subr.mxu0 0.0
        %3989 = vmatpush1.msra.mxu0 %v3966
        %3990 = vmatprep.subr.mxu0 0.0
        %3991 = vmatpush1.msra.mxu0 %v3965
        %3992 = vmatprep.subr.mxu0 0.0
        %3993 = vmatpush1.msra.mxu0 %v3964
        %3994 = vmatprep.subr.mxu0 0.0
        %3995 = vmatpush1.msra.mxu0 %v3963
        %3996 = vmatprep.subr.mxu0 0.0
        %3997 = vmatpush1.msra.mxu0 %v3962
        %3998 = vmatprep.subr.mxu0 0.0
        %3999 = vmatpush1.msra.mxu0 %v3961
        %4000 = vmatprep.subr.mxu0 0.0
        %4001 = vmatpush1.msra.mxu0 %v3960
        %4002 = vmatprep.subr.mxu0 0.0
        %4003 = vmatpush1.msra.mxu0 %v3959
        %4004 = vmatprep.subr.mxu0 0.0
        %4005 = vmatpush1.msra.mxu0 %v3958
        %4006 = vmatprep.subr.mxu0 0.0
        %4007 = vmatpush2.msra.mxu0 0.0
        %4008 = vmatprep.subr.mxu0 0.0
        %4009 = vmatpush2.msra.mxu0 0.0
        %4010 = vmatprep.subr.mxu0 0.0
        %4011 = vmatpush2.msra.mxu0 0.0
        %4012 = vmatprep.subr.mxu0 0.0
        %4013 = vmatpush2.msra.mxu0 0.0
        %4014 = vmatprep.subr.mxu0 0.0
        %4015 = vmatpush2.msra.mxu0 0.0
        %4016 = vmatprep.subr.mxu0 0.0
        %4017 = vmatpush2.msra.mxu0 0.0
        %4018 = vmatprep.subr.mxu0 0.0
        %4019 = vmatpush2.msra.mxu0 0.0
        %4020 = vmatprep.subr.mxu0 0.0
        %4021 = vmatpush2.msra.mxu0 0.0
        %4022 = vmatprep.subr.mxu0 0.0
        %4023 = vmatpush2.msra.mxu0 0.0
        %4024 = vmatprep.subr.mxu0 0.0
        %4025 = vmatpush2.msra.mxu0 0.0
        %4026 = vmatprep.subr.mxu0 0.0
        %4027 = vmatpush2.msra.mxu0 0.0
        %4028 = vmatprep.subr.mxu0 0.0
        %4029 = vmatpush2.msra.mxu0 0.0
        %4030 = vmatprep.subr.mxu0 0.0
        %4031 = vmatpush2.msra.mxu0 0.0
        %4032 = vmatprep.subr.mxu0 0.0
        %4033 = vmatpush2.msra.mxu0 0.0
        %4034 = vmatprep.subr.mxu0 0.0
        %4035 = vmatpush2.msra.mxu0 0.0
        %4036 = vmatprep.subr.mxu0 0.0
        %4037 = vmatpush2.msra.mxu0 0.0
        %4038 = vmatprep.mubr.f32.mxu0 0.0
        %4039 = vmatmul.mubr.f32.gmra.mxu0 %v3949
        %v4040 = vpop.f32.mrf.mxu0
        %v4041 = vadd.f32 0.0, %v4040
        %v4042 = vpop.f32.mrf.mxu0
        %4043 = vmatprep.mubr.f32.mxu0 0.0
        %4044 = vmatmul.mubr.f32.gmra.mxu0 %v3954
        %v4045 = vpop.f32.mrf.mxu0
        %v4046 = vadd.f32 0.0, %v4045
        %v4047 = vpop.f32.mrf.mxu0
        %4048 = vdwg.mxu0
        %v4049 = vadd.f32 %v3874, %v4041
        %v4050 = vadd.f32 %v3879, %v4046
        %v4052 = vlaneseq
        %v4053 = vshrl.u32 %v4052, 7
        %v4054 = vsub.s32 0, %v4053
        %v4055 = vrot.slane %v3623, %v4054
        %v4057 = vadd.f32 %v4049, %v4055
        %v4058 = vadd.f32 %v4050, %v4055
        %v4059 = vadd.f32 %v3071, %v4057
        %v4060 = vadd.f32 %v3072, %v4058
        %4061 = vst.msk [vmem:[%s625] sm:$0xff] %vm645, %v4059
        %4062 = vst.msk [vmem:[%s625 + $0x8] sm:$0xff] %vm645, %v4060
        %s4063 = sand.u32 %s455, 1
        %s4064 = scalar_lea.sflag [#allocation3], %s4063
        %s4065 = sand.u32 %s455, 1
        %s4066 = smul.addr %s4065, 16
        %s4067 = scalar_lea.vmem [#allocation2], %s4066
        // Predicated region
        $region97: #{transformer_encoder_forward.3} parent=95 // pred_check
          %p4068 = pneg %p465
        $region98: #{transformer_encoder_forward.3} parent=95 // pred_check_branch
          %4070 = sbr.rel (%p4068) target = $region100
        $region99: #{transformer_encoder_forward.3} parent=95 // pred_region
          %s4072 = ssub.s32 256, 256
          %4073 = vsyncadd %s4064, %s4072
          %s4074 = smul.addr %s33, 2
          %s4075 = smul.addr %s4074, 128
          %s4076 = scalar_lea.hbm %s19, %s4075
          %s4077 = sshll.u32 %s4067, 4
          %s4078 = int_to_ptr.vmem [resolvable:$true] %s4077
          %4083 = dma.vmem_to_hbm [thread:$0]  %s4078, 256, %s4076, %s4064, 128, 128, 8
        $region100: #{transformer_encoder_forward.3} parent=95 // pred_fallthru
          _
      $region96: #{transformer_encoder_forward.3} parent=5 // pred_fallthru
        _
      %p4084 = scmp.le.s32.totalorder 2, %s28
      // Predicated region
      $region101: #{transformer_encoder_forward.3} parent=5 // pred_check
        %p4085 = pneg %p4084
      $region102: #{transformer_encoder_forward.3} parent=5 // pred_check_branch
        %4087 = sbr.rel (%p4085) target = $region104
      $region103: #{transformer_encoder_forward.3} parent=5 // pred_region
        %s4088 = ssub.s32 %s28, 2
        // Predicated region
        $region105: #{transformer_encoder_forward.3} parent=103 // pred_check
          %p4089 = pneg %p471
        $region106: #{transformer_encoder_forward.3} parent=103 // pred_check_branch
          %4091 = sbr.rel (%p4089) target = $region108
        $region107: #{transformer_encoder_forward.3} parent=103 // pred_region
          %s4092 = sand.u32 %s456, 1
          %s4093 = scalar_lea.sflag [#allocation3], %s4092
          %s4094 = sand.u32 %s456, 1
          %s4095 = smul.addr %s4094, 16
          %s4096 = scalar_lea.vmem [#allocation2], %s4095
          %4097 = dma.done %s4093, 256
        $region108: #{transformer_encoder_forward.3} parent=103 // pred_fallthru
          _
      $region104: #{transformer_encoder_forward.3} parent=5 // pred_fallthru
        _
    $region6: #{transformer_encoder_forward.3} parent=1 // loop_footer
      %s32 = sadd.s32 1, %s28
    $region7: #{transformer_encoder_forward.3} parent=1 // loop_footer_branch
      %27 = sbr.rel target = $region3
    $region8: #{transformer_encoder_forward.3} parent=1 // loop_exit
      _
    %4098 = vsyncpa [#allocation3], 1
    %s4099 = scalar_lea.sflag [#allocation3], 1
    %4100 = vsyncpa %s4099, 1

// kernel: transformer_encoder_forward.2
$region0: #{transformer_encoder_forward.2}
  #allocation0 [shape = 'u32[]', space=smem, size = 0x4, offset = 0x4, fixed_abs, tag = 'smem constant byte address 0x4 - core index']
  #allocation1 [shape = 'u32[144,128]{1,0:T(1,128)}', space=vmem, size = 0x12000, scoped, tag = 'internal scratch']
  %s0 = inlined_call_operand.vmem [shape: f32[2,16,32], index: 0, kind: input, shape index: {}]
  %s1 = inlined_call_operand.vmem [shape: f32[2,16,16], index: 1, kind: input, shape index: {}]
  %s2 = inlined_call_operand.vmem [shape: f32[4,16,16], index: 2, kind: input, shape index: {}]
  %s3 = inlined_call_operand.vmem [shape: f32[2,16,1], index: 3, kind: input, shape index: {}]
  %s4 = inlined_call_operand.vmem [shape: f32[1,32], index: 4, kind: input, shape index: {}]
  %s5 = inlined_call_operand.vmem [shape: f32[1,32], index: 5, kind: input, shape index: {}]
  %s6 = inlined_call_operand.vmem [shape: f32[4,32,8], index: 6, kind: input, shape index: {}]
  %s7 = inlined_call_operand.vmem [shape: f32[4,32,8], index: 7, kind: input, shape index: {}]
  %s8 = inlined_call_operand.vmem [shape: f32[4,32,8], index: 8, kind: input, shape index: {}]
  %s9 = inlined_call_operand.vmem [shape: f32[4,8,32], index: 9, kind: input, shape index: {}]
  %s10 = inlined_call_operand.vmem [shape: f32[1,32], index: 10, kind: input, shape index: {}]
  %s11 = inlined_call_operand.vmem [shape: f32[4,4], index: 11, kind: input, shape index: {}]
  %s12 = inlined_call_operand.vmem [shape: f32[4,4], index: 12, kind: input, shape index: {}]
  %s13 = inlined_call_operand.vmem [shape: f32[1,32], index: 13, kind: input, shape index: {}]
  %s14 = inlined_call_operand.vmem [shape: f32[1,32], index: 14, kind: input, shape index: {}]
  %s15 = inlined_call_operand.vmem [shape: f32[3,32,256], index: 15, kind: input, shape index: {}]
  %s16 = inlined_call_operand.vmem [shape: f32[1,256], index: 16, kind: input, shape index: {}]
  %s17 = inlined_call_operand.vmem [shape: f32[3,128,32], index: 17, kind: input, shape index: {}]
  %s18 = inlined_call_operand.vmem [shape: f32[1,32], index: 18, kind: input, shape index: {}]
  %s19 = inlined_call_operand.vmem [shape: f32[2,16,32], index: 19, kind: output, shape index: {}]
  %s20 = sld [smem:[#allocation0]]
  $region109: #{transformer_encoder_forward.2} parent=0
    _
  %s22 = ssub.s32 1, %s20
  %s23 = scalar_select 0, %s22, %s20
  loop: start=0, step=1, limit=4
  $region2: #{transformer_encoder_forward.2} parent=0 // loop_pre_header
    _
  $region3: #{transformer_encoder_forward.2} parent=0 // loop_header
    %s25 = sphi 0, %s29
    %p26 = scmp.ge.s32.totalorder %s25, 4
    %s35 = sphi 0, %s37
    %s38 = sphi 0, %s35
    %s39 = sphi 0, %s38
    %s55 = sphi 0, %s39
    %s61 = sphi 0, %s63
    %s64 = sphi 0, %s61
    %s65 = sphi 0, %s64
    %s81 = sphi 0, %s65
    %s85 = sphi 0, %s85
    %s87 = sphi 0, %s85
    %s88 = sphi 0, %s87
    %s102 = sphi 0, %s88
    %s108 = sphi 0, %s110
    %s111 = sphi 0, %s108
    %s112 = sphi 0, %s111
    %s128 = sphi 0, %s112
    %s132 = sphi 0, %s132
    %s134 = sphi 0, %s132
    %s135 = sphi 0, %s134
    %s149 = sphi 0, %s135
    %s153 = sphi 0, %s153
    %s155 = sphi 0, %s153
    %s156 = sphi 0, %s155
    %s170 = sphi 0, %s156
    %s174 = sphi 0, %s174
    %s176 = sphi 0, %s174
    %s177 = sphi 0, %s176
    %s191 = sphi 0, %s177
    %s195 = sphi 0, %s195
    %s197 = sphi 0, %s195
    %s198 = sphi 0, %s197
    %s212 = sphi 0, %s198
    %s216 = sphi 0, %s216
    %s218 = sphi 0, %s216
    %s219 = sphi 0, %s218
    %s233 = sphi 0, %s219
    %s237 = sphi 0, %s237
    %s239 = sphi 0, %s237
    %s240 = sphi 0, %s239
    %s254 = sphi 0, %s240
    %s258 = sphi 0, %s258
    %s260 = sphi 0, %s258
    %s261 = sphi 0, %s260
    %s275 = sphi 0, %s261
    %s279 = sphi 0, %s279
    %s281 = sphi 0, %s279
    %s282 = sphi 0, %s281
    %s296 = sphi 0, %s282
    %s300 = sphi 0, %s300
    %s302 = sphi 0, %s300
    %s303 = sphi 0, %s302
    %s317 = sphi 0, %s303
    %s321 = sphi 0, %s321
    %s323 = sphi 0, %s321
    %s324 = sphi 0, %s323
    %s338 = sphi 0, %s324
    %s342 = sphi 0, %s342
    %s344 = sphi 0, %s342
    %s345 = sphi 0, %s344
    %s359 = sphi 0, %s345
    %s363 = sphi 0, %s363
    %s365 = sphi 0, %s363
    %s366 = sphi 0, %s365
    %s380 = sphi 0, %s366
    %s384 = sphi 0, %s384
    %s386 = sphi 0, %s384
    %s387 = sphi 0, %s386
    %s401 = sphi 0, %s387
    %s405 = sphi 0, %s405
    %s407 = sphi 0, %s405
    %s408 = sphi 0, %s407
    %s422 = sphi 0, %s408
    %s426 = sphi 0, %s426
    %s428 = sphi 0, %s426
    %s429 = sphi 0, %s428
    %s443 = sphi 0, %s429
    %s449 = sphi 0, %s451
    %s452 = sphi 0, %s449
    %s453 = sphi 0, %s452
    %s469 = sphi 0, %s453
  $region4: #{transformer_encoder_forward.2} parent=0 // loop_header_branch
    %28 = sbr.rel (%p26) target = $region8
  $region5: #{transformer_encoder_forward.2} parent=0 // loop_body
    %s30 = ssub.s32 %s25, 1
    %s31 = ssub.s32 %s25, 2
    %s32 = sadd.s32 %s25, 1
    %s33 = ssub.s32 %s25, %s32
    %p34 = scmp.eq.s32.totalorder %s33, 0
    %s36 = sadd.s32 %s35, 1
    %s37 = scalar_select %p34, %s35, %s36
    %p40 = pneg %p34
    %p41 = scmp.eq.s32.totalorder %s25, 1
    %p42 = por %p40, %p41
    %p43 = scmp.ne.s32.totalorder %s35, %s38
    %p44 = scmp.eq.s32.totalorder %s25, 0
    %p45 = por %p43, %p44
    %p46 = scmp.ne.s32.totalorder %s35, %s38
    %p47 = scmp.eq.s32.totalorder %s30, 1
    %p48 = por %p46, %p47
    %p49 = scmp.ne.s32.totalorder %s38, %s39
    %p50 = scmp.eq.s32.totalorder %s30, 0
    %p51 = por %p49, %p50
    %p52 = scmp.ne.s32.totalorder %s38, %s39
    %p53 = scmp.eq.s32.totalorder %s31, 1
    %p54 = por %p52, %p53
    %p56 = scmp.ne.s32.totalorder %s39, %s55
    %p57 = scmp.eq.s32.totalorder %s31, 0
    %p58 = por %p56, %p57
    %s59 = ssub.s32 %s25, %s32
    %p60 = scmp.eq.s32.totalorder %s59, 0
    %s62 = sadd.s32 %s61, 1
    %s63 = scalar_select %p60, %s61, %s62
    %p66 = pneg %p60
    %p67 = scmp.eq.s32.totalorder %s25, 1
    %p68 = por %p66, %p67
    %p69 = scmp.ne.s32.totalorder %s61, %s64
    %p70 = scmp.eq.s32.totalorder %s25, 0
    %p71 = por %p69, %p70
    %p72 = scmp.ne.s32.totalorder %s61, %s64
    %p73 = scmp.eq.s32.totalorder %s30, 1
    %p74 = por %p72, %p73
    %p75 = scmp.ne.s32.totalorder %s64, %s65
    %p76 = scmp.eq.s32.totalorder %s30, 0
    %p77 = por %p75, %p76
    %p78 = scmp.ne.s32.totalorder %s64, %s65
    %p79 = scmp.eq.s32.totalorder %s31, 1
    %p80 = por %p78, %p79
    %p82 = scmp.ne.s32.totalorder %s65, %s81
    %p83 = scmp.eq.s32.totalorder %s31, 0
    %p84 = por %p82, %p83
    %s86 = sadd.s32 %s85, 1
    %p89 = scmp.eq.s32.totalorder %s25, 1
    %p90 = scmp.ne.s32.totalorder %s85, %s87
    %p91 = scmp.eq.s32.totalorder %s25, 0
    %p92 = por %p90, %p91
    %p93 = scmp.ne.s32.totalorder %s85, %s87
    %p94 = scmp.eq.s32.totalorder %s30, 1
    %p95 = por %p93, %p94
    %p96 = scmp.ne.s32.totalorder %s87, %s88
    %p97 = scmp.eq.s32.totalorder %s30, 0
    %p98 = por %p96, %p97
    %p99 = scmp.ne.s32.totalorder %s87, %s88
    %p100 = scmp.eq.s32.totalorder %s31, 1
    %p101 = por %p99, %p100
    %p103 = scmp.ne.s32.totalorder %s88, %s102
    %p104 = scmp.eq.s32.totalorder %s31, 0
    %p105 = por %p103, %p104
    %s106 = ssub.s32 %s25, %s32
    %p107 = scmp.eq.s32.totalorder %s106, 0
    %s109 = sadd.s32 %s108, 1
    %s110 = scalar_select %p107, %s108, %s109
    %p113 = pneg %p107
    %p114 = scmp.eq.s32.totalorder %s25, 1
    %p115 = por %p113, %p114
    %p116 = scmp.ne.s32.totalorder %s108, %s111
    %p117 = scmp.eq.s32.totalorder %s25, 0
    %p118 = por %p116, %p117
    %p119 = scmp.ne.s32.totalorder %s108, %s111
    %p120 = scmp.eq.s32.totalorder %s30, 1
    %p121 = por %p119, %p120
    %p122 = scmp.ne.s32.totalorder %s111, %s112
    %p123 = scmp.eq.s32.totalorder %s30, 0
    %p124 = por %p122, %p123
    %p125 = scmp.ne.s32.totalorder %s111, %s112
    %p126 = scmp.eq.s32.totalorder %s31, 1
    %p127 = por %p125, %p126
    %p129 = scmp.ne.s32.totalorder %s112, %s128
    %p130 = scmp.eq.s32.totalorder %s31, 0
    %p131 = por %p129, %p130
    %s133 = sadd.s32 %s132, 1
    %p136 = scmp.eq.s32.totalorder %s25, 1
    %p137 = scmp.ne.s32.totalorder %s132, %s134
    %p138 = scmp.eq.s32.totalorder %s25, 0
    %p139 = por %p137, %p138
    %p140 = scmp.ne.s32.totalorder %s132, %s134
    %p141 = scmp.eq.s32.totalorder %s30, 1
    %p142 = por %p140, %p141
    %p143 = scmp.ne.s32.totalorder %s134, %s135
    %p144 = scmp.eq.s32.totalorder %s30, 0
    %p145 = por %p143, %p144
    %p146 = scmp.ne.s32.totalorder %s134, %s135
    %p147 = scmp.eq.s32.totalorder %s31, 1
    %p148 = por %p146, %p147
    %p150 = scmp.ne.s32.totalorder %s135, %s149
    %p151 = scmp.eq.s32.totalorder %s31, 0
    %p152 = por %p150, %p151
    %s154 = sadd.s32 %s153, 1
    %p157 = scmp.eq.s32.totalorder %s25, 1
    %p158 = scmp.ne.s32.totalorder %s153, %s155
    %p159 = scmp.eq.s32.totalorder %s25, 0
    %p160 = por %p158, %p159
    %p161 = scmp.ne.s32.totalorder %s153, %s155
    %p162 = scmp.eq.s32.totalorder %s30, 1
    %p163 = por %p161, %p162
    %p164 = scmp.ne.s32.totalorder %s155, %s156
    %p165 = scmp.eq.s32.totalorder %s30, 0
    %p166 = por %p164, %p165
    %p167 = scmp.ne.s32.totalorder %s155, %s156
    %p168 = scmp.eq.s32.totalorder %s31, 1
    %p169 = por %p167, %p168
    %p171 = scmp.ne.s32.totalorder %s156, %s170
    %p172 = scmp.eq.s32.totalorder %s31, 0
    %p173 = por %p171, %p172
    %s175 = sadd.s32 %s174, 1
    %p178 = scmp.eq.s32.totalorder %s25, 1
    %p179 = scmp.ne.s32.totalorder %s174, %s176
    %p180 = scmp.eq.s32.totalorder %s25, 0
    %p181 = por %p179, %p180
    %p182 = scmp.ne.s32.totalorder %s174, %s176
    %p183 = scmp.eq.s32.totalorder %s30, 1
    %p184 = por %p182, %p183
    %p185 = scmp.ne.s32.totalorder %s176, %s177
    %p186 = scmp.eq.s32.totalorder %s30, 0
    %p187 = por %p185, %p186
    %p188 = scmp.ne.s32.totalorder %s176, %s177
    %p189 = scmp.eq.s32.totalorder %s31, 1
    %p190 = por %p188, %p189
    %p192 = scmp.ne.s32.totalorder %s177, %s191
    %p193 = scmp.eq.s32.totalorder %s31, 0
    %p194 = por %p192, %p193
    %s196 = sadd.s32 %s195, 1
    %p199 = scmp.eq.s32.totalorder %s25, 1
    %p200 = scmp.ne.s32.totalorder %s195, %s197
    %p201 = scmp.eq.s32.totalorder %s25, 0
    %p202 = por %p200, %p201
    %p203 = scmp.ne.s32.totalorder %s195, %s197
    %p204 = scmp.eq.s32.totalorder %s30, 1
    %p205 = por %p203, %p204
    %p206 = scmp.ne.s32.totalorder %s197, %s198
    %p207 = scmp.eq.s32.totalorder %s30, 0
    %p208 = por %p206, %p207
    %p209 = scmp.ne.s32.totalorder %s197, %s198
    %p210 = scmp.eq.s32.totalorder %s31, 1
    %p211 = por %p209, %p210
    %p213 = scmp.ne.s32.totalorder %s198, %s212
    %p214 = scmp.eq.s32.totalorder %s31, 0
    %p215 = por %p213, %p214
    %s217 = sadd.s32 %s216, 1
    %p220 = scmp.eq.s32.totalorder %s25, 1
    %p221 = scmp.ne.s32.totalorder %s216, %s218
    %p222 = scmp.eq.s32.totalorder %s25, 0
    %p223 = por %p221, %p222
    %p224 = scmp.ne.s32.totalorder %s216, %s218
    %p225 = scmp.eq.s32.totalorder %s30, 1
    %p226 = por %p224, %p225
    %p227 = scmp.ne.s32.totalorder %s218, %s219
    %p228 = scmp.eq.s32.totalorder %s30, 0
    %p229 = por %p227, %p228
    %p230 = scmp.ne.s32.totalorder %s218, %s219
    %p231 = scmp.eq.s32.totalorder %s31, 1
    %p232 = por %p230, %p231
    %p234 = scmp.ne.s32.totalorder %s219, %s233
    %p235 = scmp.eq.s32.totalorder %s31, 0
    %p236 = por %p234, %p235
    %s238 = sadd.s32 %s237, 1
    %p241 = scmp.eq.s32.totalorder %s25, 1
    %p242 = scmp.ne.s32.totalorder %s237, %s239
    %p243 = scmp.eq.s32.totalorder %s25, 0
    %p244 = por %p242, %p243
    %p245 = scmp.ne.s32.totalorder %s237, %s239
    %p246 = scmp.eq.s32.totalorder %s30, 1
    %p247 = por %p245, %p246
    %p248 = scmp.ne.s32.totalorder %s239, %s240
    %p249 = scmp.eq.s32.totalorder %s30, 0
    %p250 = por %p248, %p249
    %p251 = scmp.ne.s32.totalorder %s239, %s240
    %p252 = scmp.eq.s32.totalorder %s31, 1
    %p253 = por %p251, %p252
    %p255 = scmp.ne.s32.totalorder %s240, %s254
    %p256 = scmp.eq.s32.totalorder %s31, 0
    %p257 = por %p255, %p256
    %s259 = sadd.s32 %s258, 1
    %p262 = scmp.eq.s32.totalorder %s25, 1
    %p263 = scmp.ne.s32.totalorder %s258, %s260
    %p264 = scmp.eq.s32.totalorder %s25, 0
    %p265 = por %p263, %p264
    %p266 = scmp.ne.s32.totalorder %s258, %s260
    %p267 = scmp.eq.s32.totalorder %s30, 1
    %p268 = por %p266, %p267
    %p269 = scmp.ne.s32.totalorder %s260, %s261
    %p270 = scmp.eq.s32.totalorder %s30, 0
    %p271 = por %p269, %p270
    %p272 = scmp.ne.s32.totalorder %s260, %s261
    %p273 = scmp.eq.s32.totalorder %s31, 1
    %p274 = por %p272, %p273
    %p276 = scmp.ne.s32.totalorder %s261, %s275
    %p277 = scmp.eq.s32.totalorder %s31, 0
    %p278 = por %p276, %p277
    %s280 = sadd.s32 %s279, 1
    %p283 = scmp.eq.s32.totalorder %s25, 1
    %p284 = scmp.ne.s32.totalorder %s279, %s281
    %p285 = scmp.eq.s32.totalorder %s25, 0
    %p286 = por %p284, %p285
    %p287 = scmp.ne.s32.totalorder %s279, %s281
    %p288 = scmp.eq.s32.totalorder %s30, 1
    %p289 = por %p287, %p288
    %p290 = scmp.ne.s32.totalorder %s281, %s282
    %p291 = scmp.eq.s32.totalorder %s30, 0
    %p292 = por %p290, %p291
    %p293 = scmp.ne.s32.totalorder %s281, %s282
    %p294 = scmp.eq.s32.totalorder %s31, 1
    %p295 = por %p293, %p294
    %p297 = scmp.ne.s32.totalorder %s282, %s296
    %p298 = scmp.eq.s32.totalorder %s31, 0
    %p299 = por %p297, %p298
    %s301 = sadd.s32 %s300, 1
    %p304 = scmp.eq.s32.totalorder %s25, 1
    %p305 = scmp.ne.s32.totalorder %s300, %s302
    %p306 = scmp.eq.s32.totalorder %s25, 0
    %p307 = por %p305, %p306
    %p308 = scmp.ne.s32.totalorder %s300, %s302
    %p309 = scmp.eq.s32.totalorder %s30, 1
    %p310 = por %p308, %p309
    %p311 = scmp.ne.s32.totalorder %s302, %s303
    %p312 = scmp.eq.s32.totalorder %s30, 0
    %p313 = por %p311, %p312
    %p314 = scmp.ne.s32.totalorder %s302, %s303
    %p315 = scmp.eq.s32.totalorder %s31, 1
    %p316 = por %p314, %p315
    %p318 = scmp.ne.s32.totalorder %s303, %s317
    %p319 = scmp.eq.s32.totalorder %s31, 0
    %p320 = por %p318, %p319
    %s322 = sadd.s32 %s321, 1
    %p325 = scmp.eq.s32.totalorder %s25, 1
    %p326 = scmp.ne.s32.totalorder %s321, %s323
    %p327 = scmp.eq.s32.totalorder %s25, 0
    %p328 = por %p326, %p327
    %p329 = scmp.ne.s32.totalorder %s321, %s323
    %p330 = scmp.eq.s32.totalorder %s30, 1
    %p331 = por %p329, %p330
    %p332 = scmp.ne.s32.totalorder %s323, %s324
    %p333 = scmp.eq.s32.totalorder %s30, 0
    %p334 = por %p332, %p333
    %p335 = scmp.ne.s32.totalorder %s323, %s324
    %p336 = scmp.eq.s32.totalorder %s31, 1
    %p337 = por %p335, %p336
    %p339 = scmp.ne.s32.totalorder %s324, %s338
    %p340 = scmp.eq.s32.totalorder %s31, 0
    %p341 = por %p339, %p340
    %s343 = sadd.s32 %s342, 1
    %p346 = scmp.eq.s32.totalorder %s25, 1
    %p347 = scmp.ne.s32.totalorder %s342, %s344
    %p348 = scmp.eq.s32.totalorder %s25, 0
    %p349 = por %p347, %p348
    %p350 = scmp.ne.s32.totalorder %s342, %s344
    %p351 = scmp.eq.s32.totalorder %s30, 1
    %p352 = por %p350, %p351
    %p353 = scmp.ne.s32.totalorder %s344, %s345
    %p354 = scmp.eq.s32.totalorder %s30, 0
    %p355 = por %p353, %p354
    %p356 = scmp.ne.s32.totalorder %s344, %s345
    %p357 = scmp.eq.s32.totalorder %s31, 1
    %p358 = por %p356, %p357
    %p360 = scmp.ne.s32.totalorder %s345, %s359
    %p361 = scmp.eq.s32.totalorder %s31, 0
    %p362 = por %p360, %p361
    %s364 = sadd.s32 %s363, 1
    %p367 = scmp.eq.s32.totalorder %s25, 1
    %p368 = scmp.ne.s32.totalorder %s363, %s365
    %p369 = scmp.eq.s32.totalorder %s25, 0
    %p370 = por %p368, %p369
    %p371 = scmp.ne.s32.totalorder %s363, %s365
    %p372 = scmp.eq.s32.totalorder %s30, 1
    %p373 = por %p371, %p372
    %p374 = scmp.ne.s32.totalorder %s365, %s366
    %p375 = scmp.eq.s32.totalorder %s30, 0
    %p376 = por %p374, %p375
    %p377 = scmp.ne.s32.totalorder %s365, %s366
    %p378 = scmp.eq.s32.totalorder %s31, 1
    %p379 = por %p377, %p378
    %p381 = scmp.ne.s32.totalorder %s366, %s380
    %p382 = scmp.eq.s32.totalorder %s31, 0
    %p383 = por %p381, %p382
    %s385 = sadd.s32 %s384, 1
    %p388 = scmp.eq.s32.totalorder %s25, 1
    %p389 = scmp.ne.s32.totalorder %s384, %s386
    %p390 = scmp.eq.s32.totalorder %s25, 0
    %p391 = por %p389, %p390
    %p392 = scmp.ne.s32.totalorder %s384, %s386
    %p393 = scmp.eq.s32.totalorder %s30, 1
    %p394 = por %p392, %p393
    %p395 = scmp.ne.s32.totalorder %s386, %s387
    %p396 = scmp.eq.s32.totalorder %s30, 0
    %p397 = por %p395, %p396
    %p398 = scmp.ne.s32.totalorder %s386, %s387
    %p399 = scmp.eq.s32.totalorder %s31, 1
    %p400 = por %p398, %p399
    %p402 = scmp.ne.s32.totalorder %s387, %s401
    %p403 = scmp.eq.s32.totalorder %s31, 0
    %p404 = por %p402, %p403
    %s406 = sadd.s32 %s405, 1
    %p409 = scmp.eq.s32.totalorder %s25, 1
    %p410 = scmp.ne.s32.totalorder %s405, %s407
    %p411 = scmp.eq.s32.totalorder %s25, 0
    %p412 = por %p410, %p411
    %p413 = scmp.ne.s32.totalorder %s405, %s407
    %p414 = scmp.eq.s32.totalorder %s30, 1
    %p415 = por %p413, %p414
    %p416 = scmp.ne.s32.totalorder %s407, %s408
    %p417 = scmp.eq.s32.totalorder %s30, 0
    %p418 = por %p416, %p417
    %p419 = scmp.ne.s32.totalorder %s407, %s408
    %p420 = scmp.eq.s32.totalorder %s31, 1
    %p421 = por %p419, %p420
    %p423 = scmp.ne.s32.totalorder %s408, %s422
    %p424 = scmp.eq.s32.totalorder %s31, 0
    %p425 = por %p423, %p424
    %s427 = sadd.s32 %s426, 1
    %p430 = scmp.eq.s32.totalorder %s25, 1
    %p431 = scmp.ne.s32.totalorder %s426, %s428
    %p432 = scmp.eq.s32.totalorder %s25, 0
    %p433 = por %p431, %p432
    %p434 = scmp.ne.s32.totalorder %s426, %s428
    %p435 = scmp.eq.s32.totalorder %s30, 1
    %p436 = por %p434, %p435
    %p437 = scmp.ne.s32.totalorder %s428, %s429
    %p438 = scmp.eq.s32.totalorder %s30, 0
    %p439 = por %p437, %p438
    %p440 = scmp.ne.s32.totalorder %s428, %s429
    %p441 = scmp.eq.s32.totalorder %s31, 1
    %p442 = por %p440, %p441
    %p444 = scmp.ne.s32.totalorder %s429, %s443
    %p445 = scmp.eq.s32.totalorder %s31, 0
    %p446 = por %p444, %p445
    %s447 = ssub.s32 %s25, %s32
    %p448 = scmp.eq.s32.totalorder %s447, 0
    %s450 = sadd.s32 %s449, 1
    %s451 = scalar_select %p448, %s449, %s450
    %p454 = pneg %p448
    %p455 = scmp.eq.s32.totalorder %s25, 1
    %p456 = por %p454, %p455
    %p457 = scmp.ne.s32.totalorder %s449, %s452
    %p458 = scmp.eq.s32.totalorder %s25, 0
    %p459 = por %p457, %p458
    %p460 = scmp.ne.s32.totalorder %s449, %s452
    %p461 = scmp.eq.s32.totalorder %s30, 1
    %p462 = por %p460, %p461
    %p463 = scmp.ne.s32.totalorder %s452, %s453
    %p464 = scmp.eq.s32.totalorder %s30, 0
    %p465 = por %p463, %p464
    %p466 = scmp.ne.s32.totalorder %s452, %s453
    %p467 = scmp.eq.s32.totalorder %s31, 1
    %p468 = por %p466, %p467
    %p470 = scmp.ne.s32.totalorder %s453, %s469
    %p471 = scmp.eq.s32.totalorder %s31, 0
    %p472 = por %p470, %p471
    %p473 = scmp.le.s32.totalorder 1, %s25
    %p474 = scmp.lt.s32.totalorder %s25, 3
    %p475 = pnand %p473, %p474
    %p476 = pneg %p475
    // Predicated region
    $region9: #{transformer_encoder_forward.2} parent=5 // pred_check
      _
    $region10: #{transformer_encoder_forward.2} parent=5 // pred_check_branch
      %478 = sbr.rel (%p475) target = $region12
    $region11: #{transformer_encoder_forward.2} parent=5 // pred_region
      %s479 = ssub.s32 %s25, 1
      // Predicated region
      $region13: #{transformer_encoder_forward.2} parent=11 // pred_check
        %p480 = pneg %p98
      $region14: #{transformer_encoder_forward.2} parent=11 // pred_check_branch
        %482 = sbr.rel (%p480) target = $region16
      $region15: #{transformer_encoder_forward.2} parent=11 // pred_region
        _
      $region16: #{transformer_encoder_forward.2} parent=11 // pred_fallthru
        _
      // Predicated region
      $region17: #{transformer_encoder_forward.2} parent=11 // pred_check
        %p483 = pneg %p145
      $region18: #{transformer_encoder_forward.2} parent=11 // pred_check_branch
        %485 = sbr.rel (%p483) target = $region20
      $region19: #{transformer_encoder_forward.2} parent=11 // pred_region
        _
      $region20: #{transformer_encoder_forward.2} parent=11 // pred_fallthru
        _
      // Predicated region
      $region21: #{transformer_encoder_forward.2} parent=11 // pred_check
        %p486 = pneg %p166
      $region22: #{transformer_encoder_forward.2} parent=11 // pred_check_branch
        %488 = sbr.rel (%p486) target = $region24
      $region23: #{transformer_encoder_forward.2} parent=11 // pred_region
        _
      $region24: #{transformer_encoder_forward.2} parent=11 // pred_fallthru
        _
      // Predicated region
      $region25: #{transformer_encoder_forward.2} parent=11 // pred_check
        %p489 = pneg %p187
      $region26: #{transformer_encoder_forward.2} parent=11 // pred_check_branch
        %491 = sbr.rel (%p489) target = $region28
      $region27: #{transformer_encoder_forward.2} parent=11 // pred_region
        _
      $region28: #{transformer_encoder_forward.2} parent=11 // pred_fallthru
        _
      // Predicated region
      $region29: #{transformer_encoder_forward.2} parent=11 // pred_check
        %p492 = pneg %p208
      $region30: #{transformer_encoder_forward.2} parent=11 // pred_check_branch
        %494 = sbr.rel (%p492) target = $region32
      $region31: #{transformer_encoder_forward.2} parent=11 // pred_region
        _
      $region32: #{transformer_encoder_forward.2} parent=11 // pred_fallthru
        _
      // Predicated region
      $region33: #{transformer_encoder_forward.2} parent=11 // pred_check
        %p495 = pneg %p229
      $region34: #{transformer_encoder_forward.2} parent=11 // pred_check_branch
        %497 = sbr.rel (%p495) target = $region36
      $region35: #{transformer_encoder_forward.2} parent=11 // pred_region
        _
      $region36: #{transformer_encoder_forward.2} parent=11 // pred_fallthru
        _
      // Predicated region
      $region37: #{transformer_encoder_forward.2} parent=11 // pred_check
        %p498 = pneg %p250
      $region38: #{transformer_encoder_forward.2} parent=11 // pred_check_branch
        %500 = sbr.rel (%p498) target = $region40
      $region39: #{transformer_encoder_forward.2} parent=11 // pred_region
        _
      $region40: #{transformer_encoder_forward.2} parent=11 // pred_fallthru
        _
      // Predicated region
      $region41: #{transformer_encoder_forward.2} parent=11 // pred_check
        %p501 = pneg %p271
      $region42: #{transformer_encoder_forward.2} parent=11 // pred_check_branch
        %503 = sbr.rel (%p501) target = $region44
      $region43: #{transformer_encoder_forward.2} parent=11 // pred_region
        _
      $region44: #{transformer_encoder_forward.2} parent=11 // pred_fallthru
        _
      // Predicated region
      $region45: #{transformer_encoder_forward.2} parent=11 // pred_check
        %p504 = pneg %p292
      $region46: #{transformer_encoder_forward.2} parent=11 // pred_check_branch
        %506 = sbr.rel (%p504) target = $region48
      $region47: #{transformer_encoder_forward.2} parent=11 // pred_region
        _
      $region48: #{transformer_encoder_forward.2} parent=11 // pred_fallthru
        _
      // Predicated region
      $region49: #{transformer_encoder_forward.2} parent=11 // pred_check
        %p507 = pneg %p313
      $region50: #{transformer_encoder_forward.2} parent=11 // pred_check_branch
        %509 = sbr.rel (%p507) target = $region52
      $region51: #{transformer_encoder_forward.2} parent=11 // pred_region
        _
      $region52: #{transformer_encoder_forward.2} parent=11 // pred_fallthru
        _
      // Predicated region
      $region53: #{transformer_encoder_forward.2} parent=11 // pred_check
        %p510 = pneg %p334
      $region54: #{transformer_encoder_forward.2} parent=11 // pred_check_branch
        %512 = sbr.rel (%p510) target = $region56
      $region55: #{transformer_encoder_forward.2} parent=11 // pred_region
        _
      $region56: #{transformer_encoder_forward.2} parent=11 // pred_fallthru
        _
      // Predicated region
      $region57: #{transformer_encoder_forward.2} parent=11 // pred_check
        %p513 = pneg %p355
      $region58: #{transformer_encoder_forward.2} parent=11 // pred_check_branch
        %515 = sbr.rel (%p513) target = $region60
      $region59: #{transformer_encoder_forward.2} parent=11 // pred_region
        _
      $region60: #{transformer_encoder_forward.2} parent=11 // pred_fallthru
        _
      // Predicated region
      $region61: #{transformer_encoder_forward.2} parent=11 // pred_check
        %p516 = pneg %p376
      $region62: #{transformer_encoder_forward.2} parent=11 // pred_check_branch
        %518 = sbr.rel (%p516) target = $region64
      $region63: #{transformer_encoder_forward.2} parent=11 // pred_region
        _
      $region64: #{transformer_encoder_forward.2} parent=11 // pred_fallthru
        _
      // Predicated region
      $region65: #{transformer_encoder_forward.2} parent=11 // pred_check
        %p519 = pneg %p397
      $region66: #{transformer_encoder_forward.2} parent=11 // pred_check_branch
        %521 = sbr.rel (%p519) target = $region68
      $region67: #{transformer_encoder_forward.2} parent=11 // pred_region
        _
      $region68: #{transformer_encoder_forward.2} parent=11 // pred_fallthru
        _
      // Predicated region
      $region69: #{transformer_encoder_forward.2} parent=11 // pred_check
        %p522 = pneg %p418
      $region70: #{transformer_encoder_forward.2} parent=11 // pred_check_branch
        %524 = sbr.rel (%p522) target = $region72
      $region71: #{transformer_encoder_forward.2} parent=11 // pred_region
        _
      $region72: #{transformer_encoder_forward.2} parent=11 // pred_fallthru
        _
      // Predicated region
      $region73: #{transformer_encoder_forward.2} parent=11 // pred_check
        %p525 = pneg %p439
      $region74: #{transformer_encoder_forward.2} parent=11 // pred_check_branch
        %527 = sbr.rel (%p525) target = $region76
      $region75: #{transformer_encoder_forward.2} parent=11 // pred_region
        _
      $region76: #{transformer_encoder_forward.2} parent=11 // pred_fallthru
        _
    $region12: #{transformer_encoder_forward.2} parent=5 // pred_fallthru
      _
    %p528 = scmp.lt.s32.totalorder %s25, 2
    // Predicated region
    $region77: #{transformer_encoder_forward.2} parent=5 // pred_check
      %p529 = pneg %p528
    $region78: #{transformer_encoder_forward.2} parent=5 // pred_check_branch
      %531 = sbr.rel (%p529) target = $region80
    $region79: #{transformer_encoder_forward.2} parent=5 // pred_region
      // Predicated region
      $region81: #{transformer_encoder_forward.2} parent=79 // pred_check
        %p532 = pneg %p45
      $region82: #{transformer_encoder_forward.2} parent=79 // pred_check_branch
        %534 = sbr.rel (%p532) target = $region84
      $region83: #{transformer_encoder_forward.2} parent=79 // pred_region
        %p535 = scmp.lt.s32.totalorder %s25, 1
        %s536 = scalar_select %p535, %s25, 1
        %s537 = smul.addr %s536, 2
        %s538 = smul.addr %s537, 8
        %s539 = scalar_lea.vmem %s0, %s538
      $region84: #{transformer_encoder_forward.2} parent=79 // pred_fallthru
        _
      // Predicated region
      $region85: #{transformer_encoder_forward.2} parent=79 // pred_check
        %p540 = pneg %p71
      $region86: #{transformer_encoder_forward.2} parent=79 // pred_check_branch
        %542 = sbr.rel (%p540) target = $region88
      $region87: #{transformer_encoder_forward.2} parent=79 // pred_region
        %p543 = scmp.lt.s32.totalorder %s25, 1
        %s544 = scalar_select %p543, %s25, 1
        %s545 = smul.addr %s544, 2
        %s546 = smul.addr %s545, 8
        %s547 = scalar_lea.vmem %s1, %s546
      $region88: #{transformer_encoder_forward.2} parent=79 // pred_fallthru
        _
      // Predicated region
      $region89: #{transformer_encoder_forward.2} parent=79 // pred_check
        %p548 = pneg %p118
      $region90: #{transformer_encoder_forward.2} parent=79 // pred_check_branch
        %550 = sbr.rel (%p548) target = $region92
      $region91: #{transformer_encoder_forward.2} parent=79 // pred_region
        %p551 = scmp.lt.s32.totalorder %s25, 1
        %s552 = scalar_select %p551, %s25, 1
        %s553 = smul.addr %s552, 2
        %s554 = smul.addr %s553, 8
        %s555 = scalar_lea.vmem %s3, %s554
      $region92: #{transformer_encoder_forward.2} parent=79 // pred_fallthru
        _
    $region80: #{transformer_encoder_forward.2} parent=5 // pred_fallthru
      _
    %p556 = scmp.le.s32.totalorder 1, %s25
    %p557 = scmp.lt.s32.totalorder %s25, 3
    %p558 = pnand %p556, %p557
    %p559 = pneg %p558
    // Predicated region
    $region93: #{transformer_encoder_forward.2} parent=5 // pred_check
      _
    $region94: #{transformer_encoder_forward.2} parent=5 // pred_check_branch
      %561 = sbr.rel (%p558) target = $region96
    $region95: #{transformer_encoder_forward.2} parent=5 // pred_region
      %s562 = ssub.s32 %s25, 1
      %p563 = scmp.lt.s32.totalorder %s30, 1
      %s564 = scalar_select %p563, %s30, 1
      %s565 = smul.addr %s564, 2
      %s566 = smul.addr %s565, 8
      %s567 = scalar_lea.vmem %s0, %s566
      %p568 = pneg %p51
      %p569 = pneg %p48
      %p570 = scmp.lt.s32.totalorder %s30, 1
      %s571 = scalar_select %p570, %s30, 1
      %s572 = smul.addr %s571, 2
      %s573 = smul.addr %s572, 8
      %s574 = scalar_lea.vmem %s1, %s573
      %p575 = pneg %p77
      %p576 = pneg %p74
      %p577 = pneg %p98
      %p578 = pneg %p95
      %p579 = scmp.lt.s32.totalorder %s30, 1
      %s580 = scalar_select %p579, %s30, 1
      %s581 = smul.addr %s580, 2
      %s582 = smul.addr %s581, 8
      %s583 = scalar_lea.vmem %s3, %s582
      %p584 = pneg %p124
      %p585 = pneg %p121
      %p586 = pneg %p145
      %p587 = pneg %p142
      %p588 = pneg %p166
      %p589 = pneg %p163
      %p590 = pneg %p187
      %p591 = pneg %p184
      %p592 = pneg %p208
      %p593 = pneg %p205
      %p594 = pneg %p229
      %p595 = pneg %p226
      %p596 = pneg %p250
      %p597 = pneg %p247
      %p598 = pneg %p271
      %p599 = pneg %p268
      %p600 = pneg %p292
      %p601 = pneg %p289
      %p602 = pneg %p313
      %p603 = pneg %p310
      %p604 = pneg %p334
      %p605 = pneg %p331
      %p606 = pneg %p355
      %p607 = pneg %p352
      %p608 = pneg %p376
      %p609 = pneg %p373
      %p610 = pneg %p397
      %p611 = pneg %p394
      %p612 = pneg %p418
      %p613 = pneg %p415
      %p614 = pneg %p439
      %p615 = pneg %p436
      %p616 = pneg %p465
      %p617 = pneg %p462
      %p618 = scmp.lt.s32.totalorder %s30, 1
      %s619 = scalar_select %p618, %s30, 1
      %s620 = smul.addr %s619, 2
      %s621 = smul.addr %s620, 8
      %s622 = scalar_lea.vmem %s19, %s621
      %p623 = scmp.lt.s32.totalorder %s30, 1
      %s624 = scalar_select %p623, %s30, 1
      %s625 = smul.addr %s624, 2
      %s626 = smul.addr %s625, 8
      %s627 = scalar_lea.vmem %s0, %s626
      %p628 = scmp.lt.s32.totalorder %s30, 1
      %s629 = scalar_select %p628, %s30, 1
      %s630 = smul.addr %s629, 2
      %s631 = smul.addr %s630, 8
      %s632 = scalar_lea.vmem %s1, %s631
      %p633 = scmp.lt.s32.totalorder %s30, 1
      %s634 = scalar_select %p633, %s30, 1
      %s635 = smul.addr %s634, 2
      %s636 = smul.addr %s635, 8
      %s637 = scalar_lea.vmem %s3, %s636
      %p638 = scmp.lt.s32.totalorder %s30, 1
      %s639 = scalar_select %p638, %s30, 1
      %s640 = smul.addr %s639, 2
      %s641 = smul.addr %s640, 8
      %s642 = scalar_lea.vmem %s19, %s641
      %v643 = vld [vmem:[%s627] sm:$0xff]
      %v644 = vld [vmem:[%s627 + $0x8] sm:$0xff]
      %v645 = vld [vmem:[%s4] sm:$0x1]
      %v646 = vld [vmem:[%s5] sm:$0x1]
      %vm647 = vcmask 261120
      %v648 = vsel %vm647, %v643, 0.0
      %649 = vadd.xlane.f32.xlu0 %v648
      %v650 = vpop.xlane.xlu0 %649
      %v651 = vsel %vm647, %v644, 0.0
      %652 = vadd.xlane.f32.xlu0 %v651
      %v653 = vpop.xlane.xlu0 %652
      %v654 = vrcp.pop 32.0
      %v655 = vmul.f32 %v650, %v654
      %v656 = vmul.f32 %v653, %v654
      %v657 = vsub.f32 %v643, %v655
      %v658 = vsub.f32 %v644, %v656
      %v659 = vmul.f32 %v657, %v657
      %v660 = vmul.f32 %v658, %v658
      %v661 = vsel %vm647, %v659, 0.0
      %662 = vadd.xlane.f32.xlu0 %v661
      %v663 = vpop.xlane.xlu0 %662
      %v664 = vsel %vm647, %v660, 0.0
      %665 = vadd.xlane.f32.xlu0 %v664
      %v666 = vpop.xlane.xlu0 %665
      %v667 = vmul.f32 %v663, %v654
      %v668 = vmul.f32 %v666, %v654
      %v669 = vadd.f32 %v667, 1e-05
      %v670 = vadd.f32 %v668, 1e-05
      %v671 = vrsqrt.pop %v669
      %v672 = vrsqrt.pop %v670
      %v673 = vmul.f32 %v657, %v671
      %v674 = vmul.f32 %v658, %v672
      %v676 = vlaneseq
      %v677 = vshrl.u32 %v676, 7
      %v678 = vsub.s32 0, %v677
      %v679 = vrot.slane %v645, %v678
      %v681 = vmul.f32 %v673, %v679
      %v682 = vmul.f32 %v674, %v679
      %v684 = vlaneseq
      %v685 = vshrl.u32 %v684, 7
      %v686 = vsub.s32 0, %v685
      %v687 = vrot.slane %v646, %v686
      %v689 = vadd.f32 %v681, %v687
      %v690 = vadd.f32 %v682, %v687
      %v691 = vld [vmem:[%s11] sm:$0xf]
      %v692 = vld [vmem:[%s12] sm:$0xf]
      %v693 = vld [vmem:[%s632] sm:$0xff]
      %v694 = vld [vmem:[%s632 + $0x8] sm:$0xff]
      %v695 = vld [vmem:[%s6] sm:$0xff]
      %v696 = vld [vmem:[%s6 + $0x8] sm:$0xff]
      %v697 = vld [vmem:[%s6 + $0x10] sm:$0xff]
      %v698 = vld [vmem:[%s6 + $0x18] sm:$0xff]
      %v700 = vsel %vm647, %v689, 0
      %v703 = vsel %vm647, %v690, 0
      %705 = vmatprep.subr.mxu0 0.0
      %706 = vmatpush1.msra.mxu0 0.0
      %707 = vmatprep.subr.mxu0 0.0
      %708 = vmatpush1.msra.mxu0 0.0
      %709 = vmatprep.subr.mxu0 0.0
      %710 = vmatpush1.msra.mxu0 0.0
      %711 = vmatprep.subr.mxu0 0.0
      %712 = vmatpush1.msra.mxu0 0.0
      %713 = vmatprep.subr.mxu0 0.0
      %714 = vmatpush1.msra.mxu0 0.0
      %715 = vmatprep.subr.mxu0 0.0
      %716 = vmatpush1.msra.mxu0 0.0
      %717 = vmatprep.subr.mxu0 0.0
      %718 = vmatpush1.msra.mxu0 0.0
      %719 = vmatprep.subr.mxu0 0.0
      %720 = vmatpush1.msra.mxu0 0.0
      %721 = vmatprep.subr.mxu0 0.0
      %722 = vmatpush1.msra.mxu0 0.0
      %723 = vmatprep.subr.mxu0 0.0
      %724 = vmatpush1.msra.mxu0 0.0
      %725 = vmatprep.subr.mxu0 0.0
      %726 = vmatpush1.msra.mxu0 0.0
      %727 = vmatprep.subr.mxu0 0.0
      %728 = vmatpush1.msra.mxu0 0.0
      %729 = vmatprep.subr.mxu0 0.0
      %730 = vmatpush1.msra.mxu0 %v698
      %731 = vmatprep.subr.mxu0 0.0
      %732 = vmatpush1.msra.mxu0 %v697
      %733 = vmatprep.subr.mxu0 0.0
      %734 = vmatpush1.msra.mxu0 %v696
      %735 = vmatprep.subr.mxu0 0.0
      %736 = vmatpush1.msra.mxu0 %v695
      %737 = vmatprep.subr.mxu0 0.0
      %738 = vmatpush2.msra.mxu0 0.0
      %739 = vmatprep.subr.mxu0 0.0
      %740 = vmatpush2.msra.mxu0 0.0
      %741 = vmatprep.subr.mxu0 0.0
      %742 = vmatpush2.msra.mxu0 0.0
      %743 = vmatprep.subr.mxu0 0.0
      %744 = vmatpush2.msra.mxu0 0.0
      %745 = vmatprep.subr.mxu0 0.0
      %746 = vmatpush2.msra.mxu0 0.0
      %747 = vmatprep.subr.mxu0 0.0
      %748 = vmatpush2.msra.mxu0 0.0
      %749 = vmatprep.subr.mxu0 0.0
      %750 = vmatpush2.msra.mxu0 0.0
      %751 = vmatprep.subr.mxu0 0.0
      %752 = vmatpush2.msra.mxu0 0.0
      %753 = vmatprep.subr.mxu0 0.0
      %754 = vmatpush2.msra.mxu0 0.0
      %755 = vmatprep.subr.mxu0 0.0
      %756 = vmatpush2.msra.mxu0 0.0
      %757 = vmatprep.subr.mxu0 0.0
      %758 = vmatpush2.msra.mxu0 0.0
      %759 = vmatprep.subr.mxu0 0.0
      %760 = vmatpush2.msra.mxu0 0.0
      %761 = vmatprep.subr.mxu0 0.0
      %762 = vmatpush2.msra.mxu0 0.0
      %763 = vmatprep.subr.mxu0 0.0
      %764 = vmatpush2.msra.mxu0 0.0
      %765 = vmatprep.subr.mxu0 0.0
      %766 = vmatpush2.msra.mxu0 0.0
      %767 = vmatprep.subr.mxu0 0.0
      %768 = vmatpush2.msra.mxu0 0.0
      %769 = vmatprep.mubr.f32.mxu0 0.0
      %770 = vmatmul.mubr.f32.gmra.mxu0 %v700
      %v771 = vpop.f32.mrf.mxu0
      %v772 = vadd.f32 0.0, %v771
      %v773 = vpop.f32.mrf.mxu0
      %774 = vmatprep.mubr.f32.mxu0 0.0
      %775 = vmatmul.mubr.f32.gmra.mxu0 %v703
      %v776 = vpop.f32.mrf.mxu0
      %v777 = vadd.f32 0.0, %v776
      %v778 = vpop.f32.mrf.mxu0
      %779 = vdwg.mxu0
      %v780 = vld [vmem:[%s7] sm:$0xff]
      %v781 = vld [vmem:[%s7 + $0x8] sm:$0xff]
      %v782 = vld [vmem:[%s7 + $0x10] sm:$0xff]
      %v783 = vld [vmem:[%s7 + $0x18] sm:$0xff]
      %784 = vmatprep.subr.mxu0 0.0
      %785 = vmatpush1.msra.mxu0 0.0
      %786 = vmatprep.subr.mxu0 0.0
      %787 = vmatpush1.msra.mxu0 0.0
      %788 = vmatprep.subr.mxu0 0.0
      %789 = vmatpush1.msra.mxu0 0.0
      %790 = vmatprep.subr.mxu0 0.0
      %791 = vmatpush1.msra.mxu0 0.0
      %792 = vmatprep.subr.mxu0 0.0
      %793 = vmatpush1.msra.mxu0 0.0
      %794 = vmatprep.subr.mxu0 0.0
      %795 = vmatpush1.msra.mxu0 0.0
      %796 = vmatprep.subr.mxu0 0.0
      %797 = vmatpush1.msra.mxu0 0.0
      %798 = vmatprep.subr.mxu0 0.0
      %799 = vmatpush1.msra.mxu0 0.0
      %800 = vmatprep.subr.mxu0 0.0
      %801 = vmatpush1.msra.mxu0 0.0
      %802 = vmatprep.subr.mxu0 0.0
      %803 = vmatpush1.msra.mxu0 0.0
      %804 = vmatprep.subr.mxu0 0.0
      %805 = vmatpush1.msra.mxu0 0.0
      %806 = vmatprep.subr.mxu0 0.0
      %807 = vmatpush1.msra.mxu0 0.0
      %808 = vmatprep.subr.mxu0 0.0
      %809 = vmatpush1.msra.mxu0 %v783
      %810 = vmatprep.subr.mxu0 0.0
      %811 = vmatpush1.msra.mxu0 %v782
      %812 = vmatprep.subr.mxu0 0.0
      %813 = vmatpush1.msra.mxu0 %v781
      %814 = vmatprep.subr.mxu0 0.0
      %815 = vmatpush1.msra.mxu0 %v780
      %816 = vmatprep.subr.mxu0 0.0
      %817 = vmatpush2.msra.mxu0 0.0
      %818 = vmatprep.subr.mxu0 0.0
      %819 = vmatpush2.msra.mxu0 0.0
      %820 = vmatprep.subr.mxu0 0.0
      %821 = vmatpush2.msra.mxu0 0.0
      %822 = vmatprep.subr.mxu0 0.0
      %823 = vmatpush2.msra.mxu0 0.0
      %824 = vmatprep.subr.mxu0 0.0
      %825 = vmatpush2.msra.mxu0 0.0
      %826 = vmatprep.subr.mxu0 0.0
      %827 = vmatpush2.msra.mxu0 0.0
      %828 = vmatprep.subr.mxu0 0.0
      %829 = vmatpush2.msra.mxu0 0.0
      %830 = vmatprep.subr.mxu0 0.0
      %831 = vmatpush2.msra.mxu0 0.0
      %832 = vmatprep.subr.mxu0 0.0
      %833 = vmatpush2.msra.mxu0 0.0
      %834 = vmatprep.subr.mxu0 0.0
      %835 = vmatpush2.msra.mxu0 0.0
      %836 = vmatprep.subr.mxu0 0.0
      %837 = vmatpush2.msra.mxu0 0.0
      %838 = vmatprep.subr.mxu0 0.0
      %839 = vmatpush2.msra.mxu0 0.0
      %840 = vmatprep.subr.mxu0 0.0
      %841 = vmatpush2.msra.mxu0 0.0
      %842 = vmatprep.subr.mxu0 0.0
      %843 = vmatpush2.msra.mxu0 0.0
      %844 = vmatprep.subr.mxu0 0.0
      %845 = vmatpush2.msra.mxu0 0.0
      %846 = vmatprep.subr.mxu0 0.0
      %847 = vmatpush2.msra.mxu0 0.0
      %848 = vmatprep.mubr.f32.mxu0 0.0
      %849 = vmatmul.mubr.f32.gmra.mxu0 %v700
      %v850 = vpop.f32.mrf.mxu0
      %v851 = vadd.f32 0.0, %v850
      %v852 = vpop.f32.mrf.mxu0
      %853 = vmatprep.mubr.f32.mxu0 0.0
      %854 = vmatmul.mubr.f32.gmra.mxu0 %v703
      %v855 = vpop.f32.mrf.mxu0
      %v856 = vadd.f32 0.0, %v855
      %v857 = vpop.f32.mrf.mxu0
      %858 = vdwg.mxu0
      %v859 = vld [vmem:[%s8] sm:$0xff]
      %v860 = vld [vmem:[%s8 + $0x8] sm:$0xff]
      %v861 = vld [vmem:[%s8 + $0x10] sm:$0xff]
      %v862 = vld [vmem:[%s8 + $0x18] sm:$0xff]
      %863 = vmatprep.subr.mxu0 0.0
      %864 = vmatpush1.msra.mxu0 0.0
      %865 = vmatprep.subr.mxu0 0.0
      %866 = vmatpush1.msra.mxu0 0.0
      %867 = vmatprep.subr.mxu0 0.0
      %868 = vmatpush1.msra.mxu0 0.0
      %869 = vmatprep.subr.mxu0 0.0
      %870 = vmatpush1.msra.mxu0 0.0
      %871 = vmatprep.subr.mxu0 0.0
      %872 = vmatpush1.msra.mxu0 0.0
      %873 = vmatprep.subr.mxu0 0.0
      %874 = vmatpush1.msra.mxu0 0.0
      %875 = vmatprep.subr.mxu0 0.0
      %876 = vmatpush1.msra.mxu0 0.0
      %877 = vmatprep.subr.mxu0 0.0
      %878 = vmatpush1.msra.mxu0 0.0
      %879 = vmatprep.subr.mxu0 0.0
      %880 = vmatpush1.msra.mxu0 0.0
      %881 = vmatprep.subr.mxu0 0.0
      %882 = vmatpush1.msra.mxu0 0.0
      %883 = vmatprep.subr.mxu0 0.0
      %884 = vmatpush1.msra.mxu0 0.0
      %885 = vmatprep.subr.mxu0 0.0
      %886 = vmatpush1.msra.mxu0 0.0
      %887 = vmatprep.subr.mxu0 0.0
      %888 = vmatpush1.msra.mxu0 %v862
      %889 = vmatprep.subr.mxu0 0.0
      %890 = vmatpush1.msra.mxu0 %v861
      %891 = vmatprep.subr.mxu0 0.0
      %892 = vmatpush1.msra.mxu0 %v860
      %893 = vmatprep.subr.mxu0 0.0
      %894 = vmatpush1.msra.mxu0 %v859
      %895 = vmatprep.subr.mxu0 0.0
      %896 = vmatpush2.msra.mxu0 0.0
      %897 = vmatprep.subr.mxu0 0.0
      %898 = vmatpush2.msra.mxu0 0.0
      %899 = vmatprep.subr.mxu0 0.0
      %900 = vmatpush2.msra.mxu0 0.0
      %901 = vmatprep.subr.mxu0 0.0
      %902 = vmatpush2.msra.mxu0 0.0
      %903 = vmatprep.subr.mxu0 0.0
      %904 = vmatpush2.msra.mxu0 0.0
      %905 = vmatprep.subr.mxu0 0.0
      %906 = vmatpush2.msra.mxu0 0.0
      %907 = vmatprep.subr.mxu0 0.0
      %908 = vmatpush2.msra.mxu0 0.0
      %909 = vmatprep.subr.mxu0 0.0
      %910 = vmatpush2.msra.mxu0 0.0
      %911 = vmatprep.subr.mxu0 0.0
      %912 = vmatpush2.msra.mxu0 0.0
      %913 = vmatprep.subr.mxu0 0.0
      %914 = vmatpush2.msra.mxu0 0.0
      %915 = vmatprep.subr.mxu0 0.0
      %916 = vmatpush2.msra.mxu0 0.0
      %917 = vmatprep.subr.mxu0 0.0
      %918 = vmatpush2.msra.mxu0 0.0
      %919 = vmatprep.subr.mxu0 0.0
      %920 = vmatpush2.msra.mxu0 0.0
      %921 = vmatprep.subr.mxu0 0.0
      %922 = vmatpush2.msra.mxu0 0.0
      %923 = vmatprep.subr.mxu0 0.0
      %924 = vmatpush2.msra.mxu0 0.0
      %925 = vmatprep.subr.mxu0 0.0
      %926 = vmatpush2.msra.mxu0 0.0
      %927 = vmatprep.mubr.f32.mxu0 0.0
      %928 = vmatmul.mubr.f32.gmra.mxu0 %v700
      %v929 = vpop.f32.mrf.mxu0
      %v930 = vadd.f32 0.0, %v929
      %v931 = vpop.f32.mrf.mxu0
      %932 = vmatprep.mubr.f32.mxu0 0.0
      %933 = vmatmul.mubr.f32.gmra.mxu0 %v703
      %v934 = vpop.f32.mrf.mxu0
      %v935 = vadd.f32 0.0, %v934
      %v936 = vpop.f32.mrf.mxu0
      %937 = vdwg.mxu0
      %v938 = vld [vmem:[%s2] sm:$0xff]
      %v939 = vld [vmem:[%s2 + $0x8] sm:$0xff]
      %vm940 = vcmask 64512
      %v942 = vsel %vm940, %v772, 0
      %v945 = vsel %vm940, %v777, 0
      %v948 = vsel %vm940, %v851, 0
      %v951 = vsel %vm940, %v856, 0
      %953 = vmatprep.subr.mxu0 0.0
      %954 = vmatpush1.xpose.msra.mxu0 0.0
      %955 = vmatprep.subr.mxu0 0.0
      %956 = vmatpush1.xpose.msra.mxu0 0.0
      %957 = vmatprep.subr.mxu0 0.0
      %958 = vmatpush1.xpose.msra.mxu0 0.0
      %959 = vmatprep.subr.mxu0 0.0
      %960 = vmatpush1.xpose.msra.mxu0 0.0
      %961 = vmatprep.subr.mxu0 0.0
      %962 = vmatpush1.xpose.msra.mxu0 0.0
      %963 = vmatprep.subr.mxu0 0.0
      %964 = vmatpush1.xpose.msra.mxu0 0.0
      %965 = vmatprep.subr.mxu0 0.0
      %966 = vmatpush1.xpose.msra.mxu0 0.0
      %967 = vmatprep.subr.mxu0 0.0
      %968 = vmatpush1.xpose.msra.mxu0 0.0
      %969 = vmatprep.subr.mxu0 0.0
      %970 = vmatpush1.xpose.msra.mxu0 0.0
      %971 = vmatprep.subr.mxu0 0.0
      %972 = vmatpush1.xpose.msra.mxu0 0.0
      %973 = vmatprep.subr.mxu0 0.0
      %974 = vmatpush1.xpose.msra.mxu0 0.0
      %975 = vmatprep.subr.mxu0 0.0
      %976 = vmatpush1.xpose.msra.mxu0 0.0
      %977 = vmatprep.subr.mxu0 0.0
      %978 = vmatpush1.xpose.msra.mxu0 0.0
      %979 = vmatprep.subr.mxu0 0.0
      %980 = vmatpush1.xpose.msra.mxu0 0.0
      %981 = vmatprep.subr.mxu0 0.0
      %982 = vmatpush1.xpose.msra.mxu0 %v951
      %983 = vmatprep.subr.mxu0 0.0
      %984 = vmatpush1.xpose.msra.mxu0 %v948
      %985 = vmatprep.subr.mxu0 0.0
      %986 = vmatpush2.xpose.msra.mxu0 0.0
      %987 = vmatprep.subr.mxu0 0.0
      %988 = vmatpush2.xpose.msra.mxu0 0.0
      %989 = vmatprep.subr.mxu0 0.0
      %990 = vmatpush2.xpose.msra.mxu0 0.0
      %991 = vmatprep.subr.mxu0 0.0
      %992 = vmatpush2.xpose.msra.mxu0 0.0
      %993 = vmatprep.subr.mxu0 0.0
      %994 = vmatpush2.xpose.msra.mxu0 0.0
      %995 = vmatprep.subr.mxu0 0.0
      %996 = vmatpush2.xpose.msra.mxu0 0.0
      %997 = vmatprep.subr.mxu0 0.0
      %998 = vmatpush2.xpose.msra.mxu0 0.0
      %999 = vmatprep.subr.mxu0 0.0
      %1000 = vmatpush2.xpose.msra.mxu0 0.0
      %1001 = vmatprep.subr.mxu0 0.0
      %1002 = vmatpush2.xpose.msra.mxu0 0.0
      %1003 = vmatprep.subr.mxu0 0.0
      %1004 = vmatpush2.xpose.msra.mxu0 0.0
      %1005 = vmatprep.subr.mxu0 0.0
      %1006 = vmatpush2.xpose.msra.mxu0 0.0
      %1007 = vmatprep.subr.mxu0 0.0
      %1008 = vmatpush2.xpose.msra.mxu0 0.0
      %1009 = vmatprep.subr.mxu0 0.0
      %1010 = vmatpush2.xpose.msra.mxu0 0.0
      %1011 = vmatprep.subr.mxu0 0.0
      %1012 = vmatpush2.xpose.msra.mxu0 0.0
      %1013 = vmatprep.subr.mxu0 0.0
      %1014 = vmatpush2.xpose.msra.mxu0 0.0
      %1015 = vmatprep.subr.mxu0 0.0
      %1016 = vmatpush2.xpose.msra.mxu0 0.0
      %1017 = vmatprep.mubr.f32.mxu0 0.0
      %1018 = vmatmul.mubr.f32.gmra.mxu0 %v942
      %v1019 = vpop.f32.mrf.mxu0
      %v1020 = vadd.f32 %v938, %v1019
      %v1021 = vpop.f32.mrf.mxu0
      %1022 = vmatprep.mubr.f32.mxu0 0.0
      %1023 = vmatmul.mubr.f32.gmra.mxu0 %v945
      %v1024 = vpop.f32.mrf.mxu0
      %v1025 = vadd.f32 %v939, %v1024
      %v1026 = vpop.f32.mrf.mxu0
      %1027 = vdwg.mxu0
      %s1028 = scalar_lea.vmem %s6, 32
      %v1029 = vld [vmem:[%s1028] sm:$0xff]
      %v1030 = vld [vmem:[%s1028 + $0x8] sm:$0xff]
      %v1031 = vld [vmem:[%s1028 + $0x10] sm:$0xff]
      %v1032 = vld [vmem:[%s1028 + $0x18] sm:$0xff]
      %1033 = vmatprep.subr.mxu0 0.0
      %1034 = vmatpush1.msra.mxu0 0.0
      %1035 = vmatprep.subr.mxu0 0.0
      %1036 = vmatpush1.msra.mxu0 0.0
      %1037 = vmatprep.subr.mxu0 0.0
      %1038 = vmatpush1.msra.mxu0 0.0
      %1039 = vmatprep.subr.mxu0 0.0
      %1040 = vmatpush1.msra.mxu0 0.0
      %1041 = vmatprep.subr.mxu0 0.0
      %1042 = vmatpush1.msra.mxu0 0.0
      %1043 = vmatprep.subr.mxu0 0.0
      %1044 = vmatpush1.msra.mxu0 0.0
      %1045 = vmatprep.subr.mxu0 0.0
      %1046 = vmatpush1.msra.mxu0 0.0
      %1047 = vmatprep.subr.mxu0 0.0
      %1048 = vmatpush1.msra.mxu0 0.0
      %1049 = vmatprep.subr.mxu0 0.0
      %1050 = vmatpush1.msra.mxu0 0.0
      %1051 = vmatprep.subr.mxu0 0.0
      %1052 = vmatpush1.msra.mxu0 0.0
      %1053 = vmatprep.subr.mxu0 0.0
      %1054 = vmatpush1.msra.mxu0 0.0
      %1055 = vmatprep.subr.mxu0 0.0
      %1056 = vmatpush1.msra.mxu0 0.0
      %1057 = vmatprep.subr.mxu0 0.0
      %1058 = vmatpush1.msra.mxu0 %v1032
      %1059 = vmatprep.subr.mxu0 0.0
      %1060 = vmatpush1.msra.mxu0 %v1031
      %1061 = vmatprep.subr.mxu0 0.0
      %1062 = vmatpush1.msra.mxu0 %v1030
      %1063 = vmatprep.subr.mxu0 0.0
      %1064 = vmatpush1.msra.mxu0 %v1029
      %1065 = vmatprep.subr.mxu0 0.0
      %1066 = vmatpush2.msra.mxu0 0.0
      %1067 = vmatprep.subr.mxu0 0.0
      %1068 = vmatpush2.msra.mxu0 0.0
      %1069 = vmatprep.subr.mxu0 0.0
      %1070 = vmatpush2.msra.mxu0 0.0
      %1071 = vmatprep.subr.mxu0 0.0
      %1072 = vmatpush2.msra.mxu0 0.0
      %1073 = vmatprep.subr.mxu0 0.0
      %1074 = vmatpush2.msra.mxu0 0.0
      %1075 = vmatprep.subr.mxu0 0.0
      %1076 = vmatpush2.msra.mxu0 0.0
      %1077 = vmatprep.subr.mxu0 0.0
      %1078 = vmatpush2.msra.mxu0 0.0
      %1079 = vmatprep.subr.mxu0 0.0
      %1080 = vmatpush2.msra.mxu0 0.0
      %1081 = vmatprep.subr.mxu0 0.0
      %1082 = vmatpush2.msra.mxu0 0.0
      %1083 = vmatprep.subr.mxu0 0.0
      %1084 = vmatpush2.msra.mxu0 0.0
      %1085 = vmatprep.subr.mxu0 0.0
      %1086 = vmatpush2.msra.mxu0 0.0
      %1087 = vmatprep.subr.mxu0 0.0
      %1088 = vmatpush2.msra.mxu0 0.0
      %1089 = vmatprep.subr.mxu0 0.0
      %1090 = vmatpush2.msra.mxu0 0.0
      %1091 = vmatprep.subr.mxu0 0.0
      %1092 = vmatpush2.msra.mxu0 0.0
      %1093 = vmatprep.subr.mxu0 0.0
      %1094 = vmatpush2.msra.mxu0 0.0
      %1095 = vmatprep.subr.mxu0 0.0
      %1096 = vmatpush2.msra.mxu0 0.0
      %1097 = vmatprep.mubr.f32.mxu0 0.0
      %1098 = vmatmul.mubr.f32.gmra.mxu0 %v700
      %v1099 = vpop.f32.mrf.mxu0
      %v1100 = vadd.f32 0.0, %v1099
      %v1101 = vpop.f32.mrf.mxu0
      %1102 = vmatprep.mubr.f32.mxu0 0.0
      %1103 = vmatmul.mubr.f32.gmra.mxu0 %v703
      %v1104 = vpop.f32.mrf.mxu0
      %v1105 = vadd.f32 0.0, %v1104
      %v1106 = vpop.f32.mrf.mxu0
      %1107 = vdwg.mxu0
      %s1108 = scalar_lea.vmem %s7, 32
      %v1109 = vld [vmem:[%s1108] sm:$0xff]
      %v1110 = vld [vmem:[%s1108 + $0x8] sm:$0xff]
      %v1111 = vld [vmem:[%s1108 + $0x10] sm:$0xff]
      %v1112 = vld [vmem:[%s1108 + $0x18] sm:$0xff]
      %1113 = vmatprep.subr.mxu0 0.0
      %1114 = vmatpush1.msra.mxu0 0.0
      %1115 = vmatprep.subr.mxu0 0.0
      %1116 = vmatpush1.msra.mxu0 0.0
      %1117 = vmatprep.subr.mxu0 0.0
      %1118 = vmatpush1.msra.mxu0 0.0
      %1119 = vmatprep.subr.mxu0 0.0
      %1120 = vmatpush1.msra.mxu0 0.0
      %1121 = vmatprep.subr.mxu0 0.0
      %1122 = vmatpush1.msra.mxu0 0.0
      %1123 = vmatprep.subr.mxu0 0.0
      %1124 = vmatpush1.msra.mxu0 0.0
      %1125 = vmatprep.subr.mxu0 0.0
      %1126 = vmatpush1.msra.mxu0 0.0
      %1127 = vmatprep.subr.mxu0 0.0
      %1128 = vmatpush1.msra.mxu0 0.0
      %1129 = vmatprep.subr.mxu0 0.0
      %1130 = vmatpush1.msra.mxu0 0.0
      %1131 = vmatprep.subr.mxu0 0.0
      %1132 = vmatpush1.msra.mxu0 0.0
      %1133 = vmatprep.subr.mxu0 0.0
      %1134 = vmatpush1.msra.mxu0 0.0
      %1135 = vmatprep.subr.mxu0 0.0
      %1136 = vmatpush1.msra.mxu0 0.0
      %1137 = vmatprep.subr.mxu0 0.0
      %1138 = vmatpush1.msra.mxu0 %v1112
      %1139 = vmatprep.subr.mxu0 0.0
      %1140 = vmatpush1.msra.mxu0 %v1111
      %1141 = vmatprep.subr.mxu0 0.0
      %1142 = vmatpush1.msra.mxu0 %v1110
      %1143 = vmatprep.subr.mxu0 0.0
      %1144 = vmatpush1.msra.mxu0 %v1109
      %1145 = vmatprep.subr.mxu0 0.0
      %1146 = vmatpush2.msra.mxu0 0.0
      %1147 = vmatprep.subr.mxu0 0.0
      %1148 = vmatpush2.msra.mxu0 0.0
      %1149 = vmatprep.subr.mxu0 0.0
      %1150 = vmatpush2.msra.mxu0 0.0
      %1151 = vmatprep.subr.mxu0 0.0
      %1152 = vmatpush2.msra.mxu0 0.0
      %1153 = vmatprep.subr.mxu0 0.0
      %1154 = vmatpush2.msra.mxu0 0.0
      %1155 = vmatprep.subr.mxu0 0.0
      %1156 = vmatpush2.msra.mxu0 0.0
      %1157 = vmatprep.subr.mxu0 0.0
      %1158 = vmatpush2.msra.mxu0 0.0
      %1159 = vmatprep.subr.mxu0 0.0
      %1160 = vmatpush2.msra.mxu0 0.0
      %1161 = vmatprep.subr.mxu0 0.0
      %1162 = vmatpush2.msra.mxu0 0.0
      %1163 = vmatprep.subr.mxu0 0.0
      %1164 = vmatpush2.msra.mxu0 0.0
      %1165 = vmatprep.subr.mxu0 0.0
      %1166 = vmatpush2.msra.mxu0 0.0
      %1167 = vmatprep.subr.mxu0 0.0
      %1168 = vmatpush2.msra.mxu0 0.0
      %1169 = vmatprep.subr.mxu0 0.0
      %1170 = vmatpush2.msra.mxu0 0.0
      %1171 = vmatprep.subr.mxu0 0.0
      %1172 = vmatpush2.msra.mxu0 0.0
      %1173 = vmatprep.subr.mxu0 0.0
      %1174 = vmatpush2.msra.mxu0 0.0
      %1175 = vmatprep.subr.mxu0 0.0
      %1176 = vmatpush2.msra.mxu0 0.0
      %1177 = vmatprep.mubr.f32.mxu0 0.0
      %1178 = vmatmul.mubr.f32.gmra.mxu0 %v700
      %v1179 = vpop.f32.mrf.mxu0
      %v1180 = vadd.f32 0.0, %v1179
      %v1181 = vpop.f32.mrf.mxu0
      %1182 = vmatprep.mubr.f32.mxu0 0.0
      %1183 = vmatmul.mubr.f32.gmra.mxu0 %v703
      %v1184 = vpop.f32.mrf.mxu0
      %v1185 = vadd.f32 0.0, %v1184
      %v1186 = vpop.f32.mrf.mxu0
      %1187 = vdwg.mxu0
      %s1188 = scalar_lea.vmem %s8, 32
      %v1189 = vld [vmem:[%s1188] sm:$0xff]
      %v1190 = vld [vmem:[%s1188 + $0x8] sm:$0xff]
      %v1191 = vld [vmem:[%s1188 + $0x10] sm:$0xff]
      %v1192 = vld [vmem:[%s1188 + $0x18] sm:$0xff]
      %1193 = vmatprep.subr.mxu0 0.0
      %1194 = vmatpush1.msra.mxu0 0.0
      %1195 = vmatprep.subr.mxu0 0.0
      %1196 = vmatpush1.msra.mxu0 0.0
      %1197 = vmatprep.subr.mxu0 0.0
      %1198 = vmatpush1.msra.mxu0 0.0
      %1199 = vmatprep.subr.mxu0 0.0
      %1200 = vmatpush1.msra.mxu0 0.0
      %1201 = vmatprep.subr.mxu0 0.0
      %1202 = vmatpush1.msra.mxu0 0.0
      %1203 = vmatprep.subr.mxu0 0.0
      %1204 = vmatpush1.msra.mxu0 0.0
      %1205 = vmatprep.subr.mxu0 0.0
      %1206 = vmatpush1.msra.mxu0 0.0
      %1207 = vmatprep.subr.mxu0 0.0
      %1208 = vmatpush1.msra.mxu0 0.0
      %1209 = vmatprep.subr.mxu0 0.0
      %1210 = vmatpush1.msra.mxu0 0.0
      %1211 = vmatprep.subr.mxu0 0.0
      %1212 = vmatpush1.msra.mxu0 0.0
      %1213 = vmatprep.subr.mxu0 0.0
      %1214 = vmatpush1.msra.mxu0 0.0
      %1215 = vmatprep.subr.mxu0 0.0
      %1216 = vmatpush1.msra.mxu0 0.0
      %1217 = vmatprep.subr.mxu0 0.0
      %1218 = vmatpush1.msra.mxu0 %v1192
      %1219 = vmatprep.subr.mxu0 0.0
      %1220 = vmatpush1.msra.mxu0 %v1191
      %1221 = vmatprep.subr.mxu0 0.0
      %1222 = vmatpush1.msra.mxu0 %v1190
      %1223 = vmatprep.subr.mxu0 0.0
      %1224 = vmatpush1.msra.mxu0 %v1189
      %1225 = vmatprep.subr.mxu0 0.0
      %1226 = vmatpush2.msra.mxu0 0.0
      %1227 = vmatprep.subr.mxu0 0.0
      %1228 = vmatpush2.msra.mxu0 0.0
      %1229 = vmatprep.subr.mxu0 0.0
      %1230 = vmatpush2.msra.mxu0 0.0
      %1231 = vmatprep.subr.mxu0 0.0
      %1232 = vmatpush2.msra.mxu0 0.0
      %1233 = vmatprep.subr.mxu0 0.0
      %1234 = vmatpush2.msra.mxu0 0.0
      %1235 = vmatprep.subr.mxu0 0.0
      %1236 = vmatpush2.msra.mxu0 0.0
      %1237 = vmatprep.subr.mxu0 0.0
      %1238 = vmatpush2.msra.mxu0 0.0
      %1239 = vmatprep.subr.mxu0 0.0
      %1240 = vmatpush2.msra.mxu0 0.0
      %1241 = vmatprep.subr.mxu0 0.0
      %1242 = vmatpush2.msra.mxu0 0.0
      %1243 = vmatprep.subr.mxu0 0.0
      %1244 = vmatpush2.msra.mxu0 0.0
      %1245 = vmatprep.subr.mxu0 0.0
      %1246 = vmatpush2.msra.mxu0 0.0
      %1247 = vmatprep.subr.mxu0 0.0
      %1248 = vmatpush2.msra.mxu0 0.0
      %1249 = vmatprep.subr.mxu0 0.0
      %1250 = vmatpush2.msra.mxu0 0.0
      %1251 = vmatprep.subr.mxu0 0.0
      %1252 = vmatpush2.msra.mxu0 0.0
      %1253 = vmatprep.subr.mxu0 0.0
      %1254 = vmatpush2.msra.mxu0 0.0
      %1255 = vmatprep.subr.mxu0 0.0
      %1256 = vmatpush2.msra.mxu0 0.0
      %1257 = vmatprep.mubr.f32.mxu0 0.0
      %1258 = vmatmul.mubr.f32.gmra.mxu0 %v700
      %v1259 = vpop.f32.mrf.mxu0
      %v1260 = vadd.f32 0.0, %v1259
      %v1261 = vpop.f32.mrf.mxu0
      %1262 = vmatprep.mubr.f32.mxu0 0.0
      %1263 = vmatmul.mubr.f32.gmra.mxu0 %v703
      %v1264 = vpop.f32.mrf.mxu0
      %v1265 = vadd.f32 0.0, %v1264
      %v1266 = vpop.f32.mrf.mxu0
      %1267 = vdwg.mxu0
      %s1268 = scalar_lea.vmem %s2, 16
      %v1269 = vld [vmem:[%s1268] sm:$0xff]
      %v1270 = vld [vmem:[%s1268 + $0x8] sm:$0xff]
      %v1272 = vsel %vm940, %v1100, 0
      %v1275 = vsel %vm940, %v1105, 0
      %v1278 = vsel %vm940, %v1180, 0
      %v1281 = vsel %vm940, %v1185, 0
      %1283 = vmatprep.subr.mxu0 0.0
      %1284 = vmatpush1.xpose.msra.mxu0 0.0
      %1285 = vmatprep.subr.mxu0 0.0
      %1286 = vmatpush1.xpose.msra.mxu0 0.0
      %1287 = vmatprep.subr.mxu0 0.0
      %1288 = vmatpush1.xpose.msra.mxu0 0.0
      %1289 = vmatprep.subr.mxu0 0.0
      %1290 = vmatpush1.xpose.msra.mxu0 0.0
      %1291 = vmatprep.subr.mxu0 0.0
      %1292 = vmatpush1.xpose.msra.mxu0 0.0
      %1293 = vmatprep.subr.mxu0 0.0
      %1294 = vmatpush1.xpose.msra.mxu0 0.0
      %1295 = vmatprep.subr.mxu0 0.0
      %1296 = vmatpush1.xpose.msra.mxu0 0.0
      %1297 = vmatprep.subr.mxu0 0.0
      %1298 = vmatpush1.xpose.msra.mxu0 0.0
      %1299 = vmatprep.subr.mxu0 0.0
      %1300 = vmatpush1.xpose.msra.mxu0 0.0
      %1301 = vmatprep.subr.mxu0 0.0
      %1302 = vmatpush1.xpose.msra.mxu0 0.0
      %1303 = vmatprep.subr.mxu0 0.0
      %1304 = vmatpush1.xpose.msra.mxu0 0.0
      %1305 = vmatprep.subr.mxu0 0.0
      %1306 = vmatpush1.xpose.msra.mxu0 0.0
      %1307 = vmatprep.subr.mxu0 0.0
      %1308 = vmatpush1.xpose.msra.mxu0 0.0
      %1309 = vmatprep.subr.mxu0 0.0
      %1310 = vmatpush1.xpose.msra.mxu0 0.0
      %1311 = vmatprep.subr.mxu0 0.0
      %1312 = vmatpush1.xpose.msra.mxu0 %v1281
      %1313 = vmatprep.subr.mxu0 0.0
      %1314 = vmatpush1.xpose.msra.mxu0 %v1278
      %1315 = vmatprep.subr.mxu0 0.0
      %1316 = vmatpush2.xpose.msra.mxu0 0.0
      %1317 = vmatprep.subr.mxu0 0.0
      %1318 = vmatpush2.xpose.msra.mxu0 0.0
      %1319 = vmatprep.subr.mxu0 0.0
      %1320 = vmatpush2.xpose.msra.mxu0 0.0
      %1321 = vmatprep.subr.mxu0 0.0
      %1322 = vmatpush2.xpose.msra.mxu0 0.0
      %1323 = vmatprep.subr.mxu0 0.0
      %1324 = vmatpush2.xpose.msra.mxu0 0.0
      %1325 = vmatprep.subr.mxu0 0.0
      %1326 = vmatpush2.xpose.msra.mxu0 0.0
      %1327 = vmatprep.subr.mxu0 0.0
      %1328 = vmatpush2.xpose.msra.mxu0 0.0
      %1329 = vmatprep.subr.mxu0 0.0
      %1330 = vmatpush2.xpose.msra.mxu0 0.0
      %1331 = vmatprep.subr.mxu0 0.0
      %1332 = vmatpush2.xpose.msra.mxu0 0.0
      %1333 = vmatprep.subr.mxu0 0.0
      %1334 = vmatpush2.xpose.msra.mxu0 0.0
      %1335 = vmatprep.subr.mxu0 0.0
      %1336 = vmatpush2.xpose.msra.mxu0 0.0
      %1337 = vmatprep.subr.mxu0 0.0
      %1338 = vmatpush2.xpose.msra.mxu0 0.0
      %1339 = vmatprep.subr.mxu0 0.0
      %1340 = vmatpush2.xpose.msra.mxu0 0.0
      %1341 = vmatprep.subr.mxu0 0.0
      %1342 = vmatpush2.xpose.msra.mxu0 0.0
      %1343 = vmatprep.subr.mxu0 0.0
      %1344 = vmatpush2.xpose.msra.mxu0 0.0
      %1345 = vmatprep.subr.mxu0 0.0
      %1346 = vmatpush2.xpose.msra.mxu0 0.0
      %1347 = vmatprep.mubr.f32.mxu0 0.0
      %1348 = vmatmul.mubr.f32.gmra.mxu0 %v1272
      %v1349 = vpop.f32.mrf.mxu0
      %v1350 = vadd.f32 %v1269, %v1349
      %v1351 = vpop.f32.mrf.mxu0
      %1352 = vmatprep.mubr.f32.mxu0 0.0
      %1353 = vmatmul.mubr.f32.gmra.mxu0 %v1275
      %v1354 = vpop.f32.mrf.mxu0
      %v1355 = vadd.f32 %v1270, %v1354
      %v1356 = vpop.f32.mrf.mxu0
      %1357 = vdwg.mxu0
      %s1358 = scalar_lea.vmem %s6, 64
      %v1359 = vld [vmem:[%s1358] sm:$0xff]
      %v1360 = vld [vmem:[%s1358 + $0x8] sm:$0xff]
      %v1361 = vld [vmem:[%s1358 + $0x10] sm:$0xff]
      %v1362 = vld [vmem:[%s1358 + $0x18] sm:$0xff]
      %1363 = vmatprep.subr.mxu0 0.0
      %1364 = vmatpush1.msra.mxu0 0.0
      %1365 = vmatprep.subr.mxu0 0.0
      %1366 = vmatpush1.msra.mxu0 0.0
      %1367 = vmatprep.subr.mxu0 0.0
      %1368 = vmatpush1.msra.mxu0 0.0
      %1369 = vmatprep.subr.mxu0 0.0
      %1370 = vmatpush1.msra.mxu0 0.0
      %1371 = vmatprep.subr.mxu0 0.0
      %1372 = vmatpush1.msra.mxu0 0.0
      %1373 = vmatprep.subr.mxu0 0.0
      %1374 = vmatpush1.msra.mxu0 0.0
      %1375 = vmatprep.subr.mxu0 0.0
      %1376 = vmatpush1.msra.mxu0 0.0
      %1377 = vmatprep.subr.mxu0 0.0
      %1378 = vmatpush1.msra.mxu0 0.0
      %1379 = vmatprep.subr.mxu0 0.0
      %1380 = vmatpush1.msra.mxu0 0.0
      %1381 = vmatprep.subr.mxu0 0.0
      %1382 = vmatpush1.msra.mxu0 0.0
      %1383 = vmatprep.subr.mxu0 0.0
      %1384 = vmatpush1.msra.mxu0 0.0
      %1385 = vmatprep.subr.mxu0 0.0
      %1386 = vmatpush1.msra.mxu0 0.0
      %1387 = vmatprep.subr.mxu0 0.0
      %1388 = vmatpush1.msra.mxu0 %v1362
      %1389 = vmatprep.subr.mxu0 0.0
      %1390 = vmatpush1.msra.mxu0 %v1361
      %1391 = vmatprep.subr.mxu0 0.0
      %1392 = vmatpush1.msra.mxu0 %v1360
      %1393 = vmatprep.subr.mxu0 0.0
      %1394 = vmatpush1.msra.mxu0 %v1359
      %1395 = vmatprep.subr.mxu0 0.0
      %1396 = vmatpush2.msra.mxu0 0.0
      %1397 = vmatprep.subr.mxu0 0.0
      %1398 = vmatpush2.msra.mxu0 0.0
      %1399 = vmatprep.subr.mxu0 0.0
      %1400 = vmatpush2.msra.mxu0 0.0
      %1401 = vmatprep.subr.mxu0 0.0
      %1402 = vmatpush2.msra.mxu0 0.0
      %1403 = vmatprep.subr.mxu0 0.0
      %1404 = vmatpush2.msra.mxu0 0.0
      %1405 = vmatprep.subr.mxu0 0.0
      %1406 = vmatpush2.msra.mxu0 0.0
      %1407 = vmatprep.subr.mxu0 0.0
      %1408 = vmatpush2.msra.mxu0 0.0
      %1409 = vmatprep.subr.mxu0 0.0
      %1410 = vmatpush2.msra.mxu0 0.0
      %1411 = vmatprep.subr.mxu0 0.0
      %1412 = vmatpush2.msra.mxu0 0.0
      %1413 = vmatprep.subr.mxu0 0.0
      %1414 = vmatpush2.msra.mxu0 0.0
      %1415 = vmatprep.subr.mxu0 0.0
      %1416 = vmatpush2.msra.mxu0 0.0
      %1417 = vmatprep.subr.mxu0 0.0
      %1418 = vmatpush2.msra.mxu0 0.0
      %1419 = vmatprep.subr.mxu0 0.0
      %1420 = vmatpush2.msra.mxu0 0.0
      %1421 = vmatprep.subr.mxu0 0.0
      %1422 = vmatpush2.msra.mxu0 0.0
      %1423 = vmatprep.subr.mxu0 0.0
      %1424 = vmatpush2.msra.mxu0 0.0
      %1425 = vmatprep.subr.mxu0 0.0
      %1426 = vmatpush2.msra.mxu0 0.0
      %1427 = vmatprep.mubr.f32.mxu0 0.0
      %1428 = vmatmul.mubr.f32.gmra.mxu0 %v700
      %v1429 = vpop.f32.mrf.mxu0
      %v1430 = vadd.f32 0.0, %v1429
      %v1431 = vpop.f32.mrf.mxu0
      %1432 = vmatprep.mubr.f32.mxu0 0.0
      %1433 = vmatmul.mubr.f32.gmra.mxu0 %v703
      %v1434 = vpop.f32.mrf.mxu0
      %v1435 = vadd.f32 0.0, %v1434
      %v1436 = vpop.f32.mrf.mxu0
      %1437 = vdwg.mxu0
      %s1438 = scalar_lea.vmem %s7, 64
      %v1439 = vld [vmem:[%s1438] sm:$0xff]
      %v1440 = vld [vmem:[%s1438 + $0x8] sm:$0xff]
      %v1441 = vld [vmem:[%s1438 + $0x10] sm:$0xff]
      %v1442 = vld [vmem:[%s1438 + $0x18] sm:$0xff]
      %1443 = vmatprep.subr.mxu0 0.0
      %1444 = vmatpush1.msra.mxu0 0.0
      %1445 = vmatprep.subr.mxu0 0.0
      %1446 = vmatpush1.msra.mxu0 0.0
      %1447 = vmatprep.subr.mxu0 0.0
      %1448 = vmatpush1.msra.mxu0 0.0
      %1449 = vmatprep.subr.mxu0 0.0
      %1450 = vmatpush1.msra.mxu0 0.0
      %1451 = vmatprep.subr.mxu0 0.0
      %1452 = vmatpush1.msra.mxu0 0.0
      %1453 = vmatprep.subr.mxu0 0.0
      %1454 = vmatpush1.msra.mxu0 0.0
      %1455 = vmatprep.subr.mxu0 0.0
      %1456 = vmatpush1.msra.mxu0 0.0
      %1457 = vmatprep.subr.mxu0 0.0
      %1458 = vmatpush1.msra.mxu0 0.0
      %1459 = vmatprep.subr.mxu0 0.0
      %1460 = vmatpush1.msra.mxu0 0.0
      %1461 = vmatprep.subr.mxu0 0.0
      %1462 = vmatpush1.msra.mxu0 0.0
      %1463 = vmatprep.subr.mxu0 0.0
      %1464 = vmatpush1.msra.mxu0 0.0
      %1465 = vmatprep.subr.mxu0 0.0
      %1466 = vmatpush1.msra.mxu0 0.0
      %1467 = vmatprep.subr.mxu0 0.0
      %1468 = vmatpush1.msra.mxu0 %v1442
      %1469 = vmatprep.subr.mxu0 0.0
      %1470 = vmatpush1.msra.mxu0 %v1441
      %1471 = vmatprep.subr.mxu0 0.0
      %1472 = vmatpush1.msra.mxu0 %v1440
      %1473 = vmatprep.subr.mxu0 0.0
      %1474 = vmatpush1.msra.mxu0 %v1439
      %1475 = vmatprep.subr.mxu0 0.0
      %1476 = vmatpush2.msra.mxu0 0.0
      %1477 = vmatprep.subr.mxu0 0.0
      %1478 = vmatpush2.msra.mxu0 0.0
      %1479 = vmatprep.subr.mxu0 0.0
      %1480 = vmatpush2.msra.mxu0 0.0
      %1481 = vmatprep.subr.mxu0 0.0
      %1482 = vmatpush2.msra.mxu0 0.0
      %1483 = vmatprep.subr.mxu0 0.0
      %1484 = vmatpush2.msra.mxu0 0.0
      %1485 = vmatprep.subr.mxu0 0.0
      %1486 = vmatpush2.msra.mxu0 0.0
      %1487 = vmatprep.subr.mxu0 0.0
      %1488 = vmatpush2.msra.mxu0 0.0
      %1489 = vmatprep.subr.mxu0 0.0
      %1490 = vmatpush2.msra.mxu0 0.0
      %1491 = vmatprep.subr.mxu0 0.0
      %1492 = vmatpush2.msra.mxu0 0.0
      %1493 = vmatprep.subr.mxu0 0.0
      %1494 = vmatpush2.msra.mxu0 0.0
      %1495 = vmatprep.subr.mxu0 0.0
      %1496 = vmatpush2.msra.mxu0 0.0
      %1497 = vmatprep.subr.mxu0 0.0
      %1498 = vmatpush2.msra.mxu0 0.0
      %1499 = vmatprep.subr.mxu0 0.0
      %1500 = vmatpush2.msra.mxu0 0.0
      %1501 = vmatprep.subr.mxu0 0.0
      %1502 = vmatpush2.msra.mxu0 0.0
      %1503 = vmatprep.subr.mxu0 0.0
      %1504 = vmatpush2.msra.mxu0 0.0
      %1505 = vmatprep.subr.mxu0 0.0
      %1506 = vmatpush2.msra.mxu0 0.0
      %1507 = vmatprep.mubr.f32.mxu0 0.0
      %1508 = vmatmul.mubr.f32.gmra.mxu0 %v700
      %v1509 = vpop.f32.mrf.mxu0
      %v1510 = vadd.f32 0.0, %v1509
      %v1511 = vpop.f32.mrf.mxu0
      %1512 = vmatprep.mubr.f32.mxu0 0.0
      %1513 = vmatmul.mubr.f32.gmra.mxu0 %v703
      %v1514 = vpop.f32.mrf.mxu0
      %v1515 = vadd.f32 0.0, %v1514
      %v1516 = vpop.f32.mrf.mxu0
      %1517 = vdwg.mxu0
      %s1518 = scalar_lea.vmem %s8, 64
      %v1519 = vld [vmem:[%s1518] sm:$0xff]
      %v1520 = vld [vmem:[%s1518 + $0x8] sm:$0xff]
      %v1521 = vld [vmem:[%s1518 + $0x10] sm:$0xff]
      %v1522 = vld [vmem:[%s1518 + $0x18] sm:$0xff]
      %1523 = vmatprep.subr.mxu0 0.0
      %1524 = vmatpush1.msra.mxu0 0.0
      %1525 = vmatprep.subr.mxu0 0.0
      %1526 = vmatpush1.msra.mxu0 0.0
      %1527 = vmatprep.subr.mxu0 0.0
      %1528 = vmatpush1.msra.mxu0 0.0
      %1529 = vmatprep.subr.mxu0 0.0
      %1530 = vmatpush1.msra.mxu0 0.0
      %1531 = vmatprep.subr.mxu0 0.0
      %1532 = vmatpush1.msra.mxu0 0.0
      %1533 = vmatprep.subr.mxu0 0.0
      %1534 = vmatpush1.msra.mxu0 0.0
      %1535 = vmatprep.subr.mxu0 0.0
      %1536 = vmatpush1.msra.mxu0 0.0
      %1537 = vmatprep.subr.mxu0 0.0
      %1538 = vmatpush1.msra.mxu0 0.0
      %1539 = vmatprep.subr.mxu0 0.0
      %1540 = vmatpush1.msra.mxu0 0.0
      %1541 = vmatprep.subr.mxu0 0.0
      %1542 = vmatpush1.msra.mxu0 0.0
      %1543 = vmatprep.subr.mxu0 0.0
      %1544 = vmatpush1.msra.mxu0 0.0
      %1545 = vmatprep.subr.mxu0 0.0
      %1546 = vmatpush1.msra.mxu0 0.0
      %1547 = vmatprep.subr.mxu0 0.0
      %1548 = vmatpush1.msra.mxu0 %v1522
      %1549 = vmatprep.subr.mxu0 0.0
      %1550 = vmatpush1.msra.mxu0 %v1521
      %1551 = vmatprep.subr.mxu0 0.0
      %1552 = vmatpush1.msra.mxu0 %v1520
      %1553 = vmatprep.subr.mxu0 0.0
      %1554 = vmatpush1.msra.mxu0 %v1519
      %1555 = vmatprep.subr.mxu0 0.0
      %1556 = vmatpush2.msra.mxu0 0.0
      %1557 = vmatprep.subr.mxu0 0.0
      %1558 = vmatpush2.msra.mxu0 0.0
      %1559 = vmatprep.subr.mxu0 0.0
      %1560 = vmatpush2.msra.mxu0 0.0
      %1561 = vmatprep.subr.mxu0 0.0
      %1562 = vmatpush2.msra.mxu0 0.0
      %1563 = vmatprep.subr.mxu0 0.0
      %1564 = vmatpush2.msra.mxu0 0.0
      %1565 = vmatprep.subr.mxu0 0.0
      %1566 = vmatpush2.msra.mxu0 0.0
      %1567 = vmatprep.subr.mxu0 0.0
      %1568 = vmatpush2.msra.mxu0 0.0
      %1569 = vmatprep.subr.mxu0 0.0
      %1570 = vmatpush2.msra.mxu0 0.0
      %1571 = vmatprep.subr.mxu0 0.0
      %1572 = vmatpush2.msra.mxu0 0.0
      %1573 = vmatprep.subr.mxu0 0.0
      %1574 = vmatpush2.msra.mxu0 0.0
      %1575 = vmatprep.subr.mxu0 0.0
      %1576 = vmatpush2.msra.mxu0 0.0
      %1577 = vmatprep.subr.mxu0 0.0
      %1578 = vmatpush2.msra.mxu0 0.0
      %1579 = vmatprep.subr.mxu0 0.0
      %1580 = vmatpush2.msra.mxu0 0.0
      %1581 = vmatprep.subr.mxu0 0.0
      %1582 = vmatpush2.msra.mxu0 0.0
      %1583 = vmatprep.subr.mxu0 0.0
      %1584 = vmatpush2.msra.mxu0 0.0
      %1585 = vmatprep.subr.mxu0 0.0
      %1586 = vmatpush2.msra.mxu0 0.0
      %1587 = vmatprep.mubr.f32.mxu0 0.0
      %1588 = vmatmul.mubr.f32.gmra.mxu0 %v700
      %v1589 = vpop.f32.mrf.mxu0
      %v1590 = vadd.f32 0.0, %v1589
      %v1591 = vpop.f32.mrf.mxu0
      %1592 = vmatprep.mubr.f32.mxu0 0.0
      %1593 = vmatmul.mubr.f32.gmra.mxu0 %v703
      %v1594 = vpop.f32.mrf.mxu0
      %v1595 = vadd.f32 0.0, %v1594
      %v1596 = vpop.f32.mrf.mxu0
      %1597 = vdwg.mxu0
      %s1598 = scalar_lea.vmem %s2, 32
      %v1599 = vld [vmem:[%s1598] sm:$0xff]
      %v1600 = vld [vmem:[%s1598 + $0x8] sm:$0xff]
      %v1602 = vsel %vm940, %v1430, 0
      %v1605 = vsel %vm940, %v1435, 0
      %v1608 = vsel %vm940, %v1510, 0
      %v1611 = vsel %vm940, %v1515, 0
      %1613 = vmatprep.subr.mxu0 0.0
      %1614 = vmatpush1.xpose.msra.mxu0 0.0
      %1615 = vmatprep.subr.mxu0 0.0
      %1616 = vmatpush1.xpose.msra.mxu0 0.0
      %1617 = vmatprep.subr.mxu0 0.0
      %1618 = vmatpush1.xpose.msra.mxu0 0.0
      %1619 = vmatprep.subr.mxu0 0.0
      %1620 = vmatpush1.xpose.msra.mxu0 0.0
      %1621 = vmatprep.subr.mxu0 0.0
      %1622 = vmatpush1.xpose.msra.mxu0 0.0
      %1623 = vmatprep.subr.mxu0 0.0
      %1624 = vmatpush1.xpose.msra.mxu0 0.0
      %1625 = vmatprep.subr.mxu0 0.0
      %1626 = vmatpush1.xpose.msra.mxu0 0.0
      %1627 = vmatprep.subr.mxu0 0.0
      %1628 = vmatpush1.xpose.msra.mxu0 0.0
      %1629 = vmatprep.subr.mxu0 0.0
      %1630 = vmatpush1.xpose.msra.mxu0 0.0
      %1631 = vmatprep.subr.mxu0 0.0
      %1632 = vmatpush1.xpose.msra.mxu0 0.0
      %1633 = vmatprep.subr.mxu0 0.0
      %1634 = vmatpush1.xpose.msra.mxu0 0.0
      %1635 = vmatprep.subr.mxu0 0.0
      %1636 = vmatpush1.xpose.msra.mxu0 0.0
      %1637 = vmatprep.subr.mxu0 0.0
      %1638 = vmatpush1.xpose.msra.mxu0 0.0
      %1639 = vmatprep.subr.mxu0 0.0
      %1640 = vmatpush1.xpose.msra.mxu0 0.0
      %1641 = vmatprep.subr.mxu0 0.0
      %1642 = vmatpush1.xpose.msra.mxu0 %v1611
      %1643 = vmatprep.subr.mxu0 0.0
      %1644 = vmatpush1.xpose.msra.mxu0 %v1608
      %1645 = vmatprep.subr.mxu0 0.0
      %1646 = vmatpush2.xpose.msra.mxu0 0.0
      %1647 = vmatprep.subr.mxu0 0.0
      %1648 = vmatpush2.xpose.msra.mxu0 0.0
      %1649 = vmatprep.subr.mxu0 0.0
      %1650 = vmatpush2.xpose.msra.mxu0 0.0
      %1651 = vmatprep.subr.mxu0 0.0
      %1652 = vmatpush2.xpose.msra.mxu0 0.0
      %1653 = vmatprep.subr.mxu0 0.0
      %1654 = vmatpush2.xpose.msra.mxu0 0.0
      %1655 = vmatprep.subr.mxu0 0.0
      %1656 = vmatpush2.xpose.msra.mxu0 0.0
      %1657 = vmatprep.subr.mxu0 0.0
      %1658 = vmatpush2.xpose.msra.mxu0 0.0
      %1659 = vmatprep.subr.mxu0 0.0
      %1660 = vmatpush2.xpose.msra.mxu0 0.0
      %1661 = vmatprep.subr.mxu0 0.0
      %1662 = vmatpush2.xpose.msra.mxu0 0.0
      %1663 = vmatprep.subr.mxu0 0.0
      %1664 = vmatpush2.xpose.msra.mxu0 0.0
      %1665 = vmatprep.subr.mxu0 0.0
      %1666 = vmatpush2.xpose.msra.mxu0 0.0
      %1667 = vmatprep.subr.mxu0 0.0
      %1668 = vmatpush2.xpose.msra.mxu0 0.0
      %1669 = vmatprep.subr.mxu0 0.0
      %1670 = vmatpush2.xpose.msra.mxu0 0.0
      %1671 = vmatprep.subr.mxu0 0.0
      %1672 = vmatpush2.xpose.msra.mxu0 0.0
      %1673 = vmatprep.subr.mxu0 0.0
      %1674 = vmatpush2.xpose.msra.mxu0 0.0
      %1675 = vmatprep.subr.mxu0 0.0
      %1676 = vmatpush2.xpose.msra.mxu0 0.0
      %1677 = vmatprep.mubr.f32.mxu0 0.0
      %1678 = vmatmul.mubr.f32.gmra.mxu0 %v1602
      %v1679 = vpop.f32.mrf.mxu0
      %v1680 = vadd.f32 %v1599, %v1679
      %v1681 = vpop.f32.mrf.mxu0
      %1682 = vmatprep.mubr.f32.mxu0 0.0
      %1683 = vmatmul.mubr.f32.gmra.mxu0 %v1605
      %v1684 = vpop.f32.mrf.mxu0
      %v1685 = vadd.f32 %v1600, %v1684
      %v1686 = vpop.f32.mrf.mxu0
      %1687 = vdwg.mxu0
      %s1688 = scalar_lea.vmem %s6, 96
      %v1689 = vld [vmem:[%s1688] sm:$0xff]
      %v1690 = vld [vmem:[%s1688 + $0x8] sm:$0xff]
      %v1691 = vld [vmem:[%s1688 + $0x10] sm:$0xff]
      %v1692 = vld [vmem:[%s1688 + $0x18] sm:$0xff]
      %1693 = vmatprep.subr.mxu0 0.0
      %1694 = vmatpush1.msra.mxu0 0.0
      %1695 = vmatprep.subr.mxu0 0.0
      %1696 = vmatpush1.msra.mxu0 0.0
      %1697 = vmatprep.subr.mxu0 0.0
      %1698 = vmatpush1.msra.mxu0 0.0
      %1699 = vmatprep.subr.mxu0 0.0
      %1700 = vmatpush1.msra.mxu0 0.0
      %1701 = vmatprep.subr.mxu0 0.0
      %1702 = vmatpush1.msra.mxu0 0.0
      %1703 = vmatprep.subr.mxu0 0.0
      %1704 = vmatpush1.msra.mxu0 0.0
      %1705 = vmatprep.subr.mxu0 0.0
      %1706 = vmatpush1.msra.mxu0 0.0
      %1707 = vmatprep.subr.mxu0 0.0
      %1708 = vmatpush1.msra.mxu0 0.0
      %1709 = vmatprep.subr.mxu0 0.0
      %1710 = vmatpush1.msra.mxu0 0.0
      %1711 = vmatprep.subr.mxu0 0.0
      %1712 = vmatpush1.msra.mxu0 0.0
      %1713 = vmatprep.subr.mxu0 0.0
      %1714 = vmatpush1.msra.mxu0 0.0
      %1715 = vmatprep.subr.mxu0 0.0
      %1716 = vmatpush1.msra.mxu0 0.0
      %1717 = vmatprep.subr.mxu0 0.0
      %1718 = vmatpush1.msra.mxu0 %v1692
      %1719 = vmatprep.subr.mxu0 0.0
      %1720 = vmatpush1.msra.mxu0 %v1691
      %1721 = vmatprep.subr.mxu0 0.0
      %1722 = vmatpush1.msra.mxu0 %v1690
      %1723 = vmatprep.subr.mxu0 0.0
      %1724 = vmatpush1.msra.mxu0 %v1689
      %1725 = vmatprep.subr.mxu0 0.0
      %1726 = vmatpush2.msra.mxu0 0.0
      %1727 = vmatprep.subr.mxu0 0.0
      %1728 = vmatpush2.msra.mxu0 0.0
      %1729 = vmatprep.subr.mxu0 0.0
      %1730 = vmatpush2.msra.mxu0 0.0
      %1731 = vmatprep.subr.mxu0 0.0
      %1732 = vmatpush2.msra.mxu0 0.0
      %1733 = vmatprep.subr.mxu0 0.0
      %1734 = vmatpush2.msra.mxu0 0.0
      %1735 = vmatprep.subr.mxu0 0.0
      %1736 = vmatpush2.msra.mxu0 0.0
      %1737 = vmatprep.subr.mxu0 0.0
      %1738 = vmatpush2.msra.mxu0 0.0
      %1739 = vmatprep.subr.mxu0 0.0
      %1740 = vmatpush2.msra.mxu0 0.0
      %1741 = vmatprep.subr.mxu0 0.0
      %1742 = vmatpush2.msra.mxu0 0.0
      %1743 = vmatprep.subr.mxu0 0.0
      %1744 = vmatpush2.msra.mxu0 0.0
      %1745 = vmatprep.subr.mxu0 0.0
      %1746 = vmatpush2.msra.mxu0 0.0
      %1747 = vmatprep.subr.mxu0 0.0
      %1748 = vmatpush2.msra.mxu0 0.0
      %1749 = vmatprep.subr.mxu0 0.0
      %1750 = vmatpush2.msra.mxu0 0.0
      %1751 = vmatprep.subr.mxu0 0.0
      %1752 = vmatpush2.msra.mxu0 0.0
      %1753 = vmatprep.subr.mxu0 0.0
      %1754 = vmatpush2.msra.mxu0 0.0
      %1755 = vmatprep.subr.mxu0 0.0
      %1756 = vmatpush2.msra.mxu0 0.0
      %1757 = vmatprep.mubr.f32.mxu0 0.0
      %1758 = vmatmul.mubr.f32.gmra.mxu0 %v700
      %v1759 = vpop.f32.mrf.mxu0
      %v1760 = vadd.f32 0.0, %v1759
      %v1761 = vpop.f32.mrf.mxu0
      %1762 = vmatprep.mubr.f32.mxu0 0.0
      %1763 = vmatmul.mubr.f32.gmra.mxu0 %v703
      %v1764 = vpop.f32.mrf.mxu0
      %v1765 = vadd.f32 0.0, %v1764
      %v1766 = vpop.f32.mrf.mxu0
      %1767 = vdwg.mxu0
      %s1768 = scalar_lea.vmem %s7, 96
      %v1769 = vld [vmem:[%s1768] sm:$0xff]
      %v1770 = vld [vmem:[%s1768 + $0x8] sm:$0xff]
      %v1771 = vld [vmem:[%s1768 + $0x10] sm:$0xff]
      %v1772 = vld [vmem:[%s1768 + $0x18] sm:$0xff]
      %1773 = vmatprep.subr.mxu0 0.0
      %1774 = vmatpush1.msra.mxu0 0.0
      %1775 = vmatprep.subr.mxu0 0.0
      %1776 = vmatpush1.msra.mxu0 0.0
      %1777 = vmatprep.subr.mxu0 0.0
      %1778 = vmatpush1.msra.mxu0 0.0
      %1779 = vmatprep.subr.mxu0 0.0
      %1780 = vmatpush1.msra.mxu0 0.0
      %1781 = vmatprep.subr.mxu0 0.0
      %1782 = vmatpush1.msra.mxu0 0.0
      %1783 = vmatprep.subr.mxu0 0.0
      %1784 = vmatpush1.msra.mxu0 0.0
      %1785 = vmatprep.subr.mxu0 0.0
      %1786 = vmatpush1.msra.mxu0 0.0
      %1787 = vmatprep.subr.mxu0 0.0
      %1788 = vmatpush1.msra.mxu0 0.0
      %1789 = vmatprep.subr.mxu0 0.0
      %1790 = vmatpush1.msra.mxu0 0.0
      %1791 = vmatprep.subr.mxu0 0.0
      %1792 = vmatpush1.msra.mxu0 0.0
      %1793 = vmatprep.subr.mxu0 0.0
      %1794 = vmatpush1.msra.mxu0 0.0
      %1795 = vmatprep.subr.mxu0 0.0
      %1796 = vmatpush1.msra.mxu0 0.0
      %1797 = vmatprep.subr.mxu0 0.0
      %1798 = vmatpush1.msra.mxu0 %v1772
      %1799 = vmatprep.subr.mxu0 0.0
      %1800 = vmatpush1.msra.mxu0 %v1771
      %1801 = vmatprep.subr.mxu0 0.0
      %1802 = vmatpush1.msra.mxu0 %v1770
      %1803 = vmatprep.subr.mxu0 0.0
      %1804 = vmatpush1.msra.mxu0 %v1769
      %1805 = vmatprep.subr.mxu0 0.0
      %1806 = vmatpush2.msra.mxu0 0.0
      %1807 = vmatprep.subr.mxu0 0.0
      %1808 = vmatpush2.msra.mxu0 0.0
      %1809 = vmatprep.subr.mxu0 0.0
      %1810 = vmatpush2.msra.mxu0 0.0
      %1811 = vmatprep.subr.mxu0 0.0
      %1812 = vmatpush2.msra.mxu0 0.0
      %1813 = vmatprep.subr.mxu0 0.0
      %1814 = vmatpush2.msra.mxu0 0.0
      %1815 = vmatprep.subr.mxu0 0.0
      %1816 = vmatpush2.msra.mxu0 0.0
      %1817 = vmatprep.subr.mxu0 0.0
      %1818 = vmatpush2.msra.mxu0 0.0
      %1819 = vmatprep.subr.mxu0 0.0
      %1820 = vmatpush2.msra.mxu0 0.0
      %1821 = vmatprep.subr.mxu0 0.0
      %1822 = vmatpush2.msra.mxu0 0.0
      %1823 = vmatprep.subr.mxu0 0.0
      %1824 = vmatpush2.msra.mxu0 0.0
      %1825 = vmatprep.subr.mxu0 0.0
      %1826 = vmatpush2.msra.mxu0 0.0
      %1827 = vmatprep.subr.mxu0 0.0
      %1828 = vmatpush2.msra.mxu0 0.0
      %1829 = vmatprep.subr.mxu0 0.0
      %1830 = vmatpush2.msra.mxu0 0.0
      %1831 = vmatprep.subr.mxu0 0.0
      %1832 = vmatpush2.msra.mxu0 0.0
      %1833 = vmatprep.subr.mxu0 0.0
      %1834 = vmatpush2.msra.mxu0 0.0
      %1835 = vmatprep.subr.mxu0 0.0
      %1836 = vmatpush2.msra.mxu0 0.0
      %1837 = vmatprep.mubr.f32.mxu0 0.0
      %1838 = vmatmul.mubr.f32.gmra.mxu0 %v700
      %v1839 = vpop.f32.mrf.mxu0
      %v1840 = vadd.f32 0.0, %v1839
      %v1841 = vpop.f32.mrf.mxu0
      %1842 = vmatprep.mubr.f32.mxu0 0.0
      %1843 = vmatmul.mubr.f32.gmra.mxu0 %v703
      %v1844 = vpop.f32.mrf.mxu0
      %v1845 = vadd.f32 0.0, %v1844
      %v1846 = vpop.f32.mrf.mxu0
      %1847 = vdwg.mxu0
      %s1848 = scalar_lea.vmem %s8, 96
      %v1849 = vld [vmem:[%s1848] sm:$0xff]
      %v1850 = vld [vmem:[%s1848 + $0x8] sm:$0xff]
      %v1851 = vld [vmem:[%s1848 + $0x10] sm:$0xff]
      %v1852 = vld [vmem:[%s1848 + $0x18] sm:$0xff]
      %1853 = vmatprep.subr.mxu0 0.0
      %1854 = vmatpush1.msra.mxu0 0.0
      %1855 = vmatprep.subr.mxu0 0.0
      %1856 = vmatpush1.msra.mxu0 0.0
      %1857 = vmatprep.subr.mxu0 0.0
      %1858 = vmatpush1.msra.mxu0 0.0
      %1859 = vmatprep.subr.mxu0 0.0
      %1860 = vmatpush1.msra.mxu0 0.0
      %1861 = vmatprep.subr.mxu0 0.0
      %1862 = vmatpush1.msra.mxu0 0.0
      %1863 = vmatprep.subr.mxu0 0.0
      %1864 = vmatpush1.msra.mxu0 0.0
      %1865 = vmatprep.subr.mxu0 0.0
      %1866 = vmatpush1.msra.mxu0 0.0
      %1867 = vmatprep.subr.mxu0 0.0
      %1868 = vmatpush1.msra.mxu0 0.0
      %1869 = vmatprep.subr.mxu0 0.0
      %1870 = vmatpush1.msra.mxu0 0.0
      %1871 = vmatprep.subr.mxu0 0.0
      %1872 = vmatpush1.msra.mxu0 0.0
      %1873 = vmatprep.subr.mxu0 0.0
      %1874 = vmatpush1.msra.mxu0 0.0
      %1875 = vmatprep.subr.mxu0 0.0
      %1876 = vmatpush1.msra.mxu0 0.0
      %1877 = vmatprep.subr.mxu0 0.0
      %1878 = vmatpush1.msra.mxu0 %v1852
      %1879 = vmatprep.subr.mxu0 0.0
      %1880 = vmatpush1.msra.mxu0 %v1851
      %1881 = vmatprep.subr.mxu0 0.0
      %1882 = vmatpush1.msra.mxu0 %v1850
      %1883 = vmatprep.subr.mxu0 0.0
      %1884 = vmatpush1.msra.mxu0 %v1849
      %1885 = vmatprep.subr.mxu0 0.0
      %1886 = vmatpush2.msra.mxu0 0.0
      %1887 = vmatprep.subr.mxu0 0.0
      %1888 = vmatpush2.msra.mxu0 0.0
      %1889 = vmatprep.subr.mxu0 0.0
      %1890 = vmatpush2.msra.mxu0 0.0
      %1891 = vmatprep.subr.mxu0 0.0
      %1892 = vmatpush2.msra.mxu0 0.0
      %1893 = vmatprep.subr.mxu0 0.0
      %1894 = vmatpush2.msra.mxu0 0.0
      %1895 = vmatprep.subr.mxu0 0.0
      %1896 = vmatpush2.msra.mxu0 0.0
      %1897 = vmatprep.subr.mxu0 0.0
      %1898 = vmatpush2.msra.mxu0 0.0
      %1899 = vmatprep.subr.mxu0 0.0
      %1900 = vmatpush2.msra.mxu0 0.0
      %1901 = vmatprep.subr.mxu0 0.0
      %1902 = vmatpush2.msra.mxu0 0.0
      %1903 = vmatprep.subr.mxu0 0.0
      %1904 = vmatpush2.msra.mxu0 0.0
      %1905 = vmatprep.subr.mxu0 0.0
      %1906 = vmatpush2.msra.mxu0 0.0
      %1907 = vmatprep.subr.mxu0 0.0
      %1908 = vmatpush2.msra.mxu0 0.0
      %1909 = vmatprep.subr.mxu0 0.0
      %1910 = vmatpush2.msra.mxu0 0.0
      %1911 = vmatprep.subr.mxu0 0.0
      %1912 = vmatpush2.msra.mxu0 0.0
      %1913 = vmatprep.subr.mxu0 0.0
      %1914 = vmatpush2.msra.mxu0 0.0
      %1915 = vmatprep.subr.mxu0 0.0
      %1916 = vmatpush2.msra.mxu0 0.0
      %1917 = vmatprep.mubr.f32.mxu0 0.0
      %1918 = vmatmul.mubr.f32.gmra.mxu0 %v700
      %v1919 = vpop.f32.mrf.mxu0
      %v1920 = vadd.f32 0.0, %v1919
      %v1921 = vpop.f32.mrf.mxu0
      %1922 = vmatprep.mubr.f32.mxu0 0.0
      %1923 = vmatmul.mubr.f32.gmra.mxu0 %v703
      %v1924 = vpop.f32.mrf.mxu0
      %v1925 = vadd.f32 0.0, %v1924
      %v1926 = vpop.f32.mrf.mxu0
      %1927 = vdwg.mxu0
      %s1928 = scalar_lea.vmem %s2, 48
      %v1929 = vld [vmem:[%s1928] sm:$0xff]
      %v1930 = vld [vmem:[%s1928 + $0x8] sm:$0xff]
      %v1932 = vsel %vm940, %v1760, 0
      %v1935 = vsel %vm940, %v1765, 0
      %v1938 = vsel %vm940, %v1840, 0
      %v1941 = vsel %vm940, %v1845, 0
      %1943 = vmatprep.subr.mxu0 0.0
      %1944 = vmatpush1.xpose.msra.mxu0 0.0
      %1945 = vmatprep.subr.mxu0 0.0
      %1946 = vmatpush1.xpose.msra.mxu0 0.0
      %1947 = vmatprep.subr.mxu0 0.0
      %1948 = vmatpush1.xpose.msra.mxu0 0.0
      %1949 = vmatprep.subr.mxu0 0.0
      %1950 = vmatpush1.xpose.msra.mxu0 0.0
      %1951 = vmatprep.subr.mxu0 0.0
      %1952 = vmatpush1.xpose.msra.mxu0 0.0
      %1953 = vmatprep.subr.mxu0 0.0
      %1954 = vmatpush1.xpose.msra.mxu0 0.0
      %1955 = vmatprep.subr.mxu0 0.0
      %1956 = vmatpush1.xpose.msra.mxu0 0.0
      %1957 = vmatprep.subr.mxu0 0.0
      %1958 = vmatpush1.xpose.msra.mxu0 0.0
      %1959 = vmatprep.subr.mxu0 0.0
      %1960 = vmatpush1.xpose.msra.mxu0 0.0
      %1961 = vmatprep.subr.mxu0 0.0
      %1962 = vmatpush1.xpose.msra.mxu0 0.0
      %1963 = vmatprep.subr.mxu0 0.0
      %1964 = vmatpush1.xpose.msra.mxu0 0.0
      %1965 = vmatprep.subr.mxu0 0.0
      %1966 = vmatpush1.xpose.msra.mxu0 0.0
      %1967 = vmatprep.subr.mxu0 0.0
      %1968 = vmatpush1.xpose.msra.mxu0 0.0
      %1969 = vmatprep.subr.mxu0 0.0
      %1970 = vmatpush1.xpose.msra.mxu0 0.0
      %1971 = vmatprep.subr.mxu0 0.0
      %1972 = vmatpush1.xpose.msra.mxu0 %v1941
      %1973 = vmatprep.subr.mxu0 0.0
      %1974 = vmatpush1.xpose.msra.mxu0 %v1938
      %1975 = vmatprep.subr.mxu0 0.0
      %1976 = vmatpush2.xpose.msra.mxu0 0.0
      %1977 = vmatprep.subr.mxu0 0.0
      %1978 = vmatpush2.xpose.msra.mxu0 0.0
      %1979 = vmatprep.subr.mxu0 0.0
      %1980 = vmatpush2.xpose.msra.mxu0 0.0
      %1981 = vmatprep.subr.mxu0 0.0
      %1982 = vmatpush2.xpose.msra.mxu0 0.0
      %1983 = vmatprep.subr.mxu0 0.0
      %1984 = vmatpush2.xpose.msra.mxu0 0.0
      %1985 = vmatprep.subr.mxu0 0.0
      %1986 = vmatpush2.xpose.msra.mxu0 0.0
      %1987 = vmatprep.subr.mxu0 0.0
      %1988 = vmatpush2.xpose.msra.mxu0 0.0
      %1989 = vmatprep.subr.mxu0 0.0
      %1990 = vmatpush2.xpose.msra.mxu0 0.0
      %1991 = vmatprep.subr.mxu0 0.0
      %1992 = vmatpush2.xpose.msra.mxu0 0.0
      %1993 = vmatprep.subr.mxu0 0.0
      %1994 = vmatpush2.xpose.msra.mxu0 0.0
      %1995 = vmatprep.subr.mxu0 0.0
      %1996 = vmatpush2.xpose.msra.mxu0 0.0
      %1997 = vmatprep.subr.mxu0 0.0
      %1998 = vmatpush2.xpose.msra.mxu0 0.0
      %1999 = vmatprep.subr.mxu0 0.0
      %2000 = vmatpush2.xpose.msra.mxu0 0.0
      %2001 = vmatprep.subr.mxu0 0.0
      %2002 = vmatpush2.xpose.msra.mxu0 0.0
      %2003 = vmatprep.subr.mxu0 0.0
      %2004 = vmatpush2.xpose.msra.mxu0 0.0
      %2005 = vmatprep.subr.mxu0 0.0
      %2006 = vmatpush2.xpose.msra.mxu0 0.0
      %2007 = vmatprep.mubr.f32.mxu0 0.0
      %2008 = vmatmul.mubr.f32.gmra.mxu0 %v1932
      %v2009 = vpop.f32.mrf.mxu0
      %v2010 = vadd.f32 %v1929, %v2009
      %v2011 = vpop.f32.mrf.mxu0
      %2012 = vmatprep.mubr.f32.mxu0 0.0
      %2013 = vmatmul.mubr.f32.gmra.mxu0 %v1935
      %v2014 = vpop.f32.mrf.mxu0
      %v2015 = vadd.f32 %v1930, %v2014
      %v2016 = vpop.f32.mrf.mxu0
      %2017 = vdwg.mxu0
      %s2019 = vtos %v691
      %v2020 = vstv %s2019
      %v2022 = vmul.f32 %v2020, %v1020
      %v2023 = vmul.f32 %v2020, %v1025
      %v2024 = vadd.f32 %v2022, 0.0
      %v2025 = vadd.f32 %v2023, 0.0
      %2026 = vrot.lane.b32.xlu0 %v691, 127
      %v2027 = vpop.permute.xlu0 %2026
      %s2028 = vtos %v2027
      %v2029 = vstv %s2028
      %v2031 = vmul.f32 %v2029, %v1350
      %v2032 = vmul.f32 %v2029, %v1355
      %v2033 = vadd.f32 %v2024, %v2031
      %v2034 = vadd.f32 %v2025, %v2032
      %2035 = vrot.lane.b32.xlu0 %v691, 126
      %v2036 = vpop.permute.xlu0 %2035
      %s2037 = vtos %v2036
      %v2038 = vstv %s2037
      %v2040 = vmul.f32 %v2038, %v1680
      %v2041 = vmul.f32 %v2038, %v1685
      %v2042 = vadd.f32 %v2033, %v2040
      %v2043 = vadd.f32 %v2034, %v2041
      %2044 = vrot.lane.b32.xlu0 %v691, 125
      %v2045 = vpop.permute.xlu0 %2044
      %s2046 = vtos %v2045
      %v2047 = vstv %s2046
      %v2049 = vmul.f32 %v2047, %v2010
      %v2050 = vmul.f32 %v2047, %v2015
      %v2051 = vadd.f32 %v2042, %v2049
      %v2052 = vadd.f32 %v2043, %v2050
      %vm2053 = vcmp.eq.f32.partialorder %v693, 0.0
      %vm2054 = vcmp.eq.f32.partialorder %v694, 0.0
      %v2055 = vsel %vm2053, -10000.0, %v2051
      %v2056 = vsel %vm2054, -10000.0, %v2052
      %v2057 = vmul.f32 %v2055, 0.17677669
      %v2058 = vmul.f32 %v2056, 0.17677669
      %vm2059 = vcmask 130048
      %v2060 = vsel %vm2059, %v2057, -inf
      %2061 = vmax.xlane.f32.xlu0 %v2060
      %v2062 = vpop.xlane.xlu0 %2061
      %v2063 = vsel %vm2059, %v2058, -inf
      %2064 = vmax.xlane.f32.xlu0 %v2063
      %v2065 = vpop.xlane.xlu0 %2064
      %v2066 = vsub.f32 %v2057, %v2062
      %v2067 = vsub.f32 %v2058, %v2065
      %v2068 = vmul.f32 %v2066, 1.442695
      %v2069 = vpow.pop %v2068
      %v2070 = vmul.f32 %v2067, 1.442695
      %v2071 = vpow.pop %v2070
      %v2072 = vsel %vm2059, %v2069, 0.0
      %2073 = vadd.xlane.f32.xlu0 %v2072
      %v2074 = vpop.xlane.xlu0 %2073
      %v2075 = vsel %vm2059, %v2071, 0.0
      %2076 = vadd.xlane.f32.xlu0 %v2075
      %v2077 = vpop.xlane.xlu0 %2076
      %v2078 = vrcp.pop %v2074
      %v2079 = vmul.f32 %v2069, %v2078
      %v2080 = vrcp.pop %v2077
      %v2081 = vmul.f32 %v2071, %v2080
      %v2082 = vrot.slane %v691, 1
      %s2083 = vtos %v2082
      %v2084 = vstv %s2083
      %v2086 = vmul.f32 %v2084, %v1020
      %v2087 = vmul.f32 %v2084, %v1025
      %v2088 = vadd.f32 %v2086, 0.0
      %v2089 = vadd.f32 %v2087, 0.0
      %2090 = vrot.lane.b32.xlu0 %v2082, 127
      %v2091 = vpop.permute.xlu0 %2090
      %s2092 = vtos %v2091
      %v2093 = vstv %s2092
      %v2095 = vmul.f32 %v2093, %v1350
      %v2096 = vmul.f32 %v2093, %v1355
      %v2097 = vadd.f32 %v2088, %v2095
      %v2098 = vadd.f32 %v2089, %v2096
      %2099 = vrot.lane.b32.xlu0 %v2082, 126
      %v2100 = vpop.permute.xlu0 %2099
      %s2101 = vtos %v2100
      %v2102 = vstv %s2101
      %v2104 = vmul.f32 %v2102, %v1680
      %v2105 = vmul.f32 %v2102, %v1685
      %v2106 = vadd.f32 %v2097, %v2104
      %v2107 = vadd.f32 %v2098, %v2105
      %2108 = vrot.lane.b32.xlu0 %v2082, 125
      %v2109 = vpop.permute.xlu0 %2108
      %s2110 = vtos %v2109
      %v2111 = vstv %s2110
      %v2113 = vmul.f32 %v2111, %v2010
      %v2114 = vmul.f32 %v2111, %v2015
      %v2115 = vadd.f32 %v2106, %v2113
      %v2116 = vadd.f32 %v2107, %v2114
      %v2117 = vsel %vm2053, -10000.0, %v2115
      %v2118 = vsel %vm2054, -10000.0, %v2116
      %v2119 = vmul.f32 %v2117, 0.17677669
      %v2120 = vmul.f32 %v2118, 0.17677669
      %v2121 = vsel %vm2059, %v2119, -inf
      %2122 = vmax.xlane.f32.xlu0 %v2121
      %v2123 = vpop.xlane.xlu0 %2122
      %v2124 = vsel %vm2059, %v2120, -inf
      %2125 = vmax.xlane.f32.xlu0 %v2124
      %v2126 = vpop.xlane.xlu0 %2125
      %v2127 = vsub.f32 %v2119, %v2123
      %v2128 = vsub.f32 %v2120, %v2126
      %v2129 = vmul.f32 %v2127, 1.442695
      %v2130 = vpow.pop %v2129
      %v2131 = vmul.f32 %v2128, 1.442695
      %v2132 = vpow.pop %v2131
      %v2133 = vsel %vm2059, %v2130, 0.0
      %2134 = vadd.xlane.f32.xlu0 %v2133
      %v2135 = vpop.xlane.xlu0 %2134
      %v2136 = vsel %vm2059, %v2132, 0.0
      %2137 = vadd.xlane.f32.xlu0 %v2136
      %v2138 = vpop.xlane.xlu0 %2137
      %v2139 = vrcp.pop %v2135
      %v2140 = vmul.f32 %v2130, %v2139
      %v2141 = vrcp.pop %v2138
      %v2142 = vmul.f32 %v2132, %v2141
      %v2143 = vrot.slane %v691, 2
      %s2144 = vtos %v2143
      %v2145 = vstv %s2144
      %v2147 = vmul.f32 %v2145, %v1020
      %v2148 = vmul.f32 %v2145, %v1025
      %v2149 = vadd.f32 %v2147, 0.0
      %v2150 = vadd.f32 %v2148, 0.0
      %2151 = vrot.lane.b32.xlu0 %v2143, 127
      %v2152 = vpop.permute.xlu0 %2151
      %s2153 = vtos %v2152
      %v2154 = vstv %s2153
      %v2156 = vmul.f32 %v2154, %v1350
      %v2157 = vmul.f32 %v2154, %v1355
      %v2158 = vadd.f32 %v2149, %v2156
      %v2159 = vadd.f32 %v2150, %v2157
      %2160 = vrot.lane.b32.xlu0 %v2143, 126
      %v2161 = vpop.permute.xlu0 %2160
      %s2162 = vtos %v2161
      %v2163 = vstv %s2162
      %v2165 = vmul.f32 %v2163, %v1680
      %v2166 = vmul.f32 %v2163, %v1685
      %v2167 = vadd.f32 %v2158, %v2165
      %v2168 = vadd.f32 %v2159, %v2166
      %2169 = vrot.lane.b32.xlu0 %v2143, 125
      %v2170 = vpop.permute.xlu0 %2169
      %s2171 = vtos %v2170
      %v2172 = vstv %s2171
      %v2174 = vmul.f32 %v2172, %v2010
      %v2175 = vmul.f32 %v2172, %v2015
      %v2176 = vadd.f32 %v2167, %v2174
      %v2177 = vadd.f32 %v2168, %v2175
      %v2178 = vsel %vm2053, -10000.0, %v2176
      %v2179 = vsel %vm2054, -10000.0, %v2177
      %v2180 = vmul.f32 %v2178, 0.17677669
      %v2181 = vmul.f32 %v2179, 0.17677669
      %v2182 = vsel %vm2059, %v2180, -inf
      %2183 = vmax.xlane.f32.xlu0 %v2182
      %v2184 = vpop.xlane.xlu0 %2183
      %v2185 = vsel %vm2059, %v2181, -inf
      %2186 = vmax.xlane.f32.xlu0 %v2185
      %v2187 = vpop.xlane.xlu0 %2186
      %v2188 = vsub.f32 %v2180, %v2184
      %v2189 = vsub.f32 %v2181, %v2187
      %v2190 = vmul.f32 %v2188, 1.442695
      %v2191 = vpow.pop %v2190
      %v2192 = vmul.f32 %v2189, 1.442695
      %v2193 = vpow.pop %v2192
      %v2194 = vsel %vm2059, %v2191, 0.0
      %2195 = vadd.xlane.f32.xlu0 %v2194
      %v2196 = vpop.xlane.xlu0 %2195
      %v2197 = vsel %vm2059, %v2193, 0.0
      %2198 = vadd.xlane.f32.xlu0 %v2197
      %v2199 = vpop.xlane.xlu0 %2198
      %v2200 = vrcp.pop %v2196
      %v2201 = vmul.f32 %v2191, %v2200
      %v2202 = vrcp.pop %v2199
      %v2203 = vmul.f32 %v2193, %v2202
      %v2204 = vrot.slane %v691, 3
      %s2205 = vtos %v2204
      %v2206 = vstv %s2205
      %v2208 = vmul.f32 %v2206, %v1020
      %v2209 = vmul.f32 %v2206, %v1025
      %v2210 = vadd.f32 %v2208, 0.0
      %v2211 = vadd.f32 %v2209, 0.0
      %2212 = vrot.lane.b32.xlu0 %v2204, 127
      %v2213 = vpop.permute.xlu0 %2212
      %s2214 = vtos %v2213
      %v2215 = vstv %s2214
      %v2217 = vmul.f32 %v2215, %v1350
      %v2218 = vmul.f32 %v2215, %v1355
      %v2219 = vadd.f32 %v2210, %v2217
      %v2220 = vadd.f32 %v2211, %v2218
      %2221 = vrot.lane.b32.xlu0 %v2204, 126
      %v2222 = vpop.permute.xlu0 %2221
      %s2223 = vtos %v2222
      %v2224 = vstv %s2223
      %v2226 = vmul.f32 %v2224, %v1680
      %v2227 = vmul.f32 %v2224, %v1685
      %v2228 = vadd.f32 %v2219, %v2226
      %v2229 = vadd.f32 %v2220, %v2227
      %2230 = vrot.lane.b32.xlu0 %v2204, 125
      %v2231 = vpop.permute.xlu0 %2230
      %s2232 = vtos %v2231
      %v2233 = vstv %s2232
      %v2235 = vmul.f32 %v2233, %v2010
      %v2236 = vmul.f32 %v2233, %v2015
      %v2237 = vadd.f32 %v2228, %v2235
      %v2238 = vadd.f32 %v2229, %v2236
      %v2239 = vsel %vm2053, -10000.0, %v2237
      %v2240 = vsel %vm2054, -10000.0, %v2238
      %v2241 = vmul.f32 %v2239, 0.17677669
      %v2242 = vmul.f32 %v2240, 0.17677669
      %v2243 = vsel %vm2059, %v2241, -inf
      %2244 = vmax.xlane.f32.xlu0 %v2243
      %v2245 = vpop.xlane.xlu0 %2244
      %v2246 = vsel %vm2059, %v2242, -inf
      %2247 = vmax.xlane.f32.xlu0 %v2246
      %v2248 = vpop.xlane.xlu0 %2247
      %v2249 = vsub.f32 %v2241, %v2245
      %v2250 = vsub.f32 %v2242, %v2248
      %v2251 = vmul.f32 %v2249, 1.442695
      %v2252 = vpow.pop %v2251
      %v2253 = vmul.f32 %v2250, 1.442695
      %v2254 = vpow.pop %v2253
      %v2255 = vsel %vm2059, %v2252, 0.0
      %2256 = vadd.xlane.f32.xlu0 %v2255
      %v2257 = vpop.xlane.xlu0 %2256
      %v2258 = vsel %vm2059, %v2254, 0.0
      %2259 = vadd.xlane.f32.xlu0 %v2258
      %v2260 = vpop.xlane.xlu0 %2259
      %v2261 = vrcp.pop %v2257
      %v2262 = vmul.f32 %v2252, %v2261
      %v2263 = vrcp.pop %v2260
      %v2264 = vmul.f32 %v2254, %v2263
      %s2266 = vtos %v692
      %v2267 = vstv %s2266
      %v2269 = vmul.f32 %v2267, %v2079
      %v2270 = vmul.f32 %v2267, %v2081
      %v2271 = vadd.f32 %v2269, 0.0
      %v2272 = vadd.f32 %v2270, 0.0
      %2273 = vrot.lane.b32.xlu0 %v692, 127
      %v2274 = vpop.permute.xlu0 %2273
      %s2275 = vtos %v2274
      %v2276 = vstv %s2275
      %v2278 = vmul.f32 %v2276, %v2140
      %v2279 = vmul.f32 %v2276, %v2142
      %v2280 = vadd.f32 %v2271, %v2278
      %v2281 = vadd.f32 %v2272, %v2279
      %2282 = vrot.lane.b32.xlu0 %v692, 126
      %v2283 = vpop.permute.xlu0 %2282
      %s2284 = vtos %v2283
      %v2285 = vstv %s2284
      %v2287 = vmul.f32 %v2285, %v2201
      %v2288 = vmul.f32 %v2285, %v2203
      %v2289 = vadd.f32 %v2280, %v2287
      %v2290 = vadd.f32 %v2281, %v2288
      %2291 = vrot.lane.b32.xlu0 %v692, 125
      %v2292 = vpop.permute.xlu0 %2291
      %s2293 = vtos %v2292
      %v2294 = vstv %s2293
      %v2296 = vmul.f32 %v2294, %v2262
      %v2297 = vmul.f32 %v2294, %v2264
      %v2298 = vadd.f32 %v2289, %v2296
      %v2299 = vadd.f32 %v2290, %v2297
      %v2301 = vsel %vm2059, %v2298, 0
      %v2304 = vsel %vm2059, %v2299, 0
      %2306 = vmatprep.subr.mxu0 0.0
      %2307 = vmatpush1.msra.mxu0 0.0
      %2308 = vmatprep.subr.mxu0 0.0
      %2309 = vmatpush1.msra.mxu0 0.0
      %2310 = vmatprep.subr.mxu0 0.0
      %2311 = vmatpush1.msra.mxu0 0.0
      %2312 = vmatprep.subr.mxu0 0.0
      %2313 = vmatpush1.msra.mxu0 0.0
      %2314 = vmatprep.subr.mxu0 0.0
      %2315 = vmatpush1.msra.mxu0 0.0
      %2316 = vmatprep.subr.mxu0 0.0
      %2317 = vmatpush1.msra.mxu0 0.0
      %2318 = vmatprep.subr.mxu0 0.0
      %2319 = vmatpush1.msra.mxu0 0.0
      %2320 = vmatprep.subr.mxu0 0.0
      %2321 = vmatpush1.msra.mxu0 0.0
      %2322 = vmatprep.subr.mxu0 0.0
      %2323 = vmatpush1.msra.mxu0 0.0
      %2324 = vmatprep.subr.mxu0 0.0
      %2325 = vmatpush1.msra.mxu0 0.0
      %2326 = vmatprep.subr.mxu0 0.0
      %2327 = vmatpush1.msra.mxu0 0.0
      %2328 = vmatprep.subr.mxu0 0.0
      %2329 = vmatpush1.msra.mxu0 0.0
      %2330 = vmatprep.subr.mxu0 0.0
      %2331 = vmatpush1.msra.mxu0 0.0
      %2332 = vmatprep.subr.mxu0 0.0
      %2333 = vmatpush1.msra.mxu0 0.0
      %2334 = vmatprep.subr.mxu0 0.0
      %2335 = vmatpush1.msra.mxu0 %v935
      %2336 = vmatprep.subr.mxu0 0.0
      %2337 = vmatpush1.msra.mxu0 %v930
      %2338 = vmatprep.subr.mxu0 0.0
      %2339 = vmatpush2.msra.mxu0 0.0
      %2340 = vmatprep.subr.mxu0 0.0
      %2341 = vmatpush2.msra.mxu0 0.0
      %2342 = vmatprep.subr.mxu0 0.0
      %2343 = vmatpush2.msra.mxu0 0.0
      %2344 = vmatprep.subr.mxu0 0.0
      %2345 = vmatpush2.msra.mxu0 0.0
      %2346 = vmatprep.subr.mxu0 0.0
      %2347 = vmatpush2.msra.mxu0 0.0
      %2348 = vmatprep.subr.mxu0 0.0
      %2349 = vmatpush2.msra.mxu0 0.0
      %2350 = vmatprep.subr.mxu0 0.0
      %2351 = vmatpush2.msra.mxu0 0.0
      %2352 = vmatprep.subr.mxu0 0.0
      %2353 = vmatpush2.msra.mxu0 0.0
      %2354 = vmatprep.subr.mxu0 0.0
      %2355 = vmatpush2.msra.mxu0 0.0
      %2356 = vmatprep.subr.mxu0 0.0
      %2357 = vmatpush2.msra.mxu0 0.0
      %2358 = vmatprep.subr.mxu0 0.0
      %2359 = vmatpush2.msra.mxu0 0.0
      %2360 = vmatprep.subr.mxu0 0.0
      %2361 = vmatpush2.msra.mxu0 0.0
      %2362 = vmatprep.subr.mxu0 0.0
      %2363 = vmatpush2.msra.mxu0 0.0
      %2364 = vmatprep.subr.mxu0 0.0
      %2365 = vmatpush2.msra.mxu0 0.0
      %2366 = vmatprep.subr.mxu0 0.0
      %2367 = vmatpush2.msra.mxu0 0.0
      %2368 = vmatprep.subr.mxu0 0.0
      %2369 = vmatpush2.msra.mxu0 0.0
      %2370 = vmatprep.mubr.f32.mxu0 0.0
      %2371 = vmatmul.mubr.f32.gmra.mxu0 %v2301
      %v2372 = vpop.f32.mrf.mxu0
      %v2373 = vadd.f32 0.0, %v2372
      %v2374 = vpop.f32.mrf.mxu0
      %2375 = vmatprep.mubr.f32.mxu0 0.0
      %2376 = vmatmul.mubr.f32.gmra.mxu0 %v2304
      %v2377 = vpop.f32.mrf.mxu0
      %v2378 = vadd.f32 0.0, %v2377
      %v2379 = vpop.f32.mrf.mxu0
      %2380 = vdwg.mxu0
      %v2381 = vld [vmem:[%s9] sm:$0xff]
      %v2382 = vrot.slane %v692, 1
      %s2383 = vtos %v2382
      %v2384 = vstv %s2383
      %v2386 = vmul.f32 %v2384, %v2079
      %v2387 = vmul.f32 %v2384, %v2081
      %v2388 = vadd.f32 %v2386, 0.0
      %v2389 = vadd.f32 %v2387, 0.0
      %2390 = vrot.lane.b32.xlu0 %v2382, 127
      %v2391 = vpop.permute.xlu0 %2390
      %s2392 = vtos %v2391
      %v2393 = vstv %s2392
      %v2395 = vmul.f32 %v2393, %v2140
      %v2396 = vmul.f32 %v2393, %v2142
      %v2397 = vadd.f32 %v2388, %v2395
      %v2398 = vadd.f32 %v2389, %v2396
      %2399 = vrot.lane.b32.xlu0 %v2382, 126
      %v2400 = vpop.permute.xlu0 %2399
      %s2401 = vtos %v2400
      %v2402 = vstv %s2401
      %v2404 = vmul.f32 %v2402, %v2201
      %v2405 = vmul.f32 %v2402, %v2203
      %v2406 = vadd.f32 %v2397, %v2404
      %v2407 = vadd.f32 %v2398, %v2405
      %2408 = vrot.lane.b32.xlu0 %v2382, 125
      %v2409 = vpop.permute.xlu0 %2408
      %s2410 = vtos %v2409
      %v2411 = vstv %s2410
      %v2413 = vmul.f32 %v2411, %v2262
      %v2414 = vmul.f32 %v2411, %v2264
      %v2415 = vadd.f32 %v2406, %v2413
      %v2416 = vadd.f32 %v2407, %v2414
      %v2418 = vsel %vm2059, %v2415, 0
      %v2421 = vsel %vm2059, %v2416, 0
      %2423 = vmatprep.subr.mxu0 0.0
      %2424 = vmatpush1.msra.mxu0 0.0
      %2425 = vmatprep.subr.mxu0 0.0
      %2426 = vmatpush1.msra.mxu0 0.0
      %2427 = vmatprep.subr.mxu0 0.0
      %2428 = vmatpush1.msra.mxu0 0.0
      %2429 = vmatprep.subr.mxu0 0.0
      %2430 = vmatpush1.msra.mxu0 0.0
      %2431 = vmatprep.subr.mxu0 0.0
      %2432 = vmatpush1.msra.mxu0 0.0
      %2433 = vmatprep.subr.mxu0 0.0
      %2434 = vmatpush1.msra.mxu0 0.0
      %2435 = vmatprep.subr.mxu0 0.0
      %2436 = vmatpush1.msra.mxu0 0.0
      %2437 = vmatprep.subr.mxu0 0.0
      %2438 = vmatpush1.msra.mxu0 0.0
      %2439 = vmatprep.subr.mxu0 0.0
      %2440 = vmatpush1.msra.mxu0 0.0
      %2441 = vmatprep.subr.mxu0 0.0
      %2442 = vmatpush1.msra.mxu0 0.0
      %2443 = vmatprep.subr.mxu0 0.0
      %2444 = vmatpush1.msra.mxu0 0.0
      %2445 = vmatprep.subr.mxu0 0.0
      %2446 = vmatpush1.msra.mxu0 0.0
      %2447 = vmatprep.subr.mxu0 0.0
      %2448 = vmatpush1.msra.mxu0 0.0
      %2449 = vmatprep.subr.mxu0 0.0
      %2450 = vmatpush1.msra.mxu0 0.0
      %2451 = vmatprep.subr.mxu0 0.0
      %2452 = vmatpush1.msra.mxu0 %v1265
      %2453 = vmatprep.subr.mxu0 0.0
      %2454 = vmatpush1.msra.mxu0 %v1260
      %2455 = vmatprep.subr.mxu0 0.0
      %2456 = vmatpush2.msra.mxu0 0.0
      %2457 = vmatprep.subr.mxu0 0.0
      %2458 = vmatpush2.msra.mxu0 0.0
      %2459 = vmatprep.subr.mxu0 0.0
      %2460 = vmatpush2.msra.mxu0 0.0
      %2461 = vmatprep.subr.mxu0 0.0
      %2462 = vmatpush2.msra.mxu0 0.0
      %2463 = vmatprep.subr.mxu0 0.0
      %2464 = vmatpush2.msra.mxu0 0.0
      %2465 = vmatprep.subr.mxu0 0.0
      %2466 = vmatpush2.msra.mxu0 0.0
      %2467 = vmatprep.subr.mxu0 0.0
      %2468 = vmatpush2.msra.mxu0 0.0
      %2469 = vmatprep.subr.mxu0 0.0
      %2470 = vmatpush2.msra.mxu0 0.0
      %2471 = vmatprep.subr.mxu0 0.0
      %2472 = vmatpush2.msra.mxu0 0.0
      %2473 = vmatprep.subr.mxu0 0.0
      %2474 = vmatpush2.msra.mxu0 0.0
      %2475 = vmatprep.subr.mxu0 0.0
      %2476 = vmatpush2.msra.mxu0 0.0
      %2477 = vmatprep.subr.mxu0 0.0
      %2478 = vmatpush2.msra.mxu0 0.0
      %2479 = vmatprep.subr.mxu0 0.0
      %2480 = vmatpush2.msra.mxu0 0.0
      %2481 = vmatprep.subr.mxu0 0.0
      %2482 = vmatpush2.msra.mxu0 0.0
      %2483 = vmatprep.subr.mxu0 0.0
      %2484 = vmatpush2.msra.mxu0 0.0
      %2485 = vmatprep.subr.mxu0 0.0
      %2486 = vmatpush2.msra.mxu0 0.0
      %2487 = vmatprep.mubr.f32.mxu0 0.0
      %2488 = vmatmul.mubr.f32.gmra.mxu0 %v2418
      %v2489 = vpop.f32.mrf.mxu0
      %v2490 = vadd.f32 0.0, %v2489
      %v2491 = vpop.f32.mrf.mxu0
      %2492 = vmatprep.mubr.f32.mxu0 0.0
      %2493 = vmatmul.mubr.f32.gmra.mxu0 %v2421
      %v2494 = vpop.f32.mrf.mxu0
      %v2495 = vadd.f32 0.0, %v2494
      %v2496 = vpop.f32.mrf.mxu0
      %2497 = vdwg.mxu0
      %s2498 = scalar_lea.vmem %s9, 8
      %v2499 = vld [vmem:[%s2498] sm:$0xff]
      %v2501 = vsel %vm940, %v2490, 0
      %v2504 = vsel %vm940, %v2495, 0
      %2506 = vmatprep.subr.mxu0 0.0
      %2507 = vmatpush1.msra.mxu0 0.0
      %2508 = vmatprep.subr.mxu0 0.0
      %2509 = vmatpush1.msra.mxu0 0.0
      %2510 = vmatprep.subr.mxu0 0.0
      %2511 = vmatpush1.msra.mxu0 0.0
      %2512 = vmatprep.subr.mxu0 0.0
      %2513 = vmatpush1.msra.mxu0 0.0
      %2514 = vmatprep.subr.mxu0 0.0
      %2515 = vmatpush1.msra.mxu0 0.0
      %2516 = vmatprep.subr.mxu0 0.0
      %2517 = vmatpush1.msra.mxu0 0.0
      %2518 = vmatprep.subr.mxu0 0.0
      %2519 = vmatpush1.msra.mxu0 0.0
      %2520 = vmatprep.subr.mxu0 0.0
      %2521 = vmatpush1.msra.mxu0 0.0
      %2522 = vmatprep.subr.mxu0 0.0
      %2523 = vmatpush1.msra.mxu0 0.0
      %2524 = vmatprep.subr.mxu0 0.0
      %2525 = vmatpush1.msra.mxu0 0.0
      %2526 = vmatprep.subr.mxu0 0.0
      %2527 = vmatpush1.msra.mxu0 0.0
      %2528 = vmatprep.subr.mxu0 0.0
      %2529 = vmatpush1.msra.mxu0 0.0
      %2530 = vmatprep.subr.mxu0 0.0
      %2531 = vmatpush1.msra.mxu0 0.0
      %2532 = vmatprep.subr.mxu0 0.0
      %2533 = vmatpush1.msra.mxu0 0.0
      %2534 = vmatprep.subr.mxu0 0.0
      %2535 = vmatpush1.msra.mxu0 0.0
      %2536 = vmatprep.subr.mxu0 0.0
      %2537 = vmatpush1.msra.mxu0 %v2499
      %2538 = vmatprep.subr.mxu0 0.0
      %2539 = vmatpush2.msra.mxu0 0.0
      %2540 = vmatprep.subr.mxu0 0.0
      %2541 = vmatpush2.msra.mxu0 0.0
      %2542 = vmatprep.subr.mxu0 0.0
      %2543 = vmatpush2.msra.mxu0 0.0
      %2544 = vmatprep.subr.mxu0 0.0
      %2545 = vmatpush2.msra.mxu0 0.0
      %2546 = vmatprep.subr.mxu0 0.0
      %2547 = vmatpush2.msra.mxu0 0.0
      %2548 = vmatprep.subr.mxu0 0.0
      %2549 = vmatpush2.msra.mxu0 0.0
      %2550 = vmatprep.subr.mxu0 0.0
      %2551 = vmatpush2.msra.mxu0 0.0
      %2552 = vmatprep.subr.mxu0 0.0
      %2553 = vmatpush2.msra.mxu0 0.0
      %2554 = vmatprep.subr.mxu0 0.0
      %2555 = vmatpush2.msra.mxu0 0.0
      %2556 = vmatprep.subr.mxu0 0.0
      %2557 = vmatpush2.msra.mxu0 0.0
      %2558 = vmatprep.subr.mxu0 0.0
      %2559 = vmatpush2.msra.mxu0 0.0
      %2560 = vmatprep.subr.mxu0 0.0
      %2561 = vmatpush2.msra.mxu0 0.0
      %2562 = vmatprep.subr.mxu0 0.0
      %2563 = vmatpush2.msra.mxu0 0.0
      %2564 = vmatprep.subr.mxu0 0.0
      %2565 = vmatpush2.msra.mxu0 0.0
      %2566 = vmatprep.subr.mxu0 0.0
      %2567 = vmatpush2.msra.mxu0 0.0
      %2568 = vmatprep.subr.mxu0 0.0
      %2569 = vmatpush2.msra.mxu0 0.0
      %2570 = vmatprep.mubr.f32.mxu0 0.0
      %2571 = vmatmul.mubr.f32.gmra.mxu0 %v2501
      %v2572 = vpop.f32.mrf.mxu0
      %v2573 = vadd.f32 0.0, %v2572
      %v2574 = vpop.f32.mrf.mxu0
      %2575 = vmatprep.mubr.f32.mxu0 0.0
      %2576 = vmatmul.mubr.f32.gmra.mxu0 %v2504
      %v2577 = vpop.f32.mrf.mxu0
      %v2578 = vadd.f32 0.0, %v2577
      %v2579 = vpop.f32.mrf.mxu0
      %2580 = vdwg.mxu0
      %v2582 = vsel %vm940, %v2373, 0
      %v2585 = vsel %vm940, %v2378, 0
      %2587 = vmatprep.subr.mxu0 0.0
      %2588 = vmatpush1.msra.mxu0 0.0
      %2589 = vmatprep.subr.mxu0 0.0
      %2590 = vmatpush1.msra.mxu0 0.0
      %2591 = vmatprep.subr.mxu0 0.0
      %2592 = vmatpush1.msra.mxu0 0.0
      %2593 = vmatprep.subr.mxu0 0.0
      %2594 = vmatpush1.msra.mxu0 0.0
      %2595 = vmatprep.subr.mxu0 0.0
      %2596 = vmatpush1.msra.mxu0 0.0
      %2597 = vmatprep.subr.mxu0 0.0
      %2598 = vmatpush1.msra.mxu0 0.0
      %2599 = vmatprep.subr.mxu0 0.0
      %2600 = vmatpush1.msra.mxu0 0.0
      %2601 = vmatprep.subr.mxu0 0.0
      %2602 = vmatpush1.msra.mxu0 0.0
      %2603 = vmatprep.subr.mxu0 0.0
      %2604 = vmatpush1.msra.mxu0 0.0
      %2605 = vmatprep.subr.mxu0 0.0
      %2606 = vmatpush1.msra.mxu0 0.0
      %2607 = vmatprep.subr.mxu0 0.0
      %2608 = vmatpush1.msra.mxu0 0.0
      %2609 = vmatprep.subr.mxu0 0.0
      %2610 = vmatpush1.msra.mxu0 0.0
      %2611 = vmatprep.subr.mxu0 0.0
      %2612 = vmatpush1.msra.mxu0 0.0
      %2613 = vmatprep.subr.mxu0 0.0
      %2614 = vmatpush1.msra.mxu0 0.0
      %2615 = vmatprep.subr.mxu0 0.0
      %2616 = vmatpush1.msra.mxu0 0.0
      %2617 = vmatprep.subr.mxu0 0.0
      %2618 = vmatpush1.msra.mxu0 %v2381
      %2619 = vmatprep.subr.mxu0 0.0
      %2620 = vmatpush2.msra.mxu0 0.0
      %2621 = vmatprep.subr.mxu0 0.0
      %2622 = vmatpush2.msra.mxu0 0.0
      %2623 = vmatprep.subr.mxu0 0.0
      %2624 = vmatpush2.msra.mxu0 0.0
      %2625 = vmatprep.subr.mxu0 0.0
      %2626 = vmatpush2.msra.mxu0 0.0
      %2627 = vmatprep.subr.mxu0 0.0
      %2628 = vmatpush2.msra.mxu0 0.0
      %2629 = vmatprep.subr.mxu0 0.0
      %2630 = vmatpush2.msra.mxu0 0.0
      %2631 = vmatprep.subr.mxu0 0.0
      %2632 = vmatpush2.msra.mxu0 0.0
      %2633 = vmatprep.subr.mxu0 0.0
      %2634 = vmatpush2.msra.mxu0 0.0
      %2635 = vmatprep.subr.mxu0 0.0
      %2636 = vmatpush2.msra.mxu0 0.0
      %2637 = vmatprep.subr.mxu0 0.0
      %2638 = vmatpush2.msra.mxu0 0.0
      %2639 = vmatprep.subr.mxu0 0.0
      %2640 = vmatpush2.msra.mxu0 0.0
      %2641 = vmatprep.subr.mxu0 0.0
      %2642 = vmatpush2.msra.mxu0 0.0
      %2643 = vmatprep.subr.mxu0 0.0
      %2644 = vmatpush2.msra.mxu0 0.0
      %2645 = vmatprep.subr.mxu0 0.0
      %2646 = vmatpush2.msra.mxu0 0.0
      %2647 = vmatprep.subr.mxu0 0.0
      %2648 = vmatpush2.msra.mxu0 0.0
      %2649 = vmatprep.subr.mxu0 0.0
      %2650 = vmatpush2.msra.mxu0 0.0
      %2651 = vmatprep.mubr.f32.mxu0 0.0
      %2652 = vmatmul.mubr.f32.gmra.mxu0 %v2582
      %v2653 = vpop.f32.mrf.mxu0
      %v2654 = vadd.f32 %v2573, %v2653
      %v2655 = vpop.f32.mrf.mxu0
      %2656 = vmatprep.mubr.f32.mxu0 0.0
      %2657 = vmatmul.mubr.f32.gmra.mxu0 %v2585
      %v2658 = vpop.f32.mrf.mxu0
      %v2659 = vadd.f32 %v2578, %v2658
      %v2660 = vpop.f32.mrf.mxu0
      %2661 = vdwg.mxu0
      %v2662 = vrot.slane %v692, 2
      %s2663 = vtos %v2662
      %v2664 = vstv %s2663
      %v2666 = vmul.f32 %v2664, %v2079
      %v2667 = vmul.f32 %v2664, %v2081
      %v2668 = vadd.f32 %v2666, 0.0
      %v2669 = vadd.f32 %v2667, 0.0
      %2670 = vrot.lane.b32.xlu0 %v2662, 127
      %v2671 = vpop.permute.xlu0 %2670
      %s2672 = vtos %v2671
      %v2673 = vstv %s2672
      %v2675 = vmul.f32 %v2673, %v2140
      %v2676 = vmul.f32 %v2673, %v2142
      %v2677 = vadd.f32 %v2668, %v2675
      %v2678 = vadd.f32 %v2669, %v2676
      %2679 = vrot.lane.b32.xlu0 %v2662, 126
      %v2680 = vpop.permute.xlu0 %2679
      %s2681 = vtos %v2680
      %v2682 = vstv %s2681
      %v2684 = vmul.f32 %v2682, %v2201
      %v2685 = vmul.f32 %v2682, %v2203
      %v2686 = vadd.f32 %v2677, %v2684
      %v2687 = vadd.f32 %v2678, %v2685
      %2688 = vrot.lane.b32.xlu0 %v2662, 125
      %v2689 = vpop.permute.xlu0 %2688
      %s2690 = vtos %v2689
      %v2691 = vstv %s2690
      %v2693 = vmul.f32 %v2691, %v2262
      %v2694 = vmul.f32 %v2691, %v2264
      %v2695 = vadd.f32 %v2686, %v2693
      %v2696 = vadd.f32 %v2687, %v2694
      %v2698 = vsel %vm2059, %v2695, 0
      %v2701 = vsel %vm2059, %v2696, 0
      %2703 = vmatprep.subr.mxu0 0.0
      %2704 = vmatpush1.msra.mxu0 0.0
      %2705 = vmatprep.subr.mxu0 0.0
      %2706 = vmatpush1.msra.mxu0 0.0
      %2707 = vmatprep.subr.mxu0 0.0
      %2708 = vmatpush1.msra.mxu0 0.0
      %2709 = vmatprep.subr.mxu0 0.0
      %2710 = vmatpush1.msra.mxu0 0.0
      %2711 = vmatprep.subr.mxu0 0.0
      %2712 = vmatpush1.msra.mxu0 0.0
      %2713 = vmatprep.subr.mxu0 0.0
      %2714 = vmatpush1.msra.mxu0 0.0
      %2715 = vmatprep.subr.mxu0 0.0
      %2716 = vmatpush1.msra.mxu0 0.0
      %2717 = vmatprep.subr.mxu0 0.0
      %2718 = vmatpush1.msra.mxu0 0.0
      %2719 = vmatprep.subr.mxu0 0.0
      %2720 = vmatpush1.msra.mxu0 0.0
      %2721 = vmatprep.subr.mxu0 0.0
      %2722 = vmatpush1.msra.mxu0 0.0
      %2723 = vmatprep.subr.mxu0 0.0
      %2724 = vmatpush1.msra.mxu0 0.0
      %2725 = vmatprep.subr.mxu0 0.0
      %2726 = vmatpush1.msra.mxu0 0.0
      %2727 = vmatprep.subr.mxu0 0.0
      %2728 = vmatpush1.msra.mxu0 0.0
      %2729 = vmatprep.subr.mxu0 0.0
      %2730 = vmatpush1.msra.mxu0 0.0
      %2731 = vmatprep.subr.mxu0 0.0
      %2732 = vmatpush1.msra.mxu0 %v1595
      %2733 = vmatprep.subr.mxu0 0.0
      %2734 = vmatpush1.msra.mxu0 %v1590
      %2735 = vmatprep.subr.mxu0 0.0
      %2736 = vmatpush2.msra.mxu0 0.0
      %2737 = vmatprep.subr.mxu0 0.0
      %2738 = vmatpush2.msra.mxu0 0.0
      %2739 = vmatprep.subr.mxu0 0.0
      %2740 = vmatpush2.msra.mxu0 0.0
      %2741 = vmatprep.subr.mxu0 0.0
      %2742 = vmatpush2.msra.mxu0 0.0
      %2743 = vmatprep.subr.mxu0 0.0
      %2744 = vmatpush2.msra.mxu0 0.0
      %2745 = vmatprep.subr.mxu0 0.0
      %2746 = vmatpush2.msra.mxu0 0.0
      %2747 = vmatprep.subr.mxu0 0.0
      %2748 = vmatpush2.msra.mxu0 0.0
      %2749 = vmatprep.subr.mxu0 0.0
      %2750 = vmatpush2.msra.mxu0 0.0
      %2751 = vmatprep.subr.mxu0 0.0
      %2752 = vmatpush2.msra.mxu0 0.0
      %2753 = vmatprep.subr.mxu0 0.0
      %2754 = vmatpush2.msra.mxu0 0.0
      %2755 = vmatprep.subr.mxu0 0.0
      %2756 = vmatpush2.msra.mxu0 0.0
      %2757 = vmatprep.subr.mxu0 0.0
      %2758 = vmatpush2.msra.mxu0 0.0
      %2759 = vmatprep.subr.mxu0 0.0
      %2760 = vmatpush2.msra.mxu0 0.0
      %2761 = vmatprep.subr.mxu0 0.0
      %2762 = vmatpush2.msra.mxu0 0.0
      %2763 = vmatprep.subr.mxu0 0.0
      %2764 = vmatpush2.msra.mxu0 0.0
      %2765 = vmatprep.subr.mxu0 0.0
      %2766 = vmatpush2.msra.mxu0 0.0
      %2767 = vmatprep.mubr.f32.mxu0 0.0
      %2768 = vmatmul.mubr.f32.gmra.mxu0 %v2698
      %v2769 = vpop.f32.mrf.mxu0
      %v2770 = vadd.f32 0.0, %v2769
      %v2771 = vpop.f32.mrf.mxu0
      %2772 = vmatprep.mubr.f32.mxu0 0.0
      %2773 = vmatmul.mubr.f32.gmra.mxu0 %v2701
      %v2774 = vpop.f32.mrf.mxu0
      %v2775 = vadd.f32 0.0, %v2774
      %v2776 = vpop.f32.mrf.mxu0
      %2777 = vdwg.mxu0
      %s2778 = scalar_lea.vmem %s9, 16
      %v2779 = vld [vmem:[%s2778] sm:$0xff]
      %v2781 = vsel %vm940, %v2770, 0
      %v2784 = vsel %vm940, %v2775, 0
      %2786 = vmatprep.subr.mxu0 0.0
      %2787 = vmatpush1.msra.mxu0 0.0
      %2788 = vmatprep.subr.mxu0 0.0
      %2789 = vmatpush1.msra.mxu0 0.0
      %2790 = vmatprep.subr.mxu0 0.0
      %2791 = vmatpush1.msra.mxu0 0.0
      %2792 = vmatprep.subr.mxu0 0.0
      %2793 = vmatpush1.msra.mxu0 0.0
      %2794 = vmatprep.subr.mxu0 0.0
      %2795 = vmatpush1.msra.mxu0 0.0
      %2796 = vmatprep.subr.mxu0 0.0
      %2797 = vmatpush1.msra.mxu0 0.0
      %2798 = vmatprep.subr.mxu0 0.0
      %2799 = vmatpush1.msra.mxu0 0.0
      %2800 = vmatprep.subr.mxu0 0.0
      %2801 = vmatpush1.msra.mxu0 0.0
      %2802 = vmatprep.subr.mxu0 0.0
      %2803 = vmatpush1.msra.mxu0 0.0
      %2804 = vmatprep.subr.mxu0 0.0
      %2805 = vmatpush1.msra.mxu0 0.0
      %2806 = vmatprep.subr.mxu0 0.0
      %2807 = vmatpush1.msra.mxu0 0.0
      %2808 = vmatprep.subr.mxu0 0.0
      %2809 = vmatpush1.msra.mxu0 0.0
      %2810 = vmatprep.subr.mxu0 0.0
      %2811 = vmatpush1.msra.mxu0 0.0
      %2812 = vmatprep.subr.mxu0 0.0
      %2813 = vmatpush1.msra.mxu0 0.0
      %2814 = vmatprep.subr.mxu0 0.0
      %2815 = vmatpush1.msra.mxu0 0.0
      %2816 = vmatprep.subr.mxu0 0.0
      %2817 = vmatpush1.msra.mxu0 %v2779
      %2818 = vmatprep.subr.mxu0 0.0
      %2819 = vmatpush2.msra.mxu0 0.0
      %2820 = vmatprep.subr.mxu0 0.0
      %2821 = vmatpush2.msra.mxu0 0.0
      %2822 = vmatprep.subr.mxu0 0.0
      %2823 = vmatpush2.msra.mxu0 0.0
      %2824 = vmatprep.subr.mxu0 0.0
      %2825 = vmatpush2.msra.mxu0 0.0
      %2826 = vmatprep.subr.mxu0 0.0
      %2827 = vmatpush2.msra.mxu0 0.0
      %2828 = vmatprep.subr.mxu0 0.0
      %2829 = vmatpush2.msra.mxu0 0.0
      %2830 = vmatprep.subr.mxu0 0.0
      %2831 = vmatpush2.msra.mxu0 0.0
      %2832 = vmatprep.subr.mxu0 0.0
      %2833 = vmatpush2.msra.mxu0 0.0
      %2834 = vmatprep.subr.mxu0 0.0
      %2835 = vmatpush2.msra.mxu0 0.0
      %2836 = vmatprep.subr.mxu0 0.0
      %2837 = vmatpush2.msra.mxu0 0.0
      %2838 = vmatprep.subr.mxu0 0.0
      %2839 = vmatpush2.msra.mxu0 0.0
      %2840 = vmatprep.subr.mxu0 0.0
      %2841 = vmatpush2.msra.mxu0 0.0
      %2842 = vmatprep.subr.mxu0 0.0
      %2843 = vmatpush2.msra.mxu0 0.0
      %2844 = vmatprep.subr.mxu0 0.0
      %2845 = vmatpush2.msra.mxu0 0.0
      %2846 = vmatprep.subr.mxu0 0.0
      %2847 = vmatpush2.msra.mxu0 0.0
      %2848 = vmatprep.subr.mxu0 0.0
      %2849 = vmatpush2.msra.mxu0 0.0
      %2850 = vmatprep.mubr.f32.mxu0 0.0
      %2851 = vmatmul.mubr.f32.gmra.mxu0 %v2781
      %v2852 = vpop.f32.mrf.mxu0
      %v2853 = vadd.f32 0.0, %v2852
      %v2854 = vpop.f32.mrf.mxu0
      %2855 = vmatprep.mubr.f32.mxu0 0.0
      %2856 = vmatmul.mubr.f32.gmra.mxu0 %v2784
      %v2857 = vpop.f32.mrf.mxu0
      %v2858 = vadd.f32 0.0, %v2857
      %v2859 = vpop.f32.mrf.mxu0
      %2860 = vdwg.mxu0
      %v2861 = vadd.f32 %v2654, %v2853
      %v2862 = vadd.f32 %v2659, %v2858
      %v2863 = vrot.slane %v692, 3
      %s2864 = vtos %v2863
      %v2865 = vstv %s2864
      %v2867 = vmul.f32 %v2865, %v2079
      %v2868 = vmul.f32 %v2865, %v2081
      %v2869 = vadd.f32 %v2867, 0.0
      %v2870 = vadd.f32 %v2868, 0.0
      %2871 = vrot.lane.b32.xlu0 %v2863, 127
      %v2872 = vpop.permute.xlu0 %2871
      %s2873 = vtos %v2872
      %v2874 = vstv %s2873
      %v2876 = vmul.f32 %v2874, %v2140
      %v2877 = vmul.f32 %v2874, %v2142
      %v2878 = vadd.f32 %v2869, %v2876
      %v2879 = vadd.f32 %v2870, %v2877
      %2880 = vrot.lane.b32.xlu0 %v2863, 126
      %v2881 = vpop.permute.xlu0 %2880
      %s2882 = vtos %v2881
      %v2883 = vstv %s2882
      %v2885 = vmul.f32 %v2883, %v2201
      %v2886 = vmul.f32 %v2883, %v2203
      %v2887 = vadd.f32 %v2878, %v2885
      %v2888 = vadd.f32 %v2879, %v2886
      %2889 = vrot.lane.b32.xlu0 %v2863, 125
      %v2890 = vpop.permute.xlu0 %2889
      %s2891 = vtos %v2890
      %v2892 = vstv %s2891
      %v2894 = vmul.f32 %v2892, %v2262
      %v2895 = vmul.f32 %v2892, %v2264
      %v2896 = vadd.f32 %v2887, %v2894
      %v2897 = vadd.f32 %v2888, %v2895
      %v2899 = vsel %vm2059, %v2896, 0
      %v2902 = vsel %vm2059, %v2897, 0
      %2904 = vmatprep.subr.mxu0 0.0
      %2905 = vmatpush1.msra.mxu0 0.0
      %2906 = vmatprep.subr.mxu0 0.0
      %2907 = vmatpush1.msra.mxu0 0.0
      %2908 = vmatprep.subr.mxu0 0.0
      %2909 = vmatpush1.msra.mxu0 0.0
      %2910 = vmatprep.subr.mxu0 0.0
      %2911 = vmatpush1.msra.mxu0 0.0
      %2912 = vmatprep.subr.mxu0 0.0
      %2913 = vmatpush1.msra.mxu0 0.0
      %2914 = vmatprep.subr.mxu0 0.0
      %2915 = vmatpush1.msra.mxu0 0.0
      %2916 = vmatprep.subr.mxu0 0.0
      %2917 = vmatpush1.msra.mxu0 0.0
      %2918 = vmatprep.subr.mxu0 0.0
      %2919 = vmatpush1.msra.mxu0 0.0
      %2920 = vmatprep.subr.mxu0 0.0
      %2921 = vmatpush1.msra.mxu0 0.0
      %2922 = vmatprep.subr.mxu0 0.0
      %2923 = vmatpush1.msra.mxu0 0.0
      %2924 = vmatprep.subr.mxu0 0.0
      %2925 = vmatpush1.msra.mxu0 0.0
      %2926 = vmatprep.subr.mxu0 0.0
      %2927 = vmatpush1.msra.mxu0 0.0
      %2928 = vmatprep.subr.mxu0 0.0
      %2929 = vmatpush1.msra.mxu0 0.0
      %2930 = vmatprep.subr.mxu0 0.0
      %2931 = vmatpush1.msra.mxu0 0.0
      %2932 = vmatprep.subr.mxu0 0.0
      %2933 = vmatpush1.msra.mxu0 %v1925
      %2934 = vmatprep.subr.mxu0 0.0
      %2935 = vmatpush1.msra.mxu0 %v1920
      %2936 = vmatprep.subr.mxu0 0.0
      %2937 = vmatpush2.msra.mxu0 0.0
      %2938 = vmatprep.subr.mxu0 0.0
      %2939 = vmatpush2.msra.mxu0 0.0
      %2940 = vmatprep.subr.mxu0 0.0
      %2941 = vmatpush2.msra.mxu0 0.0
      %2942 = vmatprep.subr.mxu0 0.0
      %2943 = vmatpush2.msra.mxu0 0.0
      %2944 = vmatprep.subr.mxu0 0.0
      %2945 = vmatpush2.msra.mxu0 0.0
      %2946 = vmatprep.subr.mxu0 0.0
      %2947 = vmatpush2.msra.mxu0 0.0
      %2948 = vmatprep.subr.mxu0 0.0
      %2949 = vmatpush2.msra.mxu0 0.0
      %2950 = vmatprep.subr.mxu0 0.0
      %2951 = vmatpush2.msra.mxu0 0.0
      %2952 = vmatprep.subr.mxu0 0.0
      %2953 = vmatpush2.msra.mxu0 0.0
      %2954 = vmatprep.subr.mxu0 0.0
      %2955 = vmatpush2.msra.mxu0 0.0
      %2956 = vmatprep.subr.mxu0 0.0
      %2957 = vmatpush2.msra.mxu0 0.0
      %2958 = vmatprep.subr.mxu0 0.0
      %2959 = vmatpush2.msra.mxu0 0.0
      %2960 = vmatprep.subr.mxu0 0.0
      %2961 = vmatpush2.msra.mxu0 0.0
      %2962 = vmatprep.subr.mxu0 0.0
      %2963 = vmatpush2.msra.mxu0 0.0
      %2964 = vmatprep.subr.mxu0 0.0
      %2965 = vmatpush2.msra.mxu0 0.0
      %2966 = vmatprep.subr.mxu0 0.0
      %2967 = vmatpush2.msra.mxu0 0.0
      %2968 = vmatprep.mubr.f32.mxu0 0.0
      %2969 = vmatmul.mubr.f32.gmra.mxu0 %v2899
      %v2970 = vpop.f32.mrf.mxu0
      %v2971 = vadd.f32 0.0, %v2970
      %v2972 = vpop.f32.mrf.mxu0
      %2973 = vmatprep.mubr.f32.mxu0 0.0
      %2974 = vmatmul.mubr.f32.gmra.mxu0 %v2902
      %v2975 = vpop.f32.mrf.mxu0
      %v2976 = vadd.f32 0.0, %v2975
      %v2977 = vpop.f32.mrf.mxu0
      %2978 = vdwg.mxu0
      %s2979 = scalar_lea.vmem %s9, 24
      %v2980 = vld [vmem:[%s2979] sm:$0xff]
      %v2982 = vsel %vm940, %v2971, 0
      %v2985 = vsel %vm940, %v2976, 0
      %2987 = vmatprep.subr.mxu0 0.0
      %2988 = vmatpush1.msra.mxu0 0.0
      %2989 = vmatprep.subr.mxu0 0.0
      %2990 = vmatpush1.msra.mxu0 0.0
      %2991 = vmatprep.subr.mxu0 0.0
      %2992 = vmatpush1.msra.mxu0 0.0
      %2993 = vmatprep.subr.mxu0 0.0
      %2994 = vmatpush1.msra.mxu0 0.0
      %2995 = vmatprep.subr.mxu0 0.0
      %2996 = vmatpush1.msra.mxu0 0.0
      %2997 = vmatprep.subr.mxu0 0.0
      %2998 = vmatpush1.msra.mxu0 0.0
      %2999 = vmatprep.subr.mxu0 0.0
      %3000 = vmatpush1.msra.mxu0 0.0
      %3001 = vmatprep.subr.mxu0 0.0
      %3002 = vmatpush1.msra.mxu0 0.0
      %3003 = vmatprep.subr.mxu0 0.0
      %3004 = vmatpush1.msra.mxu0 0.0
      %3005 = vmatprep.subr.mxu0 0.0
      %3006 = vmatpush1.msra.mxu0 0.0
      %3007 = vmatprep.subr.mxu0 0.0
      %3008 = vmatpush1.msra.mxu0 0.0
      %3009 = vmatprep.subr.mxu0 0.0
      %3010 = vmatpush1.msra.mxu0 0.0
      %3011 = vmatprep.subr.mxu0 0.0
      %3012 = vmatpush1.msra.mxu0 0.0
      %3013 = vmatprep.subr.mxu0 0.0
      %3014 = vmatpush1.msra.mxu0 0.0
      %3015 = vmatprep.subr.mxu0 0.0
      %3016 = vmatpush1.msra.mxu0 0.0
      %3017 = vmatprep.subr.mxu0 0.0
      %3018 = vmatpush1.msra.mxu0 %v2980
      %3019 = vmatprep.subr.mxu0 0.0
      %3020 = vmatpush2.msra.mxu0 0.0
      %3021 = vmatprep.subr.mxu0 0.0
      %3022 = vmatpush2.msra.mxu0 0.0
      %3023 = vmatprep.subr.mxu0 0.0
      %3024 = vmatpush2.msra.mxu0 0.0
      %3025 = vmatprep.subr.mxu0 0.0
      %3026 = vmatpush2.msra.mxu0 0.0
      %3027 = vmatprep.subr.mxu0 0.0
      %3028 = vmatpush2.msra.mxu0 0.0
      %3029 = vmatprep.subr.mxu0 0.0
      %3030 = vmatpush2.msra.mxu0 0.0
      %3031 = vmatprep.subr.mxu0 0.0
      %3032 = vmatpush2.msra.mxu0 0.0
      %3033 = vmatprep.subr.mxu0 0.0
      %3034 = vmatpush2.msra.mxu0 0.0
      %3035 = vmatprep.subr.mxu0 0.0
      %3036 = vmatpush2.msra.mxu0 0.0
      %3037 = vmatprep.subr.mxu0 0.0
      %3038 = vmatpush2.msra.mxu0 0.0
      %3039 = vmatprep.subr.mxu0 0.0
      %3040 = vmatpush2.msra.mxu0 0.0
      %3041 = vmatprep.subr.mxu0 0.0
      %3042 = vmatpush2.msra.mxu0 0.0
      %3043 = vmatprep.subr.mxu0 0.0
      %3044 = vmatpush2.msra.mxu0 0.0
      %3045 = vmatprep.subr.mxu0 0.0
      %3046 = vmatpush2.msra.mxu0 0.0
      %3047 = vmatprep.subr.mxu0 0.0
      %3048 = vmatpush2.msra.mxu0 0.0
      %3049 = vmatprep.subr.mxu0 0.0
      %3050 = vmatpush2.msra.mxu0 0.0
      %3051 = vmatprep.mubr.f32.mxu0 0.0
      %3052 = vmatmul.mubr.f32.gmra.mxu0 %v2982
      %v3053 = vpop.f32.mrf.mxu0
      %v3054 = vadd.f32 0.0, %v3053
      %v3055 = vpop.f32.mrf.mxu0
      %3056 = vmatprep.mubr.f32.mxu0 0.0
      %3057 = vmatmul.mubr.f32.gmra.mxu0 %v2985
      %v3058 = vpop.f32.mrf.mxu0
      %v3059 = vadd.f32 0.0, %v3058
      %v3060 = vpop.f32.mrf.mxu0
      %3061 = vdwg.mxu0
      %v3062 = vadd.f32 %v2861, %v3054
      %v3063 = vadd.f32 %v2862, %v3059
      %v3064 = vld [vmem:[%s10] sm:$0x1]
      %v3066 = vlaneseq
      %v3067 = vshrl.u32 %v3066, 7
      %v3068 = vsub.s32 0, %v3067
      %v3069 = vrot.slane %v3064, %v3068
      %v3071 = vadd.f32 %v3062, %v3069
      %v3072 = vadd.f32 %v3063, %v3069
      %v3073 = vadd.f32 %v643, %v3071
      %v3074 = vadd.f32 %v644, %v3072
      %v3075 = vld [vmem:[%s13] sm:$0x1]
      %v3076 = vld [vmem:[%s14] sm:$0x1]
      %v3077 = vsel %vm647, %v3073, 0.0
      %3078 = vadd.xlane.f32.xlu0 %v3077
      %v3079 = vpop.xlane.xlu0 %3078
      %v3080 = vsel %vm647, %v3074, 0.0
      %3081 = vadd.xlane.f32.xlu0 %v3080
      %v3082 = vpop.xlane.xlu0 %3081
      %v3083 = vmul.f32 %v3079, %v654
      %v3084 = vmul.f32 %v3082, %v654
      %v3085 = vsub.f32 %v3073, %v3083
      %v3086 = vsub.f32 %v3074, %v3084
      %v3087 = vmul.f32 %v3085, %v3085
      %v3088 = vmul.f32 %v3086, %v3086
      %v3089 = vsel %vm647, %v3087, 0.0
      %3090 = vadd.xlane.f32.xlu0 %v3089
      %v3091 = vpop.xlane.xlu0 %3090
      %v3092 = vsel %vm647, %v3088, 0.0
      %3093 = vadd.xlane.f32.xlu0 %v3092
      %v3094 = vpop.xlane.xlu0 %3093
      %v3095 = vmul.f32 %v3091, %v654
      %v3096 = vmul.f32 %v3094, %v654
      %v3097 = vadd.f32 %v3095, 1e-05
      %v3098 = vadd.f32 %v3096, 1e-05
      %v3099 = vrsqrt.pop %v3097
      %v3100 = vrsqrt.pop %v3098
      %v3101 = vmul.f32 %v3085, %v3099
      %v3102 = vmul.f32 %v3086, %v3100
      %v3104 = vlaneseq
      %v3105 = vshrl.u32 %v3104, 7
      %v3106 = vsub.s32 0, %v3105
      %v3107 = vrot.slane %v3075, %v3106
      %v3109 = vmul.f32 %v3101, %v3107
      %v3110 = vmul.f32 %v3102, %v3107
      %v3112 = vlaneseq
      %v3113 = vshrl.u32 %v3112, 7
      %v3114 = vsub.s32 0, %v3113
      %v3115 = vrot.slane %v3076, %v3114
      %v3117 = vadd.f32 %v3109, %v3115
      %v3118 = vadd.f32 %v3110, %v3115
      %v3119 = vld [vmem:[%s637] sm:$0xff]
      %v3120 = vld [vmem:[%s637 + $0x8] sm:$0xff]
      %v3121 = vlaneseq
      %v3122 = vshrl.u32 %v3121, 7
      %v3123 = vadd.s32 %v3122, 8
      %v3124 = vlaneseq
      %v3125 = vand.u32 %v3124, 127
      %v3126 = vadd.s32 %v3122, 4294967295
      %v3127 = vadd.s32 %v3123, 4294967295
      %vm3128 = vcmp.eq.s32.totalorder %v3125, %v3126
      %vm3129 = vcmp.eq.s32.totalorder %v3125, %v3127
      %v3130 = vsel %vm3128, 1.0, 0.0
      %v3131 = vsel %vm3129, 1.0, 0.0
      %v3132 = vadd.s32 %v3122, 1
      %v3133 = vadd.s32 %v3123, 1
      %vm3134 = vcmp.eq.s32.totalorder %v3125, %v3132
      %vm3135 = vcmp.eq.s32.totalorder %v3125, %v3133
      %v3136 = vsel %vm3134, 1.0, 0.0
      %v3137 = vsel %vm3135, 1.0, 0.0
      %3139 = vset.pattern.permute.xlu0 0
      %3140 = vperm.xlu0 %3139, %v3119
      %v3141 = vpop.permute.xlu0 %3140
      %3144 = vset.pattern.permute.xlu0 0
      %3145 = vperm.xlu0 %3144, %v3120
      %v3146 = vpop.permute.xlu0 %3145
      %v3148 = vmul.f32 %v3117, %v3141
      %v3149 = vmul.f32 %v3118, %v3146
      %v3150 = vld [vmem:[%s16] sm:$0x3]
      %v3152 = vsel %vm2059, %v3130, 0
      %v3155 = vsel %vm2059, %v3131, 0
      %3157 = vmatprep.subr.mxu0 0.0
      %3158 = vmatpush1.msra.mxu0 0.0
      %3159 = vmatprep.subr.mxu0 0.0
      %3160 = vmatpush1.msra.mxu0 0.0
      %3161 = vmatprep.subr.mxu0 0.0
      %3162 = vmatpush1.msra.mxu0 0.0
      %3163 = vmatprep.subr.mxu0 0.0
      %3164 = vmatpush1.msra.mxu0 0.0
      %3165 = vmatprep.subr.mxu0 0.0
      %3166 = vmatpush1.msra.mxu0 0.0
      %3167 = vmatprep.subr.mxu0 0.0
      %3168 = vmatpush1.msra.mxu0 0.0
      %3169 = vmatprep.subr.mxu0 0.0
      %3170 = vmatpush1.msra.mxu0 0.0
      %3171 = vmatprep.subr.mxu0 0.0
      %3172 = vmatpush1.msra.mxu0 0.0
      %3173 = vmatprep.subr.mxu0 0.0
      %3174 = vmatpush1.msra.mxu0 0.0
      %3175 = vmatprep.subr.mxu0 0.0
      %3176 = vmatpush1.msra.mxu0 0.0
      %3177 = vmatprep.subr.mxu0 0.0
      %3178 = vmatpush1.msra.mxu0 0.0
      %3179 = vmatprep.subr.mxu0 0.0
      %3180 = vmatpush1.msra.mxu0 0.0
      %3181 = vmatprep.subr.mxu0 0.0
      %3182 = vmatpush1.msra.mxu0 0.0
      %3183 = vmatprep.subr.mxu0 0.0
      %3184 = vmatpush1.msra.mxu0 0.0
      %3185 = vmatprep.subr.mxu0 0.0
      %3186 = vmatpush1.msra.mxu0 %v3149
      %3187 = vmatprep.subr.mxu0 0.0
      %3188 = vmatpush1.msra.mxu0 %v3148
      %3189 = vmatprep.subr.mxu0 0.0
      %3190 = vmatpush2.msra.mxu0 0.0
      %3191 = vmatprep.subr.mxu0 0.0
      %3192 = vmatpush2.msra.mxu0 0.0
      %3193 = vmatprep.subr.mxu0 0.0
      %3194 = vmatpush2.msra.mxu0 0.0
      %3195 = vmatprep.subr.mxu0 0.0
      %3196 = vmatpush2.msra.mxu0 0.0
      %3197 = vmatprep.subr.mxu0 0.0
      %3198 = vmatpush2.msra.mxu0 0.0
      %3199 = vmatprep.subr.mxu0 0.0
      %3200 = vmatpush2.msra.mxu0 0.0
      %3201 = vmatprep.subr.mxu0 0.0
      %3202 = vmatpush2.msra.mxu0 0.0
      %3203 = vmatprep.subr.mxu0 0.0
      %3204 = vmatpush2.msra.mxu0 0.0
      %3205 = vmatprep.subr.mxu0 0.0
      %3206 = vmatpush2.msra.mxu0 0.0
      %3207 = vmatprep.subr.mxu0 0.0
      %3208 = vmatpush2.msra.mxu0 0.0
      %3209 = vmatprep.subr.mxu0 0.0
      %3210 = vmatpush2.msra.mxu0 0.0
      %3211 = vmatprep.subr.mxu0 0.0
      %3212 = vmatpush2.msra.mxu0 0.0
      %3213 = vmatprep.subr.mxu0 0.0
      %3214 = vmatpush2.msra.mxu0 0.0
      %3215 = vmatprep.subr.mxu0 0.0
      %3216 = vmatpush2.msra.mxu0 0.0
      %3217 = vmatprep.subr.mxu0 0.0
      %3218 = vmatpush2.msra.mxu0 0.0
      %3219 = vmatprep.subr.mxu0 0.0
      %3220 = vmatpush2.msra.mxu0 0.0
      %3221 = vmatprep.mubr.f32.mxu0 0.0
      %3222 = vmatmul.mubr.f32.gmra.mxu0 %v3152
      %v3223 = vpop.f32.mrf.mxu0
      %v3224 = vadd.f32 0.0, %v3223
      %v3225 = vpop.f32.mrf.mxu0
      %3226 = vmatprep.mubr.f32.mxu0 0.0
      %3227 = vmatmul.mubr.f32.gmra.mxu0 %v3155
      %v3228 = vpop.f32.mrf.mxu0
      %v3229 = vadd.f32 0.0, %v3228
      %v3230 = vpop.f32.mrf.mxu0
      %3231 = vdwg.mxu0
      %v3232 = vld [vmem:[%s15] sm:$0xff]
      %v3233 = vld [vmem:[%s15 + $0x8] sm:$0xff]
      %v3234 = vld [vmem:[%s15 + $0x10] sm:$0xff]
      %v3235 = vld [vmem:[%s15 + $0x18] sm:$0xff]
      %v3236 = vld [vmem:[%s15 + $0x20] sm:$0xff]
      %v3237 = vld [vmem:[%s15 + $0x28] sm:$0xff]
      %v3238 = vld [vmem:[%s15 + $0x30] sm:$0xff]
      %v3239 = vld [vmem:[%s15 + $0x38] sm:$0xff]
      %s3240 = scalar_lea.vmem %s15, 64
      %v3241 = vld [vmem:[%s3240] sm:$0xff]
      %v3242 = vld [vmem:[%s3240 + $0x8] sm:$0xff]
      %v3243 = vld [vmem:[%s3240 + $0x10] sm:$0xff]
      %v3244 = vld [vmem:[%s3240 + $0x18] sm:$0xff]
      %v3245 = vld [vmem:[%s3240 + $0x20] sm:$0xff]
      %v3246 = vld [vmem:[%s3240 + $0x28] sm:$0xff]
      %v3247 = vld [vmem:[%s3240 + $0x30] sm:$0xff]
      %v3248 = vld [vmem:[%s3240 + $0x38] sm:$0xff]
      %v3250 = vsel %vm647, %v3148, 0
      %v3253 = vsel %vm647, %v3149, 0
      %3255 = vmatprep.subr.mxu0 0.0
      %3256 = vmatpush1.msra.mxu0 0.0
      %3257 = vmatprep.subr.mxu0 0.0
      %3258 = vmatpush1.msra.mxu0 0.0
      %3259 = vmatprep.subr.mxu0 0.0
      %3260 = vmatpush1.msra.mxu0 0.0
      %3261 = vmatprep.subr.mxu0 0.0
      %3262 = vmatpush1.msra.mxu0 0.0
      %3263 = vmatprep.subr.mxu0 0.0
      %3264 = vmatpush1.msra.mxu0 0.0
      %3265 = vmatprep.subr.mxu0 0.0
      %3266 = vmatpush1.msra.mxu0 0.0
      %3267 = vmatprep.subr.mxu0 0.0
      %3268 = vmatpush1.msra.mxu0 0.0
      %3269 = vmatprep.subr.mxu0 0.0
      %3270 = vmatpush1.msra.mxu0 0.0
      %3271 = vmatprep.subr.mxu0 0.0
      %3272 = vmatpush1.msra.mxu0 0.0
      %3273 = vmatprep.subr.mxu0 0.0
      %3274 = vmatpush1.msra.mxu0 0.0
      %3275 = vmatprep.subr.mxu0 0.0
      %3276 = vmatpush1.msra.mxu0 0.0
      %3277 = vmatprep.subr.mxu0 0.0
      %3278 = vmatpush1.msra.mxu0 0.0
      %3279 = vmatprep.subr.mxu0 %v3248
      %3280 = vmatpush1.msra.mxu0 %v3247
      %3281 = vmatprep.subr.mxu0 %v3246
      %3282 = vmatpush1.msra.mxu0 %v3245
      %3283 = vmatprep.subr.mxu0 %v3244
      %3284 = vmatpush1.msra.mxu0 %v3243
      %3285 = vmatprep.subr.mxu0 %v3242
      %3286 = vmatpush1.msra.mxu0 %v3241
      %3287 = vmatprep.subr.mxu0 0.0
      %3288 = vmatpush2.msra.mxu0 0.0
      %3289 = vmatprep.subr.mxu0 0.0
      %3290 = vmatpush2.msra.mxu0 0.0
      %3291 = vmatprep.subr.mxu0 0.0
      %3292 = vmatpush2.msra.mxu0 0.0
      %3293 = vmatprep.subr.mxu0 0.0
      %3294 = vmatpush2.msra.mxu0 0.0
      %3295 = vmatprep.subr.mxu0 0.0
      %3296 = vmatpush2.msra.mxu0 0.0
      %3297 = vmatprep.subr.mxu0 0.0
      %3298 = vmatpush2.msra.mxu0 0.0
      %3299 = vmatprep.subr.mxu0 0.0
      %3300 = vmatpush2.msra.mxu0 0.0
      %3301 = vmatprep.subr.mxu0 0.0
      %3302 = vmatpush2.msra.mxu0 0.0
      %3303 = vmatprep.subr.mxu0 0.0
      %3304 = vmatpush2.msra.mxu0 0.0
      %3305 = vmatprep.subr.mxu0 0.0
      %3306 = vmatpush2.msra.mxu0 0.0
      %3307 = vmatprep.subr.mxu0 0.0
      %3308 = vmatpush2.msra.mxu0 0.0
      %3309 = vmatprep.subr.mxu0 0.0
      %3310 = vmatpush2.msra.mxu0 0.0
      %3311 = vmatprep.subr.mxu0 0.0
      %3312 = vmatpush2.msra.mxu0 0.0
      %3313 = vmatprep.subr.mxu0 0.0
      %3314 = vmatpush2.msra.mxu0 0.0
      %3315 = vmatprep.subr.mxu0 0.0
      %3316 = vmatpush2.msra.mxu0 0.0
      %3317 = vmatprep.subr.mxu0 0.0
      %3318 = vmatpush2.msra.mxu0 0.0
      %3319 = vmatprep.mubr.f32.mxu0 0.0
      %3320 = vmatmul.mubr.f32.gmra.mxu0 %v3250
      %v3321 = vpop.f32.mrf.mxu0
      %v3322 = vadd.f32 0.0, %v3321
      %v3323 = vpop.f32.mrf.mxu0
      %v3324 = vadd.f32 0.0, %v3323
      %3325 = vmatprep.mubr.f32.mxu0 0.0
      %3326 = vmatmul.mubr.f32.gmra.mxu0 %v3253
      %v3327 = vpop.f32.mrf.mxu0
      %v3328 = vadd.f32 0.0, %v3327
      %v3329 = vpop.f32.mrf.mxu0
      %v3330 = vadd.f32 0.0, %v3329
      %3331 = vdwg.mxu0
      %v3333 = vsel %vm647, %v3224, 0
      %v3336 = vsel %vm647, %v3229, 0
      %3338 = vmatprep.subr.mxu0 0.0
      %3339 = vmatpush1.msra.mxu0 0.0
      %3340 = vmatprep.subr.mxu0 0.0
      %3341 = vmatpush1.msra.mxu0 0.0
      %3342 = vmatprep.subr.mxu0 0.0
      %3343 = vmatpush1.msra.mxu0 0.0
      %3344 = vmatprep.subr.mxu0 0.0
      %3345 = vmatpush1.msra.mxu0 0.0
      %3346 = vmatprep.subr.mxu0 0.0
      %3347 = vmatpush1.msra.mxu0 0.0
      %3348 = vmatprep.subr.mxu0 0.0
      %3349 = vmatpush1.msra.mxu0 0.0
      %3350 = vmatprep.subr.mxu0 0.0
      %3351 = vmatpush1.msra.mxu0 0.0
      %3352 = vmatprep.subr.mxu0 0.0
      %3353 = vmatpush1.msra.mxu0 0.0
      %3354 = vmatprep.subr.mxu0 0.0
      %3355 = vmatpush1.msra.mxu0 0.0
      %3356 = vmatprep.subr.mxu0 0.0
      %3357 = vmatpush1.msra.mxu0 0.0
      %3358 = vmatprep.subr.mxu0 0.0
      %3359 = vmatpush1.msra.mxu0 0.0
      %3360 = vmatprep.subr.mxu0 0.0
      %3361 = vmatpush1.msra.mxu0 0.0
      %3362 = vmatprep.subr.mxu0 %v3239
      %3363 = vmatpush1.msra.mxu0 %v3238
      %3364 = vmatprep.subr.mxu0 %v3237
      %3365 = vmatpush1.msra.mxu0 %v3236
      %3366 = vmatprep.subr.mxu0 %v3235
      %3367 = vmatpush1.msra.mxu0 %v3234
      %3368 = vmatprep.subr.mxu0 %v3233
      %3369 = vmatpush1.msra.mxu0 %v3232
      %3370 = vmatprep.subr.mxu0 0.0
      %3371 = vmatpush2.msra.mxu0 0.0
      %3372 = vmatprep.subr.mxu0 0.0
      %3373 = vmatpush2.msra.mxu0 0.0
      %3374 = vmatprep.subr.mxu0 0.0
      %3375 = vmatpush2.msra.mxu0 0.0
      %3376 = vmatprep.subr.mxu0 0.0
      %3377 = vmatpush2.msra.mxu0 0.0
      %3378 = vmatprep.subr.mxu0 0.0
      %3379 = vmatpush2.msra.mxu0 0.0
      %3380 = vmatprep.subr.mxu0 0.0
      %3381 = vmatpush2.msra.mxu0 0.0
      %3382 = vmatprep.subr.mxu0 0.0
      %3383 = vmatpush2.msra.mxu0 0.0
      %3384 = vmatprep.subr.mxu0 0.0
      %3385 = vmatpush2.msra.mxu0 0.0
      %3386 = vmatprep.subr.mxu0 0.0
      %3387 = vmatpush2.msra.mxu0 0.0
      %3388 = vmatprep.subr.mxu0 0.0
      %3389 = vmatpush2.msra.mxu0 0.0
      %3390 = vmatprep.subr.mxu0 0.0
      %3391 = vmatpush2.msra.mxu0 0.0
      %3392 = vmatprep.subr.mxu0 0.0
      %3393 = vmatpush2.msra.mxu0 0.0
      %3394 = vmatprep.subr.mxu0 0.0
      %3395 = vmatpush2.msra.mxu0 0.0
      %3396 = vmatprep.subr.mxu0 0.0
      %3397 = vmatpush2.msra.mxu0 0.0
      %3398 = vmatprep.subr.mxu0 0.0
      %3399 = vmatpush2.msra.mxu0 0.0
      %3400 = vmatprep.subr.mxu0 0.0
      %3401 = vmatpush2.msra.mxu0 0.0
      %3402 = vmatprep.mubr.f32.mxu0 0.0
      %3403 = vmatmul.mubr.f32.gmra.mxu0 %v3333
      %v3404 = vpop.f32.mrf.mxu0
      %v3405 = vadd.f32 %v3322, %v3404
      %v3406 = vpop.f32.mrf.mxu0
      %v3407 = vadd.f32 %v3324, %v3406
      %3408 = vmatprep.mubr.f32.mxu0 0.0
      %3409 = vmatmul.mubr.f32.gmra.mxu0 %v3336
      %v3410 = vpop.f32.mrf.mxu0
      %v3411 = vadd.f32 %v3328, %v3410
      %v3412 = vpop.f32.mrf.mxu0
      %v3413 = vadd.f32 %v3330, %v3412
      %3414 = vdwg.mxu0
      %v3416 = vsel %vm2059, %v3136, 0
      %v3419 = vsel %vm2059, %v3137, 0
      %3421 = vmatprep.subr.mxu0 0.0
      %3422 = vmatpush1.msra.mxu0 0.0
      %3423 = vmatprep.subr.mxu0 0.0
      %3424 = vmatpush1.msra.mxu0 0.0
      %3425 = vmatprep.subr.mxu0 0.0
      %3426 = vmatpush1.msra.mxu0 0.0
      %3427 = vmatprep.subr.mxu0 0.0
      %3428 = vmatpush1.msra.mxu0 0.0
      %3429 = vmatprep.subr.mxu0 0.0
      %3430 = vmatpush1.msra.mxu0 0.0
      %3431 = vmatprep.subr.mxu0 0.0
      %3432 = vmatpush1.msra.mxu0 0.0
      %3433 = vmatprep.subr.mxu0 0.0
      %3434 = vmatpush1.msra.mxu0 0.0
      %3435 = vmatprep.subr.mxu0 0.0
      %3436 = vmatpush1.msra.mxu0 0.0
      %3437 = vmatprep.subr.mxu0 0.0
      %3438 = vmatpush1.msra.mxu0 0.0
      %3439 = vmatprep.subr.mxu0 0.0
      %3440 = vmatpush1.msra.mxu0 0.0
      %3441 = vmatprep.subr.mxu0 0.0
      %3442 = vmatpush1.msra.mxu0 0.0
      %3443 = vmatprep.subr.mxu0 0.0
      %3444 = vmatpush1.msra.mxu0 0.0
      %3445 = vmatprep.subr.mxu0 0.0
      %3446 = vmatpush1.msra.mxu0 0.0
      %3447 = vmatprep.subr.mxu0 0.0
      %3448 = vmatpush1.msra.mxu0 0.0
      %3449 = vmatprep.subr.mxu0 0.0
      %3450 = vmatpush1.msra.mxu0 %v3149
      %3451 = vmatprep.subr.mxu0 0.0
      %3452 = vmatpush1.msra.mxu0 %v3148
      %3453 = vmatprep.subr.mxu0 0.0
      %3454 = vmatpush2.msra.mxu0 0.0
      %3455 = vmatprep.subr.mxu0 0.0
      %3456 = vmatpush2.msra.mxu0 0.0
      %3457 = vmatprep.subr.mxu0 0.0
      %3458 = vmatpush2.msra.mxu0 0.0
      %3459 = vmatprep.subr.mxu0 0.0
      %3460 = vmatpush2.msra.mxu0 0.0
      %3461 = vmatprep.subr.mxu0 0.0
      %3462 = vmatpush2.msra.mxu0 0.0
      %3463 = vmatprep.subr.mxu0 0.0
      %3464 = vmatpush2.msra.mxu0 0.0
      %3465 = vmatprep.subr.mxu0 0.0
      %3466 = vmatpush2.msra.mxu0 0.0
      %3467 = vmatprep.subr.mxu0 0.0
      %3468 = vmatpush2.msra.mxu0 0.0
      %3469 = vmatprep.subr.mxu0 0.0
      %3470 = vmatpush2.msra.mxu0 0.0
      %3471 = vmatprep.subr.mxu0 0.0
      %3472 = vmatpush2.msra.mxu0 0.0
      %3473 = vmatprep.subr.mxu0 0.0
      %3474 = vmatpush2.msra.mxu0 0.0
      %3475 = vmatprep.subr.mxu0 0.0
      %3476 = vmatpush2.msra.mxu0 0.0
      %3477 = vmatprep.subr.mxu0 0.0
      %3478 = vmatpush2.msra.mxu0 0.0
      %3479 = vmatprep.subr.mxu0 0.0
      %3480 = vmatpush2.msra.mxu0 0.0
      %3481 = vmatprep.subr.mxu0 0.0
      %3482 = vmatpush2.msra.mxu0 0.0
      %3483 = vmatprep.subr.mxu0 0.0
      %3484 = vmatpush2.msra.mxu0 0.0
      %3485 = vmatprep.mubr.f32.mxu0 0.0
      %3486 = vmatmul.mubr.f32.gmra.mxu0 %v3416
      %v3487 = vpop.f32.mrf.mxu0
      %v3488 = vadd.f32 0.0, %v3487
      %v3489 = vpop.f32.mrf.mxu0
      %3490 = vmatprep.mubr.f32.mxu0 0.0
      %3491 = vmatmul.mubr.f32.gmra.mxu0 %v3419
      %v3492 = vpop.f32.mrf.mxu0
      %v3493 = vadd.f32 0.0, %v3492
      %v3494 = vpop.f32.mrf.mxu0
      %3495 = vdwg.mxu0
      %s3496 = scalar_lea.vmem %s15, 128
      %v3497 = vld [vmem:[%s3496] sm:$0xff]
      %v3498 = vld [vmem:[%s3496 + $0x8] sm:$0xff]
      %v3499 = vld [vmem:[%s3496 + $0x10] sm:$0xff]
      %v3500 = vld [vmem:[%s3496 + $0x18] sm:$0xff]
      %v3501 = vld [vmem:[%s3496 + $0x20] sm:$0xff]
      %v3502 = vld [vmem:[%s3496 + $0x28] sm:$0xff]
      %v3503 = vld [vmem:[%s3496 + $0x30] sm:$0xff]
      %v3504 = vld [vmem:[%s3496 + $0x38] sm:$0xff]
      %v3506 = vsel %vm647, %v3488, 0
      %v3509 = vsel %vm647, %v3493, 0
      %3511 = vmatprep.subr.mxu0 0.0
      %3512 = vmatpush1.msra.mxu0 0.0
      %3513 = vmatprep.subr.mxu0 0.0
      %3514 = vmatpush1.msra.mxu0 0.0
      %3515 = vmatprep.subr.mxu0 0.0
      %3516 = vmatpush1.msra.mxu0 0.0
      %3517 = vmatprep.subr.mxu0 0.0
      %3518 = vmatpush1.msra.mxu0 0.0
      %3519 = vmatprep.subr.mxu0 0.0
      %3520 = vmatpush1.msra.mxu0 0.0
      %3521 = vmatprep.subr.mxu0 0.0
      %3522 = vmatpush1.msra.mxu0 0.0
      %3523 = vmatprep.subr.mxu0 0.0
      %3524 = vmatpush1.msra.mxu0 0.0
      %3525 = vmatprep.subr.mxu0 0.0
      %3526 = vmatpush1.msra.mxu0 0.0
      %3527 = vmatprep.subr.mxu0 0.0
      %3528 = vmatpush1.msra.mxu0 0.0
      %3529 = vmatprep.subr.mxu0 0.0
      %3530 = vmatpush1.msra.mxu0 0.0
      %3531 = vmatprep.subr.mxu0 0.0
      %3532 = vmatpush1.msra.mxu0 0.0
      %3533 = vmatprep.subr.mxu0 0.0
      %3534 = vmatpush1.msra.mxu0 0.0
      %3535 = vmatprep.subr.mxu0 %v3504
      %3536 = vmatpush1.msra.mxu0 %v3503
      %3537 = vmatprep.subr.mxu0 %v3502
      %3538 = vmatpush1.msra.mxu0 %v3501
      %3539 = vmatprep.subr.mxu0 %v3500
      %3540 = vmatpush1.msra.mxu0 %v3499
      %3541 = vmatprep.subr.mxu0 %v3498
      %3542 = vmatpush1.msra.mxu0 %v3497
      %3543 = vmatprep.subr.mxu0 0.0
      %3544 = vmatpush2.msra.mxu0 0.0
      %3545 = vmatprep.subr.mxu0 0.0
      %3546 = vmatpush2.msra.mxu0 0.0
      %3547 = vmatprep.subr.mxu0 0.0
      %3548 = vmatpush2.msra.mxu0 0.0
      %3549 = vmatprep.subr.mxu0 0.0
      %3550 = vmatpush2.msra.mxu0 0.0
      %3551 = vmatprep.subr.mxu0 0.0
      %3552 = vmatpush2.msra.mxu0 0.0
      %3553 = vmatprep.subr.mxu0 0.0
      %3554 = vmatpush2.msra.mxu0 0.0
      %3555 = vmatprep.subr.mxu0 0.0
      %3556 = vmatpush2.msra.mxu0 0.0
      %3557 = vmatprep.subr.mxu0 0.0
      %3558 = vmatpush2.msra.mxu0 0.0
      %3559 = vmatprep.subr.mxu0 0.0
      %3560 = vmatpush2.msra.mxu0 0.0
      %3561 = vmatprep.subr.mxu0 0.0
      %3562 = vmatpush2.msra.mxu0 0.0
      %3563 = vmatprep.subr.mxu0 0.0
      %3564 = vmatpush2.msra.mxu0 0.0
      %3565 = vmatprep.subr.mxu0 0.0
      %3566 = vmatpush2.msra.mxu0 0.0
      %3567 = vmatprep.subr.mxu0 0.0
      %3568 = vmatpush2.msra.mxu0 0.0
      %3569 = vmatprep.subr.mxu0 0.0
      %3570 = vmatpush2.msra.mxu0 0.0
      %3571 = vmatprep.subr.mxu0 0.0
      %3572 = vmatpush2.msra.mxu0 0.0
      %3573 = vmatprep.subr.mxu0 0.0
      %3574 = vmatpush2.msra.mxu0 0.0
      %3575 = vmatprep.mubr.f32.mxu0 0.0
      %3576 = vmatmul.mubr.f32.gmra.mxu0 %v3506
      %v3577 = vpop.f32.mrf.mxu0
      %v3578 = vadd.f32 0.0, %v3577
      %v3579 = vpop.f32.mrf.mxu0
      %v3580 = vadd.f32 0.0, %v3579
      %3581 = vmatprep.mubr.f32.mxu0 0.0
      %3582 = vmatmul.mubr.f32.gmra.mxu0 %v3509
      %v3583 = vpop.f32.mrf.mxu0
      %v3584 = vadd.f32 0.0, %v3583
      %v3585 = vpop.f32.mrf.mxu0
      %v3586 = vadd.f32 0.0, %v3585
      %3587 = vdwg.mxu0
      %v3588 = vadd.f32 %v3405, %v3578
      %v3589 = vadd.f32 %v3407, %v3580
      %v3590 = vadd.f32 %v3411, %v3584
      %v3591 = vadd.f32 %v3413, %v3586
      %v3593 = vlaneseq
      %v3594 = vshrl.u32 %v3593, 7
      %v3595 = vsub.s32 0, %v3594
      %v3596 = vrot.slane %v3150, %v3595
      %v3597 = vlaneseq
      %v3598 = vshrl.u32 %v3597, 7
      %v3599 = vsub.s32 1, %v3598
      %v3600 = vrot.slane %v3150, %v3599
      %v3603 = vadd.f32 %v3588, %v3596
      %v3604 = vadd.f32 %v3589, %v3600
      %v3605 = vadd.f32 %v3590, %v3596
      %v3606 = vadd.f32 %v3591, %v3600
      %v3607 = vsub.f32 0.0, %v3603
      %v3608 = vsub.f32 0.0, %v3605
      %v3609 = vmul.f32 %v3607, 1.442695
      %v3610 = vpow.pop %v3609
      %v3611 = vmul.f32 %v3608, 1.442695
      %v3612 = vpow.pop %v3611
      %v3613 = vadd.f32 %v3610, 1.0
      %v3614 = vadd.f32 %v3612, 1.0
      %v3615 = vrcp.pop %v3613
      %v3616 = vmul.f32 1.0, %v3615
      %v3617 = vrcp.pop %v3614
      %v3618 = vmul.f32 1.0, %v3617
      %v3619 = vmul.f32 %v3603, %v3616
      %v3620 = vmul.f32 %v3605, %v3618
      %v3621 = vmul.f32 %v3619, %v3604
      %v3622 = vmul.f32 %v3620, %v3606
      %v3623 = vmul.f32 %v3621, %v3141
      %v3624 = vmul.f32 %v3622, %v3146
      %v3625 = vld [vmem:[%s18] sm:$0x1]
      %3626 = vmatprep.subr.mxu0 0.0
      %3627 = vmatpush1.msra.mxu0 0.0
      %3628 = vmatprep.subr.mxu0 0.0
      %3629 = vmatpush1.msra.mxu0 0.0
      %3630 = vmatprep.subr.mxu0 0.0
      %3631 = vmatpush1.msra.mxu0 0.0
      %3632 = vmatprep.subr.mxu0 0.0
      %3633 = vmatpush1.msra.mxu0 0.0
      %3634 = vmatprep.subr.mxu0 0.0
      %3635 = vmatpush1.msra.mxu0 0.0
      %3636 = vmatprep.subr.mxu0 0.0
      %3637 = vmatpush1.msra.mxu0 0.0
      %3638 = vmatprep.subr.mxu0 0.0
      %3639 = vmatpush1.msra.mxu0 0.0
      %3640 = vmatprep.subr.mxu0 0.0
      %3641 = vmatpush1.msra.mxu0 0.0
      %3642 = vmatprep.subr.mxu0 0.0
      %3643 = vmatpush1.msra.mxu0 0.0
      %3644 = vmatprep.subr.mxu0 0.0
      %3645 = vmatpush1.msra.mxu0 0.0
      %3646 = vmatprep.subr.mxu0 0.0
      %3647 = vmatpush1.msra.mxu0 0.0
      %3648 = vmatprep.subr.mxu0 0.0
      %3649 = vmatpush1.msra.mxu0 0.0
      %3650 = vmatprep.subr.mxu0 0.0
      %3651 = vmatpush1.msra.mxu0 0.0
      %3652 = vmatprep.subr.mxu0 0.0
      %3653 = vmatpush1.msra.mxu0 0.0
      %3654 = vmatprep.subr.mxu0 0.0
      %3655 = vmatpush1.msra.mxu0 %v3624
      %3656 = vmatprep.subr.mxu0 0.0
      %3657 = vmatpush1.msra.mxu0 %v3623
      %3658 = vmatprep.subr.mxu0 0.0
      %3659 = vmatpush2.msra.mxu0 0.0
      %3660 = vmatprep.subr.mxu0 0.0
      %3661 = vmatpush2.msra.mxu0 0.0
      %3662 = vmatprep.subr.mxu0 0.0
      %3663 = vmatpush2.msra.mxu0 0.0
      %3664 = vmatprep.subr.mxu0 0.0
      %3665 = vmatpush2.msra.mxu0 0.0
      %3666 = vmatprep.subr.mxu0 0.0
      %3667 = vmatpush2.msra.mxu0 0.0
      %3668 = vmatprep.subr.mxu0 0.0
      %3669 = vmatpush2.msra.mxu0 0.0
      %3670 = vmatprep.subr.mxu0 0.0
      %3671 = vmatpush2.msra.mxu0 0.0
      %3672 = vmatprep.subr.mxu0 0.0
      %3673 = vmatpush2.msra.mxu0 0.0
      %3674 = vmatprep.subr.mxu0 0.0
      %3675 = vmatpush2.msra.mxu0 0.0
      %3676 = vmatprep.subr.mxu0 0.0
      %3677 = vmatpush2.msra.mxu0 0.0
      %3678 = vmatprep.subr.mxu0 0.0
      %3679 = vmatpush2.msra.mxu0 0.0
      %3680 = vmatprep.subr.mxu0 0.0
      %3681 = vmatpush2.msra.mxu0 0.0
      %3682 = vmatprep.subr.mxu0 0.0
      %3683 = vmatpush2.msra.mxu0 0.0
      %3684 = vmatprep.subr.mxu0 0.0
      %3685 = vmatpush2.msra.mxu0 0.0
      %3686 = vmatprep.subr.mxu0 0.0
      %3687 = vmatpush2.msra.mxu0 0.0
      %3688 = vmatprep.subr.mxu0 0.0
      %3689 = vmatpush2.msra.mxu0 0.0
      %3690 = vmatprep.mubr.f32.mxu0 0.0
      %3691 = vmatmul.mubr.f32.gmra.mxu0 %v3152
      %v3692 = vpop.f32.mrf.mxu0
      %v3693 = vadd.f32 0.0, %v3692
      %v3694 = vpop.f32.mrf.mxu0
      %3695 = vmatprep.mubr.f32.mxu0 0.0
      %3696 = vmatmul.mubr.f32.gmra.mxu0 %v3155
      %v3697 = vpop.f32.mrf.mxu0
      %v3698 = vadd.f32 0.0, %v3697
      %v3699 = vpop.f32.mrf.mxu0
      %3700 = vdwg.mxu0
      %v3701 = vld [vmem:[%s17] sm:$0xff]
      %v3702 = vld [vmem:[%s17 + $0x8] sm:$0xff]
      %v3703 = vld [vmem:[%s17 + $0x10] sm:$0xff]
      %v3704 = vld [vmem:[%s17 + $0x18] sm:$0xff]
      %v3705 = vld [vmem:[%s17 + $0x20] sm:$0xff]
      %v3706 = vld [vmem:[%s17 + $0x28] sm:$0xff]
      %v3707 = vld [vmem:[%s17 + $0x30] sm:$0xff]
      %v3708 = vld [vmem:[%s17 + $0x38] sm:$0xff]
      %v3709 = vld [vmem:[%s17 + $0x40] sm:$0xff]
      %v3710 = vld [vmem:[%s17 + $0x48] sm:$0xff]
      %v3711 = vld [vmem:[%s17 + $0x50] sm:$0xff]
      %v3712 = vld [vmem:[%s17 + $0x58] sm:$0xff]
      %v3713 = vld [vmem:[%s17 + $0x60] sm:$0xff]
      %v3714 = vld [vmem:[%s17 + $0x68] sm:$0xff]
      %v3715 = vld [vmem:[%s17 + $0x70] sm:$0xff]
      %v3716 = vld [vmem:[%s17 + $0x78] sm:$0xff]
      %s3717 = scalar_lea.vmem %s17, 128
      %v3718 = vld [vmem:[%s3717] sm:$0xff]
      %v3719 = vld [vmem:[%s3717 + $0x8] sm:$0xff]
      %v3720 = vld [vmem:[%s3717 + $0x10] sm:$0xff]
      %v3721 = vld [vmem:[%s3717 + $0x18] sm:$0xff]
      %v3722 = vld [vmem:[%s3717 + $0x20] sm:$0xff]
      %v3723 = vld [vmem:[%s3717 + $0x28] sm:$0xff]
      %v3724 = vld [vmem:[%s3717 + $0x30] sm:$0xff]
      %v3725 = vld [vmem:[%s3717 + $0x38] sm:$0xff]
      %v3726 = vld [vmem:[%s3717 + $0x40] sm:$0xff]
      %v3727 = vld [vmem:[%s3717 + $0x48] sm:$0xff]
      %v3728 = vld [vmem:[%s3717 + $0x50] sm:$0xff]
      %v3729 = vld [vmem:[%s3717 + $0x58] sm:$0xff]
      %v3730 = vld [vmem:[%s3717 + $0x60] sm:$0xff]
      %v3731 = vld [vmem:[%s3717 + $0x68] sm:$0xff]
      %v3732 = vld [vmem:[%s3717 + $0x70] sm:$0xff]
      %v3733 = vld [vmem:[%s3717 + $0x78] sm:$0xff]
      %3734 = vmatprep.subr.mxu0 0.0
      %3735 = vmatpush1.msra.mxu0 %v3733
      %3736 = vmatprep.subr.mxu0 0.0
      %3737 = vmatpush1.msra.mxu0 %v3732
      %3738 = vmatprep.subr.mxu0 0.0
      %3739 = vmatpush1.msra.mxu0 %v3731
      %3740 = vmatprep.subr.mxu0 0.0
      %3741 = vmatpush1.msra.mxu0 %v3730
      %3742 = vmatprep.subr.mxu0 0.0
      %3743 = vmatpush1.msra.mxu0 %v3729
      %3744 = vmatprep.subr.mxu0 0.0
      %3745 = vmatpush1.msra.mxu0 %v3728
      %3746 = vmatprep.subr.mxu0 0.0
      %3747 = vmatpush1.msra.mxu0 %v3727
      %3748 = vmatprep.subr.mxu0 0.0
      %3749 = vmatpush1.msra.mxu0 %v3726
      %3750 = vmatprep.subr.mxu0 0.0
      %3751 = vmatpush1.msra.mxu0 %v3725
      %3752 = vmatprep.subr.mxu0 0.0
      %3753 = vmatpush1.msra.mxu0 %v3724
      %3754 = vmatprep.subr.mxu0 0.0
      %3755 = vmatpush1.msra.mxu0 %v3723
      %3756 = vmatprep.subr.mxu0 0.0
      %3757 = vmatpush1.msra.mxu0 %v3722
      %3758 = vmatprep.subr.mxu0 0.0
      %3759 = vmatpush1.msra.mxu0 %v3721
      %3760 = vmatprep.subr.mxu0 0.0
      %3761 = vmatpush1.msra.mxu0 %v3720
      %3762 = vmatprep.subr.mxu0 0.0
      %3763 = vmatpush1.msra.mxu0 %v3719
      %3764 = vmatprep.subr.mxu0 0.0
      %3765 = vmatpush1.msra.mxu0 %v3718
      %3766 = vmatprep.subr.mxu0 0.0
      %3767 = vmatpush2.msra.mxu0 0.0
      %3768 = vmatprep.subr.mxu0 0.0
      %3769 = vmatpush2.msra.mxu0 0.0
      %3770 = vmatprep.subr.mxu0 0.0
      %3771 = vmatpush2.msra.mxu0 0.0
      %3772 = vmatprep.subr.mxu0 0.0
      %3773 = vmatpush2.msra.mxu0 0.0
      %3774 = vmatprep.subr.mxu0 0.0
      %3775 = vmatpush2.msra.mxu0 0.0
      %3776 = vmatprep.subr.mxu0 0.0
      %3777 = vmatpush2.msra.mxu0 0.0
      %3778 = vmatprep.subr.mxu0 0.0
      %3779 = vmatpush2.msra.mxu0 0.0
      %3780 = vmatprep.subr.mxu0 0.0
      %3781 = vmatpush2.msra.mxu0 0.0
      %3782 = vmatprep.subr.mxu0 0.0
      %3783 = vmatpush2.msra.mxu0 0.0
      %3784 = vmatprep.subr.mxu0 0.0
      %3785 = vmatpush2.msra.mxu0 0.0
      %3786 = vmatprep.subr.mxu0 0.0
      %3787 = vmatpush2.msra.mxu0 0.0
      %3788 = vmatprep.subr.mxu0 0.0
      %3789 = vmatpush2.msra.mxu0 0.0
      %3790 = vmatprep.subr.mxu0 0.0
      %3791 = vmatpush2.msra.mxu0 0.0
      %3792 = vmatprep.subr.mxu0 0.0
      %3793 = vmatpush2.msra.mxu0 0.0
      %3794 = vmatprep.subr.mxu0 0.0
      %3795 = vmatpush2.msra.mxu0 0.0
      %3796 = vmatprep.subr.mxu0 0.0
      %3797 = vmatpush2.msra.mxu0 0.0
      %3798 = vmatprep.mubr.f32.mxu0 0.0
      %3799 = vmatmul.mubr.f32.gmra.mxu0 %v3623
      %v3800 = vpop.f32.mrf.mxu0
      %v3801 = vadd.f32 0.0, %v3800
      %v3802 = vpop.f32.mrf.mxu0
      %3803 = vmatprep.mubr.f32.mxu0 0.0
      %3804 = vmatmul.mubr.f32.gmra.mxu0 %v3624
      %v3805 = vpop.f32.mrf.mxu0
      %v3806 = vadd.f32 0.0, %v3805
      %v3807 = vpop.f32.mrf.mxu0
      %3808 = vdwg.mxu0
      %3809 = vmatprep.subr.mxu0 0.0
      %3810 = vmatpush1.msra.mxu0 %v3716
      %3811 = vmatprep.subr.mxu0 0.0
      %3812 = vmatpush1.msra.mxu0 %v3715
      %3813 = vmatprep.subr.mxu0 0.0
      %3814 = vmatpush1.msra.mxu0 %v3714
      %3815 = vmatprep.subr.mxu0 0.0
      %3816 = vmatpush1.msra.mxu0 %v3713
      %3817 = vmatprep.subr.mxu0 0.0
      %3818 = vmatpush1.msra.mxu0 %v3712
      %3819 = vmatprep.subr.mxu0 0.0
      %3820 = vmatpush1.msra.mxu0 %v3711
      %3821 = vmatprep.subr.mxu0 0.0
      %3822 = vmatpush1.msra.mxu0 %v3710
      %3823 = vmatprep.subr.mxu0 0.0
      %3824 = vmatpush1.msra.mxu0 %v3709
      %3825 = vmatprep.subr.mxu0 0.0
      %3826 = vmatpush1.msra.mxu0 %v3708
      %3827 = vmatprep.subr.mxu0 0.0
      %3828 = vmatpush1.msra.mxu0 %v3707
      %3829 = vmatprep.subr.mxu0 0.0
      %3830 = vmatpush1.msra.mxu0 %v3706
      %3831 = vmatprep.subr.mxu0 0.0
      %3832 = vmatpush1.msra.mxu0 %v3705
      %3833 = vmatprep.subr.mxu0 0.0
      %3834 = vmatpush1.msra.mxu0 %v3704
      %3835 = vmatprep.subr.mxu0 0.0
      %3836 = vmatpush1.msra.mxu0 %v3703
      %3837 = vmatprep.subr.mxu0 0.0
      %3838 = vmatpush1.msra.mxu0 %v3702
      %3839 = vmatprep.subr.mxu0 0.0
      %3840 = vmatpush1.msra.mxu0 %v3701
      %3841 = vmatprep.subr.mxu0 0.0
      %3842 = vmatpush2.msra.mxu0 0.0
      %3843 = vmatprep.subr.mxu0 0.0
      %3844 = vmatpush2.msra.mxu0 0.0
      %3845 = vmatprep.subr.mxu0 0.0
      %3846 = vmatpush2.msra.mxu0 0.0
      %3847 = vmatprep.subr.mxu0 0.0
      %3848 = vmatpush2.msra.mxu0 0.0
      %3849 = vmatprep.subr.mxu0 0.0
      %3850 = vmatpush2.msra.mxu0 0.0
      %3851 = vmatprep.subr.mxu0 0.0
      %3852 = vmatpush2.msra.mxu0 0.0
      %3853 = vmatprep.subr.mxu0 0.0
      %3854 = vmatpush2.msra.mxu0 0.0
      %3855 = vmatprep.subr.mxu0 0.0
      %3856 = vmatpush2.msra.mxu0 0.0
      %3857 = vmatprep.subr.mxu0 0.0
      %3858 = vmatpush2.msra.mxu0 0.0
      %3859 = vmatprep.subr.mxu0 0.0
      %3860 = vmatpush2.msra.mxu0 0.0
      %3861 = vmatprep.subr.mxu0 0.0
      %3862 = vmatpush2.msra.mxu0 0.0
      %3863 = vmatprep.subr.mxu0 0.0
      %3864 = vmatpush2.msra.mxu0 0.0
      %3865 = vmatprep.subr.mxu0 0.0
      %3866 = vmatpush2.msra.mxu0 0.0
      %3867 = vmatprep.subr.mxu0 0.0
      %3868 = vmatpush2.msra.mxu0 0.0
      %3869 = vmatprep.subr.mxu0 0.0
      %3870 = vmatpush2.msra.mxu0 0.0
      %3871 = vmatprep.subr.mxu0 0.0
      %3872 = vmatpush2.msra.mxu0 0.0
      %3873 = vmatprep.mubr.f32.mxu0 0.0
      %3874 = vmatmul.mubr.f32.gmra.mxu0 %v3693
      %v3875 = vpop.f32.mrf.mxu0
      %v3876 = vadd.f32 %v3801, %v3875
      %v3877 = vpop.f32.mrf.mxu0
      %3878 = vmatprep.mubr.f32.mxu0 0.0
      %3879 = vmatmul.mubr.f32.gmra.mxu0 %v3698
      %v3880 = vpop.f32.mrf.mxu0
      %v3881 = vadd.f32 %v3806, %v3880
      %v3882 = vpop.f32.mrf.mxu0
      %3883 = vdwg.mxu0
      %3884 = vmatprep.subr.mxu0 0.0
      %3885 = vmatpush1.msra.mxu0 0.0
      %3886 = vmatprep.subr.mxu0 0.0
      %3887 = vmatpush1.msra.mxu0 0.0
      %3888 = vmatprep.subr.mxu0 0.0
      %3889 = vmatpush1.msra.mxu0 0.0
      %3890 = vmatprep.subr.mxu0 0.0
      %3891 = vmatpush1.msra.mxu0 0.0
      %3892 = vmatprep.subr.mxu0 0.0
      %3893 = vmatpush1.msra.mxu0 0.0
      %3894 = vmatprep.subr.mxu0 0.0
      %3895 = vmatpush1.msra.mxu0 0.0
      %3896 = vmatprep.subr.mxu0 0.0
      %3897 = vmatpush1.msra.mxu0 0.0
      %3898 = vmatprep.subr.mxu0 0.0
      %3899 = vmatpush1.msra.mxu0 0.0
      %3900 = vmatprep.subr.mxu0 0.0
      %3901 = vmatpush1.msra.mxu0 0.0
      %3902 = vmatprep.subr.mxu0 0.0
      %3903 = vmatpush1.msra.mxu0 0.0
      %3904 = vmatprep.subr.mxu0 0.0
      %3905 = vmatpush1.msra.mxu0 0.0
      %3906 = vmatprep.subr.mxu0 0.0
      %3907 = vmatpush1.msra.mxu0 0.0
      %3908 = vmatprep.subr.mxu0 0.0
      %3909 = vmatpush1.msra.mxu0 0.0
      %3910 = vmatprep.subr.mxu0 0.0
      %3911 = vmatpush1.msra.mxu0 0.0
      %3912 = vmatprep.subr.mxu0 0.0
      %3913 = vmatpush1.msra.mxu0 %v3624
      %3914 = vmatprep.subr.mxu0 0.0
      %3915 = vmatpush1.msra.mxu0 %v3623
      %3916 = vmatprep.subr.mxu0 0.0
      %3917 = vmatpush2.msra.mxu0 0.0
      %3918 = vmatprep.subr.mxu0 0.0
      %3919 = vmatpush2.msra.mxu0 0.0
      %3920 = vmatprep.subr.mxu0 0.0
      %3921 = vmatpush2.msra.mxu0 0.0
      %3922 = vmatprep.subr.mxu0 0.0
      %3923 = vmatpush2.msra.mxu0 0.0
      %3924 = vmatprep.subr.mxu0 0.0
      %3925 = vmatpush2.msra.mxu0 0.0
      %3926 = vmatprep.subr.mxu0 0.0
      %3927 = vmatpush2.msra.mxu0 0.0
      %3928 = vmatprep.subr.mxu0 0.0
      %3929 = vmatpush2.msra.mxu0 0.0
      %3930 = vmatprep.subr.mxu0 0.0
      %3931 = vmatpush2.msra.mxu0 0.0
      %3932 = vmatprep.subr.mxu0 0.0
      %3933 = vmatpush2.msra.mxu0 0.0
      %3934 = vmatprep.subr.mxu0 0.0
      %3935 = vmatpush2.msra.mxu0 0.0
      %3936 = vmatprep.subr.mxu0 0.0
      %3937 = vmatpush2.msra.mxu0 0.0
      %3938 = vmatprep.subr.mxu0 0.0
      %3939 = vmatpush2.msra.mxu0 0.0
      %3940 = vmatprep.subr.mxu0 0.0
      %3941 = vmatpush2.msra.mxu0 0.0
      %3942 = vmatprep.subr.mxu0 0.0
      %3943 = vmatpush2.msra.mxu0 0.0
      %3944 = vmatprep.subr.mxu0 0.0
      %3945 = vmatpush2.msra.mxu0 0.0
      %3946 = vmatprep.subr.mxu0 0.0
      %3947 = vmatpush2.msra.mxu0 0.0
      %3948 = vmatprep.mubr.f32.mxu0 0.0
      %3949 = vmatmul.mubr.f32.gmra.mxu0 %v3416
      %v3950 = vpop.f32.mrf.mxu0
      %v3951 = vadd.f32 0.0, %v3950
      %v3952 = vpop.f32.mrf.mxu0
      %3953 = vmatprep.mubr.f32.mxu0 0.0
      %3954 = vmatmul.mubr.f32.gmra.mxu0 %v3419
      %v3955 = vpop.f32.mrf.mxu0
      %v3956 = vadd.f32 0.0, %v3955
      %v3957 = vpop.f32.mrf.mxu0
      %3958 = vdwg.mxu0
      %s3959 = scalar_lea.vmem %s17, 256
      %v3960 = vld [vmem:[%s3959] sm:$0xff]
      %v3961 = vld [vmem:[%s3959 + $0x8] sm:$0xff]
      %v3962 = vld [vmem:[%s3959 + $0x10] sm:$0xff]
      %v3963 = vld [vmem:[%s3959 + $0x18] sm:$0xff]
      %v3964 = vld [vmem:[%s3959 + $0x20] sm:$0xff]
      %v3965 = vld [vmem:[%s3959 + $0x28] sm:$0xff]
      %v3966 = vld [vmem:[%s3959 + $0x30] sm:$0xff]
      %v3967 = vld [vmem:[%s3959 + $0x38] sm:$0xff]
      %v3968 = vld [vmem:[%s3959 + $0x40] sm:$0xff]
      %v3969 = vld [vmem:[%s3959 + $0x48] sm:$0xff]
      %v3970 = vld [vmem:[%s3959 + $0x50] sm:$0xff]
      %v3971 = vld [vmem:[%s3959 + $0x58] sm:$0xff]
      %v3972 = vld [vmem:[%s3959 + $0x60] sm:$0xff]
      %v3973 = vld [vmem:[%s3959 + $0x68] sm:$0xff]
      %v3974 = vld [vmem:[%s3959 + $0x70] sm:$0xff]
      %v3975 = vld [vmem:[%s3959 + $0x78] sm:$0xff]
      %3976 = vmatprep.subr.mxu0 0.0
      %3977 = vmatpush1.msra.mxu0 %v3975
      %3978 = vmatprep.subr.mxu0 0.0
      %3979 = vmatpush1.msra.mxu0 %v3974
      %3980 = vmatprep.subr.mxu0 0.0
      %3981 = vmatpush1.msra.mxu0 %v3973
      %3982 = vmatprep.subr.mxu0 0.0
      %3983 = vmatpush1.msra.mxu0 %v3972
      %3984 = vmatprep.subr.mxu0 0.0
      %3985 = vmatpush1.msra.mxu0 %v3971
      %3986 = vmatprep.subr.mxu0 0.0
      %3987 = vmatpush1.msra.mxu0 %v3970
      %3988 = vmatprep.subr.mxu0 0.0
      %3989 = vmatpush1.msra.mxu0 %v3969
      %3990 = vmatprep.subr.mxu0 0.0
      %3991 = vmatpush1.msra.mxu0 %v3968
      %3992 = vmatprep.subr.mxu0 0.0
      %3993 = vmatpush1.msra.mxu0 %v3967
      %3994 = vmatprep.subr.mxu0 0.0
      %3995 = vmatpush1.msra.mxu0 %v3966
      %3996 = vmatprep.subr.mxu0 0.0
      %3997 = vmatpush1.msra.mxu0 %v3965
      %3998 = vmatprep.subr.mxu0 0.0
      %3999 = vmatpush1.msra.mxu0 %v3964
      %4000 = vmatprep.subr.mxu0 0.0
      %4001 = vmatpush1.msra.mxu0 %v3963
      %4002 = vmatprep.subr.mxu0 0.0
      %4003 = vmatpush1.msra.mxu0 %v3962
      %4004 = vmatprep.subr.mxu0 0.0
      %4005 = vmatpush1.msra.mxu0 %v3961
      %4006 = vmatprep.subr.mxu0 0.0
      %4007 = vmatpush1.msra.mxu0 %v3960
      %4008 = vmatprep.subr.mxu0 0.0
      %4009 = vmatpush2.msra.mxu0 0.0
      %4010 = vmatprep.subr.mxu0 0.0
      %4011 = vmatpush2.msra.mxu0 0.0
      %4012 = vmatprep.subr.mxu0 0.0
      %4013 = vmatpush2.msra.mxu0 0.0
      %4014 = vmatprep.subr.mxu0 0.0
      %4015 = vmatpush2.msra.mxu0 0.0
      %4016 = vmatprep.subr.mxu0 0.0
      %4017 = vmatpush2.msra.mxu0 0.0
      %4018 = vmatprep.subr.mxu0 0.0
      %4019 = vmatpush2.msra.mxu0 0.0
      %4020 = vmatprep.subr.mxu0 0.0
      %4021 = vmatpush2.msra.mxu0 0.0
      %4022 = vmatprep.subr.mxu0 0.0
      %4023 = vmatpush2.msra.mxu0 0.0
      %4024 = vmatprep.subr.mxu0 0.0
      %4025 = vmatpush2.msra.mxu0 0.0
      %4026 = vmatprep.subr.mxu0 0.0
      %4027 = vmatpush2.msra.mxu0 0.0
      %4028 = vmatprep.subr.mxu0 0.0
      %4029 = vmatpush2.msra.mxu0 0.0
      %4030 = vmatprep.subr.mxu0 0.0
      %4031 = vmatpush2.msra.mxu0 0.0
      %4032 = vmatprep.subr.mxu0 0.0
      %4033 = vmatpush2.msra.mxu0 0.0
      %4034 = vmatprep.subr.mxu0 0.0
      %4035 = vmatpush2.msra.mxu0 0.0
      %4036 = vmatprep.subr.mxu0 0.0
      %4037 = vmatpush2.msra.mxu0 0.0
      %4038 = vmatprep.subr.mxu0 0.0
      %4039 = vmatpush2.msra.mxu0 0.0
      %4040 = vmatprep.mubr.f32.mxu0 0.0
      %4041 = vmatmul.mubr.f32.gmra.mxu0 %v3951
      %v4042 = vpop.f32.mrf.mxu0
      %v4043 = vadd.f32 0.0, %v4042
      %v4044 = vpop.f32.mrf.mxu0
      %4045 = vmatprep.mubr.f32.mxu0 0.0
      %4046 = vmatmul.mubr.f32.gmra.mxu0 %v3956
      %v4047 = vpop.f32.mrf.mxu0
      %v4048 = vadd.f32 0.0, %v4047
      %v4049 = vpop.f32.mrf.mxu0
      %4050 = vdwg.mxu0
      %v4051 = vadd.f32 %v3876, %v4043
      %v4052 = vadd.f32 %v3881, %v4048
      %v4054 = vlaneseq
      %v4055 = vshrl.u32 %v4054, 7
      %v4056 = vsub.s32 0, %v4055
      %v4057 = vrot.slane %v3625, %v4056
      %v4059 = vadd.f32 %v4051, %v4057
      %v4060 = vadd.f32 %v4052, %v4057
      %v4061 = vadd.f32 %v3073, %v4059
      %v4062 = vadd.f32 %v3074, %v4060
      %4063 = vst.msk [vmem:[%s642] sm:$0xff] %vm647, %v4061
      %4064 = vst.msk [vmem:[%s642 + $0x8] sm:$0xff] %vm647, %v4062
      %p4065 = scmp.lt.s32.totalorder %s30, 1
      %s4066 = scalar_select %p4065, %s30, 1
      %s4067 = smul.addr %s4066, 2
      %s4068 = smul.addr %s4067, 8
      %s4069 = scalar_lea.vmem %s19, %s4068
      // Predicated region
      $region97: #{transformer_encoder_forward.2} parent=95 // pred_check
        %p4070 = pneg %p462
      $region98: #{transformer_encoder_forward.2} parent=95 // pred_check_branch
        %4072 = sbr.rel (%p4070) target = $region100
      $region99: #{transformer_encoder_forward.2} parent=95 // pred_region
        _
      $region100: #{transformer_encoder_forward.2} parent=95 // pred_fallthru
        _
    $region96: #{transformer_encoder_forward.2} parent=5 // pred_fallthru
      _
    %p4073 = scmp.le.s32.totalorder 2, %s25
    // Predicated region
    $region101: #{transformer_encoder_forward.2} parent=5 // pred_check
      %p4074 = pneg %p4073
    $region102: #{transformer_encoder_forward.2} parent=5 // pred_check_branch
      %4076 = sbr.rel (%p4074) target = $region104
    $region103: #{transformer_encoder_forward.2} parent=5 // pred_region
      %s4077 = ssub.s32 %s25, 2
      // Predicated region
      $region105: #{transformer_encoder_forward.2} parent=103 // pred_check
        %p4078 = pneg %p468
      $region106: #{transformer_encoder_forward.2} parent=103 // pred_check_branch
        %4080 = sbr.rel (%p4078) target = $region108
      $region107: #{transformer_encoder_forward.2} parent=103 // pred_region
        %p4081 = scmp.lt.s32.totalorder %s31, 1
        %s4082 = scalar_select %p4081, %s31, 1
        %s4083 = smul.addr %s4082, 2
        %s4084 = smul.addr %s4083, 8
        %s4085 = scalar_lea.vmem %s19, %s4084
      $region108: #{transformer_encoder_forward.2} parent=103 // pred_fallthru
        _
    $region104: #{transformer_encoder_forward.2} parent=5 // pred_fallthru
      _
  $region6: #{transformer_encoder_forward.2} parent=0 // loop_footer
    %s29 = sadd.s32 1, %s25
  $region7: #{transformer_encoder_forward.2} parent=0 // loop_footer_branch
    %24 = sbr.rel target = $region3
  $region8: #{transformer_encoder_forward.2} parent=0 // loop_exit
    _

</llo_original>
